<compile_context>
chip_gen: v6e
topology: v6e:2x2x1
jax: 0.10.0
libtpu: 0.0.40
codegen_flags: <defaults>
</compile_context>

<pallas_src>
import math

import numpy as np
import jax
import jax.numpy as jnp
from jax.experimental import pallas as pl
from jax.experimental.pallas import tpu as pltpu

EPS = 1e-5

PARAM_ORDER = [
    "pool", "expand", "cols",
    "A1", "A2", "B1", "B2",
    "W3a", "W3b",
    "fc3w", "fc3b",
    "w3p", "w5p", "w7p",
    "P3", "safull", "P5", "P7", "Pf",
    "Wc",
]


def make_mmpn_kernel(H, W, tn, b, c_parts, n_classes, cr_rows, d1_rows, col_idx):
    C = c_parts * b
    HW = H * W
    LANES = tn * HW
    inv_parts = 1.0 / c_parts

    def kernel(x_ref, pool_ref, expand_ref, cols_ref,
               A1_ref, A2_ref, B1_ref, B2_ref,
               W3a_ref, W3b_ref, fc3w_ref, fc3b_ref,
               w3p_ref, w5p_ref, w7p_ref,
               P3_ref, safull_ref, P5_ref, P7_ref, Pf_ref,
               Wc_ref, out_ref):
        f32 = jnp.float32

        def col(name, nrows):
            i = col_idx[name]
            return cols_ref[0:nrows, i:i + 1]

        def sigmoid(z):
            # reciprocal on the (otherwise idle) EUP slot
            return pl.reciprocal(1.0 + jnp.exp(-z), approx=True)

        def dwconv(t, planes_ref, k):
            # depthwise KxK conv as k^2 lane-rolled multiply-adds; boundary
            # handling is pre-fused into the per-tap weight planes (zeros at
            # out-of-image taps), so wrap-around across samples contributes 0.
            p = (k - 1) // 2
            acc = None
            for u in range(k):
                for v in range(k):
                    d = (u - p) * W + (v - p)
                    src = t if d == 0 else pltpu.roll(t, shift=(-d) % LANES, axis=1)
                    term = src * planes_ref[u * k + v]
                    acc = term if acc is None else acc + term
            return acc

        x = x_ref[...]                                              # (C, TN*HW)

        # ---- avg_pool: per-sample mean over H*W + BatchNorm3d(1) ----
        v = jnp.dot(x, pool_ref[...], preferred_element_type=f32)   # (C, TN)
        v = v * col("bn0s", 1) + col("bn0t", 1)

        # ---- fc1: Linear+BN+ReLU+Linear+BN+Sigmoid (per-sample columns) ----
        h1 = jnp.maximum(jnp.dot(A1_ref[...], v, preferred_element_type=f32)
                         + col("c1", cr_rows), 0.0)
        v1 = sigmoid(jnp.dot(A2_ref[...], h1, preferred_element_type=f32)
                     + col("c2", C))

        # ---- fc2: same, block-diagonalised over partitions ----
        h2 = jnp.maximum(jnp.dot(B1_ref[...], v, preferred_element_type=f32)
                         + col("d1", d1_rows), 0.0)
        v2 = sigmoid(jnp.dot(B2_ref[...], h2, preferred_element_type=f32)
                     + col("d2", C))

        vs = v + v1 + v2                                            # (C, TN)
        xs = x * jnp.dot(vs, expand_ref[...], preferred_element_type=f32)

        # ---- conv3d: two (k,1,1) Conv3d mixing partitions (+ BN, ReLU) ----
        p1 = jnp.maximum(jnp.dot(W3a_ref[...], xs, preferred_element_type=f32)
                         + col("e3a", C), 0.0)
        p2 = jnp.maximum(jnp.dot(W3b_ref[...], p1, preferred_element_type=f32)
                         + col("e3b", C), 0.0)

        # ---- fc3: grouped 1x1 conv (groups == channels) => scale+bias, ReLU ----
        fc3 = jnp.maximum(fc3w_ref[...] * p2 + fc3b_ref[...], 0.0)  # (C, TN*HW)

        ci = xs + fc3                                               # conv_inputs

        # ---- conv_branch (entry BN2d folded into w3 planes / safull) ----
        t = dwconv(ci, w3p_ref, 3)
        t = jnp.maximum(jnp.dot(P3_ref[...], t, preferred_element_type=f32)
                        + safull_ref[...], 0.0)
        t = dwconv(t, w5p_ref, 5)
        t = jnp.maximum(jnp.dot(P5_ref[...], t, preferred_element_type=f32)
                        + col("sb", C), 0.0)
        t = dwconv(t, w7p_ref, 7)
        t = jnp.dot(P7_ref[...], t, preferred_element_type=f32) + col("sc", C)

        co = jnp.maximum(t + ci, 0.0)                               # residual + ReLU
        co = jnp.maximum(jnp.dot(Pf_ref[...], co, preferred_element_type=f32)
                         + col("tf", C), 0.0)                       # conv_final

        y = fc3 + co

        # ---- end_pool (mean over H*W) + averaged per-partition classifiers ----
        o = jnp.dot(y, pool_ref[...], preferred_element_type=f32)   # (C, TN)
        pred = (jnp.dot(Wc_ref[...], o, preferred_element_type=f32)
                + col("bc", n_classes))                             # (n_classes, TN)
        out_ref[...] = pred * inv_parts

    return kernel


def _valid_mask7(H, W):
    """mask[(du+3)*7+(dv+3), i*W+j] = 1 iff (i+du, j+dv) lies inside the image."""
    m = np.zeros((49, H * W), np.float32)
    for du in range(-3, 4):
        for dv in range(-3, 4):
            row = (du + 3) * 7 + (dv + 3)
            for i in range(H):
                for j in range(W):
                    if 0 <= i + du < H and 0 <= j + dv < W:
                        m[row, i * W + j] = 1.0
    return m


def lower_params(p, *, tn, H, W, b, c_parts, n_classes):
    """Lower logical parameters to the kernel's packed, lane-folded layout."""
    C = c_parts * b
    HW = H * W
    mask7 = _valid_mask7(H, W)
    band = np.arange(C) % b                          # channel -> band index

    def taps(w, k, scale=None):                      # (b,k,k) -> (C, k*k)
        cols_ = w[band].reshape(C, k * k).astype(np.float32)
        if scale is not None:
            cols_ = cols_ * scale[:, None]
        return cols_

    def tap_planes(w, k, scale=None):
        # (b,k,k) depthwise taps -> (k*k, C, tn*HW) planes with the boundary
        # mask fused in (single VPU multiply-add per tap in the kernel).
        cols_ = taps(w, k, scale)
        pp = (k - 1) // 2
        planes = np.zeros((k * k, C, HW), np.float32)
        for u in range(k):
            for v in range(k):
                mrow = (u - pp + 3) * 7 + (v - pp + 3)
                planes[u * k + v] = (cols_[:, u * k + v:u * k + v + 1]
                                     * mask7[mrow][None, :])
        return np.tile(planes, (1, 1, tn))           # lane = sample*HW + spatial

    w3p = tap_planes(p["w3"], 3, scale=p["bnin_scale"])   # entry BN2d scale folded
    w5p = tap_planes(p["w5"], 5)
    w7p = tap_planes(p["w7"], 7)

    # entry BN2d shift folded through the raw 3x3 taps and P3 into an additive term
    rows3 = [(du + 3) * 7 + (dv + 3) for du in (-1, 0, 1) for dv in (-1, 0, 1)]
    k3 = taps(p["w3"], 3) @ mask7[rows3]             # (C, HW)
    safull = p["P3"] @ (p["bnin_shift"][:, None] * k3) + p["sa"][:, None]

    # per-sample mean / broadcast over the lane-folded batch
    pool = np.kron(np.eye(tn, dtype=np.float32),
                   np.full((HW, 1), 1.0 / HW, np.float32))           # (tn*HW, tn)
    expand = np.kron(np.eye(tn, dtype=np.float32),
                     np.ones((1, HW), np.float32))                   # (tn, tn*HW)

    def tile_lanes(a):                               # (R, HW) -> (R, tn*HW)
        return np.tile(np.asarray(a, np.float32), (1, tn))

    # pack the small per-channel bias/scale columns into one operand
    names = ["c1", "c2", "d1", "d2", "e3a", "e3b", "sb", "sc", "tf", "bc",
             "bn0s", "bn0t"]
    col_idx = {n: i for i, n in enumerate(names)}
    nrow = max(C, n_classes)
    cols = np.zeros((nrow, len(names)), np.float32)

    def put(name, vec):
        v = np.asarray(vec, np.float32).reshape(-1)
        cols[:v.shape[0], col_idx[name]] = v

    for nm in ["c1", "c2", "d1", "d2", "e3a", "e3b", "sb", "sc", "tf", "bc"]:
        put(nm, p[nm])
    cols[:, col_idx["bn0s"]] = p["bn0"][0]
    cols[:, col_idx["bn0t"]] = p["bn0"][1]

    lowered = {
        "pool": pool, "expand": expand, "cols": cols,
        "A1": p["A1"], "A2": p["A2"], "B1": p["B1"], "B2": p["B2"],
        "W3a": p["W3a"], "W3b": p["W3b"],
        "fc3w": tile_lanes(p["fc3w"]), "fc3b": tile_lanes(p["fc3b"]),
        "w3p": w3p, "w5p": w5p, "w7p": w7p,
        "P3": p["P3"], "safull": tile_lanes(safull),
        "P5": p["P5"], "P7": p["P7"], "Pf": p["Pf"],
        "Wc": p["Wc"],
    }
    plist = [jnp.asarray(lowered[k], jnp.float32) for k in PARAM_ORDER]
    return plist, col_idx


def _pick_tn(N, HW):
    """Batch tile per grid step: lane-dense (tn*HW % 128 == 0), large enough to
    amortize per-step overhead, small enough to keep nb>=2 (v7x 2 TCs) and to
    bound the O(tn^2*HW) pool/expand matrices."""
    base = 128 // math.gcd(HW, 128)
    cap = max(base, min(32, -(-N // 2)))
    tn = base
    while tn * 2 <= cap:
        tn *= 2
    return tn


def _const_spec(shape):
    nd = len(shape)
    return pl.BlockSpec(tuple(shape), lambda i: (0,) * nd)


def mmpn_forward_folded(x2, n_valid, params, *, n_classes, C, H, W, b, c_parts, tn):
    """x2: activations already in folded (C, n_pad*HW) layout (lane = sample*HW+p)."""
    HW = H * W
    lanes = tn * HW
    total = x2.shape[1]
    assert total % lanes == 0
    nb = total // lanes

    plist, col_idx = lower_params(params, tn=tn, H=H, W=W, b=b,
                                  c_parts=c_parts, n_classes=n_classes)
    kernel = make_mmpn_kernel(
        H=H, W=W, tn=tn, b=b, c_parts=c_parts, n_classes=n_classes,
        cr_rows=int(params["A1"].shape[0]), d1_rows=int(params["B1"].shape[0]),
        col_idx=col_idx)

    in_specs = [pl.BlockSpec((C, lanes), lambda i: (0, i))]
    in_specs += [_const_spec(pa.shape) for pa in plist]
    out_spec = pl.BlockSpec((None, n_classes, tn), lambda i: (i, 0, 0))

    # explicit VMEM budget: constant operands conservatively counted double-
    # buffered; floor 32 MiB (v5e default scoped is 16), cap 64 MiB (v7x).
    param_bytes = sum(int(np.prod(pa.shape)) * 4 for pa in plist)
    act_bytes = C * lanes * 4
    vmem_limit = int(min(max(2 * param_bytes + 16 * act_bytes + (16 << 20),
                             32 << 20), 64 << 20))

    out = pl.pallas_call(
        kernel,
        out_shape=jax.ShapeDtypeStruct((nb, n_classes, tn), jnp.float32),
        grid=(nb,),
        in_specs=in_specs,
        out_specs=out_spec,
        compiler_params=pltpu.CompilerParams(
            dimension_semantics=("parallel",),
            vmem_limit_bytes=vmem_limit),
    )(x2, *plist)

    # (nb, n_classes, tn) -> (n_pad, n_classes) -> (n_valid, n_classes)
    out = jnp.transpose(out, (0, 2, 1)).reshape(nb * tn, n_classes)
    return out[:n_valid]


def mmpn_forward(x, params, *, n_classes, C, H, W, b, c_parts, tn=None):
    """x: (N, 1, C, H, W) (module layout). Folds batch into lanes, runs kernel."""
    N = x.shape[0]
    HW = H * W
    if tn is None:
        tn = _pick_tn(N, HW)
    nb = -(-N // tn)
    n_pad = nb * tn

    x3 = jnp.asarray(x, jnp.float32).reshape(N, C, HW)
    if n_pad != N:
        x3 = jnp.concatenate(
            [x3, jnp.zeros((n_pad - N, C, HW), jnp.float32)], axis=0)
    # NOTE(perf): this one-time layout fold is an extra HBM pass over the
    # activations; producers that can emit (C, N*HW) directly should call
    # mmpn_forward_folded and skip it.
    x2 = jnp.transpose(x3, (1, 0, 2)).reshape(C, n_pad * HW)
    return mmpn_forward_folded(x2, N, params, n_classes=n_classes, C=C, H=H,
                               W=W, b=b, c_parts=c_parts, tn=tn)


def build_params(key, *, n_classes, C, H, W, b, ratio):
    """Random inference-mode parameters, pre-lowered to dense/folded form."""
    c_parts = C // b
    HW = H * W
    Cr = C // ratio
    br = b // ratio

    keys = iter(jax.random.split(key, 128))

    def nxt(shape, scale=0.1):
        return np.asarray(
            scale * jax.random.normal(next(keys), shape, jnp.float32),
            dtype=np.float32)

    def bn_affine(n):
        # inference-mode BatchNorm (running_mean=0, running_var=1) -> scale/shift
        gamma = (1.0 + nxt((n,), 0.1)).astype(np.float32)
        beta = nxt((n,), 0.1)
        scale = (gamma / np.sqrt(1.0 + EPS)).astype(np.float32)
        return scale, beta.astype(np.float32)

    params = {}

    # avg_pool BatchNorm3d(1)
    s0, t0 = bn_affine(1)
    params["bn0"] = np.array([s0[0], t0[0]], np.float32)

    # fc1 (two Linear+BN folded)
    W1a, b1a = nxt((Cr, C)), nxt((Cr,))
    s, t = bn_affine(Cr)
    params["A1"] = (s[:, None] * W1a).astype(np.float32)
    params["c1"] = (s * b1a + t).astype(np.float32)
    W1b, b1b = nxt((C, Cr)), nxt((C,))
    s, t = bn_affine(C)
    params["A2"] = (s[:, None] * W1b).astype(np.float32)
    params["c2"] = (s * b1b + t).astype(np.float32)

    # fc2 folded, then block-diagonalised over c_parts
    W2a, b2a = nxt((br, b)), nxt((br,))
    s, t = bn_affine(br)
    A2a, c2a = s[:, None] * W2a, s * b2a + t
    W2b, b2b = nxt((b, br)), nxt((b,))
    s, t = bn_affine(b)
    A2b, c2b = s[:, None] * W2b, s * b2b + t
    B1bd = np.zeros((c_parts * br, C), np.float32)
    B2bd = np.zeros((C, c_parts * br), np.float32)
    for cp in range(c_parts):
        B1bd[cp * br:(cp + 1) * br, cp * b:(cp + 1) * b] = A2a
        B2bd[cp * b:(cp + 1) * b, cp * br:(cp + 1) * br] = A2b
    params["B1"], params["d1"] = B1bd, np.tile(c2a, c_parts).astype(np.float32)
    params["B2"], params["d2"] = B2bd, np.tile(c2b, c_parts).astype(np.float32)

    # conv3d layers: Conv3d(c_parts, c_parts, (k,1,1), pad) + BN3d -> (C, C) matmul
    def conv3d_mat(k):
        w = nxt((c_parts, c_parts, k))
        bias = nxt((c_parts,))
        p = (k - 1) // 2
        Wm = np.zeros((C, C), np.float32)
        for co in range(c_parts):
            for cin in range(c_parts):
                for do in range(b):
                    for di in range(b):
                        u = di - do + p
                        if 0 <= u < k:
                            Wm[co * b + do, cin * b + di] = w[co, cin, u]
        bvec = np.repeat(bias, b)
        s_, t_ = bn_affine(c_parts)
        svec = np.repeat(s_, b)
        tvec = np.repeat(t_, b)
        return ((svec[:, None] * Wm).astype(np.float32),
                (svec * bvec + tvec).astype(np.float32))

    params["W3a"], params["e3a"] = conv3d_mat(5)
    params["W3b"], params["e3b"] = conv3d_mat(7)

    # fc3: grouped 1x1 conv (groups == b*H*W) -> per-element scale + bias
    w3g, bw3 = nxt((b * HW,)), nxt((b * HW,))
    params["fc3w"] = np.tile(w3g.reshape(b, HW), (c_parts, 1)).astype(np.float32)
    params["fc3b"] = np.tile(bw3.reshape(b, HW), (c_parts, 1)).astype(np.float32)

    # conv_branch entry BatchNorm2d(b)
    sin_, tin_ = bn_affine(b)
    params["bnin_scale"] = np.tile(sin_, c_parts).astype(np.float32)
    params["bnin_shift"] = np.tile(tin_, c_parts).astype(np.float32)

    def block_diag(P):
        out = np.zeros((C, C), np.float32)
        for cp in range(c_parts):
            out[cp * b:(cp + 1) * b, cp * b:(cp + 1) * b] = P
        return out

    # depthwise KxK weights kept raw (lowered to fused lane-roll tap planes later);
    # pointwise 1x1 conv + BN folded to block-diag (C, C) + per-channel shift
    def dw_pw_bn(k, nw, npw, nsh):
        params[nw] = nxt((b, k, k))
        wpw = nxt((b, b))
        s_, t_ = bn_affine(b)
        params[npw] = (np.tile(s_, c_parts)[:, None]
                       * block_diag(wpw)).astype(np.float32)
        params[nsh] = np.tile(t_, c_parts).astype(np.float32)

    dw_pw_bn(3, "w3", "P3", "sa")
    dw_pw_bn(5, "w5", "P5", "sb")
    dw_pw_bn(7, "w7", "P7", "sc")

    # conv_final: 1x1 conv (no bias) + BN + ReLU
    wf = nxt((b, b))
    s_, t_ = bn_affine(b)
    params["Pf"] = (np.tile(s_, c_parts)[:, None]
                    * block_diag(wf)).astype(np.float32)
    params["tf"] = np.tile(t_, c_parts).astype(np.float32)

    # per-partition classifiers, concatenated + summed bias
    Wcls = np.zeros((n_classes, C), np.float32)
    bsum = np.zeros((n_classes,), np.float32)
    for cp in range(c_parts):
        Wcls[:, cp * b:(cp + 1) * b] = nxt((n_classes, b))
        bsum += nxt((n_classes,))
    params["Wc"], params["bc"] = Wcls, bsum.astype(np.float32)

    return params


if __name__ == "__main__":
    N, n_classes, b, c_parts = 16, 6, 4, 3
    H = W = 8
    ratio = 3
    C = c_parts * b

    key = jax.random.PRNGKey(0)
    kx, kp = jax.random.split(key)
    x = jax.random.normal(kx, (N, 1, C, H, W), dtype=jnp.float32)  # (N,1,C,H,W)
    params = build_params(kp, n_classes=n_classes, C=C, H=H, W=W, b=b, ratio=ratio)

    out = mmpn_forward(x, params, n_classes=n_classes, C=C, H=H, W=W,
                       b=b, c_parts=c_parts)
    out = jax.block_until_ready(out)
    assert out.shape == (N, n_classes) and out.dtype == jnp.float32
    print("KERNEL_OK")
</pallas_src>

<mosaic_0001>
module attributes {stable_mosaic.version = 11 : i64} {
  func.func @kernel(%arg0: i32, %arg1: memref<12x512xf32, #tpu.memory_space<vmem>>, %arg2: memref<512x8xf32, #tpu.memory_space<vmem>>, %arg3: memref<8x512xf32, #tpu.memory_space<vmem>>, %arg4: memref<12x12xf32, #tpu.memory_space<vmem>>, %arg5: memref<4x12xf32, #tpu.memory_space<vmem>>, %arg6: memref<12x4xf32, #tpu.memory_space<vmem>>, %arg7: memref<3x12xf32, #tpu.memory_space<vmem>>, %arg8: memref<12x3xf32, #tpu.memory_space<vmem>>, %arg9: memref<12x12xf32, #tpu.memory_space<vmem>>, %arg10: memref<12x12xf32, #tpu.memory_space<vmem>>, %arg11: memref<12x512xf32, #tpu.memory_space<vmem>>, %arg12: memref<12x512xf32, #tpu.memory_space<vmem>>, %arg13: memref<9x12x512xf32, #tpu.memory_space<vmem>>, %arg14: memref<25x12x512xf32, #tpu.memory_space<vmem>>, %arg15: memref<49x12x512xf32, #tpu.memory_space<vmem>>, %arg16: memref<12x12xf32, #tpu.memory_space<vmem>>, %arg17: memref<12x512xf32, #tpu.memory_space<vmem>>, %arg18: memref<12x12xf32, #tpu.memory_space<vmem>>, %arg19: memref<12x12xf32, #tpu.memory_space<vmem>>, %arg20: memref<12x12xf32, #tpu.memory_space<vmem>>, %arg21: memref<6x12xf32, #tpu.memory_space<vmem>>, %arg22: memref<1x6x8xf32, #tpu.memory_space<vmem>>) attributes {dimension_semantics = [#tpu.dimension_semantics<parallel>], iteration_bounds = array<i64: 2>, scalar_prefetch = 0 : i64, scratch_operands = 0 : i64, tpu.core_type = #tpu.core_type<tc>, window_params = [{transform_indices = @transform_0, window_bounds = array<i64: 12, 512>}, {pipeline_mode = #tpu.pipeline_mode<synchronous>, transform_indices = @transform_1, window_bounds = array<i64: 512, 8>}, {pipeline_mode = #tpu.pipeline_mode<synchronous>, transform_indices = @transform_2, window_bounds = array<i64: 8, 512>}, {pipeline_mode = #tpu.pipeline_mode<synchronous>, transform_indices = @transform_3, window_bounds = array<i64: 12, 12>}, {pipeline_mode = #tpu.pipeline_mode<synchronous>, transform_indices = @transform_4, window_bounds = array<i64: 4, 12>}, {pipeline_mode = #tpu.pipeline_mode<synchronous>, transform_indices = @transform_5, window_bounds = array<i64: 12, 4>}, {pipeline_mode = #tpu.pipeline_mode<synchronous>, transform_indices = @transform_6, window_bounds = array<i64: 3, 12>}, {pipeline_mode = #tpu.pipeline_mode<synchronous>, transform_indices = @transform_7, window_bounds = array<i64: 12, 3>}, {pipeline_mode = #tpu.pipeline_mode<synchronous>, transform_indices = @transform_8, window_bounds = array<i64: 12, 12>}, {pipeline_mode = #tpu.pipeline_mode<synchronous>, transform_indices = @transform_9, window_bounds = array<i64: 12, 12>}, {pipeline_mode = #tpu.pipeline_mode<synchronous>, transform_indices = @transform_10, window_bounds = array<i64: 12, 512>}, {pipeline_mode = #tpu.pipeline_mode<synchronous>, transform_indices = @transform_11, window_bounds = array<i64: 12, 512>}, {pipeline_mode = #tpu.pipeline_mode<synchronous>, transform_indices = @transform_12, window_bounds = array<i64: 9, 12, 512>}, {pipeline_mode = #tpu.pipeline_mode<synchronous>, transform_indices = @transform_13, window_bounds = array<i64: 25, 12, 512>}, {pipeline_mode = #tpu.pipeline_mode<synchronous>, transform_indices = @transform_14, window_bounds = array<i64: 49, 12, 512>}, {pipeline_mode = #tpu.pipeline_mode<synchronous>, transform_indices = @transform_15, window_bounds = array<i64: 12, 12>}, {pipeline_mode = #tpu.pipeline_mode<synchronous>, transform_indices = @transform_16, window_bounds = array<i64: 12, 512>}, {pipeline_mode = #tpu.pipeline_mode<synchronous>, transform_indices = @transform_17, window_bounds = array<i64: 12, 12>}, {pipeline_mode = #tpu.pipeline_mode<synchronous>, transform_indices = @transform_18, window_bounds = array<i64: 12, 12>}, {pipeline_mode = #tpu.pipeline_mode<synchronous>, transform_indices = @transform_19, window_bounds = array<i64: 12, 12>}, {pipeline_mode = #tpu.pipeline_mode<synchronous>, transform_indices = @transform_20, window_bounds = array<i64: 6, 12>}, {transform_indices = @transform_21, window_bounds = array<i64: 1, 6, 8>}]} {
    %c0 = arith.constant 0 : index
    %c0_0 = arith.constant 0 : index
    %0 = vector.load %arg1[%c0, %c0_0] : memref<12x512xf32, #tpu.memory_space<vmem>>, vector<12x512xf32>
    %c0_1 = arith.constant 0 : index
    %c0_2 = arith.constant 0 : index
    %1 = vector.load %arg2[%c0_1, %c0_2] : memref<512x8xf32, #tpu.memory_space<vmem>>, vector<512x8xf32>
    %cst = arith.constant dense<0.000000e+00> : vector<12x8xf32>
    %2 = tpu.matmul %0, %1, %cst {dimension_numbers = #tpu.dot_dimension_numbers<[1], [0], [0], [1], [0, 0, 1, 1], [], []>} : vector<12x512xf32>, vector<512x8xf32>, vector<12x8xf32> -> vector<12x8xf32>
    %c0_3 = arith.constant 0 : index
    %c10 = arith.constant 10 : index
    %3 = vector.load %arg4[%c0_3, %c10] : memref<12x12xf32, #tpu.memory_space<vmem>>, vector<1x1xf32>
    %4 = vector.broadcast %3 : vector<1x1xf32> to vector<12x8xf32>
    %5 = arith.mulf %2, %4 : vector<12x8xf32>
    %c0_4 = arith.constant 0 : index
    %c11 = arith.constant 11 : index
    %6 = vector.load %arg4[%c0_4, %c11] : memref<12x12xf32, #tpu.memory_space<vmem>>, vector<1x1xf32>
    %7 = vector.broadcast %6 : vector<1x1xf32> to vector<12x8xf32>
    %8 = arith.addf %5, %7 : vector<12x8xf32>
    %c0_5 = arith.constant 0 : index
    %c0_6 = arith.constant 0 : index
    %9 = vector.load %arg5[%c0_5, %c0_6] : memref<4x12xf32, #tpu.memory_space<vmem>>, vector<4x12xf32>
    %cst_7 = arith.constant dense<0.000000e+00> : vector<4x8xf32>
    %10 = tpu.matmul %9, %8, %cst_7 {dimension_numbers = #tpu.dot_dimension_numbers<[1], [0], [0], [1], [0, 0, 1, 1], [], []>} : vector<4x12xf32>, vector<12x8xf32>, vector<4x8xf32> -> vector<4x8xf32>
    %c0_8 = arith.constant 0 : index
    %c0_9 = arith.constant 0 : index
    %11 = vector.load %arg4[%c0_8, %c0_9] : memref<12x12xf32, #tpu.memory_space<vmem>>, vector<4x1xf32>
    %12 = vector.broadcast %11 : vector<4x1xf32> to vector<4x8xf32>
    %13 = arith.addf %10, %12 : vector<4x8xf32>
    %cst_10 = arith.constant 0.000000e+00 : f32
    %14 = vector.broadcast %cst_10 : f32 to vector<4x8xf32>
    %15 = arith.maximumf %13, %14 : vector<4x8xf32>
    %c0_11 = arith.constant 0 : index
    %c0_12 = arith.constant 0 : index
    %16 = vector.load %arg6[%c0_11, %c0_12] : memref<12x4xf32, #tpu.memory_space<vmem>>, vector<12x4xf32>
    %cst_13 = arith.constant dense<0.000000e+00> : vector<12x8xf32>
    %17 = tpu.matmul %16, %15, %cst_13 {dimension_numbers = #tpu.dot_dimension_numbers<[1], [0], [0], [1], [0, 0, 1, 1], [], []>} : vector<12x4xf32>, vector<4x8xf32>, vector<12x8xf32> -> vector<12x8xf32>
    %c0_14 = arith.constant 0 : index
    %c1 = arith.constant 1 : index
    %18 = vector.load %arg4[%c0_14, %c1] : memref<12x12xf32, #tpu.memory_space<vmem>>, vector<12x1xf32>
    %19 = vector.broadcast %18 : vector<12x1xf32> to vector<12x8xf32>
    %20 = arith.addf %17, %19 : vector<12x8xf32>
    %cst_15 = arith.constant 0.000000e+00 : f32
    %21 = vector.broadcast %cst_15 : f32 to vector<12x8xf32>
    %22 = arith.subf %21, %20 : vector<12x8xf32>
    %23 = math.exp %22 : vector<12x8xf32>
    %cst_16 = arith.constant 1.000000e+00 : f32
    %24 = vector.broadcast %cst_16 : f32 to vector<12x8xf32>
    %25 = arith.addf %24, %23 : vector<12x8xf32>
    %26 = tpu.reciprocal %25 {approx = true} : vector<12x8xf32> -> vector<12x8xf32>
    %c0_17 = arith.constant 0 : index
    %c0_18 = arith.constant 0 : index
    %27 = vector.load %arg7[%c0_17, %c0_18] : memref<3x12xf32, #tpu.memory_space<vmem>>, vector<3x12xf32>
    %cst_19 = arith.constant dense<0.000000e+00> : vector<3x8xf32>
    %28 = tpu.matmul %27, %8, %cst_19 {dimension_numbers = #tpu.dot_dimension_numbers<[1], [0], [0], [1], [0, 0, 1, 1], [], []>} : vector<3x12xf32>, vector<12x8xf32>, vector<3x8xf32> -> vector<3x8xf32>
    %c0_20 = arith.constant 0 : index
    %c2 = arith.constant 2 : index
    %29 = vector.load %arg4[%c0_20, %c2] : memref<12x12xf32, #tpu.memory_space<vmem>>, vector<3x1xf32>
    %30 = vector.broadcast %29 : vector<3x1xf32> to vector<3x8xf32>
    %31 = arith.addf %28, %30 : vector<3x8xf32>
    %cst_21 = arith.constant 0.000000e+00 : f32
    %32 = vector.broadcast %cst_21 : f32 to vector<3x8xf32>
    %33 = arith.maximumf %31, %32 : vector<3x8xf32>
    %c0_22 = arith.constant 0 : index
    %c0_23 = arith.constant 0 : index
    %34 = vector.load %arg8[%c0_22, %c0_23] : memref<12x3xf32, #tpu.memory_space<vmem>>, vector<12x3xf32>
    %cst_24 = arith.constant dense<0.000000e+00> : vector<12x8xf32>
    %35 = tpu.matmul %34, %33, %cst_24 {dimension_numbers = #tpu.dot_dimension_numbers<[1], [0], [0], [1], [0, 0, 1, 1], [], []>} : vector<12x3xf32>, vector<3x8xf32>, vector<12x8xf32> -> vector<12x8xf32>
    %c0_25 = arith.constant 0 : index
    %c3 = arith.constant 3 : index
    %36 = vector.load %arg4[%c0_25, %c3] : memref<12x12xf32, #tpu.memory_space<vmem>>, vector<12x1xf32>
    %37 = vector.broadcast %36 : vector<12x1xf32> to vector<12x8xf32>
    %38 = arith.addf %35, %37 : vector<12x8xf32>
    %cst_26 = arith.constant 0.000000e+00 : f32
    %39 = vector.broadcast %cst_26 : f32 to vector<12x8xf32>
    %40 = arith.subf %39, %38 : vector<12x8xf32>
    %41 = math.exp %40 : vector<12x8xf32>
    %cst_27 = arith.constant 1.000000e+00 : f32
    %42 = vector.broadcast %cst_27 : f32 to vector<12x8xf32>
    %43 = arith.addf %42, %41 : vector<12x8xf32>
    %44 = tpu.reciprocal %43 {approx = true} : vector<12x8xf32> -> vector<12x8xf32>
    %45 = arith.addf %8, %26 : vector<12x8xf32>
    %46 = arith.addf %45, %44 : vector<12x8xf32>
    %c0_28 = arith.constant 0 : index
    %c0_29 = arith.constant 0 : index
    %47 = vector.load %arg3[%c0_28, %c0_29] : memref<8x512xf32, #tpu.memory_space<vmem>>, vector<8x512xf32>
    %cst_30 = arith.constant dense<0.000000e+00> : vector<12x512xf32>
    %48 = tpu.matmul %46, %47, %cst_30 {dimension_numbers = #tpu.dot_dimension_numbers<[1], [0], [0], [1], [0, 0, 1, 1], [], []>} : vector<12x8xf32>, vector<8x512xf32>, vector<12x512xf32> -> vector<12x512xf32>
    %49 = arith.mulf %0, %48 : vector<12x512xf32>
    %c0_31 = arith.constant 0 : index
    %c0_32 = arith.constant 0 : index
    %50 = vector.load %arg9[%c0_31, %c0_32] : memref<12x12xf32, #tpu.memory_space<vmem>>, vector<12x12xf32>
    %cst_33 = arith.constant dense<0.000000e+00> : vector<12x512xf32>
    %51 = tpu.matmul %50, %49, %cst_33 {dimension_numbers = #tpu.dot_dimension_numbers<[1], [0], [0], [1], [0, 0, 1, 1], [], []>} : vector<12x12xf32>, vector<12x512xf32>, vector<12x512xf32> -> vector<12x512xf32>
    %c0_34 = arith.constant 0 : index
    %c4 = arith.constant 4 : index
    %52 = vector.load %arg4[%c0_34, %c4] : memref<12x12xf32, #tpu.memory_space<vmem>>, vector<12x1xf32>
    %53 = vector.broadcast %52 : vector<12x1xf32> to vector<12x512xf32>
    %54 = arith.addf %51, %53 : vector<12x512xf32>
    %cst_35 = arith.constant 0.000000e+00 : f32
    %55 = vector.broadcast %cst_35 : f32 to vector<12x512xf32>
    %56 = arith.maximumf %54, %55 : vector<12x512xf32>
    %c0_36 = arith.constant 0 : index
    %c0_37 = arith.constant 0 : index
    %57 = vector.load %arg10[%c0_36, %c0_37] : memref<12x12xf32, #tpu.memory_space<vmem>>, vector<12x12xf32>
    %cst_38 = arith.constant dense<0.000000e+00> : vector<12x512xf32>
    %58 = tpu.matmul %57, %56, %cst_38 {dimension_numbers = #tpu.dot_dimension_numbers<[1], [0], [0], [1], [0, 0, 1, 1], [], []>} : vector<12x12xf32>, vector<12x512xf32>, vector<12x512xf32> -> vector<12x512xf32>
    %c0_39 = arith.constant 0 : index
    %c5 = arith.constant 5 : index
    %59 = vector.load %arg4[%c0_39, %c5] : memref<12x12xf32, #tpu.memory_space<vmem>>, vector<12x1xf32>
    %60 = vector.broadcast %59 : vector<12x1xf32> to vector<12x512xf32>
    %61 = arith.addf %58, %60 : vector<12x512xf32>
    %cst_40 = arith.constant 0.000000e+00 : f32
    %62 = vector.broadcast %cst_40 : f32 to vector<12x512xf32>
    %63 = arith.maximumf %61, %62 : vector<12x512xf32>
    %c0_41 = arith.constant 0 : index
    %c0_42 = arith.constant 0 : index
    %64 = vector.load %arg11[%c0_41, %c0_42] : memref<12x512xf32, #tpu.memory_space<vmem>>, vector<12x512xf32>
    %65 = arith.mulf %64, %63 : vector<12x512xf32>
    %c0_43 = arith.constant 0 : index
    %c0_44 = arith.constant 0 : index
    %66 = vector.load %arg12[%c0_43, %c0_44] : memref<12x512xf32, #tpu.memory_space<vmem>>, vector<12x512xf32>
    %67 = arith.addf %65, %66 : vector<12x512xf32>
    %cst_45 = arith.constant 0.000000e+00 : f32
    %68 = vector.broadcast %cst_45 : f32 to vector<12x512xf32>
    %69 = arith.maximumf %67, %68 : vector<12x512xf32>
    %70 = arith.addf %49, %69 : vector<12x512xf32>
    %c9_i32 = arith.constant 9 : i32
    %71 = tpu.dynamic_rotate %70 by %c9_i32 dim 1 : vector<12x512xf32>, i32 -> vector<12x512xf32>
    %c0_46 = arith.constant 0 : index
    %c0_47 = arith.constant 0 : index
    %c0_48 = arith.constant 0 : index
    %72 = vector.load %arg13[%c0_46, %c0_47, %c0_48] : memref<9x12x512xf32, #tpu.memory_space<vmem>>, vector<1x12x512xf32>
    %73 = vector.shape_cast %72 : vector<1x12x512xf32> to vector<12x512xf32>
    %74 = arith.mulf %71, %73 : vector<12x512xf32>
    %c8_i32 = arith.constant 8 : i32
    %75 = tpu.dynamic_rotate %70 by %c8_i32 dim 1 : vector<12x512xf32>, i32 -> vector<12x512xf32>
    %c1_49 = arith.constant 1 : index
    %c0_50 = arith.constant 0 : index
    %c0_51 = arith.constant 0 : index
    %76 = vector.load %arg13[%c1_49, %c0_50, %c0_51] : memref<9x12x512xf32, #tpu.memory_space<vmem>>, vector<1x12x512xf32>
    %77 = vector.shape_cast %76 : vector<1x12x512xf32> to vector<12x512xf32>
    %78 = arith.mulf %75, %77 : vector<12x512xf32>
    %79 = arith.addf %74, %78 : vector<12x512xf32>
    %c7_i32 = arith.constant 7 : i32
    %80 = tpu.dynamic_rotate %70 by %c7_i32 dim 1 : vector<12x512xf32>, i32 -> vector<12x512xf32>
    %c2_52 = arith.constant 2 : index
    %c0_53 = arith.constant 0 : index
    %c0_54 = arith.constant 0 : index
    %81 = vector.load %arg13[%c2_52, %c0_53, %c0_54] : memref<9x12x512xf32, #tpu.memory_space<vmem>>, vector<1x12x512xf32>
    %82 = vector.shape_cast %81 : vector<1x12x512xf32> to vector<12x512xf32>
    %83 = arith.mulf %80, %82 : vector<12x512xf32>
    %84 = arith.addf %79, %83 : vector<12x512xf32>
    %c1_i32 = arith.constant 1 : i32
    %85 = tpu.dynamic_rotate %70 by %c1_i32 dim 1 : vector<12x512xf32>, i32 -> vector<12x512xf32>
    %c3_55 = arith.constant 3 : index
    %c0_56 = arith.constant 0 : index
    %c0_57 = arith.constant 0 : index
    %86 = vector.load %arg13[%c3_55, %c0_56, %c0_57] : memref<9x12x512xf32, #tpu.memory_space<vmem>>, vector<1x12x512xf32>
    %87 = vector.shape_cast %86 : vector<1x12x512xf32> to vector<12x512xf32>
    %88 = arith.mulf %85, %87 : vector<12x512xf32>
    %89 = arith.addf %84, %88 : vector<12x512xf32>
    %c4_58 = arith.constant 4 : index
    %c0_59 = arith.constant 0 : index
    %c0_60 = arith.constant 0 : index
    %90 = vector.load %arg13[%c4_58, %c0_59, %c0_60] : memref<9x12x512xf32, #tpu.memory_space<vmem>>, vector<1x12x512xf32>
    %91 = vector.shape_cast %90 : vector<1x12x512xf32> to vector<12x512xf32>
    %92 = arith.mulf %70, %91 : vector<12x512xf32>
    %93 = arith.addf %89, %92 : vector<12x512xf32>
    %c511_i32 = arith.constant 511 : i32
    %94 = tpu.dynamic_rotate %70 by %c511_i32 dim 1 : vector<12x512xf32>, i32 -> vector<12x512xf32>
    %c5_61 = arith.constant 5 : index
    %c0_62 = arith.constant 0 : index
    %c0_63 = arith.constant 0 : index
    %95 = vector.load %arg13[%c5_61, %c0_62, %c0_63] : memref<9x12x512xf32, #tpu.memory_space<vmem>>, vector<1x12x512xf32>
    %96 = vector.shape_cast %95 : vector<1x12x512xf32> to vector<12x512xf32>
    %97 = arith.mulf %94, %96 : vector<12x512xf32>
    %98 = arith.addf %93, %97 : vector<12x512xf32>
    %c505_i32 = arith.constant 505 : i32
    %99 = tpu.dynamic_rotate %70 by %c505_i32 dim 1 : vector<12x512xf32>, i32 -> vector<12x512xf32>
    %c6 = arith.constant 6 : index
    %c0_64 = arith.constant 0 : index
    %c0_65 = arith.constant 0 : index
    %100 = vector.load %arg13[%c6, %c0_64, %c0_65] : memref<9x12x512xf32, #tpu.memory_space<vmem>>, vector<1x12x512xf32>
    %101 = vector.shape_cast %100 : vector<1x12x512xf32> to vector<12x512xf32>
    %102 = arith.mulf %99, %101 : vector<12x512xf32>
    %103 = arith.addf %98, %102 : vector<12x512xf32>
    %c504_i32 = arith.constant 504 : i32
    %104 = tpu.dynamic_rotate %70 by %c504_i32 dim 1 : vector<12x512xf32>, i32 -> vector<12x512xf32>
    %c7 = arith.constant 7 : index
    %c0_66 = arith.constant 0 : index
    %c0_67 = arith.constant 0 : index
    %105 = vector.load %arg13[%c7, %c0_66, %c0_67] : memref<9x12x512xf32, #tpu.memory_space<vmem>>, vector<1x12x512xf32>
    %106 = vector.shape_cast %105 : vector<1x12x512xf32> to vector<12x512xf32>
    %107 = arith.mulf %104, %106 : vector<12x512xf32>
    %108 = arith.addf %103, %107 : vector<12x512xf32>
    %c503_i32 = arith.constant 503 : i32
    %109 = tpu.dynamic_rotate %70 by %c503_i32 dim 1 : vector<12x512xf32>, i32 -> vector<12x512xf32>
    %c8 = arith.constant 8 : index
    %c0_68 = arith.constant 0 : index
    %c0_69 = arith.constant 0 : index
    %110 = vector.load %arg13[%c8, %c0_68, %c0_69] : memref<9x12x512xf32, #tpu.memory_space<vmem>>, vector<1x12x512xf32>
    %111 = vector.shape_cast %110 : vector<1x12x512xf32> to vector<12x512xf32>
    %112 = arith.mulf %109, %111 : vector<12x512xf32>
    %113 = arith.addf %108, %112 : vector<12x512xf32>
    %c0_70 = arith.constant 0 : index
    %c0_71 = arith.constant 0 : index
    %114 = vector.load %arg16[%c0_70, %c0_71] : memref<12x12xf32, #tpu.memory_space<vmem>>, vector<12x12xf32>
    %cst_72 = arith.constant dense<0.000000e+00> : vector<12x512xf32>
    %115 = tpu.matmul %114, %113, %cst_72 {dimension_numbers = #tpu.dot_dimension_numbers<[1], [0], [0], [1], [0, 0, 1, 1], [], []>} : vector<12x12xf32>, vector<12x512xf32>, vector<12x512xf32> -> vector<12x512xf32>
    %c0_73 = arith.constant 0 : index
    %c0_74 = arith.constant 0 : index
    %116 = vector.load %arg17[%c0_73, %c0_74] : memref<12x512xf32, #tpu.memory_space<vmem>>, vector<12x512xf32>
    %117 = arith.addf %115, %116 : vector<12x512xf32>
    %cst_75 = arith.constant 0.000000e+00 : f32
    %118 = vector.broadcast %cst_75 : f32 to vector<12x512xf32>
    %119 = arith.maximumf %117, %118 : vector<12x512xf32>
    %c18_i32 = arith.constant 18 : i32
    %120 = tpu.dynamic_rotate %119 by %c18_i32 dim 1 : vector<12x512xf32>, i32 -> vector<12x512xf32>
    %c0_76 = arith.constant 0 : index
    %c0_77 = arith.constant 0 : index
    %c0_78 = arith.constant 0 : index
    %121 = vector.load %arg14[%c0_76, %c0_77, %c0_78] : memref<25x12x512xf32, #tpu.memory_space<vmem>>, vector<1x12x512xf32>
    %122 = vector.shape_cast %121 : vector<1x12x512xf32> to vector<12x512xf32>
    %123 = arith.mulf %120, %122 : vector<12x512xf32>
    %c17_i32 = arith.constant 17 : i32
    %124 = tpu.dynamic_rotate %119 by %c17_i32 dim 1 : vector<12x512xf32>, i32 -> vector<12x512xf32>
    %c1_79 = arith.constant 1 : index
    %c0_80 = arith.constant 0 : index
    %c0_81 = arith.constant 0 : index
    %125 = vector.load %arg14[%c1_79, %c0_80, %c0_81] : memref<25x12x512xf32, #tpu.memory_space<vmem>>, vector<1x12x512xf32>
    %126 = vector.shape_cast %125 : vector<1x12x512xf32> to vector<12x512xf32>
    %127 = arith.mulf %124, %126 : vector<12x512xf32>
    %128 = arith.addf %123, %127 : vector<12x512xf32>
    %c16_i32 = arith.constant 16 : i32
    %129 = tpu.dynamic_rotate %119 by %c16_i32 dim 1 : vector<12x512xf32>, i32 -> vector<12x512xf32>
    %c2_82 = arith.constant 2 : index
    %c0_83 = arith.constant 0 : index
    %c0_84 = arith.constant 0 : index
    %130 = vector.load %arg14[%c2_82, %c0_83, %c0_84] : memref<25x12x512xf32, #tpu.memory_space<vmem>>, vector<1x12x512xf32>
    %131 = vector.shape_cast %130 : vector<1x12x512xf32> to vector<12x512xf32>
    %132 = arith.mulf %129, %131 : vector<12x512xf32>
    %133 = arith.addf %128, %132 : vector<12x512xf32>
    %c15_i32 = arith.constant 15 : i32
    %134 = tpu.dynamic_rotate %119 by %c15_i32 dim 1 : vector<12x512xf32>, i32 -> vector<12x512xf32>
    %c3_85 = arith.constant 3 : index
    %c0_86 = arith.constant 0 : index
    %c0_87 = arith.constant 0 : index
    %135 = vector.load %arg14[%c3_85, %c0_86, %c0_87] : memref<25x12x512xf32, #tpu.memory_space<vmem>>, vector<1x12x512xf32>
    %136 = vector.shape_cast %135 : vector<1x12x512xf32> to vector<12x512xf32>
    %137 = arith.mulf %134, %136 : vector<12x512xf32>
    %138 = arith.addf %133, %137 : vector<12x512xf32>
    %c14_i32 = arith.constant 14 : i32
    %139 = tpu.dynamic_rotate %119 by %c14_i32 dim 1 : vector<12x512xf32>, i32 -> vector<12x512xf32>
    %c4_88 = arith.constant 4 : index
    %c0_89 = arith.constant 0 : index
    %c0_90 = arith.constant 0 : index
    %140 = vector.load %arg14[%c4_88, %c0_89, %c0_90] : memref<25x12x512xf32, #tpu.memory_space<vmem>>, vector<1x12x512xf32>
    %141 = vector.shape_cast %140 : vector<1x12x512xf32> to vector<12x512xf32>
    %142 = arith.mulf %139, %141 : vector<12x512xf32>
    %143 = arith.addf %138, %142 : vector<12x512xf32>
    %c10_i32 = arith.constant 10 : i32
    %144 = tpu.dynamic_rotate %119 by %c10_i32 dim 1 : vector<12x512xf32>, i32 -> vector<12x512xf32>
    %c5_91 = arith.constant 5 : index
    %c0_92 = arith.constant 0 : index
    %c0_93 = arith.constant 0 : index
    %145 = vector.load %arg14[%c5_91, %c0_92, %c0_93] : memref<25x12x512xf32, #tpu.memory_space<vmem>>, vector<1x12x512xf32>
    %146 = vector.shape_cast %145 : vector<1x12x512xf32> to vector<12x512xf32>
    %147 = arith.mulf %144, %146 : vector<12x512xf32>
    %148 = arith.addf %143, %147 : vector<12x512xf32>
    %c9_i32_94 = arith.constant 9 : i32
    %149 = tpu.dynamic_rotate %119 by %c9_i32_94 dim 1 : vector<12x512xf32>, i32 -> vector<12x512xf32>
    %c6_95 = arith.constant 6 : index
    %c0_96 = arith.constant 0 : index
    %c0_97 = arith.constant 0 : index
    %150 = vector.load %arg14[%c6_95, %c0_96, %c0_97] : memref<25x12x512xf32, #tpu.memory_space<vmem>>, vector<1x12x512xf32>
    %151 = vector.shape_cast %150 : vector<1x12x512xf32> to vector<12x512xf32>
    %152 = arith.mulf %149, %151 : vector<12x512xf32>
    %153 = arith.addf %148, %152 : vector<12x512xf32>
    %c8_i32_98 = arith.constant 8 : i32
    %154 = tpu.dynamic_rotate %119 by %c8_i32_98 dim 1 : vector<12x512xf32>, i32 -> vector<12x512xf32>
    %c7_99 = arith.constant 7 : index
    %c0_100 = arith.constant 0 : index
    %c0_101 = arith.constant 0 : index
    %155 = vector.load %arg14[%c7_99, %c0_100, %c0_101] : memref<25x12x512xf32, #tpu.memory_space<vmem>>, vector<1x12x512xf32>
    %156 = vector.shape_cast %155 : vector<1x12x512xf32> to vector<12x512xf32>
    %157 = arith.mulf %154, %156 : vector<12x512xf32>
    %158 = arith.addf %153, %157 : vector<12x512xf32>
    %c7_i32_102 = arith.constant 7 : i32
    %159 = tpu.dynamic_rotate %119 by %c7_i32_102 dim 1 : vector<12x512xf32>, i32 -> vector<12x512xf32>
    %c8_103 = arith.constant 8 : index
    %c0_104 = arith.constant 0 : index
    %c0_105 = arith.constant 0 : index
    %160 = vector.load %arg14[%c8_103, %c0_104, %c0_105] : memref<25x12x512xf32, #tpu.memory_space<vmem>>, vector<1x12x512xf32>
    %161 = vector.shape_cast %160 : vector<1x12x512xf32> to vector<12x512xf32>
    %162 = arith.mulf %159, %161 : vector<12x512xf32>
    %163 = arith.addf %158, %162 : vector<12x512xf32>
    %c6_i32 = arith.constant 6 : i32
    %164 = tpu.dynamic_rotate %119 by %c6_i32 dim 1 : vector<12x512xf32>, i32 -> vector<12x512xf32>
    %c9 = arith.constant 9 : index
    %c0_106 = arith.constant 0 : index
    %c0_107 = arith.constant 0 : index
    %165 = vector.load %arg14[%c9, %c0_106, %c0_107] : memref<25x12x512xf32, #tpu.memory_space<vmem>>, vector<1x12x512xf32>
    %166 = vector.shape_cast %165 : vector<1x12x512xf32> to vector<12x512xf32>
    %167 = arith.mulf %164, %166 : vector<12x512xf32>
    %168 = arith.addf %163, %167 : vector<12x512xf32>
    %c2_i32 = arith.constant 2 : i32
    %169 = tpu.dynamic_rotate %119 by %c2_i32 dim 1 : vector<12x512xf32>, i32 -> vector<12x512xf32>
    %c10_108 = arith.constant 10 : index
    %c0_109 = arith.constant 0 : index
    %c0_110 = arith.constant 0 : index
    %170 = vector.load %arg14[%c10_108, %c0_109, %c0_110] : memref<25x12x512xf32, #tpu.memory_space<vmem>>, vector<1x12x512xf32>
    %171 = vector.shape_cast %170 : vector<1x12x512xf32> to vector<12x512xf32>
    %172 = arith.mulf %169, %171 : vector<12x512xf32>
    %173 = arith.addf %168, %172 : vector<12x512xf32>
    %c1_i32_111 = arith.constant 1 : i32
    %174 = tpu.dynamic_rotate %119 by %c1_i32_111 dim 1 : vector<12x512xf32>, i32 -> vector<12x512xf32>
    %c11_112 = arith.constant 11 : index
    %c0_113 = arith.constant 0 : index
    %c0_114 = arith.constant 0 : index
    %175 = vector.load %arg14[%c11_112, %c0_113, %c0_114] : memref<25x12x512xf32, #tpu.memory_space<vmem>>, vector<1x12x512xf32>
    %176 = vector.shape_cast %175 : vector<1x12x512xf32> to vector<12x512xf32>
    %177 = arith.mulf %174, %176 : vector<12x512xf32>
    %178 = arith.addf %173, %177 : vector<12x512xf32>
    %c12 = arith.constant 12 : index
    %c0_115 = arith.constant 0 : index
    %c0_116 = arith.constant 0 : index
    %179 = vector.load %arg14[%c12, %c0_115, %c0_116] : memref<25x12x512xf32, #tpu.memory_space<vmem>>, vector<1x12x512xf32>
    %180 = vector.shape_cast %179 : vector<1x12x512xf32> to vector<12x512xf32>
    %181 = arith.mulf %119, %180 : vector<12x512xf32>
    %182 = arith.addf %178, %181 : vector<12x512xf32>
    %c511_i32_117 = arith.constant 511 : i32
    %183 = tpu.dynamic_rotate %119 by %c511_i32_117 dim 1 : vector<12x512xf32>, i32 -> vector<12x512xf32>
    %c13 = arith.constant 13 : index
    %c0_118 = arith.constant 0 : index
    %c0_119 = arith.constant 0 : index
    %184 = vector.load %arg14[%c13, %c0_118, %c0_119] : memref<25x12x512xf32, #tpu.memory_space<vmem>>, vector<1x12x512xf32>
    %185 = vector.shape_cast %184 : vector<1x12x512xf32> to vector<12x512xf32>
    %186 = arith.mulf %183, %185 : vector<12x512xf32>
    %187 = arith.addf %182, %186 : vector<12x512xf32>
    %c510_i32 = arith.constant 510 : i32
    %188 = tpu.dynamic_rotate %119 by %c510_i32 dim 1 : vector<12x512xf32>, i32 -> vector<12x512xf32>
    %c14 = arith.constant 14 : index
    %c0_120 = arith.constant 0 : index
    %c0_121 = arith.constant 0 : index
    %189 = vector.load %arg14[%c14, %c0_120, %c0_121] : memref<25x12x512xf32, #tpu.memory_space<vmem>>, vector<1x12x512xf32>
    %190 = vector.shape_cast %189 : vector<1x12x512xf32> to vector<12x512xf32>
    %191 = arith.mulf %188, %190 : vector<12x512xf32>
    %192 = arith.addf %187, %191 : vector<12x512xf32>
    %c506_i32 = arith.constant 506 : i32
    %193 = tpu.dynamic_rotate %119 by %c506_i32 dim 1 : vector<12x512xf32>, i32 -> vector<12x512xf32>
    %c15 = arith.constant 15 : index
    %c0_122 = arith.constant 0 : index
    %c0_123 = arith.constant 0 : index
    %194 = vector.load %arg14[%c15, %c0_122, %c0_123] : memref<25x12x512xf32, #tpu.memory_space<vmem>>, vector<1x12x512xf32>
    %195 = vector.shape_cast %194 : vector<1x12x512xf32> to vector<12x512xf32>
    %196 = arith.mulf %193, %195 : vector<12x512xf32>
    %197 = arith.addf %192, %196 : vector<12x512xf32>
    %c505_i32_124 = arith.constant 505 : i32
    %198 = tpu.dynamic_rotate %119 by %c505_i32_124 dim 1 : vector<12x512xf32>, i32 -> vector<12x512xf32>
    %c16 = arith.constant 16 : index
    %c0_125 = arith.constant 0 : index
    %c0_126 = arith.constant 0 : index
    %199 = vector.load %arg14[%c16, %c0_125, %c0_126] : memref<25x12x512xf32, #tpu.memory_space<vmem>>, vector<1x12x512xf32>
    %200 = vector.shape_cast %199 : vector<1x12x512xf32> to vector<12x512xf32>
    %201 = arith.mulf %198, %200 : vector<12x512xf32>
    %202 = arith.addf %197, %201 : vector<12x512xf32>
    %c504_i32_127 = arith.constant 504 : i32
    %203 = tpu.dynamic_rotate %119 by %c504_i32_127 dim 1 : vector<12x512xf32>, i32 -> vector<12x512xf32>
    %c17 = arith.constant 17 : index
    %c0_128 = arith.constant 0 : index
    %c0_129 = arith.constant 0 : index
    %204 = vector.load %arg14[%c17, %c0_128, %c0_129] : memref<25x12x512xf32, #tpu.memory_space<vmem>>, vector<1x12x512xf32>
    %205 = vector.shape_cast %204 : vector<1x12x512xf32> to vector<12x512xf32>
    %206 = arith.mulf %203, %205 : vector<12x512xf32>
    %207 = arith.addf %202, %206 : vector<12x512xf32>
    %c503_i32_130 = arith.constant 503 : i32
    %208 = tpu.dynamic_rotate %119 by %c503_i32_130 dim 1 : vector<12x512xf32>, i32 -> vector<12x512xf32>
    %c18 = arith.constant 18 : index
    %c0_131 = arith.constant 0 : index
    %c0_132 = arith.constant 0 : index
    %209 = vector.load %arg14[%c18, %c0_131, %c0_132] : memref<25x12x512xf32, #tpu.memory_space<vmem>>, vector<1x12x512xf32>
    %210 = vector.shape_cast %209 : vector<1x12x512xf32> to vector<12x512xf32>
    %211 = arith.mulf %208, %210 : vector<12x512xf32>
    %212 = arith.addf %207, %211 : vector<12x512xf32>
    %c502_i32 = arith.constant 502 : i32
    %213 = tpu.dynamic_rotate %119 by %c502_i32 dim 1 : vector<12x512xf32>, i32 -> vector<12x512xf32>
    %c19 = arith.constant 19 : index
    %c0_133 = arith.constant 0 : index
    %c0_134 = arith.constant 0 : index
    %214 = vector.load %arg14[%c19, %c0_133, %c0_134] : memref<25x12x512xf32, #tpu.memory_space<vmem>>, vector<1x12x512xf32>
    %215 = vector.shape_cast %214 : vector<1x12x512xf32> to vector<12x512xf32>
    %216 = arith.mulf %213, %215 : vector<12x512xf32>
    %217 = arith.addf %212, %216 : vector<12x512xf32>
    %c498_i32 = arith.constant 498 : i32
    %218 = tpu.dynamic_rotate %119 by %c498_i32 dim 1 : vector<12x512xf32>, i32 -> vector<12x512xf32>
    %c20 = arith.constant 20 : index
    %c0_135 = arith.constant 0 : index
    %c0_136 = arith.constant 0 : index
    %219 = vector.load %arg14[%c20, %c0_135, %c0_136] : memref<25x12x512xf32, #tpu.memory_space<vmem>>, vector<1x12x512xf32>
    %220 = vector.shape_cast %219 : vector<1x12x512xf32> to vector<12x512xf32>
    %221 = arith.mulf %218, %220 : vector<12x512xf32>
    %222 = arith.addf %217, %221 : vector<12x512xf32>
    %c497_i32 = arith.constant 497 : i32
    %223 = tpu.dynamic_rotate %119 by %c497_i32 dim 1 : vector<12x512xf32>, i32 -> vector<12x512xf32>
    %c21 = arith.constant 21 : index
    %c0_137 = arith.constant 0 : index
    %c0_138 = arith.constant 0 : index
    %224 = vector.load %arg14[%c21, %c0_137, %c0_138] : memref<25x12x512xf32, #tpu.memory_space<vmem>>, vector<1x12x512xf32>
    %225 = vector.shape_cast %224 : vector<1x12x512xf32> to vector<12x512xf32>
    %226 = arith.mulf %223, %225 : vector<12x512xf32>
    %227 = arith.addf %222, %226 : vector<12x512xf32>
    %c496_i32 = arith.constant 496 : i32
    %228 = tpu.dynamic_rotate %119 by %c496_i32 dim 1 : vector<12x512xf32>, i32 -> vector<12x512xf32>
    %c22 = arith.constant 22 : index
    %c0_139 = arith.constant 0 : index
    %c0_140 = arith.constant 0 : index
    %229 = vector.load %arg14[%c22, %c0_139, %c0_140] : memref<25x12x512xf32, #tpu.memory_space<vmem>>, vector<1x12x512xf32>
    %230 = vector.shape_cast %229 : vector<1x12x512xf32> to vector<12x512xf32>
    %231 = arith.mulf %228, %230 : vector<12x512xf32>
    %232 = arith.addf %227, %231 : vector<12x512xf32>
    %c495_i32 = arith.constant 495 : i32
    %233 = tpu.dynamic_rotate %119 by %c495_i32 dim 1 : vector<12x512xf32>, i32 -> vector<12x512xf32>
    %c23 = arith.constant 23 : index
    %c0_141 = arith.constant 0 : index
    %c0_142 = arith.constant 0 : index
    %234 = vector.load %arg14[%c23, %c0_141, %c0_142] : memref<25x12x512xf32, #tpu.memory_space<vmem>>, vector<1x12x512xf32>
    %235 = vector.shape_cast %234 : vector<1x12x512xf32> to vector<12x512xf32>
    %236 = arith.mulf %233, %235 : vector<12x512xf32>
    %237 = arith.addf %232, %236 : vector<12x512xf32>
    %c494_i32 = arith.constant 494 : i32
    %238 = tpu.dynamic_rotate %119 by %c494_i32 dim 1 : vector<12x512xf32>, i32 -> vector<12x512xf32>
    %c24 = arith.constant 24 : index
    %c0_143 = arith.constant 0 : index
    %c0_144 = arith.constant 0 : index
    %239 = vector.load %arg14[%c24, %c0_143, %c0_144] : memref<25x12x512xf32, #tpu.memory_space<vmem>>, vector<1x12x512xf32>
    %240 = vector.shape_cast %239 : vector<1x12x512xf32> to vector<12x512xf32>
    %241 = arith.mulf %238, %240 : vector<12x512xf32>
    %242 = arith.addf %237, %241 : vector<12x512xf32>
    %c0_145 = arith.constant 0 : index
    %c0_146 = arith.constant 0 : index
    %243 = vector.load %arg18[%c0_145, %c0_146] : memref<12x12xf32, #tpu.memory_space<vmem>>, vector<12x12xf32>
    %cst_147 = arith.constant dense<0.000000e+00> : vector<12x512xf32>
    %244 = tpu.matmul %243, %242, %cst_147 {dimension_numbers = #tpu.dot_dimension_numbers<[1], [0], [0], [1], [0, 0, 1, 1], [], []>} : vector<12x12xf32>, vector<12x512xf32>, vector<12x512xf32> -> vector<12x512xf32>
    %c0_148 = arith.constant 0 : index
    %c6_149 = arith.constant 6 : index
    %245 = vector.load %arg4[%c0_148, %c6_149] : memref<12x12xf32, #tpu.memory_space<vmem>>, vector<12x1xf32>
    %246 = vector.broadcast %245 : vector<12x1xf32> to vector<12x512xf32>
    %247 = arith.addf %244, %246 : vector<12x512xf32>
    %cst_150 = arith.constant 0.000000e+00 : f32
    %248 = vector.broadcast %cst_150 : f32 to vector<12x512xf32>
    %249 = arith.maximumf %247, %248 : vector<12x512xf32>
    %c27_i32 = arith.constant 27 : i32
    %250 = tpu.dynamic_rotate %249 by %c27_i32 dim 1 : vector<12x512xf32>, i32 -> vector<12x512xf32>
    %c0_151 = arith.constant 0 : index
    %c0_152 = arith.constant 0 : index
    %c0_153 = arith.constant 0 : index
    %251 = vector.load %arg15[%c0_151, %c0_152, %c0_153] : memref<49x12x512xf32, #tpu.memory_space<vmem>>, vector<1x12x512xf32>
    %252 = vector.shape_cast %251 : vector<1x12x512xf32> to vector<12x512xf32>
    %253 = arith.mulf %250, %252 : vector<12x512xf32>
    %c26_i32 = arith.constant 26 : i32
    %254 = tpu.dynamic_rotate %249 by %c26_i32 dim 1 : vector<12x512xf32>, i32 -> vector<12x512xf32>
    %c1_154 = arith.constant 1 : index
    %c0_155 = arith.constant 0 : index
    %c0_156 = arith.constant 0 : index
    %255 = vector.load %arg15[%c1_154, %c0_155, %c0_156] : memref<49x12x512xf32, #tpu.memory_space<vmem>>, vector<1x12x512xf32>
    %256 = vector.shape_cast %255 : vector<1x12x512xf32> to vector<12x512xf32>
    %257 = arith.mulf %254, %256 : vector<12x512xf32>
    %258 = arith.addf %253, %257 : vector<12x512xf32>
    %c25_i32 = arith.constant 25 : i32
    %259 = tpu.dynamic_rotate %249 by %c25_i32 dim 1 : vector<12x512xf32>, i32 -> vector<12x512xf32>
    %c2_157 = arith.constant 2 : index
    %c0_158 = arith.constant 0 : index
    %c0_159 = arith.constant 0 : index
    %260 = vector.load %arg15[%c2_157, %c0_158, %c0_159] : memref<49x12x512xf32, #tpu.memory_space<vmem>>, vector<1x12x512xf32>
    %261 = vector.shape_cast %260 : vector<1x12x512xf32> to vector<12x512xf32>
    %262 = arith.mulf %259, %261 : vector<12x512xf32>
    %263 = arith.addf %258, %262 : vector<12x512xf32>
    %c24_i32 = arith.constant 24 : i32
    %264 = tpu.dynamic_rotate %249 by %c24_i32 dim 1 : vector<12x512xf32>, i32 -> vector<12x512xf32>
    %c3_160 = arith.constant 3 : index
    %c0_161 = arith.constant 0 : index
    %c0_162 = arith.constant 0 : index
    %265 = vector.load %arg15[%c3_160, %c0_161, %c0_162] : memref<49x12x512xf32, #tpu.memory_space<vmem>>, vector<1x12x512xf32>
    %266 = vector.shape_cast %265 : vector<1x12x512xf32> to vector<12x512xf32>
    %267 = arith.mulf %264, %266 : vector<12x512xf32>
    %268 = arith.addf %263, %267 : vector<12x512xf32>
    %c23_i32 = arith.constant 23 : i32
    %269 = tpu.dynamic_rotate %249 by %c23_i32 dim 1 : vector<12x512xf32>, i32 -> vector<12x512xf32>
    %c4_163 = arith.constant 4 : index
    %c0_164 = arith.constant 0 : index
    %c0_165 = arith.constant 0 : index
    %270 = vector.load %arg15[%c4_163, %c0_164, %c0_165] : memref<49x12x512xf32, #tpu.memory_space<vmem>>, vector<1x12x512xf32>
    %271 = vector.shape_cast %270 : vector<1x12x512xf32> to vector<12x512xf32>
    %272 = arith.mulf %269, %271 : vector<12x512xf32>
    %273 = arith.addf %268, %272 : vector<12x512xf32>
    %c22_i32 = arith.constant 22 : i32
    %274 = tpu.dynamic_rotate %249 by %c22_i32 dim 1 : vector<12x512xf32>, i32 -> vector<12x512xf32>
    %c5_166 = arith.constant 5 : index
    %c0_167 = arith.constant 0 : index
    %c0_168 = arith.constant 0 : index
    %275 = vector.load %arg15[%c5_166, %c0_167, %c0_168] : memref<49x12x512xf32, #tpu.memory_space<vmem>>, vector<1x12x512xf32>
    %276 = vector.shape_cast %275 : vector<1x12x512xf32> to vector<12x512xf32>
    %277 = arith.mulf %274, %276 : vector<12x512xf32>
    %278 = arith.addf %273, %277 : vector<12x512xf32>
    %c21_i32 = arith.constant 21 : i32
    %279 = tpu.dynamic_rotate %249 by %c21_i32 dim 1 : vector<12x512xf32>, i32 -> vector<12x512xf32>
    %c6_169 = arith.constant 6 : index
    %c0_170 = arith.constant 0 : index
    %c0_171 = arith.constant 0 : index
    %280 = vector.load %arg15[%c6_169, %c0_170, %c0_171] : memref<49x12x512xf32, #tpu.memory_space<vmem>>, vector<1x12x512xf32>
    %281 = vector.shape_cast %280 : vector<1x12x512xf32> to vector<12x512xf32>
    %282 = arith.mulf %279, %281 : vector<12x512xf32>
    %283 = arith.addf %278, %282 : vector<12x512xf32>
    %c19_i32 = arith.constant 19 : i32
    %284 = tpu.dynamic_rotate %249 by %c19_i32 dim 1 : vector<12x512xf32>, i32 -> vector<12x512xf32>
    %c7_172 = arith.constant 7 : index
    %c0_173 = arith.constant 0 : index
    %c0_174 = arith.constant 0 : index
    %285 = vector.load %arg15[%c7_172, %c0_173, %c0_174] : memref<49x12x512xf32, #tpu.memory_space<vmem>>, vector<1x12x512xf32>
    %286 = vector.shape_cast %285 : vector<1x12x512xf32> to vector<12x512xf32>
    %287 = arith.mulf %284, %286 : vector<12x512xf32>
    %288 = arith.addf %283, %287 : vector<12x512xf32>
    %c18_i32_175 = arith.constant 18 : i32
    %289 = tpu.dynamic_rotate %249 by %c18_i32_175 dim 1 : vector<12x512xf32>, i32 -> vector<12x512xf32>
    %c8_176 = arith.constant 8 : index
    %c0_177 = arith.constant 0 : index
    %c0_178 = arith.constant 0 : index
    %290 = vector.load %arg15[%c8_176, %c0_177, %c0_178] : memref<49x12x512xf32, #tpu.memory_space<vmem>>, vector<1x12x512xf32>
    %291 = vector.shape_cast %290 : vector<1x12x512xf32> to vector<12x512xf32>
    %292 = arith.mulf %289, %291 : vector<12x512xf32>
    %293 = arith.addf %288, %292 : vector<12x512xf32>
    %c17_i32_179 = arith.constant 17 : i32
    %294 = tpu.dynamic_rotate %249 by %c17_i32_179 dim 1 : vector<12x512xf32>, i32 -> vector<12x512xf32>
    %c9_180 = arith.constant 9 : index
    %c0_181 = arith.constant 0 : index
    %c0_182 = arith.constant 0 : index
    %295 = vector.load %arg15[%c9_180, %c0_181, %c0_182] : memref<49x12x512xf32, #tpu.memory_space<vmem>>, vector<1x12x512xf32>
    %296 = vector.shape_cast %295 : vector<1x12x512xf32> to vector<12x512xf32>
    %297 = arith.mulf %294, %296 : vector<12x512xf32>
    %298 = arith.addf %293, %297 : vector<12x512xf32>
    %c16_i32_183 = arith.constant 16 : i32
    %299 = tpu.dynamic_rotate %249 by %c16_i32_183 dim 1 : vector<12x512xf32>, i32 -> vector<12x512xf32>
    %c10_184 = arith.constant 10 : index
    %c0_185 = arith.constant 0 : index
    %c0_186 = arith.constant 0 : index
    %300 = vector.load %arg15[%c10_184, %c0_185, %c0_186] : memref<49x12x512xf32, #tpu.memory_space<vmem>>, vector<1x12x512xf32>
    %301 = vector.shape_cast %300 : vector<1x12x512xf32> to vector<12x512xf32>
    %302 = arith.mulf %299, %301 : vector<12x512xf32>
    %303 = arith.addf %298, %302 : vector<12x512xf32>
    %c15_i32_187 = arith.constant 15 : i32
    %304 = tpu.dynamic_rotate %249 by %c15_i32_187 dim 1 : vector<12x512xf32>, i32 -> vector<12x512xf32>
    %c11_188 = arith.constant 11 : index
    %c0_189 = arith.constant 0 : index
    %c0_190 = arith.constant 0 : index
    %305 = vector.load %arg15[%c11_188, %c0_189, %c0_190] : memref<49x12x512xf32, #tpu.memory_space<vmem>>, vector<1x12x512xf32>
    %306 = vector.shape_cast %305 : vector<1x12x512xf32> to vector<12x512xf32>
    %307 = arith.mulf %304, %306 : vector<12x512xf32>
    %308 = arith.addf %303, %307 : vector<12x512xf32>
    %c14_i32_191 = arith.constant 14 : i32
    %309 = tpu.dynamic_rotate %249 by %c14_i32_191 dim 1 : vector<12x512xf32>, i32 -> vector<12x512xf32>
    %c12_192 = arith.constant 12 : index
    %c0_193 = arith.constant 0 : index
    %c0_194 = arith.constant 0 : index
    %310 = vector.load %arg15[%c12_192, %c0_193, %c0_194] : memref<49x12x512xf32, #tpu.memory_space<vmem>>, vector<1x12x512xf32>
    %311 = vector.shape_cast %310 : vector<1x12x512xf32> to vector<12x512xf32>
    %312 = arith.mulf %309, %311 : vector<12x512xf32>
    %313 = arith.addf %308, %312 : vector<12x512xf32>
    %c13_i32 = arith.constant 13 : i32
    %314 = tpu.dynamic_rotate %249 by %c13_i32 dim 1 : vector<12x512xf32>, i32 -> vector<12x512xf32>
    %c13_195 = arith.constant 13 : index
    %c0_196 = arith.constant 0 : index
    %c0_197 = arith.constant 0 : index
    %315 = vector.load %arg15[%c13_195, %c0_196, %c0_197] : memref<49x12x512xf32, #tpu.memory_space<vmem>>, vector<1x12x512xf32>
    %316 = vector.shape_cast %315 : vector<1x12x512xf32> to vector<12x512xf32>
    %317 = arith.mulf %314, %316 : vector<12x512xf32>
    %318 = arith.addf %313, %317 : vector<12x512xf32>
    %c11_i32 = arith.constant 11 : i32
    %319 = tpu.dynamic_rotate %249 by %c11_i32 dim 1 : vector<12x512xf32>, i32 -> vector<12x512xf32>
    %c14_198 = arith.constant 14 : index
    %c0_199 = arith.constant 0 : index
    %c0_200 = arith.constant 0 : index
    %320 = vector.load %arg15[%c14_198, %c0_199, %c0_200] : memref<49x12x512xf32, #tpu.memory_space<vmem>>, vector<1x12x512xf32>
    %321 = vector.shape_cast %320 : vector<1x12x512xf32> to vector<12x512xf32>
    %322 = arith.mulf %319, %321 : vector<12x512xf32>
    %323 = arith.addf %318, %322 : vector<12x512xf32>
    %c10_i32_201 = arith.constant 10 : i32
    %324 = tpu.dynamic_rotate %249 by %c10_i32_201 dim 1 : vector<12x512xf32>, i32 -> vector<12x512xf32>
    %c15_202 = arith.constant 15 : index
    %c0_203 = arith.constant 0 : index
    %c0_204 = arith.constant 0 : index
    %325 = vector.load %arg15[%c15_202, %c0_203, %c0_204] : memref<49x12x512xf32, #tpu.memory_space<vmem>>, vector<1x12x512xf32>
    %326 = vector.shape_cast %325 : vector<1x12x512xf32> to vector<12x512xf32>
    %327 = arith.mulf %324, %326 : vector<12x512xf32>
    %328 = arith.addf %323, %327 : vector<12x512xf32>
    %c9_i32_205 = arith.constant 9 : i32
    %329 = tpu.dynamic_rotate %249 by %c9_i32_205 dim 1 : vector<12x512xf32>, i32 -> vector<12x512xf32>
    %c16_206 = arith.constant 16 : index
    %c0_207 = arith.constant 0 : index
    %c0_208 = arith.constant 0 : index
    %330 = vector.load %arg15[%c16_206, %c0_207, %c0_208] : memref<49x12x512xf32, #tpu.memory_space<vmem>>, vector<1x12x512xf32>
    %331 = vector.shape_cast %330 : vector<1x12x512xf32> to vector<12x512xf32>
    %332 = arith.mulf %329, %331 : vector<12x512xf32>
    %333 = arith.addf %328, %332 : vector<12x512xf32>
    %c8_i32_209 = arith.constant 8 : i32
    %334 = tpu.dynamic_rotate %249 by %c8_i32_209 dim 1 : vector<12x512xf32>, i32 -> vector<12x512xf32>
    %c17_210 = arith.constant 17 : index
    %c0_211 = arith.constant 0 : index
    %c0_212 = arith.constant 0 : index
    %335 = vector.load %arg15[%c17_210, %c0_211, %c0_212] : memref<49x12x512xf32, #tpu.memory_space<vmem>>, vector<1x12x512xf32>
    %336 = vector.shape_cast %335 : vector<1x12x512xf32> to vector<12x512xf32>
    %337 = arith.mulf %334, %336 : vector<12x512xf32>
    %338 = arith.addf %333, %337 : vector<12x512xf32>
    %c7_i32_213 = arith.constant 7 : i32
    %339 = tpu.dynamic_rotate %249 by %c7_i32_213 dim 1 : vector<12x512xf32>, i32 -> vector<12x512xf32>
    %c18_214 = arith.constant 18 : index
    %c0_215 = arith.constant 0 : index
    %c0_216 = arith.constant 0 : index
    %340 = vector.load %arg15[%c18_214, %c0_215, %c0_216] : memref<49x12x512xf32, #tpu.memory_space<vmem>>, vector<1x12x512xf32>
    %341 = vector.shape_cast %340 : vector<1x12x512xf32> to vector<12x512xf32>
    %342 = arith.mulf %339, %341 : vector<12x512xf32>
    %343 = arith.addf %338, %342 : vector<12x512xf32>
    %c6_i32_217 = arith.constant 6 : i32
    %344 = tpu.dynamic_rotate %249 by %c6_i32_217 dim 1 : vector<12x512xf32>, i32 -> vector<12x512xf32>
    %c19_218 = arith.constant 19 : index
    %c0_219 = arith.constant 0 : index
    %c0_220 = arith.constant 0 : index
    %345 = vector.load %arg15[%c19_218, %c0_219, %c0_220] : memref<49x12x512xf32, #tpu.memory_space<vmem>>, vector<1x12x512xf32>
    %346 = vector.shape_cast %345 : vector<1x12x512xf32> to vector<12x512xf32>
    %347 = arith.mulf %344, %346 : vector<12x512xf32>
    %348 = arith.addf %343, %347 : vector<12x512xf32>
    %c5_i32 = arith.constant 5 : i32
    %349 = tpu.dynamic_rotate %249 by %c5_i32 dim 1 : vector<12x512xf32>, i32 -> vector<12x512xf32>
    %c20_221 = arith.constant 20 : index
    %c0_222 = arith.constant 0 : index
    %c0_223 = arith.constant 0 : index
    %350 = vector.load %arg15[%c20_221, %c0_222, %c0_223] : memref<49x12x512xf32, #tpu.memory_space<vmem>>, vector<1x12x512xf32>
    %351 = vector.shape_cast %350 : vector<1x12x512xf32> to vector<12x512xf32>
    %352 = arith.mulf %349, %351 : vector<12x512xf32>
    %353 = arith.addf %348, %352 : vector<12x512xf32>
    %c3_i32 = arith.constant 3 : i32
    %354 = tpu.dynamic_rotate %249 by %c3_i32 dim 1 : vector<12x512xf32>, i32 -> vector<12x512xf32>
    %c21_224 = arith.constant 21 : index
    %c0_225 = arith.constant 0 : index
    %c0_226 = arith.constant 0 : index
    %355 = vector.load %arg15[%c21_224, %c0_225, %c0_226] : memref<49x12x512xf32, #tpu.memory_space<vmem>>, vector<1x12x512xf32>
    %356 = vector.shape_cast %355 : vector<1x12x512xf32> to vector<12x512xf32>
    %357 = arith.mulf %354, %356 : vector<12x512xf32>
    %358 = arith.addf %353, %357 : vector<12x512xf32>
    %c2_i32_227 = arith.constant 2 : i32
    %359 = tpu.dynamic_rotate %249 by %c2_i32_227 dim 1 : vector<12x512xf32>, i32 -> vector<12x512xf32>
    %c22_228 = arith.constant 22 : index
    %c0_229 = arith.constant 0 : index
    %c0_230 = arith.constant 0 : index
    %360 = vector.load %arg15[%c22_228, %c0_229, %c0_230] : memref<49x12x512xf32, #tpu.memory_space<vmem>>, vector<1x12x512xf32>
    %361 = vector.shape_cast %360 : vector<1x12x512xf32> to vector<12x512xf32>
    %362 = arith.mulf %359, %361 : vector<12x512xf32>
    %363 = arith.addf %358, %362 : vector<12x512xf32>
    %c1_i32_231 = arith.constant 1 : i32
    %364 = tpu.dynamic_rotate %249 by %c1_i32_231 dim 1 : vector<12x512xf32>, i32 -> vector<12x512xf32>
    %c23_232 = arith.constant 23 : index
    %c0_233 = arith.constant 0 : index
    %c0_234 = arith.constant 0 : index
    %365 = vector.load %arg15[%c23_232, %c0_233, %c0_234] : memref<49x12x512xf32, #tpu.memory_space<vmem>>, vector<1x12x512xf32>
    %366 = vector.shape_cast %365 : vector<1x12x512xf32> to vector<12x512xf32>
    %367 = arith.mulf %364, %366 : vector<12x512xf32>
    %368 = arith.addf %363, %367 : vector<12x512xf32>
    %c24_235 = arith.constant 24 : index
    %c0_236 = arith.constant 0 : index
    %c0_237 = arith.constant 0 : index
    %369 = vector.load %arg15[%c24_235, %c0_236, %c0_237] : memref<49x12x512xf32, #tpu.memory_space<vmem>>, vector<1x12x512xf32>
    %370 = vector.shape_cast %369 : vector<1x12x512xf32> to vector<12x512xf32>
    %371 = arith.mulf %249, %370 : vector<12x512xf32>
    %372 = arith.addf %368, %371 : vector<12x512xf32>
    %c511_i32_238 = arith.constant 511 : i32
    %373 = tpu.dynamic_rotate %249 by %c511_i32_238 dim 1 : vector<12x512xf32>, i32 -> vector<12x512xf32>
    %c25 = arith.constant 25 : index
    %c0_239 = arith.constant 0 : index
    %c0_240 = arith.constant 0 : index
    %374 = vector.load %arg15[%c25, %c0_239, %c0_240] : memref<49x12x512xf32, #tpu.memory_space<vmem>>, vector<1x12x512xf32>
    %375 = vector.shape_cast %374 : vector<1x12x512xf32> to vector<12x512xf32>
    %376 = arith.mulf %373, %375 : vector<12x512xf32>
    %377 = arith.addf %372, %376 : vector<12x512xf32>
    %c510_i32_241 = arith.constant 510 : i32
    %378 = tpu.dynamic_rotate %249 by %c510_i32_241 dim 1 : vector<12x512xf32>, i32 -> vector<12x512xf32>
    %c26 = arith.constant 26 : index
    %c0_242 = arith.constant 0 : index
    %c0_243 = arith.constant 0 : index
    %379 = vector.load %arg15[%c26, %c0_242, %c0_243] : memref<49x12x512xf32, #tpu.memory_space<vmem>>, vector<1x12x512xf32>
    %380 = vector.shape_cast %379 : vector<1x12x512xf32> to vector<12x512xf32>
    %381 = arith.mulf %378, %380 : vector<12x512xf32>
    %382 = arith.addf %377, %381 : vector<12x512xf32>
    %c509_i32 = arith.constant 509 : i32
    %383 = tpu.dynamic_rotate %249 by %c509_i32 dim 1 : vector<12x512xf32>, i32 -> vector<12x512xf32>
    %c27 = arith.constant 27 : index
    %c0_244 = arith.constant 0 : index
    %c0_245 = arith.constant 0 : index
    %384 = vector.load %arg15[%c27, %c0_244, %c0_245] : memref<49x12x512xf32, #tpu.memory_space<vmem>>, vector<1x12x512xf32>
    %385 = vector.shape_cast %384 : vector<1x12x512xf32> to vector<12x512xf32>
    %386 = arith.mulf %383, %385 : vector<12x512xf32>
    %387 = arith.addf %382, %386 : vector<12x512xf32>
    %c507_i32 = arith.constant 507 : i32
    %388 = tpu.dynamic_rotate %249 by %c507_i32 dim 1 : vector<12x512xf32>, i32 -> vector<12x512xf32>
    %c28 = arith.constant 28 : index
    %c0_246 = arith.constant 0 : index
    %c0_247 = arith.constant 0 : index
    %389 = vector.load %arg15[%c28, %c0_246, %c0_247] : memref<49x12x512xf32, #tpu.memory_space<vmem>>, vector<1x12x512xf32>
    %390 = vector.shape_cast %389 : vector<1x12x512xf32> to vector<12x512xf32>
    %391 = arith.mulf %388, %390 : vector<12x512xf32>
    %392 = arith.addf %387, %391 : vector<12x512xf32>
    %c506_i32_248 = arith.constant 506 : i32
    %393 = tpu.dynamic_rotate %249 by %c506_i32_248 dim 1 : vector<12x512xf32>, i32 -> vector<12x512xf32>
    %c29 = arith.constant 29 : index
    %c0_249 = arith.constant 0 : index
    %c0_250 = arith.constant 0 : index
    %394 = vector.load %arg15[%c29, %c0_249, %c0_250] : memref<49x12x512xf32, #tpu.memory_space<vmem>>, vector<1x12x512xf32>
    %395 = vector.shape_cast %394 : vector<1x12x512xf32> to vector<12x512xf32>
    %396 = arith.mulf %393, %395 : vector<12x512xf32>
    %397 = arith.addf %392, %396 : vector<12x512xf32>
    %c505_i32_251 = arith.constant 505 : i32
    %398 = tpu.dynamic_rotate %249 by %c505_i32_251 dim 1 : vector<12x512xf32>, i32 -> vector<12x512xf32>
    %c30 = arith.constant 30 : index
    %c0_252 = arith.constant 0 : index
    %c0_253 = arith.constant 0 : index
    %399 = vector.load %arg15[%c30, %c0_252, %c0_253] : memref<49x12x512xf32, #tpu.memory_space<vmem>>, vector<1x12x512xf32>
    %400 = vector.shape_cast %399 : vector<1x12x512xf32> to vector<12x512xf32>
    %401 = arith.mulf %398, %400 : vector<12x512xf32>
    %402 = arith.addf %397, %401 : vector<12x512xf32>
    %c504_i32_254 = arith.constant 504 : i32
    %403 = tpu.dynamic_rotate %249 by %c504_i32_254 dim 1 : vector<12x512xf32>, i32 -> vector<12x512xf32>
    %c31 = arith.constant 31 : index
    %c0_255 = arith.constant 0 : index
    %c0_256 = arith.constant 0 : index
    %404 = vector.load %arg15[%c31, %c0_255, %c0_256] : memref<49x12x512xf32, #tpu.memory_space<vmem>>, vector<1x12x512xf32>
    %405 = vector.shape_cast %404 : vector<1x12x512xf32> to vector<12x512xf32>
    %406 = arith.mulf %403, %405 : vector<12x512xf32>
    %407 = arith.addf %402, %406 : vector<12x512xf32>
    %c503_i32_257 = arith.constant 503 : i32
    %408 = tpu.dynamic_rotate %249 by %c503_i32_257 dim 1 : vector<12x512xf32>, i32 -> vector<12x512xf32>
    %c32 = arith.constant 32 : index
    %c0_258 = arith.constant 0 : index
    %c0_259 = arith.constant 0 : index
    %409 = vector.load %arg15[%c32, %c0_258, %c0_259] : memref<49x12x512xf32, #tpu.memory_space<vmem>>, vector<1x12x512xf32>
    %410 = vector.shape_cast %409 : vector<1x12x512xf32> to vector<12x512xf32>
    %411 = arith.mulf %408, %410 : vector<12x512xf32>
    %412 = arith.addf %407, %411 : vector<12x512xf32>
    %c502_i32_260 = arith.constant 502 : i32
    %413 = tpu.dynamic_rotate %249 by %c502_i32_260 dim 1 : vector<12x512xf32>, i32 -> vector<12x512xf32>
    %c33 = arith.constant 33 : index
    %c0_261 = arith.constant 0 : index
    %c0_262 = arith.constant 0 : index
    %414 = vector.load %arg15[%c33, %c0_261, %c0_262] : memref<49x12x512xf32, #tpu.memory_space<vmem>>, vector<1x12x512xf32>
    %415 = vector.shape_cast %414 : vector<1x12x512xf32> to vector<12x512xf32>
    %416 = arith.mulf %413, %415 : vector<12x512xf32>
    %417 = arith.addf %412, %416 : vector<12x512xf32>
    %c501_i32 = arith.constant 501 : i32
    %418 = tpu.dynamic_rotate %249 by %c501_i32 dim 1 : vector<12x512xf32>, i32 -> vector<12x512xf32>
    %c34 = arith.constant 34 : index
    %c0_263 = arith.constant 0 : index
    %c0_264 = arith.constant 0 : index
    %419 = vector.load %arg15[%c34, %c0_263, %c0_264] : memref<49x12x512xf32, #tpu.memory_space<vmem>>, vector<1x12x512xf32>
    %420 = vector.shape_cast %419 : vector<1x12x512xf32> to vector<12x512xf32>
    %421 = arith.mulf %418, %420 : vector<12x512xf32>
    %422 = arith.addf %417, %421 : vector<12x512xf32>
    %c499_i32 = arith.constant 499 : i32
    %423 = tpu.dynamic_rotate %249 by %c499_i32 dim 1 : vector<12x512xf32>, i32 -> vector<12x512xf32>
    %c35 = arith.constant 35 : index
    %c0_265 = arith.constant 0 : index
    %c0_266 = arith.constant 0 : index
    %424 = vector.load %arg15[%c35, %c0_265, %c0_266] : memref<49x12x512xf32, #tpu.memory_space<vmem>>, vector<1x12x512xf32>
    %425 = vector.shape_cast %424 : vector<1x12x512xf32> to vector<12x512xf32>
    %426 = arith.mulf %423, %425 : vector<12x512xf32>
    %427 = arith.addf %422, %426 : vector<12x512xf32>
    %c498_i32_267 = arith.constant 498 : i32
    %428 = tpu.dynamic_rotate %249 by %c498_i32_267 dim 1 : vector<12x512xf32>, i32 -> vector<12x512xf32>
    %c36 = arith.constant 36 : index
    %c0_268 = arith.constant 0 : index
    %c0_269 = arith.constant 0 : index
    %429 = vector.load %arg15[%c36, %c0_268, %c0_269] : memref<49x12x512xf32, #tpu.memory_space<vmem>>, vector<1x12x512xf32>
    %430 = vector.shape_cast %429 : vector<1x12x512xf32> to vector<12x512xf32>
    %431 = arith.mulf %428, %430 : vector<12x512xf32>
    %432 = arith.addf %427, %431 : vector<12x512xf32>
    %c497_i32_270 = arith.constant 497 : i32
    %433 = tpu.dynamic_rotate %249 by %c497_i32_270 dim 1 : vector<12x512xf32>, i32 -> vector<12x512xf32>
    %c37 = arith.constant 37 : index
    %c0_271 = arith.constant 0 : index
    %c0_272 = arith.constant 0 : index
    %434 = vector.load %arg15[%c37, %c0_271, %c0_272] : memref<49x12x512xf32, #tpu.memory_space<vmem>>, vector<1x12x512xf32>
    %435 = vector.shape_cast %434 : vector<1x12x512xf32> to vector<12x512xf32>
    %436 = arith.mulf %433, %435 : vector<12x512xf32>
    %437 = arith.addf %432, %436 : vector<12x512xf32>
    %c496_i32_273 = arith.constant 496 : i32
    %438 = tpu.dynamic_rotate %249 by %c496_i32_273 dim 1 : vector<12x512xf32>, i32 -> vector<12x512xf32>
    %c38 = arith.constant 38 : index
    %c0_274 = arith.constant 0 : index
    %c0_275 = arith.constant 0 : index
    %439 = vector.load %arg15[%c38, %c0_274, %c0_275] : memref<49x12x512xf32, #tpu.memory_space<vmem>>, vector<1x12x512xf32>
    %440 = vector.shape_cast %439 : vector<1x12x512xf32> to vector<12x512xf32>
    %441 = arith.mulf %438, %440 : vector<12x512xf32>
    %442 = arith.addf %437, %441 : vector<12x512xf32>
    %c495_i32_276 = arith.constant 495 : i32
    %443 = tpu.dynamic_rotate %249 by %c495_i32_276 dim 1 : vector<12x512xf32>, i32 -> vector<12x512xf32>
    %c39 = arith.constant 39 : index
    %c0_277 = arith.constant 0 : index
    %c0_278 = arith.constant 0 : index
    %444 = vector.load %arg15[%c39, %c0_277, %c0_278] : memref<49x12x512xf32, #tpu.memory_space<vmem>>, vector<1x12x512xf32>
    %445 = vector.shape_cast %444 : vector<1x12x512xf32> to vector<12x512xf32>
    %446 = arith.mulf %443, %445 : vector<12x512xf32>
    %447 = arith.addf %442, %446 : vector<12x512xf32>
    %c494_i32_279 = arith.constant 494 : i32
    %448 = tpu.dynamic_rotate %249 by %c494_i32_279 dim 1 : vector<12x512xf32>, i32 -> vector<12x512xf32>
    %c40 = arith.constant 40 : index
    %c0_280 = arith.constant 0 : index
    %c0_281 = arith.constant 0 : index
    %449 = vector.load %arg15[%c40, %c0_280, %c0_281] : memref<49x12x512xf32, #tpu.memory_space<vmem>>, vector<1x12x512xf32>
    %450 = vector.shape_cast %449 : vector<1x12x512xf32> to vector<12x512xf32>
    %451 = arith.mulf %448, %450 : vector<12x512xf32>
    %452 = arith.addf %447, %451 : vector<12x512xf32>
    %c493_i32 = arith.constant 493 : i32
    %453 = tpu.dynamic_rotate %249 by %c493_i32 dim 1 : vector<12x512xf32>, i32 -> vector<12x512xf32>
    %c41 = arith.constant 41 : index
    %c0_282 = arith.constant 0 : index
    %c0_283 = arith.constant 0 : index
    %454 = vector.load %arg15[%c41, %c0_282, %c0_283] : memref<49x12x512xf32, #tpu.memory_space<vmem>>, vector<1x12x512xf32>
    %455 = vector.shape_cast %454 : vector<1x12x512xf32> to vector<12x512xf32>
    %456 = arith.mulf %453, %455 : vector<12x512xf32>
    %457 = arith.addf %452, %456 : vector<12x512xf32>
    %c491_i32 = arith.constant 491 : i32
    %458 = tpu.dynamic_rotate %249 by %c491_i32 dim 1 : vector<12x512xf32>, i32 -> vector<12x512xf32>
    %c42 = arith.constant 42 : index
    %c0_284 = arith.constant 0 : index
    %c0_285 = arith.constant 0 : index
    %459 = vector.load %arg15[%c42, %c0_284, %c0_285] : memref<49x12x512xf32, #tpu.memory_space<vmem>>, vector<1x12x512xf32>
    %460 = vector.shape_cast %459 : vector<1x12x512xf32> to vector<12x512xf32>
    %461 = arith.mulf %458, %460 : vector<12x512xf32>
    %462 = arith.addf %457, %461 : vector<12x512xf32>
    %c490_i32 = arith.constant 490 : i32
    %463 = tpu.dynamic_rotate %249 by %c490_i32 dim 1 : vector<12x512xf32>, i32 -> vector<12x512xf32>
    %c43 = arith.constant 43 : index
    %c0_286 = arith.constant 0 : index
    %c0_287 = arith.constant 0 : index
    %464 = vector.load %arg15[%c43, %c0_286, %c0_287] : memref<49x12x512xf32, #tpu.memory_space<vmem>>, vector<1x12x512xf32>
    %465 = vector.shape_cast %464 : vector<1x12x512xf32> to vector<12x512xf32>
    %466 = arith.mulf %463, %465 : vector<12x512xf32>
    %467 = arith.addf %462, %466 : vector<12x512xf32>
    %c489_i32 = arith.constant 489 : i32
    %468 = tpu.dynamic_rotate %249 by %c489_i32 dim 1 : vector<12x512xf32>, i32 -> vector<12x512xf32>
    %c44 = arith.constant 44 : index
    %c0_288 = arith.constant 0 : index
    %c0_289 = arith.constant 0 : index
    %469 = vector.load %arg15[%c44, %c0_288, %c0_289] : memref<49x12x512xf32, #tpu.memory_space<vmem>>, vector<1x12x512xf32>
    %470 = vector.shape_cast %469 : vector<1x12x512xf32> to vector<12x512xf32>
    %471 = arith.mulf %468, %470 : vector<12x512xf32>
    %472 = arith.addf %467, %471 : vector<12x512xf32>
    %c488_i32 = arith.constant 488 : i32
    %473 = tpu.dynamic_rotate %249 by %c488_i32 dim 1 : vector<12x512xf32>, i32 -> vector<12x512xf32>
    %c45 = arith.constant 45 : index
    %c0_290 = arith.constant 0 : index
    %c0_291 = arith.constant 0 : index
    %474 = vector.load %arg15[%c45, %c0_290, %c0_291] : memref<49x12x512xf32, #tpu.memory_space<vmem>>, vector<1x12x512xf32>
    %475 = vector.shape_cast %474 : vector<1x12x512xf32> to vector<12x512xf32>
    %476 = arith.mulf %473, %475 : vector<12x512xf32>
    %477 = arith.addf %472, %476 : vector<12x512xf32>
    %c487_i32 = arith.constant 487 : i32
    %478 = tpu.dynamic_rotate %249 by %c487_i32 dim 1 : vector<12x512xf32>, i32 -> vector<12x512xf32>
    %c46 = arith.constant 46 : index
    %c0_292 = arith.constant 0 : index
    %c0_293 = arith.constant 0 : index
    %479 = vector.load %arg15[%c46, %c0_292, %c0_293] : memref<49x12x512xf32, #tpu.memory_space<vmem>>, vector<1x12x512xf32>
    %480 = vector.shape_cast %479 : vector<1x12x512xf32> to vector<12x512xf32>
    %481 = arith.mulf %478, %480 : vector<12x512xf32>
    %482 = arith.addf %477, %481 : vector<12x512xf32>
    %c486_i32 = arith.constant 486 : i32
    %483 = tpu.dynamic_rotate %249 by %c486_i32 dim 1 : vector<12x512xf32>, i32 -> vector<12x512xf32>
    %c47 = arith.constant 47 : index
    %c0_294 = arith.constant 0 : index
    %c0_295 = arith.constant 0 : index
    %484 = vector.load %arg15[%c47, %c0_294, %c0_295] : memref<49x12x512xf32, #tpu.memory_space<vmem>>, vector<1x12x512xf32>
    %485 = vector.shape_cast %484 : vector<1x12x512xf32> to vector<12x512xf32>
    %486 = arith.mulf %483, %485 : vector<12x512xf32>
    %487 = arith.addf %482, %486 : vector<12x512xf32>
    %c485_i32 = arith.constant 485 : i32
    %488 = tpu.dynamic_rotate %249 by %c485_i32 dim 1 : vector<12x512xf32>, i32 -> vector<12x512xf32>
    %c48 = arith.constant 48 : index
    %c0_296 = arith.constant 0 : index
    %c0_297 = arith.constant 0 : index
    %489 = vector.load %arg15[%c48, %c0_296, %c0_297] : memref<49x12x512xf32, #tpu.memory_space<vmem>>, vector<1x12x512xf32>
    %490 = vector.shape_cast %489 : vector<1x12x512xf32> to vector<12x512xf32>
    %491 = arith.mulf %488, %490 : vector<12x512xf32>
    %492 = arith.addf %487, %491 : vector<12x512xf32>
    %c0_298 = arith.constant 0 : index
    %c0_299 = arith.constant 0 : index
    %493 = vector.load %arg19[%c0_298, %c0_299] : memref<12x12xf32, #tpu.memory_space<vmem>>, vector<12x12xf32>
    %cst_300 = arith.constant dense<0.000000e+00> : vector<12x512xf32>
    %494 = tpu.matmul %493, %492, %cst_300 {dimension_numbers = #tpu.dot_dimension_numbers<[1], [0], [0], [1], [0, 0, 1, 1], [], []>} : vector<12x12xf32>, vector<12x512xf32>, vector<12x512xf32> -> vector<12x512xf32>
    %c0_301 = arith.constant 0 : index
    %c7_302 = arith.constant 7 : index
    %495 = vector.load %arg4[%c0_301, %c7_302] : memref<12x12xf32, #tpu.memory_space<vmem>>, vector<12x1xf32>
    %496 = vector.broadcast %495 : vector<12x1xf32> to vector<12x512xf32>
    %497 = arith.addf %494, %496 : vector<12x512xf32>
    %498 = arith.addf %497, %70 : vector<12x512xf32>
    %cst_303 = arith.constant 0.000000e+00 : f32
    %499 = vector.broadcast %cst_303 : f32 to vector<12x512xf32>
    %500 = arith.maximumf %498, %499 : vector<12x512xf32>
    %c0_304 = arith.constant 0 : index
    %c0_305 = arith.constant 0 : index
    %501 = vector.load %arg20[%c0_304, %c0_305] : memref<12x12xf32, #tpu.memory_space<vmem>>, vector<12x12xf32>
    %cst_306 = arith.constant dense<0.000000e+00> : vector<12x512xf32>
    %502 = tpu.matmul %501, %500, %cst_306 {dimension_numbers = #tpu.dot_dimension_numbers<[1], [0], [0], [1], [0, 0, 1, 1], [], []>} : vector<12x12xf32>, vector<12x512xf32>, vector<12x512xf32> -> vector<12x512xf32>
    %c0_307 = arith.constant 0 : index
    %c8_308 = arith.constant 8 : index
    %503 = vector.load %arg4[%c0_307, %c8_308] : memref<12x12xf32, #tpu.memory_space<vmem>>, vector<12x1xf32>
    %504 = vector.broadcast %503 : vector<12x1xf32> to vector<12x512xf32>
    %505 = arith.addf %502, %504 : vector<12x512xf32>
    %cst_309 = arith.constant 0.000000e+00 : f32
    %506 = vector.broadcast %cst_309 : f32 to vector<12x512xf32>
    %507 = arith.maximumf %505, %506 : vector<12x512xf32>
    %508 = arith.addf %69, %507 : vector<12x512xf32>
    %c0_310 = arith.constant 0 : index
    %c0_311 = arith.constant 0 : index
    %509 = vector.load %arg2[%c0_310, %c0_311] : memref<512x8xf32, #tpu.memory_space<vmem>>, vector<512x8xf32>
    %cst_312 = arith.constant dense<0.000000e+00> : vector<12x8xf32>
    %510 = tpu.matmul %508, %509, %cst_312 {dimension_numbers = #tpu.dot_dimension_numbers<[1], [0], [0], [1], [0, 0, 1, 1], [], []>} : vector<12x512xf32>, vector<512x8xf32>, vector<12x8xf32> -> vector<12x8xf32>
    %c0_313 = arith.constant 0 : index
    %c0_314 = arith.constant 0 : index
    %511 = vector.load %arg21[%c0_313, %c0_314] : memref<6x12xf32, #tpu.memory_space<vmem>>, vector<6x12xf32>
    %cst_315 = arith.constant dense<0.000000e+00> : vector<6x8xf32>
    %512 = tpu.matmul %511, %510, %cst_315 {dimension_numbers = #tpu.dot_dimension_numbers<[1], [0], [0], [1], [0, 0, 1, 1], [], []>} : vector<6x12xf32>, vector<12x8xf32>, vector<6x8xf32> -> vector<6x8xf32>
    %c0_316 = arith.constant 0 : index
    %c9_317 = arith.constant 9 : index
    %513 = vector.load %arg4[%c0_316, %c9_317] : memref<12x12xf32, #tpu.memory_space<vmem>>, vector<6x1xf32>
    %514 = vector.broadcast %513 : vector<6x1xf32> to vector<6x8xf32>
    %515 = arith.addf %512, %514 : vector<6x8xf32>
    %cst_318 = arith.constant 0.333333343 : f32
    %516 = vector.broadcast %cst_318 : f32 to vector<6x8xf32>
    %517 = arith.mulf %515, %516 : vector<6x8xf32>
    %c0_319 = arith.constant 0 : index
    %c0_320 = arith.constant 0 : index
    %c0_321 = arith.constant 0 : index
    %518 = vector.load %arg22[%c0_319, %c0_320, %c0_321] : memref<1x6x8xf32, #tpu.memory_space<vmem>>, vector<1x6x8xf32>
    %519 = vector.shape_cast %518 : vector<1x6x8xf32> to vector<6x8xf32>
    %520 = vector.shape_cast %517 : vector<6x8xf32> to vector<1x6x8xf32>
    tpu.vector_store %arg22[%c0_319, %c0_320, %c0_321], %520 {strides = array<i32>} : memref<1x6x8xf32, #tpu.memory_space<vmem>>, vector<1x6x8xf32>,
    return
  }
  func.func @transform_0(%arg0: i32) -> (i32, i32) {
    %c0_i32 = arith.constant 0 : i32
    %c0_i32_0 = arith.constant 0 : i32
    return %c0_i32, %arg0 : i32, i32
  }
  func.func @transform_1(%arg0: i32) -> (i32, i32) {
    %c0_i32 = arith.constant 0 : i32
    %c0_i32_0 = arith.constant 0 : i32
    %c0_i32_1 = arith.constant 0 : i32
    return %c0_i32, %c0_i32_0 : i32, i32
  }
  func.func @transform_2(%arg0: i32) -> (i32, i32) {
    %c0_i32 = arith.constant 0 : i32
    %c0_i32_0 = arith.constant 0 : i32
    %c0_i32_1 = arith.constant 0 : i32
    return %c0_i32, %c0_i32_0 : i32, i32
  }
  func.func @transform_3(%arg0: i32) -> (i32, i32) {
    %c0_i32 = arith.constant 0 : i32
    %c0_i32_0 = arith.constant 0 : i32
    %c0_i32_1 = arith.constant 0 : i32
    return %c0_i32, %c0_i32_0 : i32, i32
  }
  func.func @transform_4(%arg0: i32) -> (i32, i32) {
    %c0_i32 = arith.constant 0 : i32
    %c0_i32_0 = arith.constant 0 : i32
    %c0_i32_1 = arith.constant 0 : i32
    return %c0_i32, %c0_i32_0 : i32, i32
  }
  func.func @transform_5(%arg0: i32) -> (i32, i32) {
    %c0_i32 = arith.constant 0 : i32
    %c0_i32_0 = arith.constant 0 : i32
    %c0_i32_1 = arith.constant 0 : i32
    return %c0_i32, %c0_i32_0 : i32, i32
  }
  func.func @transform_6(%arg0: i32) -> (i32, i32) {
    %c0_i32 = arith.constant 0 : i32
    %c0_i32_0 = arith.constant 0 : i32
    %c0_i32_1 = arith.constant 0 : i32
    return %c0_i32, %c0_i32_0 : i32, i32
  }
  func.func @transform_7(%arg0: i32) -> (i32, i32) {
    %c0_i32 = arith.constant 0 : i32
    %c0_i32_0 = arith.constant 0 : i32
    %c0_i32_1 = arith.constant 0 : i32
    return %c0_i32, %c0_i32_0 : i32, i32
  }
  func.func @transform_8(%arg0: i32) -> (i32, i32) {
    %c0_i32 = arith.constant 0 : i32
    %c0_i32_0 = arith.constant 0 : i32
    %c0_i32_1 = arith.constant 0 : i32
    return %c0_i32, %c0_i32_0 : i32, i32
  }
  func.func @transform_9(%arg0: i32) -> (i32, i32) {
    %c0_i32 = arith.constant 0 : i32
    %c0_i32_0 = arith.constant 0 : i32
    %c0_i32_1 = arith.constant 0 : i32
    return %c0_i32, %c0_i32_0 : i32, i32
  }
  func.func @transform_10(%arg0: i32) -> (i32, i32) {
    %c0_i32 = arith.constant 0 : i32
    %c0_i32_0 = arith.constant 0 : i32
    %c0_i32_1 = arith.constant 0 : i32
    return %c0_i32, %c0_i32_0 : i32, i32
  }
  func.func @transform_11(%arg0: i32) -> (i32, i32) {
    %c0_i32 = arith.constant 0 : i32
    %c0_i32_0 = arith.constant 0 : i32
    %c0_i32_1 = arith.constant 0 : i32
    return %c0_i32, %c0_i32_0 : i32, i32
  }
  func.func @transform_12(%arg0: i32) -> (i32, i32, i32) {
    %c0_i32 = arith.constant 0 : i32
    %c0_i32_0 = arith.constant 0 : i32
    %c0_i32_1 = arith.constant 0 : i32
    %c0_i32_2 = arith.constant 0 : i32
    return %c0_i32, %c0_i32_0, %c0_i32_1 : i32, i32, i32
  }
  func.func @transform_13(%arg0: i32) -> (i32, i32, i32) {
    %c0_i32 = arith.constant 0 : i32
    %c0_i32_0 = arith.constant 0 : i32
    %c0_i32_1 = arith.constant 0 : i32
    %c0_i32_2 = arith.constant 0 : i32
    return %c0_i32, %c0_i32_0, %c0_i32_1 : i32, i32, i32
  }
  func.func @transform_14(%arg0: i32) -> (i32, i32, i32) {
    %c0_i32 = arith.constant 0 : i32
    %c0_i32_0 = arith.constant 0 : i32
    %c0_i32_1 = arith.constant 0 : i32
    %c0_i32_2 = arith.constant 0 : i32
    return %c0_i32, %c0_i32_0, %c0_i32_1 : i32, i32, i32
  }
  func.func @transform_15(%arg0: i32) -> (i32, i32) {
    %c0_i32 = arith.constant 0 : i32
    %c0_i32_0 = arith.constant 0 : i32
    %c0_i32_1 = arith.constant 0 : i32
    return %c0_i32, %c0_i32_0 : i32, i32
  }
  func.func @transform_16(%arg0: i32) -> (i32, i32) {
    %c0_i32 = arith.constant 0 : i32
    %c0_i32_0 = arith.constant 0 : i32
    %c0_i32_1 = arith.constant 0 : i32
    return %c0_i32, %c0_i32_0 : i32, i32
  }
  func.func @transform_17(%arg0: i32) -> (i32, i32) {
    %c0_i32 = arith.constant 0 : i32
    %c0_i32_0 = arith.constant 0 : i32
    %c0_i32_1 = arith.constant 0 : i32
    return %c0_i32, %c0_i32_0 : i32, i32
  }
  func.func @transform_18(%arg0: i32) -> (i32, i32) {
    %c0_i32 = arith.constant 0 : i32
    %c0_i32_0 = arith.constant 0 : i32
    %c0_i32_1 = arith.constant 0 : i32
    return %c0_i32, %c0_i32_0 : i32, i32
  }
  func.func @transform_19(%arg0: i32) -> (i32, i32) {
    %c0_i32 = arith.constant 0 : i32
    %c0_i32_0 = arith.constant 0 : i32
    %c0_i32_1 = arith.constant 0 : i32
    return %c0_i32, %c0_i32_0 : i32, i32
  }
  func.func @transform_20(%arg0: i32) -> (i32, i32) {
    %c0_i32 = arith.constant 0 : i32
    %c0_i32_0 = arith.constant 0 : i32
    %c0_i32_1 = arith.constant 0 : i32
    return %c0_i32, %c0_i32_0 : i32, i32
  }
  func.func @transform_21(%arg0: i32) -> (i32, i32, i32) {
    %c0_i32 = arith.constant 0 : i32
    %c0_i32_0 = arith.constant 0 : i32
    %c0_i32_1 = arith.constant 0 : i32
    return %arg0, %c0_i32, %c0_i32_0 : i32, i32, i32
  }
}

</mosaic_0001>

<llo_original>
// kernel: tpu_custom_call.1
$region0: #{tpu_custom_call.1}
  #allocation0 [shape = 'u32[]', space=smem, size = 0x4, offset = 0x4, fixed_abs, tag = 'smem constant byte address 0x4 - core index']
  #allocation1 [shape = 'u32[144,128]{1,0:T(1,128)}', space=vmem, size = 0x12000, scoped, tag = 'internal scratch']
  %s0 = inlined_call_operand.vmem [shape: f32[12,1024], index: 0, kind: input, shape index: {}]
  %s1 = inlined_call_operand.vmem [shape: f32[512,8], index: 1, kind: input, shape index: {}]
  %s2 = inlined_call_operand.vmem [shape: f32[8,512], index: 2, kind: input, shape index: {}]
  %s3 = inlined_call_operand.vmem [shape: f32[12,12], index: 3, kind: input, shape index: {}]
  %s4 = inlined_call_operand.vmem [shape: f32[4,12], index: 4, kind: input, shape index: {}]
  %s5 = inlined_call_operand.vmem [shape: f32[12,4], index: 5, kind: input, shape index: {}]
  %s6 = inlined_call_operand.vmem [shape: f32[3,12], index: 6, kind: input, shape index: {}]
  %s7 = inlined_call_operand.vmem [shape: f32[12,3], index: 7, kind: input, shape index: {}]
  %s8 = inlined_call_operand.vmem [shape: f32[12,12], index: 8, kind: input, shape index: {}]
  %s9 = inlined_call_operand.vmem [shape: f32[12,12], index: 9, kind: input, shape index: {}]
  %s10 = inlined_call_operand.vmem [shape: f32[12,512], index: 10, kind: input, shape index: {}]
  %s11 = inlined_call_operand.vmem [shape: f32[12,512], index: 11, kind: input, shape index: {}]
  %s12 = inlined_call_operand.vmem [shape: f32[9,12,512], index: 12, kind: input, shape index: {}]
  %s13 = inlined_call_operand.vmem [shape: f32[25,12,512], index: 13, kind: input, shape index: {}]
  %s14 = inlined_call_operand.vmem [shape: f32[49,12,512], index: 14, kind: input, shape index: {}]
  %s15 = inlined_call_operand.vmem [shape: f32[12,12], index: 15, kind: input, shape index: {}]
  %s16 = inlined_call_operand.vmem [shape: f32[12,512], index: 16, kind: input, shape index: {}]
  %s17 = inlined_call_operand.vmem [shape: f32[12,12], index: 17, kind: input, shape index: {}]
  %s18 = inlined_call_operand.vmem [shape: f32[12,12], index: 18, kind: input, shape index: {}]
  %s19 = inlined_call_operand.vmem [shape: f32[12,12], index: 19, kind: input, shape index: {}]
  %s20 = inlined_call_operand.vmem [shape: f32[6,12], index: 20, kind: input, shape index: {}]
  %s21 = inlined_call_operand.vmem [shape: f32[2,6,8], index: 21, kind: output, shape index: {}]
  %s22 = sld [smem:[#allocation0]]
  $region140: #{tpu_custom_call.1} parent=0
    _
  %s24 = ssub.s32 1, %s22
  %s25 = scalar_select 0, %s24, %s22
  $region1: #{tpu_custom_call.1} parent=0
    #allocation2 [shape = 'u8[65536]{0}', space=vmem, size = 0x10000, scoped, tag = 'input window, operand 0']
    loop: start=0, step=1, limit=4
    $region2: #{tpu_custom_call.1} parent=1 // loop_pre_header
      _
    $region3: #{tpu_custom_call.1} parent=1 // loop_header
      %s27 = sphi 0, %s31
      %p28 = scmp.ge.s32.totalorder %s27, 4
      %s37 = sphi 0, %s39
      %s40 = sphi 0, %s37
      %s41 = sphi 0, %s40
      %s57 = sphi 0, %s41
      %s61 = sphi 0, %s61
      %s63 = sphi 0, %s61
      %s64 = sphi 0, %s63
      %s78 = sphi 0, %s64
      %s82 = sphi 0, %s82
      %s84 = sphi 0, %s82
      %s85 = sphi 0, %s84
      %s99 = sphi 0, %s85
      %s103 = sphi 0, %s103
      %s105 = sphi 0, %s103
      %s106 = sphi 0, %s105
      %s120 = sphi 0, %s106
      %s124 = sphi 0, %s124
      %s126 = sphi 0, %s124
      %s127 = sphi 0, %s126
      %s141 = sphi 0, %s127
      %s145 = sphi 0, %s145
      %s147 = sphi 0, %s145
      %s148 = sphi 0, %s147
      %s162 = sphi 0, %s148
      %s166 = sphi 0, %s166
      %s168 = sphi 0, %s166
      %s169 = sphi 0, %s168
      %s183 = sphi 0, %s169
      %s187 = sphi 0, %s187
      %s189 = sphi 0, %s187
      %s190 = sphi 0, %s189
      %s204 = sphi 0, %s190
      %s208 = sphi 0, %s208
      %s210 = sphi 0, %s208
      %s211 = sphi 0, %s210
      %s225 = sphi 0, %s211
      %s229 = sphi 0, %s229
      %s231 = sphi 0, %s229
      %s232 = sphi 0, %s231
      %s246 = sphi 0, %s232
      %s250 = sphi 0, %s250
      %s252 = sphi 0, %s250
      %s253 = sphi 0, %s252
      %s267 = sphi 0, %s253
      %s271 = sphi 0, %s271
      %s273 = sphi 0, %s271
      %s274 = sphi 0, %s273
      %s288 = sphi 0, %s274
      %s292 = sphi 0, %s292
      %s294 = sphi 0, %s292
      %s295 = sphi 0, %s294
      %s309 = sphi 0, %s295
      %s313 = sphi 0, %s313
      %s315 = sphi 0, %s313
      %s316 = sphi 0, %s315
      %s330 = sphi 0, %s316
      %s334 = sphi 0, %s334
      %s336 = sphi 0, %s334
      %s337 = sphi 0, %s336
      %s351 = sphi 0, %s337
      %s355 = sphi 0, %s355
      %s357 = sphi 0, %s355
      %s358 = sphi 0, %s357
      %s372 = sphi 0, %s358
      %s376 = sphi 0, %s376
      %s378 = sphi 0, %s376
      %s379 = sphi 0, %s378
      %s393 = sphi 0, %s379
      %s397 = sphi 0, %s397
      %s399 = sphi 0, %s397
      %s400 = sphi 0, %s399
      %s414 = sphi 0, %s400
      %s418 = sphi 0, %s418
      %s420 = sphi 0, %s418
      %s421 = sphi 0, %s420
      %s435 = sphi 0, %s421
      %s439 = sphi 0, %s439
      %s441 = sphi 0, %s439
      %s442 = sphi 0, %s441
      %s456 = sphi 0, %s442
      %s460 = sphi 0, %s460
      %s462 = sphi 0, %s460
      %s463 = sphi 0, %s462
      %s477 = sphi 0, %s463
      %s483 = sphi 0, %s485
      %s486 = sphi 0, %s483
      %s487 = sphi 0, %s486
      %s503 = sphi 0, %s487
    $region4: #{tpu_custom_call.1} parent=1 // loop_header_branch
      %30 = sbr.rel (%p28) target = $region8
    $region5: #{tpu_custom_call.1} parent=1 // loop_body
      %s32 = ssub.s32 %s27, 1
      %s33 = ssub.s32 %s27, 2
      %s34 = sadd.s32 %s27, 1
      %s35 = ssub.s32 %s27, %s34
      %p36 = scmp.eq.s32.totalorder %s35, 0
      %s38 = sadd.s32 %s37, 1
      %s39 = scalar_select %p36, %s37, %s38
      %p42 = pneg %p36
      %p43 = scmp.eq.s32.totalorder %s27, 1
      %p44 = por %p42, %p43
      %p45 = scmp.ne.s32.totalorder %s37, %s40
      %p46 = scmp.eq.s32.totalorder %s27, 0
      %p47 = por %p45, %p46
      %p48 = scmp.ne.s32.totalorder %s37, %s40
      %p49 = scmp.eq.s32.totalorder %s32, 1
      %p50 = por %p48, %p49
      %p51 = scmp.ne.s32.totalorder %s40, %s41
      %p52 = scmp.eq.s32.totalorder %s32, 0
      %p53 = por %p51, %p52
      %p54 = scmp.ne.s32.totalorder %s40, %s41
      %p55 = scmp.eq.s32.totalorder %s33, 1
      %p56 = por %p54, %p55
      %p58 = scmp.ne.s32.totalorder %s41, %s57
      %p59 = scmp.eq.s32.totalorder %s33, 0
      %p60 = por %p58, %p59
      %s62 = sadd.s32 %s61, 1
      %p65 = scmp.eq.s32.totalorder %s27, 1
      %p66 = scmp.ne.s32.totalorder %s61, %s63
      %p67 = scmp.eq.s32.totalorder %s27, 0
      %p68 = por %p66, %p67
      %p69 = scmp.ne.s32.totalorder %s61, %s63
      %p70 = scmp.eq.s32.totalorder %s32, 1
      %p71 = por %p69, %p70
      %p72 = scmp.ne.s32.totalorder %s63, %s64
      %p73 = scmp.eq.s32.totalorder %s32, 0
      %p74 = por %p72, %p73
      %p75 = scmp.ne.s32.totalorder %s63, %s64
      %p76 = scmp.eq.s32.totalorder %s33, 1
      %p77 = por %p75, %p76
      %p79 = scmp.ne.s32.totalorder %s64, %s78
      %p80 = scmp.eq.s32.totalorder %s33, 0
      %p81 = por %p79, %p80
      %s83 = sadd.s32 %s82, 1
      %p86 = scmp.eq.s32.totalorder %s27, 1
      %p87 = scmp.ne.s32.totalorder %s82, %s84
      %p88 = scmp.eq.s32.totalorder %s27, 0
      %p89 = por %p87, %p88
      %p90 = scmp.ne.s32.totalorder %s82, %s84
      %p91 = scmp.eq.s32.totalorder %s32, 1
      %p92 = por %p90, %p91
      %p93 = scmp.ne.s32.totalorder %s84, %s85
      %p94 = scmp.eq.s32.totalorder %s32, 0
      %p95 = por %p93, %p94
      %p96 = scmp.ne.s32.totalorder %s84, %s85
      %p97 = scmp.eq.s32.totalorder %s33, 1
      %p98 = por %p96, %p97
      %p100 = scmp.ne.s32.totalorder %s85, %s99
      %p101 = scmp.eq.s32.totalorder %s33, 0
      %p102 = por %p100, %p101
      %s104 = sadd.s32 %s103, 1
      %p107 = scmp.eq.s32.totalorder %s27, 1
      %p108 = scmp.ne.s32.totalorder %s103, %s105
      %p109 = scmp.eq.s32.totalorder %s27, 0
      %p110 = por %p108, %p109
      %p111 = scmp.ne.s32.totalorder %s103, %s105
      %p112 = scmp.eq.s32.totalorder %s32, 1
      %p113 = por %p111, %p112
      %p114 = scmp.ne.s32.totalorder %s105, %s106
      %p115 = scmp.eq.s32.totalorder %s32, 0
      %p116 = por %p114, %p115
      %p117 = scmp.ne.s32.totalorder %s105, %s106
      %p118 = scmp.eq.s32.totalorder %s33, 1
      %p119 = por %p117, %p118
      %p121 = scmp.ne.s32.totalorder %s106, %s120
      %p122 = scmp.eq.s32.totalorder %s33, 0
      %p123 = por %p121, %p122
      %s125 = sadd.s32 %s124, 1
      %p128 = scmp.eq.s32.totalorder %s27, 1
      %p129 = scmp.ne.s32.totalorder %s124, %s126
      %p130 = scmp.eq.s32.totalorder %s27, 0
      %p131 = por %p129, %p130
      %p132 = scmp.ne.s32.totalorder %s124, %s126
      %p133 = scmp.eq.s32.totalorder %s32, 1
      %p134 = por %p132, %p133
      %p135 = scmp.ne.s32.totalorder %s126, %s127
      %p136 = scmp.eq.s32.totalorder %s32, 0
      %p137 = por %p135, %p136
      %p138 = scmp.ne.s32.totalorder %s126, %s127
      %p139 = scmp.eq.s32.totalorder %s33, 1
      %p140 = por %p138, %p139
      %p142 = scmp.ne.s32.totalorder %s127, %s141
      %p143 = scmp.eq.s32.totalorder %s33, 0
      %p144 = por %p142, %p143
      %s146 = sadd.s32 %s145, 1
      %p149 = scmp.eq.s32.totalorder %s27, 1
      %p150 = scmp.ne.s32.totalorder %s145, %s147
      %p151 = scmp.eq.s32.totalorder %s27, 0
      %p152 = por %p150, %p151
      %p153 = scmp.ne.s32.totalorder %s145, %s147
      %p154 = scmp.eq.s32.totalorder %s32, 1
      %p155 = por %p153, %p154
      %p156 = scmp.ne.s32.totalorder %s147, %s148
      %p157 = scmp.eq.s32.totalorder %s32, 0
      %p158 = por %p156, %p157
      %p159 = scmp.ne.s32.totalorder %s147, %s148
      %p160 = scmp.eq.s32.totalorder %s33, 1
      %p161 = por %p159, %p160
      %p163 = scmp.ne.s32.totalorder %s148, %s162
      %p164 = scmp.eq.s32.totalorder %s33, 0
      %p165 = por %p163, %p164
      %s167 = sadd.s32 %s166, 1
      %p170 = scmp.eq.s32.totalorder %s27, 1
      %p171 = scmp.ne.s32.totalorder %s166, %s168
      %p172 = scmp.eq.s32.totalorder %s27, 0
      %p173 = por %p171, %p172
      %p174 = scmp.ne.s32.totalorder %s166, %s168
      %p175 = scmp.eq.s32.totalorder %s32, 1
      %p176 = por %p174, %p175
      %p177 = scmp.ne.s32.totalorder %s168, %s169
      %p178 = scmp.eq.s32.totalorder %s32, 0
      %p179 = por %p177, %p178
      %p180 = scmp.ne.s32.totalorder %s168, %s169
      %p181 = scmp.eq.s32.totalorder %s33, 1
      %p182 = por %p180, %p181
      %p184 = scmp.ne.s32.totalorder %s169, %s183
      %p185 = scmp.eq.s32.totalorder %s33, 0
      %p186 = por %p184, %p185
      %s188 = sadd.s32 %s187, 1
      %p191 = scmp.eq.s32.totalorder %s27, 1
      %p192 = scmp.ne.s32.totalorder %s187, %s189
      %p193 = scmp.eq.s32.totalorder %s27, 0
      %p194 = por %p192, %p193
      %p195 = scmp.ne.s32.totalorder %s187, %s189
      %p196 = scmp.eq.s32.totalorder %s32, 1
      %p197 = por %p195, %p196
      %p198 = scmp.ne.s32.totalorder %s189, %s190
      %p199 = scmp.eq.s32.totalorder %s32, 0
      %p200 = por %p198, %p199
      %p201 = scmp.ne.s32.totalorder %s189, %s190
      %p202 = scmp.eq.s32.totalorder %s33, 1
      %p203 = por %p201, %p202
      %p205 = scmp.ne.s32.totalorder %s190, %s204
      %p206 = scmp.eq.s32.totalorder %s33, 0
      %p207 = por %p205, %p206
      %s209 = sadd.s32 %s208, 1
      %p212 = scmp.eq.s32.totalorder %s27, 1
      %p213 = scmp.ne.s32.totalorder %s208, %s210
      %p214 = scmp.eq.s32.totalorder %s27, 0
      %p215 = por %p213, %p214
      %p216 = scmp.ne.s32.totalorder %s208, %s210
      %p217 = scmp.eq.s32.totalorder %s32, 1
      %p218 = por %p216, %p217
      %p219 = scmp.ne.s32.totalorder %s210, %s211
      %p220 = scmp.eq.s32.totalorder %s32, 0
      %p221 = por %p219, %p220
      %p222 = scmp.ne.s32.totalorder %s210, %s211
      %p223 = scmp.eq.s32.totalorder %s33, 1
      %p224 = por %p222, %p223
      %p226 = scmp.ne.s32.totalorder %s211, %s225
      %p227 = scmp.eq.s32.totalorder %s33, 0
      %p228 = por %p226, %p227
      %s230 = sadd.s32 %s229, 1
      %p233 = scmp.eq.s32.totalorder %s27, 1
      %p234 = scmp.ne.s32.totalorder %s229, %s231
      %p235 = scmp.eq.s32.totalorder %s27, 0
      %p236 = por %p234, %p235
      %p237 = scmp.ne.s32.totalorder %s229, %s231
      %p238 = scmp.eq.s32.totalorder %s32, 1
      %p239 = por %p237, %p238
      %p240 = scmp.ne.s32.totalorder %s231, %s232
      %p241 = scmp.eq.s32.totalorder %s32, 0
      %p242 = por %p240, %p241
      %p243 = scmp.ne.s32.totalorder %s231, %s232
      %p244 = scmp.eq.s32.totalorder %s33, 1
      %p245 = por %p243, %p244
      %p247 = scmp.ne.s32.totalorder %s232, %s246
      %p248 = scmp.eq.s32.totalorder %s33, 0
      %p249 = por %p247, %p248
      %s251 = sadd.s32 %s250, 1
      %p254 = scmp.eq.s32.totalorder %s27, 1
      %p255 = scmp.ne.s32.totalorder %s250, %s252
      %p256 = scmp.eq.s32.totalorder %s27, 0
      %p257 = por %p255, %p256
      %p258 = scmp.ne.s32.totalorder %s250, %s252
      %p259 = scmp.eq.s32.totalorder %s32, 1
      %p260 = por %p258, %p259
      %p261 = scmp.ne.s32.totalorder %s252, %s253
      %p262 = scmp.eq.s32.totalorder %s32, 0
      %p263 = por %p261, %p262
      %p264 = scmp.ne.s32.totalorder %s252, %s253
      %p265 = scmp.eq.s32.totalorder %s33, 1
      %p266 = por %p264, %p265
      %p268 = scmp.ne.s32.totalorder %s253, %s267
      %p269 = scmp.eq.s32.totalorder %s33, 0
      %p270 = por %p268, %p269
      %s272 = sadd.s32 %s271, 1
      %p275 = scmp.eq.s32.totalorder %s27, 1
      %p276 = scmp.ne.s32.totalorder %s271, %s273
      %p277 = scmp.eq.s32.totalorder %s27, 0
      %p278 = por %p276, %p277
      %p279 = scmp.ne.s32.totalorder %s271, %s273
      %p280 = scmp.eq.s32.totalorder %s32, 1
      %p281 = por %p279, %p280
      %p282 = scmp.ne.s32.totalorder %s273, %s274
      %p283 = scmp.eq.s32.totalorder %s32, 0
      %p284 = por %p282, %p283
      %p285 = scmp.ne.s32.totalorder %s273, %s274
      %p286 = scmp.eq.s32.totalorder %s33, 1
      %p287 = por %p285, %p286
      %p289 = scmp.ne.s32.totalorder %s274, %s288
      %p290 = scmp.eq.s32.totalorder %s33, 0
      %p291 = por %p289, %p290
      %s293 = sadd.s32 %s292, 1
      %p296 = scmp.eq.s32.totalorder %s27, 1
      %p297 = scmp.ne.s32.totalorder %s292, %s294
      %p298 = scmp.eq.s32.totalorder %s27, 0
      %p299 = por %p297, %p298
      %p300 = scmp.ne.s32.totalorder %s292, %s294
      %p301 = scmp.eq.s32.totalorder %s32, 1
      %p302 = por %p300, %p301
      %p303 = scmp.ne.s32.totalorder %s294, %s295
      %p304 = scmp.eq.s32.totalorder %s32, 0
      %p305 = por %p303, %p304
      %p306 = scmp.ne.s32.totalorder %s294, %s295
      %p307 = scmp.eq.s32.totalorder %s33, 1
      %p308 = por %p306, %p307
      %p310 = scmp.ne.s32.totalorder %s295, %s309
      %p311 = scmp.eq.s32.totalorder %s33, 0
      %p312 = por %p310, %p311
      %s314 = sadd.s32 %s313, 1
      %p317 = scmp.eq.s32.totalorder %s27, 1
      %p318 = scmp.ne.s32.totalorder %s313, %s315
      %p319 = scmp.eq.s32.totalorder %s27, 0
      %p320 = por %p318, %p319
      %p321 = scmp.ne.s32.totalorder %s313, %s315
      %p322 = scmp.eq.s32.totalorder %s32, 1
      %p323 = por %p321, %p322
      %p324 = scmp.ne.s32.totalorder %s315, %s316
      %p325 = scmp.eq.s32.totalorder %s32, 0
      %p326 = por %p324, %p325
      %p327 = scmp.ne.s32.totalorder %s315, %s316
      %p328 = scmp.eq.s32.totalorder %s33, 1
      %p329 = por %p327, %p328
      %p331 = scmp.ne.s32.totalorder %s316, %s330
      %p332 = scmp.eq.s32.totalorder %s33, 0
      %p333 = por %p331, %p332
      %s335 = sadd.s32 %s334, 1
      %p338 = scmp.eq.s32.totalorder %s27, 1
      %p339 = scmp.ne.s32.totalorder %s334, %s336
      %p340 = scmp.eq.s32.totalorder %s27, 0
      %p341 = por %p339, %p340
      %p342 = scmp.ne.s32.totalorder %s334, %s336
      %p343 = scmp.eq.s32.totalorder %s32, 1
      %p344 = por %p342, %p343
      %p345 = scmp.ne.s32.totalorder %s336, %s337
      %p346 = scmp.eq.s32.totalorder %s32, 0
      %p347 = por %p345, %p346
      %p348 = scmp.ne.s32.totalorder %s336, %s337
      %p349 = scmp.eq.s32.totalorder %s33, 1
      %p350 = por %p348, %p349
      %p352 = scmp.ne.s32.totalorder %s337, %s351
      %p353 = scmp.eq.s32.totalorder %s33, 0
      %p354 = por %p352, %p353
      %s356 = sadd.s32 %s355, 1
      %p359 = scmp.eq.s32.totalorder %s27, 1
      %p360 = scmp.ne.s32.totalorder %s355, %s357
      %p361 = scmp.eq.s32.totalorder %s27, 0
      %p362 = por %p360, %p361
      %p363 = scmp.ne.s32.totalorder %s355, %s357
      %p364 = scmp.eq.s32.totalorder %s32, 1
      %p365 = por %p363, %p364
      %p366 = scmp.ne.s32.totalorder %s357, %s358
      %p367 = scmp.eq.s32.totalorder %s32, 0
      %p368 = por %p366, %p367
      %p369 = scmp.ne.s32.totalorder %s357, %s358
      %p370 = scmp.eq.s32.totalorder %s33, 1
      %p371 = por %p369, %p370
      %p373 = scmp.ne.s32.totalorder %s358, %s372
      %p374 = scmp.eq.s32.totalorder %s33, 0
      %p375 = por %p373, %p374
      %s377 = sadd.s32 %s376, 1
      %p380 = scmp.eq.s32.totalorder %s27, 1
      %p381 = scmp.ne.s32.totalorder %s376, %s378
      %p382 = scmp.eq.s32.totalorder %s27, 0
      %p383 = por %p381, %p382
      %p384 = scmp.ne.s32.totalorder %s376, %s378
      %p385 = scmp.eq.s32.totalorder %s32, 1
      %p386 = por %p384, %p385
      %p387 = scmp.ne.s32.totalorder %s378, %s379
      %p388 = scmp.eq.s32.totalorder %s32, 0
      %p389 = por %p387, %p388
      %p390 = scmp.ne.s32.totalorder %s378, %s379
      %p391 = scmp.eq.s32.totalorder %s33, 1
      %p392 = por %p390, %p391
      %p394 = scmp.ne.s32.totalorder %s379, %s393
      %p395 = scmp.eq.s32.totalorder %s33, 0
      %p396 = por %p394, %p395
      %s398 = sadd.s32 %s397, 1
      %p401 = scmp.eq.s32.totalorder %s27, 1
      %p402 = scmp.ne.s32.totalorder %s397, %s399
      %p403 = scmp.eq.s32.totalorder %s27, 0
      %p404 = por %p402, %p403
      %p405 = scmp.ne.s32.totalorder %s397, %s399
      %p406 = scmp.eq.s32.totalorder %s32, 1
      %p407 = por %p405, %p406
      %p408 = scmp.ne.s32.totalorder %s399, %s400
      %p409 = scmp.eq.s32.totalorder %s32, 0
      %p410 = por %p408, %p409
      %p411 = scmp.ne.s32.totalorder %s399, %s400
      %p412 = scmp.eq.s32.totalorder %s33, 1
      %p413 = por %p411, %p412
      %p415 = scmp.ne.s32.totalorder %s400, %s414
      %p416 = scmp.eq.s32.totalorder %s33, 0
      %p417 = por %p415, %p416
      %s419 = sadd.s32 %s418, 1
      %p422 = scmp.eq.s32.totalorder %s27, 1
      %p423 = scmp.ne.s32.totalorder %s418, %s420
      %p424 = scmp.eq.s32.totalorder %s27, 0
      %p425 = por %p423, %p424
      %p426 = scmp.ne.s32.totalorder %s418, %s420
      %p427 = scmp.eq.s32.totalorder %s32, 1
      %p428 = por %p426, %p427
      %p429 = scmp.ne.s32.totalorder %s420, %s421
      %p430 = scmp.eq.s32.totalorder %s32, 0
      %p431 = por %p429, %p430
      %p432 = scmp.ne.s32.totalorder %s420, %s421
      %p433 = scmp.eq.s32.totalorder %s33, 1
      %p434 = por %p432, %p433
      %p436 = scmp.ne.s32.totalorder %s421, %s435
      %p437 = scmp.eq.s32.totalorder %s33, 0
      %p438 = por %p436, %p437
      %s440 = sadd.s32 %s439, 1
      %p443 = scmp.eq.s32.totalorder %s27, 1
      %p444 = scmp.ne.s32.totalorder %s439, %s441
      %p445 = scmp.eq.s32.totalorder %s27, 0
      %p446 = por %p444, %p445
      %p447 = scmp.ne.s32.totalorder %s439, %s441
      %p448 = scmp.eq.s32.totalorder %s32, 1
      %p449 = por %p447, %p448
      %p450 = scmp.ne.s32.totalorder %s441, %s442
      %p451 = scmp.eq.s32.totalorder %s32, 0
      %p452 = por %p450, %p451
      %p453 = scmp.ne.s32.totalorder %s441, %s442
      %p454 = scmp.eq.s32.totalorder %s33, 1
      %p455 = por %p453, %p454
      %p457 = scmp.ne.s32.totalorder %s442, %s456
      %p458 = scmp.eq.s32.totalorder %s33, 0
      %p459 = por %p457, %p458
      %s461 = sadd.s32 %s460, 1
      %p464 = scmp.eq.s32.totalorder %s27, 1
      %p465 = scmp.ne.s32.totalorder %s460, %s462
      %p466 = scmp.eq.s32.totalorder %s27, 0
      %p467 = por %p465, %p466
      %p468 = scmp.ne.s32.totalorder %s460, %s462
      %p469 = scmp.eq.s32.totalorder %s32, 1
      %p470 = por %p468, %p469
      %p471 = scmp.ne.s32.totalorder %s462, %s463
      %p472 = scmp.eq.s32.totalorder %s32, 0
      %p473 = por %p471, %p472
      %p474 = scmp.ne.s32.totalorder %s462, %s463
      %p475 = scmp.eq.s32.totalorder %s33, 1
      %p476 = por %p474, %p475
      %p478 = scmp.ne.s32.totalorder %s463, %s477
      %p479 = scmp.eq.s32.totalorder %s33, 0
      %p480 = por %p478, %p479
      %s481 = ssub.s32 %s27, %s34
      %p482 = scmp.eq.s32.totalorder %s481, 0
      %s484 = sadd.s32 %s483, 1
      %s485 = scalar_select %p482, %s483, %s484
      %p488 = pneg %p482
      %p489 = scmp.eq.s32.totalorder %s27, 1
      %p490 = por %p488, %p489
      %p491 = scmp.ne.s32.totalorder %s483, %s486
      %p492 = scmp.eq.s32.totalorder %s27, 0
      %p493 = por %p491, %p492
      %p494 = scmp.ne.s32.totalorder %s483, %s486
      %p495 = scmp.eq.s32.totalorder %s32, 1
      %p496 = por %p494, %p495
      %p497 = scmp.ne.s32.totalorder %s486, %s487
      %p498 = scmp.eq.s32.totalorder %s32, 0
      %p499 = por %p497, %p498
      %p500 = scmp.ne.s32.totalorder %s486, %s487
      %p501 = scmp.eq.s32.totalorder %s33, 1
      %p502 = por %p500, %p501
      %p504 = scmp.ne.s32.totalorder %s487, %s503
      %p505 = scmp.eq.s32.totalorder %s33, 0
      %p506 = por %p504, %p505
      %p507 = scmp.le.s32.totalorder 1, %s27
      %p508 = scmp.lt.s32.totalorder %s27, 3
      %p509 = pnand %p507, %p508
      %p510 = pneg %p509
      // Predicated region
      $region9: #{tpu_custom_call.1} parent=5 // pred_check
        _
      $region10: #{tpu_custom_call.1} parent=5 // pred_check_branch
        %512 = sbr.rel (%p509) target = $region12
      $region11: #{tpu_custom_call.1} parent=5 // pred_region
        %s513 = ssub.s32 %s27, 1
        // Predicated region
        $region13: #{tpu_custom_call.1} parent=11 // pred_check
          %p514 = pneg %p74
        $region14: #{tpu_custom_call.1} parent=11 // pred_check_branch
          %516 = sbr.rel (%p514) target = $region16
        $region15: #{tpu_custom_call.1} parent=11 // pred_region
          _
        $region16: #{tpu_custom_call.1} parent=11 // pred_fallthru
          _
        // Predicated region
        $region17: #{tpu_custom_call.1} parent=11 // pred_check
          %p517 = pneg %p95
        $region18: #{tpu_custom_call.1} parent=11 // pred_check_branch
          %519 = sbr.rel (%p517) target = $region20
        $region19: #{tpu_custom_call.1} parent=11 // pred_region
          _
        $region20: #{tpu_custom_call.1} parent=11 // pred_fallthru
          _
        // Predicated region
        $region21: #{tpu_custom_call.1} parent=11 // pred_check
          %p520 = pneg %p116
        $region22: #{tpu_custom_call.1} parent=11 // pred_check_branch
          %522 = sbr.rel (%p520) target = $region24
        $region23: #{tpu_custom_call.1} parent=11 // pred_region
          _
        $region24: #{tpu_custom_call.1} parent=11 // pred_fallthru
          _
        // Predicated region
        $region25: #{tpu_custom_call.1} parent=11 // pred_check
          %p523 = pneg %p137
        $region26: #{tpu_custom_call.1} parent=11 // pred_check_branch
          %525 = sbr.rel (%p523) target = $region28
        $region27: #{tpu_custom_call.1} parent=11 // pred_region
          _
        $region28: #{tpu_custom_call.1} parent=11 // pred_fallthru
          _
        // Predicated region
        $region29: #{tpu_custom_call.1} parent=11 // pred_check
          %p526 = pneg %p158
        $region30: #{tpu_custom_call.1} parent=11 // pred_check_branch
          %528 = sbr.rel (%p526) target = $region32
        $region31: #{tpu_custom_call.1} parent=11 // pred_region
          _
        $region32: #{tpu_custom_call.1} parent=11 // pred_fallthru
          _
        // Predicated region
        $region33: #{tpu_custom_call.1} parent=11 // pred_check
          %p529 = pneg %p179
        $region34: #{tpu_custom_call.1} parent=11 // pred_check_branch
          %531 = sbr.rel (%p529) target = $region36
        $region35: #{tpu_custom_call.1} parent=11 // pred_region
          _
        $region36: #{tpu_custom_call.1} parent=11 // pred_fallthru
          _
        // Predicated region
        $region37: #{tpu_custom_call.1} parent=11 // pred_check
          %p532 = pneg %p200
        $region38: #{tpu_custom_call.1} parent=11 // pred_check_branch
          %534 = sbr.rel (%p532) target = $region40
        $region39: #{tpu_custom_call.1} parent=11 // pred_region
          _
        $region40: #{tpu_custom_call.1} parent=11 // pred_fallthru
          _
        // Predicated region
        $region41: #{tpu_custom_call.1} parent=11 // pred_check
          %p535 = pneg %p221
        $region42: #{tpu_custom_call.1} parent=11 // pred_check_branch
          %537 = sbr.rel (%p535) target = $region44
        $region43: #{tpu_custom_call.1} parent=11 // pred_region
          _
        $region44: #{tpu_custom_call.1} parent=11 // pred_fallthru
          _
        // Predicated region
        $region45: #{tpu_custom_call.1} parent=11 // pred_check
          %p538 = pneg %p242
        $region46: #{tpu_custom_call.1} parent=11 // pred_check_branch
          %540 = sbr.rel (%p538) target = $region48
        $region47: #{tpu_custom_call.1} parent=11 // pred_region
          _
        $region48: #{tpu_custom_call.1} parent=11 // pred_fallthru
          _
        // Predicated region
        $region49: #{tpu_custom_call.1} parent=11 // pred_check
          %p541 = pneg %p263
        $region50: #{tpu_custom_call.1} parent=11 // pred_check_branch
          %543 = sbr.rel (%p541) target = $region52
        $region51: #{tpu_custom_call.1} parent=11 // pred_region
          _
        $region52: #{tpu_custom_call.1} parent=11 // pred_fallthru
          _
        // Predicated region
        $region53: #{tpu_custom_call.1} parent=11 // pred_check
          %p544 = pneg %p284
        $region54: #{tpu_custom_call.1} parent=11 // pred_check_branch
          %546 = sbr.rel (%p544) target = $region56
        $region55: #{tpu_custom_call.1} parent=11 // pred_region
          _
        $region56: #{tpu_custom_call.1} parent=11 // pred_fallthru
          _
        // Predicated region
        $region57: #{tpu_custom_call.1} parent=11 // pred_check
          %p547 = pneg %p305
        $region58: #{tpu_custom_call.1} parent=11 // pred_check_branch
          %549 = sbr.rel (%p547) target = $region60
        $region59: #{tpu_custom_call.1} parent=11 // pred_region
          _
        $region60: #{tpu_custom_call.1} parent=11 // pred_fallthru
          _
        // Predicated region
        $region61: #{tpu_custom_call.1} parent=11 // pred_check
          %p550 = pneg %p326
        $region62: #{tpu_custom_call.1} parent=11 // pred_check_branch
          %552 = sbr.rel (%p550) target = $region64
        $region63: #{tpu_custom_call.1} parent=11 // pred_region
          _
        $region64: #{tpu_custom_call.1} parent=11 // pred_fallthru
          _
        // Predicated region
        $region65: #{tpu_custom_call.1} parent=11 // pred_check
          %p553 = pneg %p347
        $region66: #{tpu_custom_call.1} parent=11 // pred_check_branch
          %555 = sbr.rel (%p553) target = $region68
        $region67: #{tpu_custom_call.1} parent=11 // pred_region
          _
        $region68: #{tpu_custom_call.1} parent=11 // pred_fallthru
          _
        // Predicated region
        $region69: #{tpu_custom_call.1} parent=11 // pred_check
          %p556 = pneg %p368
        $region70: #{tpu_custom_call.1} parent=11 // pred_check_branch
          %558 = sbr.rel (%p556) target = $region72
        $region71: #{tpu_custom_call.1} parent=11 // pred_region
          _
        $region72: #{tpu_custom_call.1} parent=11 // pred_fallthru
          _
        // Predicated region
        $region73: #{tpu_custom_call.1} parent=11 // pred_check
          %p559 = pneg %p389
        $region74: #{tpu_custom_call.1} parent=11 // pred_check_branch
          %561 = sbr.rel (%p559) target = $region76
        $region75: #{tpu_custom_call.1} parent=11 // pred_region
          _
        $region76: #{tpu_custom_call.1} parent=11 // pred_fallthru
          _
        // Predicated region
        $region77: #{tpu_custom_call.1} parent=11 // pred_check
          %p562 = pneg %p410
        $region78: #{tpu_custom_call.1} parent=11 // pred_check_branch
          %564 = sbr.rel (%p562) target = $region80
        $region79: #{tpu_custom_call.1} parent=11 // pred_region
          _
        $region80: #{tpu_custom_call.1} parent=11 // pred_fallthru
          _
        // Predicated region
        $region81: #{tpu_custom_call.1} parent=11 // pred_check
          %p565 = pneg %p431
        $region82: #{tpu_custom_call.1} parent=11 // pred_check_branch
          %567 = sbr.rel (%p565) target = $region84
        $region83: #{tpu_custom_call.1} parent=11 // pred_region
          _
        $region84: #{tpu_custom_call.1} parent=11 // pred_fallthru
          _
        // Predicated region
        $region85: #{tpu_custom_call.1} parent=11 // pred_check
          %p568 = pneg %p452
        $region86: #{tpu_custom_call.1} parent=11 // pred_check_branch
          %570 = sbr.rel (%p568) target = $region88
        $region87: #{tpu_custom_call.1} parent=11 // pred_region
          _
        $region88: #{tpu_custom_call.1} parent=11 // pred_fallthru
          _
        // Predicated region
        $region89: #{tpu_custom_call.1} parent=11 // pred_check
          %p571 = pneg %p473
        $region90: #{tpu_custom_call.1} parent=11 // pred_check_branch
          %573 = sbr.rel (%p571) target = $region92
        $region91: #{tpu_custom_call.1} parent=11 // pred_region
          _
        $region92: #{tpu_custom_call.1} parent=11 // pred_fallthru
          _
      $region12: #{tpu_custom_call.1} parent=5 // pred_fallthru
        _
      %p574 = scmp.lt.s32.totalorder %s27, 2
      // Predicated region
      $region93: #{tpu_custom_call.1} parent=5 // pred_check
        %p575 = pneg %p574
      $region94: #{tpu_custom_call.1} parent=5 // pred_check_branch
        %577 = sbr.rel (%p575) target = $region96
      $region95: #{tpu_custom_call.1} parent=5 // pred_region
        // Predicated region
        $region97: #{tpu_custom_call.1} parent=95 // pred_check
          %p578 = pneg %p47
        $region98: #{tpu_custom_call.1} parent=95 // pred_check_branch
          %580 = sbr.rel (%p578) target = $region100
        $region99: #{tpu_custom_call.1} parent=95 // pred_region
          %s581 = sand.u32 %s37, 1
          %s582 = sand.u32 %s37, 1
          %s583 = smul.addr %s582, 64
          %s584 = scalar_lea.vmem [#allocation2], %s583
          %s585 = smul.u32 4, %s27
          %s586 = smul.addr %s585, 8
          %s587 = scalar_lea.vmem %s0, %s586
          // Predicated region
          $region101: #{tpu_custom_call.1} parent=99 // pred_check
            _
          $region102: #{tpu_custom_call.1} parent=99 // pred_check_branch
            %589 = sbr.rel (0) target = $region104
          $region103: #{tpu_custom_call.1} parent=99 // pred_region
            // Predicated region
            $region105: #{tpu_custom_call.1} parent=103 // pred_check
              _
            $region106: #{tpu_custom_call.1} parent=103 // pred_check_branch
              %591 = sbr.rel (0) target = $region108
            $region107: #{tpu_custom_call.1} parent=103 // pred_region
              loop: start=0, step=1, limit=1
              $region109: #{tpu_custom_call.1} parent=107 // loop_pre_header
                _
              $region110: #{tpu_custom_call.1} parent=107 // loop_header
                %s593 = sphi 0, %s597
                %p594 = scmp.ge.s32.totalorder %s593, 1
                %s598 = sphi %s587, %s587
                %s599 = sphi %s584, %s584
              $region111: #{tpu_custom_call.1} parent=107 // loop_header_branch
                %596 = sbr.rel (%p594) target = $region115
              $region112: #{tpu_custom_call.1} parent=107 // loop_body
                %v600 = vld [vmem:[%s598] sm:$0xff]
                %601 = vst [vmem:[%s599] sm:$0xff] %v600
                %v602 = vld [vmem:[%s598 + $0x8] sm:$0xff]
                %603 = vst [vmem:[%s599 + $0x8] sm:$0xff] %v602
                %v604 = vld [vmem:[%s598 + $0x10] sm:$0xff]
                %605 = vst [vmem:[%s599 + $0x10] sm:$0xff] %v604
                %v606 = vld [vmem:[%s598 + $0x18] sm:$0xff]
                %607 = vst [vmem:[%s599 + $0x18] sm:$0xff] %v606
                %v608 = vld [vmem:[%s598 + $0x40] sm:$0xff]
                %609 = vst [vmem:[%s599 + $0x20] sm:$0xff] %v608
                %v610 = vld [vmem:[%s598 + $0x48] sm:$0xff]
                %611 = vst [vmem:[%s599 + $0x28] sm:$0xff] %v610
                %v612 = vld [vmem:[%s598 + $0x50] sm:$0xff]
                %613 = vst [vmem:[%s599 + $0x30] sm:$0xff] %v612
                %v614 = vld [vmem:[%s598 + $0x58] sm:$0xff]
                %615 = vst [vmem:[%s599 + $0x38] sm:$0xff] %v614
              $region113: #{tpu_custom_call.1} parent=107 // loop_footer
                %s597 = sadd.s32 1, %s593
              $region114: #{tpu_custom_call.1} parent=107 // loop_footer_branch
                %592 = sbr.rel target = $region110
              $region115: #{tpu_custom_call.1} parent=107 // loop_exit
                _
            $region108: #{tpu_custom_call.1} parent=103 // pred_fallthru
              _
            // Predicated region
            $region116: #{tpu_custom_call.1} parent=103 // pred_check
              _
            $region117: #{tpu_custom_call.1} parent=103 // pred_check_branch
              %617 = sbr.rel target = $region119
            $region118: #{tpu_custom_call.1} parent=103 // pred_region
              _
            $region119: #{tpu_custom_call.1} parent=103 // pred_fallthru
              _
          $region104: #{tpu_custom_call.1} parent=99 // pred_fallthru
            _
          %618 = vnop
        $region100: #{tpu_custom_call.1} parent=95 // pred_fallthru
          _
      $region96: #{tpu_custom_call.1} parent=5 // pred_fallthru
        _
      %p619 = scmp.le.s32.totalorder 1, %s27
      %p620 = scmp.lt.s32.totalorder %s27, 3
      %p621 = pnand %p619, %p620
      %p622 = pneg %p621
      // Predicated region
      $region120: #{tpu_custom_call.1} parent=5 // pred_check
        _
      $region121: #{tpu_custom_call.1} parent=5 // pred_check_branch
        %624 = sbr.rel (%p621) target = $region123
      $region122: #{tpu_custom_call.1} parent=5 // pred_region
        %s625 = ssub.s32 %s27, 1
        %s626 = sand.u32 %s40, 1
        %s627 = sand.u32 %s40, 1
        %s628 = smul.addr %s627, 64
        %s629 = scalar_lea.vmem [#allocation2], %s628
        // Predicated region
        $region124: #{tpu_custom_call.1} parent=122 // pred_check
          %p630 = pneg %p53
        $region125: #{tpu_custom_call.1} parent=122 // pred_check_branch
          %632 = sbr.rel (%p630) target = $region127
        $region126: #{tpu_custom_call.1} parent=122 // pred_region
          _
        $region127: #{tpu_custom_call.1} parent=122 // pred_fallthru
          _
        %s633 = sand.u32 %s40, 1
        %s634 = sand.u32 %s40, 1
        %s635 = smul.addr %s634, 64
        %s636 = scalar_lea.vmem [#allocation2], %s635
        %p637 = pneg %p53
        %p638 = pneg %p50
        %p639 = pneg %p74
        %p640 = pneg %p71
        %p641 = pneg %p95
        %p642 = pneg %p92
        %p643 = pneg %p116
        %p644 = pneg %p113
        %p645 = pneg %p137
        %p646 = pneg %p134
        %p647 = pneg %p158
        %p648 = pneg %p155
        %p649 = pneg %p179
        %p650 = pneg %p176
        %p651 = pneg %p200
        %p652 = pneg %p197
        %p653 = pneg %p221
        %p654 = pneg %p218
        %p655 = pneg %p242
        %p656 = pneg %p239
        %p657 = pneg %p263
        %p658 = pneg %p260
        %p659 = pneg %p284
        %p660 = pneg %p281
        %p661 = pneg %p305
        %p662 = pneg %p302
        %p663 = pneg %p326
        %p664 = pneg %p323
        %p665 = pneg %p347
        %p666 = pneg %p344
        %p667 = pneg %p368
        %p668 = pneg %p365
        %p669 = pneg %p389
        %p670 = pneg %p386
        %p671 = pneg %p410
        %p672 = pneg %p407
        %p673 = pneg %p431
        %p674 = pneg %p428
        %p675 = pneg %p452
        %p676 = pneg %p449
        %p677 = pneg %p473
        %p678 = pneg %p470
        %p679 = pneg %p499
        %p680 = pneg %p496
        %p681 = scmp.lt.s32.totalorder %s32, 1
        %s682 = scalar_select %p681, %s32, 1
        %s683 = smul.addr %s682, 8
        %s684 = scalar_lea.vmem %s21, %s683
        %s685 = smul.u32 4, %s32
        %p686 = scmp.lt.s32.totalorder %s32, 1
        %s687 = scalar_select %p686, %s32, 1
        %s688 = smul.addr %s687, 8
        %s689 = scalar_lea.vmem %s21, %s688
        %v690 = vld [vmem:[%s629] sm:$0xff]
        %v691 = vld [vmem:[%s629 + $0x8] sm:$0xff]
        %v692 = vld [vmem:[%s629 + $0x10] sm:$0xff]
        %v693 = vld [vmem:[%s629 + $0x18] sm:$0xff]
        %v694 = vld [vmem:[%s629 + $0x20] sm:$0xf]
        %v695 = vld [vmem:[%s629 + $0x28] sm:$0xf]
        %v696 = vld [vmem:[%s629 + $0x30] sm:$0xf]
        %v697 = vld [vmem:[%s629 + $0x38] sm:$0xf]
        %v698 = vld [vmem:[%s1] sm:$0xff]
        %v699 = vld [vmem:[%s1 + $0x8] sm:$0xff]
        %v700 = vld [vmem:[%s1 + $0x10] sm:$0xff]
        %v701 = vld [vmem:[%s1 + $0x18] sm:$0xff]
        %v702 = vld [vmem:[%s1 + $0x20] sm:$0xff]
        %v703 = vld [vmem:[%s1 + $0x28] sm:$0xff]
        %v704 = vld [vmem:[%s1 + $0x30] sm:$0xff]
        %v705 = vld [vmem:[%s1 + $0x38] sm:$0xff]
        %v706 = vld [vmem:[%s1 + $0x40] sm:$0xff]
        %v707 = vld [vmem:[%s1 + $0x48] sm:$0xff]
        %v708 = vld [vmem:[%s1 + $0x50] sm:$0xff]
        %v709 = vld [vmem:[%s1 + $0x58] sm:$0xff]
        %v710 = vld [vmem:[%s1 + $0x60] sm:$0xff]
        %v711 = vld [vmem:[%s1 + $0x68] sm:$0xff]
        %v712 = vld [vmem:[%s1 + $0x70] sm:$0xff]
        %v713 = vld [vmem:[%s1 + $0x78] sm:$0xff]
        %v714 = vld [vmem:[%s1 + $0x80] sm:$0xff]
        %v715 = vld [vmem:[%s1 + $0x88] sm:$0xff]
        %v716 = vld [vmem:[%s1 + $0x90] sm:$0xff]
        %v717 = vld [vmem:[%s1 + $0x98] sm:$0xff]
        %v718 = vld [vmem:[%s1 + $0xa0] sm:$0xff]
        %v719 = vld [vmem:[%s1 + $0xa8] sm:$0xff]
        %v720 = vld [vmem:[%s1 + $0xb0] sm:$0xff]
        %v721 = vld [vmem:[%s1 + $0xb8] sm:$0xff]
        %v722 = vld [vmem:[%s1 + $0xc0] sm:$0xff]
        %v723 = vld [vmem:[%s1 + $0xc8] sm:$0xff]
        %v724 = vld [vmem:[%s1 + $0xd0] sm:$0xff]
        %v725 = vld [vmem:[%s1 + $0xd8] sm:$0xff]
        %v726 = vld [vmem:[%s1 + $0xe0] sm:$0xff]
        %v727 = vld [vmem:[%s1 + $0xe8] sm:$0xff]
        %v728 = vld [vmem:[%s1 + $0xf0] sm:$0xff]
        %v729 = vld [vmem:[%s1 + $0xf8] sm:$0xff]
        %v730 = vld [vmem:[%s1 + $0x100] sm:$0xff]
        %v731 = vld [vmem:[%s1 + $0x108] sm:$0xff]
        %v732 = vld [vmem:[%s1 + $0x110] sm:$0xff]
        %v733 = vld [vmem:[%s1 + $0x118] sm:$0xff]
        %v734 = vld [vmem:[%s1 + $0x120] sm:$0xff]
        %v735 = vld [vmem:[%s1 + $0x128] sm:$0xff]
        %v736 = vld [vmem:[%s1 + $0x130] sm:$0xff]
        %v737 = vld [vmem:[%s1 + $0x138] sm:$0xff]
        %v738 = vld [vmem:[%s1 + $0x140] sm:$0xff]
        %v739 = vld [vmem:[%s1 + $0x148] sm:$0xff]
        %v740 = vld [vmem:[%s1 + $0x150] sm:$0xff]
        %v741 = vld [vmem:[%s1 + $0x158] sm:$0xff]
        %v742 = vld [vmem:[%s1 + $0x160] sm:$0xff]
        %v743 = vld [vmem:[%s1 + $0x168] sm:$0xff]
        %v744 = vld [vmem:[%s1 + $0x170] sm:$0xff]
        %v745 = vld [vmem:[%s1 + $0x178] sm:$0xff]
        %v746 = vld [vmem:[%s1 + $0x180] sm:$0xff]
        %v747 = vld [vmem:[%s1 + $0x188] sm:$0xff]
        %v748 = vld [vmem:[%s1 + $0x190] sm:$0xff]
        %v749 = vld [vmem:[%s1 + $0x198] sm:$0xff]
        %v750 = vld [vmem:[%s1 + $0x1a0] sm:$0xff]
        %v751 = vld [vmem:[%s1 + $0x1a8] sm:$0xff]
        %v752 = vld [vmem:[%s1 + $0x1b0] sm:$0xff]
        %v753 = vld [vmem:[%s1 + $0x1b8] sm:$0xff]
        %v754 = vld [vmem:[%s1 + $0x1c0] sm:$0xff]
        %v755 = vld [vmem:[%s1 + $0x1c8] sm:$0xff]
        %v756 = vld [vmem:[%s1 + $0x1d0] sm:$0xff]
        %v757 = vld [vmem:[%s1 + $0x1d8] sm:$0xff]
        %v758 = vld [vmem:[%s1 + $0x1e0] sm:$0xff]
        %v759 = vld [vmem:[%s1 + $0x1e8] sm:$0xff]
        %v760 = vld [vmem:[%s1 + $0x1f0] sm:$0xff]
        %v761 = vld [vmem:[%s1 + $0x1f8] sm:$0xff]
        %762 = vmatprep.subr.mxu0 0.0
        %763 = vmatpush1.msra.mxu0 %v713
        %764 = vmatprep.subr.mxu0 0.0
        %765 = vmatpush1.msra.mxu0 %v712
        %766 = vmatprep.subr.mxu0 0.0
        %767 = vmatpush1.msra.mxu0 %v711
        %768 = vmatprep.subr.mxu0 0.0
        %769 = vmatpush1.msra.mxu0 %v710
        %770 = vmatprep.subr.mxu0 0.0
        %771 = vmatpush1.msra.mxu0 %v709
        %772 = vmatprep.subr.mxu0 0.0
        %773 = vmatpush1.msra.mxu0 %v708
        %774 = vmatprep.subr.mxu0 0.0
        %775 = vmatpush1.msra.mxu0 %v707
        %776 = vmatprep.subr.mxu0 0.0
        %777 = vmatpush1.msra.mxu0 %v706
        %778 = vmatprep.subr.mxu0 0.0
        %779 = vmatpush1.msra.mxu0 %v705
        %780 = vmatprep.subr.mxu0 0.0
        %781 = vmatpush1.msra.mxu0 %v704
        %782 = vmatprep.subr.mxu0 0.0
        %783 = vmatpush1.msra.mxu0 %v703
        %784 = vmatprep.subr.mxu0 0.0
        %785 = vmatpush1.msra.mxu0 %v702
        %786 = vmatprep.subr.mxu0 0.0
        %787 = vmatpush1.msra.mxu0 %v701
        %788 = vmatprep.subr.mxu0 0.0
        %789 = vmatpush1.msra.mxu0 %v700
        %790 = vmatprep.subr.mxu0 0.0
        %791 = vmatpush1.msra.mxu0 %v699
        %792 = vmatprep.subr.mxu0 0.0
        %793 = vmatpush1.msra.mxu0 %v698
        %794 = vmatprep.subr.mxu0 0.0
        %795 = vmatpush2.msra.mxu0 %v729
        %796 = vmatprep.subr.mxu0 0.0
        %797 = vmatpush2.msra.mxu0 %v728
        %798 = vmatprep.subr.mxu0 0.0
        %799 = vmatpush2.msra.mxu0 %v727
        %800 = vmatprep.subr.mxu0 0.0
        %801 = vmatpush2.msra.mxu0 %v726
        %802 = vmatprep.subr.mxu0 0.0
        %803 = vmatpush2.msra.mxu0 %v725
        %804 = vmatprep.subr.mxu0 0.0
        %805 = vmatpush2.msra.mxu0 %v724
        %806 = vmatprep.subr.mxu0 0.0
        %807 = vmatpush2.msra.mxu0 %v723
        %808 = vmatprep.subr.mxu0 0.0
        %809 = vmatpush2.msra.mxu0 %v722
        %810 = vmatprep.subr.mxu0 0.0
        %811 = vmatpush2.msra.mxu0 %v721
        %812 = vmatprep.subr.mxu0 0.0
        %813 = vmatpush2.msra.mxu0 %v720
        %814 = vmatprep.subr.mxu0 0.0
        %815 = vmatpush2.msra.mxu0 %v719
        %816 = vmatprep.subr.mxu0 0.0
        %817 = vmatpush2.msra.mxu0 %v718
        %818 = vmatprep.subr.mxu0 0.0
        %819 = vmatpush2.msra.mxu0 %v717
        %820 = vmatprep.subr.mxu0 0.0
        %821 = vmatpush2.msra.mxu0 %v716
        %822 = vmatprep.subr.mxu0 0.0
        %823 = vmatpush2.msra.mxu0 %v715
        %824 = vmatprep.subr.mxu0 0.0
        %825 = vmatpush2.msra.mxu0 %v714
        %826 = vmatprep.mubr.f32.mxu0 %v691
        %827 = vmatmul.mubr.f32.gmra.mxu0 %v690
        %v828 = vpop.f32.mrf.mxu0
        %v829 = vadd.f32 0.0, %v828
        %v830 = vpop.f32.mrf.mxu0
        %831 = vmatprep.mubr.f32.mxu0 %v695
        %832 = vmatmul.mubr.f32.gmra.mxu0 %v694
        %v833 = vpop.f32.mrf.mxu0
        %v834 = vadd.f32 0.0, %v833
        %v835 = vpop.f32.mrf.mxu0
        %836 = vdwg.mxu0
        %837 = vmatprep.subr.mxu0 0.0
        %838 = vmatpush1.msra.mxu0 %v745
        %839 = vmatprep.subr.mxu0 0.0
        %840 = vmatpush1.msra.mxu0 %v744
        %841 = vmatprep.subr.mxu0 0.0
        %842 = vmatpush1.msra.mxu0 %v743
        %843 = vmatprep.subr.mxu0 0.0
        %844 = vmatpush1.msra.mxu0 %v742
        %845 = vmatprep.subr.mxu0 0.0
        %846 = vmatpush1.msra.mxu0 %v741
        %847 = vmatprep.subr.mxu0 0.0
        %848 = vmatpush1.msra.mxu0 %v740
        %849 = vmatprep.subr.mxu0 0.0
        %850 = vmatpush1.msra.mxu0 %v739
        %851 = vmatprep.subr.mxu0 0.0
        %852 = vmatpush1.msra.mxu0 %v738
        %853 = vmatprep.subr.mxu0 0.0
        %854 = vmatpush1.msra.mxu0 %v737
        %855 = vmatprep.subr.mxu0 0.0
        %856 = vmatpush1.msra.mxu0 %v736
        %857 = vmatprep.subr.mxu0 0.0
        %858 = vmatpush1.msra.mxu0 %v735
        %859 = vmatprep.subr.mxu0 0.0
        %860 = vmatpush1.msra.mxu0 %v734
        %861 = vmatprep.subr.mxu0 0.0
        %862 = vmatpush1.msra.mxu0 %v733
        %863 = vmatprep.subr.mxu0 0.0
        %864 = vmatpush1.msra.mxu0 %v732
        %865 = vmatprep.subr.mxu0 0.0
        %866 = vmatpush1.msra.mxu0 %v731
        %867 = vmatprep.subr.mxu0 0.0
        %868 = vmatpush1.msra.mxu0 %v730
        %869 = vmatprep.subr.mxu0 0.0
        %870 = vmatpush2.msra.mxu0 %v761
        %871 = vmatprep.subr.mxu0 0.0
        %872 = vmatpush2.msra.mxu0 %v760
        %873 = vmatprep.subr.mxu0 0.0
        %874 = vmatpush2.msra.mxu0 %v759
        %875 = vmatprep.subr.mxu0 0.0
        %876 = vmatpush2.msra.mxu0 %v758
        %877 = vmatprep.subr.mxu0 0.0
        %878 = vmatpush2.msra.mxu0 %v757
        %879 = vmatprep.subr.mxu0 0.0
        %880 = vmatpush2.msra.mxu0 %v756
        %881 = vmatprep.subr.mxu0 0.0
        %882 = vmatpush2.msra.mxu0 %v755
        %883 = vmatprep.subr.mxu0 0.0
        %884 = vmatpush2.msra.mxu0 %v754
        %885 = vmatprep.subr.mxu0 0.0
        %886 = vmatpush2.msra.mxu0 %v753
        %887 = vmatprep.subr.mxu0 0.0
        %888 = vmatpush2.msra.mxu0 %v752
        %889 = vmatprep.subr.mxu0 0.0
        %890 = vmatpush2.msra.mxu0 %v751
        %891 = vmatprep.subr.mxu0 0.0
        %892 = vmatpush2.msra.mxu0 %v750
        %893 = vmatprep.subr.mxu0 0.0
        %894 = vmatpush2.msra.mxu0 %v749
        %895 = vmatprep.subr.mxu0 0.0
        %896 = vmatpush2.msra.mxu0 %v748
        %897 = vmatprep.subr.mxu0 0.0
        %898 = vmatpush2.msra.mxu0 %v747
        %899 = vmatprep.subr.mxu0 0.0
        %900 = vmatpush2.msra.mxu0 %v746
        %901 = vmatprep.mubr.f32.mxu0 %v693
        %902 = vmatmul.mubr.f32.gmra.mxu0 %v692
        %v903 = vpop.f32.mrf.mxu0
        %v904 = vadd.f32 %v829, %v903
        %v905 = vpop.f32.mrf.mxu0
        %906 = vmatprep.mubr.f32.mxu0 %v697
        %907 = vmatmul.mubr.f32.gmra.mxu0 %v696
        %v908 = vpop.f32.mrf.mxu0
        %v909 = vadd.f32 %v834, %v908
        %v910 = vpop.f32.mrf.mxu0
        %911 = vdwg.mxu0
        %v912 = vld [vmem:[%s3] sm:$0x1]
        %914 = vrot.lane.b32.xlu0 %v912, 118
        %v915 = vpop.permute.xlu0 %914
        %s916 = vtos %v915
        %v917 = vstv %s916
        %v919 = vmul.f32 %v904, %v917
        %v920 = vmul.f32 %v909, %v917
        %921 = vrot.lane.b32.xlu0 %v912, 117
        %v922 = vpop.permute.xlu0 %921
        %s923 = vtos %v922
        %v924 = vstv %s923
        %v926 = vadd.f32 %v919, %v924
        %v927 = vadd.f32 %v920, %v924
        %v928 = vld [vmem:[%s4] sm:$0xf]
        %v929 = vld [vmem:[%s3] sm:$0xf]
        %931 = vset.pattern.permute.xlu0 0
        %932 = vperm.xlu0 %931, %v929
        %v933 = vpop.permute.xlu0 %932
        %vm935 = vcmask 97280
        %v937 = vsel %vm935, %v928, 0
        %vm939 = vcmask 1043456
        %v941 = vsel %vm939, %v927, 0
        %943 = vmatprep.subr.mxu0 0.0
        %944 = vmatpush1.msra.mxu0 0.0
        %945 = vmatprep.subr.mxu0 0.0
        %946 = vmatpush1.msra.mxu0 0.0
        %947 = vmatprep.subr.mxu0 0.0
        %948 = vmatpush1.msra.mxu0 0.0
        %949 = vmatprep.subr.mxu0 0.0
        %950 = vmatpush1.msra.mxu0 0.0
        %951 = vmatprep.subr.mxu0 0.0
        %952 = vmatpush1.msra.mxu0 0.0
        %953 = vmatprep.subr.mxu0 0.0
        %954 = vmatpush1.msra.mxu0 0.0
        %955 = vmatprep.subr.mxu0 0.0
        %956 = vmatpush1.msra.mxu0 0.0
        %957 = vmatprep.subr.mxu0 0.0
        %958 = vmatpush1.msra.mxu0 0.0
        %959 = vmatprep.subr.mxu0 0.0
        %960 = vmatpush1.msra.mxu0 0.0
        %961 = vmatprep.subr.mxu0 0.0
        %962 = vmatpush1.msra.mxu0 0.0
        %963 = vmatprep.subr.mxu0 0.0
        %964 = vmatpush1.msra.mxu0 0.0
        %965 = vmatprep.subr.mxu0 0.0
        %966 = vmatpush1.msra.mxu0 0.0
        %967 = vmatprep.subr.mxu0 0.0
        %968 = vmatpush1.msra.mxu0 0.0
        %969 = vmatprep.subr.mxu0 0.0
        %970 = vmatpush1.msra.mxu0 0.0
        %971 = vmatprep.subr.mxu0 0.0
        %972 = vmatpush1.msra.mxu0 %v941
        %973 = vmatprep.subr.mxu0 0.0
        %974 = vmatpush1.msra.mxu0 %v926
        %975 = vmatprep.subr.mxu0 0.0
        %976 = vmatpush2.msra.mxu0 0.0
        %977 = vmatprep.subr.mxu0 0.0
        %978 = vmatpush2.msra.mxu0 0.0
        %979 = vmatprep.subr.mxu0 0.0
        %980 = vmatpush2.msra.mxu0 0.0
        %981 = vmatprep.subr.mxu0 0.0
        %982 = vmatpush2.msra.mxu0 0.0
        %983 = vmatprep.subr.mxu0 0.0
        %984 = vmatpush2.msra.mxu0 0.0
        %985 = vmatprep.subr.mxu0 0.0
        %986 = vmatpush2.msra.mxu0 0.0
        %987 = vmatprep.subr.mxu0 0.0
        %988 = vmatpush2.msra.mxu0 0.0
        %989 = vmatprep.subr.mxu0 0.0
        %990 = vmatpush2.msra.mxu0 0.0
        %991 = vmatprep.subr.mxu0 0.0
        %992 = vmatpush2.msra.mxu0 0.0
        %993 = vmatprep.subr.mxu0 0.0
        %994 = vmatpush2.msra.mxu0 0.0
        %995 = vmatprep.subr.mxu0 0.0
        %996 = vmatpush2.msra.mxu0 0.0
        %997 = vmatprep.subr.mxu0 0.0
        %998 = vmatpush2.msra.mxu0 0.0
        %999 = vmatprep.subr.mxu0 0.0
        %1000 = vmatpush2.msra.mxu0 0.0
        %1001 = vmatprep.subr.mxu0 0.0
        %1002 = vmatpush2.msra.mxu0 0.0
        %1003 = vmatprep.subr.mxu0 0.0
        %1004 = vmatpush2.msra.mxu0 0.0
        %1005 = vmatprep.subr.mxu0 0.0
        %1006 = vmatpush2.msra.mxu0 0.0
        %1007 = vmatprep.mubr.f32.mxu0 0.0
        %1008 = vmatmul.mubr.f32.gmra.mxu0 %v937
        %v1009 = vpop.f32.mrf.mxu0
        %v1010 = vadd.f32 %v933, %v1009
        %v1011 = vpop.f32.mrf.mxu0
        %1012 = vdwg.mxu0
        %v1013 = vmax.f32 %v1010, 0.0
        %v1014 = vld [vmem:[%s5] sm:$0xff]
        %v1015 = vld [vmem:[%s5 + $0x8] sm:$0xf]
        %v1016 = vld [vmem:[%s3] sm:$0xff]
        %v1017 = vld [vmem:[%s3 + $0x8] sm:$0xf]
        %1019 = vset.pattern.permute.xlu0 1
        %1020 = vperm.xlu0 %1019, %v1016
        %v1021 = vpop.permute.xlu0 %1020
        %1024 = vset.pattern.permute.xlu0 1
        %1025 = vperm.xlu0 %1024, %v1017
        %v1026 = vpop.permute.xlu0 %1025
        %vm1028 = vcmask 31744
        %v1030 = vsel %vm1028, %v1014, 0
        %v1033 = vsel %vm1028, %v1015, 0
        %v1036 = vsel %vm939, %v1013, 0
        %1038 = vmatprep.subr.mxu0 0.0
        %1039 = vmatpush1.msra.mxu0 0.0
        %1040 = vmatprep.subr.mxu0 0.0
        %1041 = vmatpush1.msra.mxu0 0.0
        %1042 = vmatprep.subr.mxu0 0.0
        %1043 = vmatpush1.msra.mxu0 0.0
        %1044 = vmatprep.subr.mxu0 0.0
        %1045 = vmatpush1.msra.mxu0 0.0
        %1046 = vmatprep.subr.mxu0 0.0
        %1047 = vmatpush1.msra.mxu0 0.0
        %1048 = vmatprep.subr.mxu0 0.0
        %1049 = vmatpush1.msra.mxu0 0.0
        %1050 = vmatprep.subr.mxu0 0.0
        %1051 = vmatpush1.msra.mxu0 0.0
        %1052 = vmatprep.subr.mxu0 0.0
        %1053 = vmatpush1.msra.mxu0 0.0
        %1054 = vmatprep.subr.mxu0 0.0
        %1055 = vmatpush1.msra.mxu0 0.0
        %1056 = vmatprep.subr.mxu0 0.0
        %1057 = vmatpush1.msra.mxu0 0.0
        %1058 = vmatprep.subr.mxu0 0.0
        %1059 = vmatpush1.msra.mxu0 0.0
        %1060 = vmatprep.subr.mxu0 0.0
        %1061 = vmatpush1.msra.mxu0 0.0
        %1062 = vmatprep.subr.mxu0 0.0
        %1063 = vmatpush1.msra.mxu0 0.0
        %1064 = vmatprep.subr.mxu0 0.0
        %1065 = vmatpush1.msra.mxu0 0.0
        %1066 = vmatprep.subr.mxu0 0.0
        %1067 = vmatpush1.msra.mxu0 0.0
        %1068 = vmatprep.subr.mxu0 0.0
        %1069 = vmatpush1.msra.mxu0 %v1036
        %1070 = vmatprep.subr.mxu0 0.0
        %1071 = vmatpush2.msra.mxu0 0.0
        %1072 = vmatprep.subr.mxu0 0.0
        %1073 = vmatpush2.msra.mxu0 0.0
        %1074 = vmatprep.subr.mxu0 0.0
        %1075 = vmatpush2.msra.mxu0 0.0
        %1076 = vmatprep.subr.mxu0 0.0
        %1077 = vmatpush2.msra.mxu0 0.0
        %1078 = vmatprep.subr.mxu0 0.0
        %1079 = vmatpush2.msra.mxu0 0.0
        %1080 = vmatprep.subr.mxu0 0.0
        %1081 = vmatpush2.msra.mxu0 0.0
        %1082 = vmatprep.subr.mxu0 0.0
        %1083 = vmatpush2.msra.mxu0 0.0
        %1084 = vmatprep.subr.mxu0 0.0
        %1085 = vmatpush2.msra.mxu0 0.0
        %1086 = vmatprep.subr.mxu0 0.0
        %1087 = vmatpush2.msra.mxu0 0.0
        %1088 = vmatprep.subr.mxu0 0.0
        %1089 = vmatpush2.msra.mxu0 0.0
        %1090 = vmatprep.subr.mxu0 0.0
        %1091 = vmatpush2.msra.mxu0 0.0
        %1092 = vmatprep.subr.mxu0 0.0
        %1093 = vmatpush2.msra.mxu0 0.0
        %1094 = vmatprep.subr.mxu0 0.0
        %1095 = vmatpush2.msra.mxu0 0.0
        %1096 = vmatprep.subr.mxu0 0.0
        %1097 = vmatpush2.msra.mxu0 0.0
        %1098 = vmatprep.subr.mxu0 0.0
        %1099 = vmatpush2.msra.mxu0 0.0
        %1100 = vmatprep.subr.mxu0 0.0
        %1101 = vmatpush2.msra.mxu0 0.0
        %1102 = vmatprep.mubr.f32.mxu0 0.0
        %1103 = vmatmul.mubr.f32.gmra.mxu0 %v1030
        %v1104 = vpop.f32.mrf.mxu0
        %v1105 = vadd.f32 %v1021, %v1104
        %v1106 = vpop.f32.mrf.mxu0
        %1107 = vmatprep.mubr.f32.mxu0 0.0
        %1108 = vmatmul.mubr.f32.gmra.mxu0 %v1033
        %v1109 = vpop.f32.mrf.mxu0
        %v1110 = vadd.f32 %v1026, %v1109
        %v1111 = vpop.f32.mrf.mxu0
        %1112 = vdwg.mxu0
        %v1113 = vsub.f32 0.0, %v1105
        %v1114 = vsub.f32 0.0, %v1110
        %v1115 = vmul.f32 %v1113, 1.442695
        %v1116 = vpow.pop %v1115
        %v1117 = vmul.f32 %v1114, 1.442695
        %v1118 = vpow.pop %v1117
        %v1119 = vadd.f32 %v1116, 1.0
        %v1120 = vadd.f32 %v1118, 1.0
        %v1121 = vrcp.pop %v1119
        %v1122 = vrcp.pop %v1120
        %v1123 = vld [vmem:[%s6] sm:$0x7]
        %v1124 = vld [vmem:[%s3] sm:$0x7]
        %1126 = vset.pattern.permute.xlu0 2
        %1127 = vperm.xlu0 %1126, %v1124
        %v1128 = vpop.permute.xlu0 %1127
        %v1131 = vsel %vm935, %v1123, 0
        %1133 = vmatprep.subr.mxu0 0.0
        %1134 = vmatpush1.msra.mxu0 0.0
        %1135 = vmatprep.subr.mxu0 0.0
        %1136 = vmatpush1.msra.mxu0 0.0
        %1137 = vmatprep.subr.mxu0 0.0
        %1138 = vmatpush1.msra.mxu0 0.0
        %1139 = vmatprep.subr.mxu0 0.0
        %1140 = vmatpush1.msra.mxu0 0.0
        %1141 = vmatprep.subr.mxu0 0.0
        %1142 = vmatpush1.msra.mxu0 0.0
        %1143 = vmatprep.subr.mxu0 0.0
        %1144 = vmatpush1.msra.mxu0 0.0
        %1145 = vmatprep.subr.mxu0 0.0
        %1146 = vmatpush1.msra.mxu0 0.0
        %1147 = vmatprep.subr.mxu0 0.0
        %1148 = vmatpush1.msra.mxu0 0.0
        %1149 = vmatprep.subr.mxu0 0.0
        %1150 = vmatpush1.msra.mxu0 0.0
        %1151 = vmatprep.subr.mxu0 0.0
        %1152 = vmatpush1.msra.mxu0 0.0
        %1153 = vmatprep.subr.mxu0 0.0
        %1154 = vmatpush1.msra.mxu0 0.0
        %1155 = vmatprep.subr.mxu0 0.0
        %1156 = vmatpush1.msra.mxu0 0.0
        %1157 = vmatprep.subr.mxu0 0.0
        %1158 = vmatpush1.msra.mxu0 0.0
        %1159 = vmatprep.subr.mxu0 0.0
        %1160 = vmatpush1.msra.mxu0 0.0
        %1161 = vmatprep.subr.mxu0 0.0
        %1162 = vmatpush1.msra.mxu0 %v941
        %1163 = vmatprep.subr.mxu0 0.0
        %1164 = vmatpush1.msra.mxu0 %v926
        %1165 = vmatprep.subr.mxu0 0.0
        %1166 = vmatpush2.msra.mxu0 0.0
        %1167 = vmatprep.subr.mxu0 0.0
        %1168 = vmatpush2.msra.mxu0 0.0
        %1169 = vmatprep.subr.mxu0 0.0
        %1170 = vmatpush2.msra.mxu0 0.0
        %1171 = vmatprep.subr.mxu0 0.0
        %1172 = vmatpush2.msra.mxu0 0.0
        %1173 = vmatprep.subr.mxu0 0.0
        %1174 = vmatpush2.msra.mxu0 0.0
        %1175 = vmatprep.subr.mxu0 0.0
        %1176 = vmatpush2.msra.mxu0 0.0
        %1177 = vmatprep.subr.mxu0 0.0
        %1178 = vmatpush2.msra.mxu0 0.0
        %1179 = vmatprep.subr.mxu0 0.0
        %1180 = vmatpush2.msra.mxu0 0.0
        %1181 = vmatprep.subr.mxu0 0.0
        %1182 = vmatpush2.msra.mxu0 0.0
        %1183 = vmatprep.subr.mxu0 0.0
        %1184 = vmatpush2.msra.mxu0 0.0
        %1185 = vmatprep.subr.mxu0 0.0
        %1186 = vmatpush2.msra.mxu0 0.0
        %1187 = vmatprep.subr.mxu0 0.0
        %1188 = vmatpush2.msra.mxu0 0.0
        %1189 = vmatprep.subr.mxu0 0.0
        %1190 = vmatpush2.msra.mxu0 0.0
        %1191 = vmatprep.subr.mxu0 0.0
        %1192 = vmatpush2.msra.mxu0 0.0
        %1193 = vmatprep.subr.mxu0 0.0
        %1194 = vmatpush2.msra.mxu0 0.0
        %1195 = vmatprep.subr.mxu0 0.0
        %1196 = vmatpush2.msra.mxu0 0.0
        %1197 = vmatprep.mubr.f32.mxu0 0.0
        %1198 = vmatmul.mubr.f32.gmra.mxu0 %v1131
        %v1199 = vpop.f32.mrf.mxu0
        %v1200 = vadd.f32 %v1128, %v1199
        %v1201 = vpop.f32.mrf.mxu0
        %1202 = vdwg.mxu0
        %v1203 = vmax.f32 %v1200, 0.0
        %v1204 = vld [vmem:[%s7] sm:$0xff]
        %v1205 = vld [vmem:[%s7 + $0x8] sm:$0xf]
        %1206 = vset.pattern.permute.xlu0 3
        %1207 = vperm.xlu0 %1206, %v1016
        %v1208 = vpop.permute.xlu0 %1207
        %1210 = vset.pattern.permute.xlu0 3
        %1211 = vperm.xlu0 %1210, %v1017
        %v1212 = vpop.permute.xlu0 %1211
        %vm1214 = vcmask 23552
        %v1216 = vsel %vm1214, %v1204, 0
        %v1219 = vsel %vm1214, %v1205, 0
        %vm1221 = vcmask 1042432
        %v1223 = vsel %vm1221, %v1203, 0
        %1225 = vmatprep.subr.mxu0 0.0
        %1226 = vmatpush1.msra.mxu0 0.0
        %1227 = vmatprep.subr.mxu0 0.0
        %1228 = vmatpush1.msra.mxu0 0.0
        %1229 = vmatprep.subr.mxu0 0.0
        %1230 = vmatpush1.msra.mxu0 0.0
        %1231 = vmatprep.subr.mxu0 0.0
        %1232 = vmatpush1.msra.mxu0 0.0
        %1233 = vmatprep.subr.mxu0 0.0
        %1234 = vmatpush1.msra.mxu0 0.0
        %1235 = vmatprep.subr.mxu0 0.0
        %1236 = vmatpush1.msra.mxu0 0.0
        %1237 = vmatprep.subr.mxu0 0.0
        %1238 = vmatpush1.msra.mxu0 0.0
        %1239 = vmatprep.subr.mxu0 0.0
        %1240 = vmatpush1.msra.mxu0 0.0
        %1241 = vmatprep.subr.mxu0 0.0
        %1242 = vmatpush1.msra.mxu0 0.0
        %1243 = vmatprep.subr.mxu0 0.0
        %1244 = vmatpush1.msra.mxu0 0.0
        %1245 = vmatprep.subr.mxu0 0.0
        %1246 = vmatpush1.msra.mxu0 0.0
        %1247 = vmatprep.subr.mxu0 0.0
        %1248 = vmatpush1.msra.mxu0 0.0
        %1249 = vmatprep.subr.mxu0 0.0
        %1250 = vmatpush1.msra.mxu0 0.0
        %1251 = vmatprep.subr.mxu0 0.0
        %1252 = vmatpush1.msra.mxu0 0.0
        %1253 = vmatprep.subr.mxu0 0.0
        %1254 = vmatpush1.msra.mxu0 0.0
        %1255 = vmatprep.subr.mxu0 0.0
        %1256 = vmatpush1.msra.mxu0 %v1223
        %1257 = vmatprep.subr.mxu0 0.0
        %1258 = vmatpush2.msra.mxu0 0.0
        %1259 = vmatprep.subr.mxu0 0.0
        %1260 = vmatpush2.msra.mxu0 0.0
        %1261 = vmatprep.subr.mxu0 0.0
        %1262 = vmatpush2.msra.mxu0 0.0
        %1263 = vmatprep.subr.mxu0 0.0
        %1264 = vmatpush2.msra.mxu0 0.0
        %1265 = vmatprep.subr.mxu0 0.0
        %1266 = vmatpush2.msra.mxu0 0.0
        %1267 = vmatprep.subr.mxu0 0.0
        %1268 = vmatpush2.msra.mxu0 0.0
        %1269 = vmatprep.subr.mxu0 0.0
        %1270 = vmatpush2.msra.mxu0 0.0
        %1271 = vmatprep.subr.mxu0 0.0
        %1272 = vmatpush2.msra.mxu0 0.0
        %1273 = vmatprep.subr.mxu0 0.0
        %1274 = vmatpush2.msra.mxu0 0.0
        %1275 = vmatprep.subr.mxu0 0.0
        %1276 = vmatpush2.msra.mxu0 0.0
        %1277 = vmatprep.subr.mxu0 0.0
        %1278 = vmatpush2.msra.mxu0 0.0
        %1279 = vmatprep.subr.mxu0 0.0
        %1280 = vmatpush2.msra.mxu0 0.0
        %1281 = vmatprep.subr.mxu0 0.0
        %1282 = vmatpush2.msra.mxu0 0.0
        %1283 = vmatprep.subr.mxu0 0.0
        %1284 = vmatpush2.msra.mxu0 0.0
        %1285 = vmatprep.subr.mxu0 0.0
        %1286 = vmatpush2.msra.mxu0 0.0
        %1287 = vmatprep.subr.mxu0 0.0
        %1288 = vmatpush2.msra.mxu0 0.0
        %1289 = vmatprep.mubr.f32.mxu0 0.0
        %1290 = vmatmul.mubr.f32.gmra.mxu0 %v1216
        %v1291 = vpop.f32.mrf.mxu0
        %v1292 = vadd.f32 %v1208, %v1291
        %v1293 = vpop.f32.mrf.mxu0
        %1294 = vmatprep.mubr.f32.mxu0 0.0
        %1295 = vmatmul.mubr.f32.gmra.mxu0 %v1219
        %v1296 = vpop.f32.mrf.mxu0
        %v1297 = vadd.f32 %v1212, %v1296
        %v1298 = vpop.f32.mrf.mxu0
        %1299 = vdwg.mxu0
        %v1300 = vsub.f32 0.0, %v1292
        %v1301 = vsub.f32 0.0, %v1297
        %v1302 = vmul.f32 %v1300, 1.442695
        %v1303 = vpow.pop %v1302
        %v1304 = vmul.f32 %v1301, 1.442695
        %v1305 = vpow.pop %v1304
        %v1306 = vadd.f32 %v1303, 1.0
        %v1307 = vadd.f32 %v1305, 1.0
        %v1308 = vrcp.pop %v1306
        %v1309 = vrcp.pop %v1307
        %v1310 = vadd.f32 %v926, %v1121
        %v1311 = vadd.f32 %v927, %v1122
        %v1312 = vadd.f32 %v1310, %v1308
        %v1313 = vadd.f32 %v1311, %v1309
        %v1314 = vld [vmem:[%s2] sm:$0xff]
        %v1315 = vld [vmem:[%s2 + $0x8] sm:$0xff]
        %v1316 = vld [vmem:[%s2 + $0x10] sm:$0xff]
        %v1317 = vld [vmem:[%s2 + $0x18] sm:$0xff]
        %vm1318 = vcmask 64512
        %v1320 = vsel %vm1318, %v1312, 0
        %v1323 = vsel %vm1318, %v1313, 0
        %1325 = vmatprep.subr.mxu0 0.0
        %1326 = vmatpush1.msra.mxu0 0.0
        %1327 = vmatprep.subr.mxu0 0.0
        %1328 = vmatpush1.msra.mxu0 0.0
        %1329 = vmatprep.subr.mxu0 0.0
        %1330 = vmatpush1.msra.mxu0 0.0
        %1331 = vmatprep.subr.mxu0 0.0
        %1332 = vmatpush1.msra.mxu0 0.0
        %1333 = vmatprep.subr.mxu0 0.0
        %1334 = vmatpush1.msra.mxu0 0.0
        %1335 = vmatprep.subr.mxu0 0.0
        %1336 = vmatpush1.msra.mxu0 0.0
        %1337 = vmatprep.subr.mxu0 0.0
        %1338 = vmatpush1.msra.mxu0 0.0
        %1339 = vmatprep.subr.mxu0 0.0
        %1340 = vmatpush1.msra.mxu0 0.0
        %1341 = vmatprep.subr.mxu0 0.0
        %1342 = vmatpush1.msra.mxu0 0.0
        %1343 = vmatprep.subr.mxu0 0.0
        %1344 = vmatpush1.msra.mxu0 0.0
        %1345 = vmatprep.subr.mxu0 0.0
        %1346 = vmatpush1.msra.mxu0 0.0
        %1347 = vmatprep.subr.mxu0 0.0
        %1348 = vmatpush1.msra.mxu0 0.0
        %1349 = vmatprep.subr.mxu0 0.0
        %1350 = vmatpush1.msra.mxu0 0.0
        %1351 = vmatprep.subr.mxu0 0.0
        %1352 = vmatpush1.msra.mxu0 0.0
        %1353 = vmatprep.subr.mxu0 0.0
        %1354 = vmatpush1.msra.mxu0 0.0
        %1355 = vmatprep.subr.mxu0 %v1315
        %1356 = vmatpush1.msra.mxu0 %v1314
        %1357 = vmatprep.subr.mxu0 0.0
        %1358 = vmatpush2.msra.mxu0 0.0
        %1359 = vmatprep.subr.mxu0 0.0
        %1360 = vmatpush2.msra.mxu0 0.0
        %1361 = vmatprep.subr.mxu0 0.0
        %1362 = vmatpush2.msra.mxu0 0.0
        %1363 = vmatprep.subr.mxu0 0.0
        %1364 = vmatpush2.msra.mxu0 0.0
        %1365 = vmatprep.subr.mxu0 0.0
        %1366 = vmatpush2.msra.mxu0 0.0
        %1367 = vmatprep.subr.mxu0 0.0
        %1368 = vmatpush2.msra.mxu0 0.0
        %1369 = vmatprep.subr.mxu0 0.0
        %1370 = vmatpush2.msra.mxu0 0.0
        %1371 = vmatprep.subr.mxu0 0.0
        %1372 = vmatpush2.msra.mxu0 0.0
        %1373 = vmatprep.subr.mxu0 0.0
        %1374 = vmatpush2.msra.mxu0 0.0
        %1375 = vmatprep.subr.mxu0 0.0
        %1376 = vmatpush2.msra.mxu0 0.0
        %1377 = vmatprep.subr.mxu0 0.0
        %1378 = vmatpush2.msra.mxu0 0.0
        %1379 = vmatprep.subr.mxu0 0.0
        %1380 = vmatpush2.msra.mxu0 0.0
        %1381 = vmatprep.subr.mxu0 0.0
        %1382 = vmatpush2.msra.mxu0 0.0
        %1383 = vmatprep.subr.mxu0 0.0
        %1384 = vmatpush2.msra.mxu0 0.0
        %1385 = vmatprep.subr.mxu0 0.0
        %1386 = vmatpush2.msra.mxu0 0.0
        %1387 = vmatprep.subr.mxu0 0.0
        %1388 = vmatpush2.msra.mxu0 0.0
        %1389 = vmatprep.mubr.f32.mxu0 0.0
        %1390 = vmatmul.mubr.f32.gmra.mxu0 %v1320
        %v1391 = vpop.f32.mrf.mxu0
        %v1392 = vadd.f32 0.0, %v1391
        %v1393 = vpop.f32.mrf.mxu0
        %v1394 = vadd.f32 0.0, %v1393
        %1395 = vmatprep.mubr.f32.mxu0 0.0
        %1396 = vmatmul.mubr.f32.gmra.mxu0 %v1323
        %v1397 = vpop.f32.mrf.mxu0
        %v1398 = vadd.f32 0.0, %v1397
        %v1399 = vpop.f32.mrf.mxu0
        %v1400 = vadd.f32 0.0, %v1399
        %1401 = vdwg.mxu0
        %1402 = vmatprep.subr.mxu0 0.0
        %1403 = vmatpush1.msra.mxu0 0.0
        %1404 = vmatprep.subr.mxu0 0.0
        %1405 = vmatpush1.msra.mxu0 0.0
        %1406 = vmatprep.subr.mxu0 0.0
        %1407 = vmatpush1.msra.mxu0 0.0
        %1408 = vmatprep.subr.mxu0 0.0
        %1409 = vmatpush1.msra.mxu0 0.0
        %1410 = vmatprep.subr.mxu0 0.0
        %1411 = vmatpush1.msra.mxu0 0.0
        %1412 = vmatprep.subr.mxu0 0.0
        %1413 = vmatpush1.msra.mxu0 0.0
        %1414 = vmatprep.subr.mxu0 0.0
        %1415 = vmatpush1.msra.mxu0 0.0
        %1416 = vmatprep.subr.mxu0 0.0
        %1417 = vmatpush1.msra.mxu0 0.0
        %1418 = vmatprep.subr.mxu0 0.0
        %1419 = vmatpush1.msra.mxu0 0.0
        %1420 = vmatprep.subr.mxu0 0.0
        %1421 = vmatpush1.msra.mxu0 0.0
        %1422 = vmatprep.subr.mxu0 0.0
        %1423 = vmatpush1.msra.mxu0 0.0
        %1424 = vmatprep.subr.mxu0 0.0
        %1425 = vmatpush1.msra.mxu0 0.0
        %1426 = vmatprep.subr.mxu0 0.0
        %1427 = vmatpush1.msra.mxu0 0.0
        %1428 = vmatprep.subr.mxu0 0.0
        %1429 = vmatpush1.msra.mxu0 0.0
        %1430 = vmatprep.subr.mxu0 0.0
        %1431 = vmatpush1.msra.mxu0 0.0
        %1432 = vmatprep.subr.mxu0 %v1317
        %1433 = vmatpush1.msra.mxu0 %v1316
        %1434 = vmatprep.subr.mxu0 0.0
        %1435 = vmatpush2.msra.mxu0 0.0
        %1436 = vmatprep.subr.mxu0 0.0
        %1437 = vmatpush2.msra.mxu0 0.0
        %1438 = vmatprep.subr.mxu0 0.0
        %1439 = vmatpush2.msra.mxu0 0.0
        %1440 = vmatprep.subr.mxu0 0.0
        %1441 = vmatpush2.msra.mxu0 0.0
        %1442 = vmatprep.subr.mxu0 0.0
        %1443 = vmatpush2.msra.mxu0 0.0
        %1444 = vmatprep.subr.mxu0 0.0
        %1445 = vmatpush2.msra.mxu0 0.0
        %1446 = vmatprep.subr.mxu0 0.0
        %1447 = vmatpush2.msra.mxu0 0.0
        %1448 = vmatprep.subr.mxu0 0.0
        %1449 = vmatpush2.msra.mxu0 0.0
        %1450 = vmatprep.subr.mxu0 0.0
        %1451 = vmatpush2.msra.mxu0 0.0
        %1452 = vmatprep.subr.mxu0 0.0
        %1453 = vmatpush2.msra.mxu0 0.0
        %1454 = vmatprep.subr.mxu0 0.0
        %1455 = vmatpush2.msra.mxu0 0.0
        %1456 = vmatprep.subr.mxu0 0.0
        %1457 = vmatpush2.msra.mxu0 0.0
        %1458 = vmatprep.subr.mxu0 0.0
        %1459 = vmatpush2.msra.mxu0 0.0
        %1460 = vmatprep.subr.mxu0 0.0
        %1461 = vmatpush2.msra.mxu0 0.0
        %1462 = vmatprep.subr.mxu0 0.0
        %1463 = vmatpush2.msra.mxu0 0.0
        %1464 = vmatprep.subr.mxu0 0.0
        %1465 = vmatpush2.msra.mxu0 0.0
        %1466 = vmatprep.mubr.f32.mxu0 0.0
        %1467 = vmatmul.mubr.f32.gmra.mxu0 %v1320
        %v1468 = vpop.f32.mrf.mxu0
        %v1469 = vadd.f32 0.0, %v1468
        %v1470 = vpop.f32.mrf.mxu0
        %v1471 = vadd.f32 0.0, %v1470
        %1472 = vmatprep.mubr.f32.mxu0 0.0
        %1473 = vmatmul.mubr.f32.gmra.mxu0 %v1323
        %v1474 = vpop.f32.mrf.mxu0
        %v1475 = vadd.f32 0.0, %v1474
        %v1476 = vpop.f32.mrf.mxu0
        %v1477 = vadd.f32 0.0, %v1476
        %1478 = vdwg.mxu0
        %v1479 = vmul.f32 %v690, %v1392
        %v1480 = vmul.f32 %v691, %v1394
        %v1481 = vmul.f32 %v692, %v1469
        %v1482 = vmul.f32 %v693, %v1471
        %v1483 = vmul.f32 %v694, %v1398
        %v1484 = vmul.f32 %v695, %v1400
        %v1485 = vmul.f32 %v696, %v1475
        %v1486 = vmul.f32 %v697, %v1477
        %v1487 = vld [vmem:[%s8] sm:$0xff]
        %v1488 = vld [vmem:[%s8 + $0x8] sm:$0xf]
        %1489 = vset.pattern.permute.xlu0 4
        %1490 = vperm.xlu0 %1489, %v1016
        %v1491 = vpop.permute.xlu0 %1490
        %1493 = vset.pattern.permute.xlu0 4
        %1494 = vperm.xlu0 %1493, %v1017
        %v1495 = vpop.permute.xlu0 %1494
        %v1498 = vsel %vm935, %v1487, 0
        %v1501 = vsel %vm935, %v1488, 0
        %v1504 = vsel %vm939, %v1483, 0
        %v1507 = vsel %vm939, %v1484, 0
        %v1510 = vsel %vm939, %v1485, 0
        %v1513 = vsel %vm939, %v1486, 0
        %1515 = vmatprep.subr.mxu0 0.0
        %1516 = vmatpush1.msra.mxu0 0.0
        %1517 = vmatprep.subr.mxu0 0.0
        %1518 = vmatpush1.msra.mxu0 0.0
        %1519 = vmatprep.subr.mxu0 0.0
        %1520 = vmatpush1.msra.mxu0 0.0
        %1521 = vmatprep.subr.mxu0 0.0
        %1522 = vmatpush1.msra.mxu0 0.0
        %1523 = vmatprep.subr.mxu0 0.0
        %1524 = vmatpush1.msra.mxu0 0.0
        %1525 = vmatprep.subr.mxu0 0.0
        %1526 = vmatpush1.msra.mxu0 0.0
        %1527 = vmatprep.subr.mxu0 0.0
        %1528 = vmatpush1.msra.mxu0 0.0
        %1529 = vmatprep.subr.mxu0 0.0
        %1530 = vmatpush1.msra.mxu0 0.0
        %1531 = vmatprep.subr.mxu0 0.0
        %1532 = vmatpush1.msra.mxu0 0.0
        %1533 = vmatprep.subr.mxu0 0.0
        %1534 = vmatpush1.msra.mxu0 0.0
        %1535 = vmatprep.subr.mxu0 0.0
        %1536 = vmatpush1.msra.mxu0 0.0
        %1537 = vmatprep.subr.mxu0 0.0
        %1538 = vmatpush1.msra.mxu0 0.0
        %1539 = vmatprep.subr.mxu0 0.0
        %1540 = vmatpush1.msra.mxu0 0.0
        %1541 = vmatprep.subr.mxu0 0.0
        %1542 = vmatpush1.msra.mxu0 0.0
        %1543 = vmatprep.subr.mxu0 %v1507
        %1544 = vmatpush1.msra.mxu0 %v1504
        %1545 = vmatprep.subr.mxu0 %v1480
        %1546 = vmatpush1.msra.mxu0 %v1479
        %1547 = vmatprep.subr.mxu0 0.0
        %1548 = vmatpush2.msra.mxu0 0.0
        %1549 = vmatprep.subr.mxu0 0.0
        %1550 = vmatpush2.msra.mxu0 0.0
        %1551 = vmatprep.subr.mxu0 0.0
        %1552 = vmatpush2.msra.mxu0 0.0
        %1553 = vmatprep.subr.mxu0 0.0
        %1554 = vmatpush2.msra.mxu0 0.0
        %1555 = vmatprep.subr.mxu0 0.0
        %1556 = vmatpush2.msra.mxu0 0.0
        %1557 = vmatprep.subr.mxu0 0.0
        %1558 = vmatpush2.msra.mxu0 0.0
        %1559 = vmatprep.subr.mxu0 0.0
        %1560 = vmatpush2.msra.mxu0 0.0
        %1561 = vmatprep.subr.mxu0 0.0
        %1562 = vmatpush2.msra.mxu0 0.0
        %1563 = vmatprep.subr.mxu0 0.0
        %1564 = vmatpush2.msra.mxu0 0.0
        %1565 = vmatprep.subr.mxu0 0.0
        %1566 = vmatpush2.msra.mxu0 0.0
        %1567 = vmatprep.subr.mxu0 0.0
        %1568 = vmatpush2.msra.mxu0 0.0
        %1569 = vmatprep.subr.mxu0 0.0
        %1570 = vmatpush2.msra.mxu0 0.0
        %1571 = vmatprep.subr.mxu0 0.0
        %1572 = vmatpush2.msra.mxu0 0.0
        %1573 = vmatprep.subr.mxu0 0.0
        %1574 = vmatpush2.msra.mxu0 0.0
        %1575 = vmatprep.subr.mxu0 0.0
        %1576 = vmatpush2.msra.mxu0 0.0
        %1577 = vmatprep.subr.mxu0 0.0
        %1578 = vmatpush2.msra.mxu0 0.0
        %1579 = vmatprep.mubr.f32.mxu0 0.0
        %1580 = vmatmul.mubr.f32.gmra.mxu0 %v1498
        %v1581 = vpop.f32.mrf.mxu0
        %v1582 = vadd.f32 %v1491, %v1581
        %v1583 = vpop.f32.mrf.mxu0
        %v1584 = vadd.f32 %v1491, %v1583
        %1585 = vmatprep.mubr.f32.mxu0 0.0
        %1586 = vmatmul.mubr.f32.gmra.mxu0 %v1501
        %v1587 = vpop.f32.mrf.mxu0
        %v1588 = vadd.f32 %v1495, %v1587
        %v1589 = vpop.f32.mrf.mxu0
        %v1590 = vadd.f32 %v1495, %v1589
        %1591 = vdwg.mxu0
        %1592 = vmatprep.subr.mxu0 0.0
        %1593 = vmatpush1.msra.mxu0 0.0
        %1594 = vmatprep.subr.mxu0 0.0
        %1595 = vmatpush1.msra.mxu0 0.0
        %1596 = vmatprep.subr.mxu0 0.0
        %1597 = vmatpush1.msra.mxu0 0.0
        %1598 = vmatprep.subr.mxu0 0.0
        %1599 = vmatpush1.msra.mxu0 0.0
        %1600 = vmatprep.subr.mxu0 0.0
        %1601 = vmatpush1.msra.mxu0 0.0
        %1602 = vmatprep.subr.mxu0 0.0
        %1603 = vmatpush1.msra.mxu0 0.0
        %1604 = vmatprep.subr.mxu0 0.0
        %1605 = vmatpush1.msra.mxu0 0.0
        %1606 = vmatprep.subr.mxu0 0.0
        %1607 = vmatpush1.msra.mxu0 0.0
        %1608 = vmatprep.subr.mxu0 0.0
        %1609 = vmatpush1.msra.mxu0 0.0
        %1610 = vmatprep.subr.mxu0 0.0
        %1611 = vmatpush1.msra.mxu0 0.0
        %1612 = vmatprep.subr.mxu0 0.0
        %1613 = vmatpush1.msra.mxu0 0.0
        %1614 = vmatprep.subr.mxu0 0.0
        %1615 = vmatpush1.msra.mxu0 0.0
        %1616 = vmatprep.subr.mxu0 0.0
        %1617 = vmatpush1.msra.mxu0 0.0
        %1618 = vmatprep.subr.mxu0 0.0
        %1619 = vmatpush1.msra.mxu0 0.0
        %1620 = vmatprep.subr.mxu0 %v1513
        %1621 = vmatpush1.msra.mxu0 %v1510
        %1622 = vmatprep.subr.mxu0 %v1482
        %1623 = vmatpush1.msra.mxu0 %v1481
        %1624 = vmatprep.subr.mxu0 0.0
        %1625 = vmatpush2.msra.mxu0 0.0
        %1626 = vmatprep.subr.mxu0 0.0
        %1627 = vmatpush2.msra.mxu0 0.0
        %1628 = vmatprep.subr.mxu0 0.0
        %1629 = vmatpush2.msra.mxu0 0.0
        %1630 = vmatprep.subr.mxu0 0.0
        %1631 = vmatpush2.msra.mxu0 0.0
        %1632 = vmatprep.subr.mxu0 0.0
        %1633 = vmatpush2.msra.mxu0 0.0
        %1634 = vmatprep.subr.mxu0 0.0
        %1635 = vmatpush2.msra.mxu0 0.0
        %1636 = vmatprep.subr.mxu0 0.0
        %1637 = vmatpush2.msra.mxu0 0.0
        %1638 = vmatprep.subr.mxu0 0.0
        %1639 = vmatpush2.msra.mxu0 0.0
        %1640 = vmatprep.subr.mxu0 0.0
        %1641 = vmatpush2.msra.mxu0 0.0
        %1642 = vmatprep.subr.mxu0 0.0
        %1643 = vmatpush2.msra.mxu0 0.0
        %1644 = vmatprep.subr.mxu0 0.0
        %1645 = vmatpush2.msra.mxu0 0.0
        %1646 = vmatprep.subr.mxu0 0.0
        %1647 = vmatpush2.msra.mxu0 0.0
        %1648 = vmatprep.subr.mxu0 0.0
        %1649 = vmatpush2.msra.mxu0 0.0
        %1650 = vmatprep.subr.mxu0 0.0
        %1651 = vmatpush2.msra.mxu0 0.0
        %1652 = vmatprep.subr.mxu0 0.0
        %1653 = vmatpush2.msra.mxu0 0.0
        %1654 = vmatprep.subr.mxu0 0.0
        %1655 = vmatpush2.msra.mxu0 0.0
        %1656 = vmatprep.mubr.f32.mxu0 0.0
        %1657 = vmatmul.mubr.f32.gmra.mxu0 %v1498
        %v1658 = vpop.f32.mrf.mxu0
        %v1659 = vadd.f32 %v1491, %v1658
        %v1660 = vpop.f32.mrf.mxu0
        %v1661 = vadd.f32 %v1491, %v1660
        %1662 = vmatprep.mubr.f32.mxu0 0.0
        %1663 = vmatmul.mubr.f32.gmra.mxu0 %v1501
        %v1664 = vpop.f32.mrf.mxu0
        %v1665 = vadd.f32 %v1495, %v1664
        %v1666 = vpop.f32.mrf.mxu0
        %v1667 = vadd.f32 %v1495, %v1666
        %1668 = vdwg.mxu0
        %v1669 = vmax.f32 %v1582, 0.0
        %v1670 = vmax.f32 %v1584, 0.0
        %v1671 = vmax.f32 %v1659, 0.0
        %v1672 = vmax.f32 %v1661, 0.0
        %v1673 = vmax.f32 %v1588, 0.0
        %v1674 = vmax.f32 %v1590, 0.0
        %v1675 = vmax.f32 %v1665, 0.0
        %v1676 = vmax.f32 %v1667, 0.0
        %v1677 = vld [vmem:[%s9] sm:$0xff]
        %v1678 = vld [vmem:[%s9 + $0x8] sm:$0xf]
        %1679 = vset.pattern.permute.xlu0 5
        %1680 = vperm.xlu0 %1679, %v1016
        %v1681 = vpop.permute.xlu0 %1680
        %1683 = vset.pattern.permute.xlu0 5
        %1684 = vperm.xlu0 %1683, %v1017
        %v1685 = vpop.permute.xlu0 %1684
        %v1688 = vsel %vm935, %v1677, 0
        %v1691 = vsel %vm935, %v1678, 0
        %v1694 = vsel %vm939, %v1673, 0
        %v1697 = vsel %vm939, %v1674, 0
        %v1700 = vsel %vm939, %v1675, 0
        %v1703 = vsel %vm939, %v1676, 0
        %1705 = vmatprep.subr.mxu0 0.0
        %1706 = vmatpush1.msra.mxu0 0.0
        %1707 = vmatprep.subr.mxu0 0.0
        %1708 = vmatpush1.msra.mxu0 0.0
        %1709 = vmatprep.subr.mxu0 0.0
        %1710 = vmatpush1.msra.mxu0 0.0
        %1711 = vmatprep.subr.mxu0 0.0
        %1712 = vmatpush1.msra.mxu0 0.0
        %1713 = vmatprep.subr.mxu0 0.0
        %1714 = vmatpush1.msra.mxu0 0.0
        %1715 = vmatprep.subr.mxu0 0.0
        %1716 = vmatpush1.msra.mxu0 0.0
        %1717 = vmatprep.subr.mxu0 0.0
        %1718 = vmatpush1.msra.mxu0 0.0
        %1719 = vmatprep.subr.mxu0 0.0
        %1720 = vmatpush1.msra.mxu0 0.0
        %1721 = vmatprep.subr.mxu0 0.0
        %1722 = vmatpush1.msra.mxu0 0.0
        %1723 = vmatprep.subr.mxu0 0.0
        %1724 = vmatpush1.msra.mxu0 0.0
        %1725 = vmatprep.subr.mxu0 0.0
        %1726 = vmatpush1.msra.mxu0 0.0
        %1727 = vmatprep.subr.mxu0 0.0
        %1728 = vmatpush1.msra.mxu0 0.0
        %1729 = vmatprep.subr.mxu0 0.0
        %1730 = vmatpush1.msra.mxu0 0.0
        %1731 = vmatprep.subr.mxu0 0.0
        %1732 = vmatpush1.msra.mxu0 0.0
        %1733 = vmatprep.subr.mxu0 %v1697
        %1734 = vmatpush1.msra.mxu0 %v1694
        %1735 = vmatprep.subr.mxu0 %v1670
        %1736 = vmatpush1.msra.mxu0 %v1669
        %1737 = vmatprep.subr.mxu0 0.0
        %1738 = vmatpush2.msra.mxu0 0.0
        %1739 = vmatprep.subr.mxu0 0.0
        %1740 = vmatpush2.msra.mxu0 0.0
        %1741 = vmatprep.subr.mxu0 0.0
        %1742 = vmatpush2.msra.mxu0 0.0
        %1743 = vmatprep.subr.mxu0 0.0
        %1744 = vmatpush2.msra.mxu0 0.0
        %1745 = vmatprep.subr.mxu0 0.0
        %1746 = vmatpush2.msra.mxu0 0.0
        %1747 = vmatprep.subr.mxu0 0.0
        %1748 = vmatpush2.msra.mxu0 0.0
        %1749 = vmatprep.subr.mxu0 0.0
        %1750 = vmatpush2.msra.mxu0 0.0
        %1751 = vmatprep.subr.mxu0 0.0
        %1752 = vmatpush2.msra.mxu0 0.0
        %1753 = vmatprep.subr.mxu0 0.0
        %1754 = vmatpush2.msra.mxu0 0.0
        %1755 = vmatprep.subr.mxu0 0.0
        %1756 = vmatpush2.msra.mxu0 0.0
        %1757 = vmatprep.subr.mxu0 0.0
        %1758 = vmatpush2.msra.mxu0 0.0
        %1759 = vmatprep.subr.mxu0 0.0
        %1760 = vmatpush2.msra.mxu0 0.0
        %1761 = vmatprep.subr.mxu0 0.0
        %1762 = vmatpush2.msra.mxu0 0.0
        %1763 = vmatprep.subr.mxu0 0.0
        %1764 = vmatpush2.msra.mxu0 0.0
        %1765 = vmatprep.subr.mxu0 0.0
        %1766 = vmatpush2.msra.mxu0 0.0
        %1767 = vmatprep.subr.mxu0 0.0
        %1768 = vmatpush2.msra.mxu0 0.0
        %1769 = vmatprep.mubr.f32.mxu0 0.0
        %1770 = vmatmul.mubr.f32.gmra.mxu0 %v1688
        %v1771 = vpop.f32.mrf.mxu0
        %v1772 = vadd.f32 %v1681, %v1771
        %v1773 = vpop.f32.mrf.mxu0
        %v1774 = vadd.f32 %v1681, %v1773
        %1775 = vmatprep.mubr.f32.mxu0 0.0
        %1776 = vmatmul.mubr.f32.gmra.mxu0 %v1691
        %v1777 = vpop.f32.mrf.mxu0
        %v1778 = vadd.f32 %v1685, %v1777
        %v1779 = vpop.f32.mrf.mxu0
        %v1780 = vadd.f32 %v1685, %v1779
        %1781 = vdwg.mxu0
        %1782 = vmatprep.subr.mxu0 0.0
        %1783 = vmatpush1.msra.mxu0 0.0
        %1784 = vmatprep.subr.mxu0 0.0
        %1785 = vmatpush1.msra.mxu0 0.0
        %1786 = vmatprep.subr.mxu0 0.0
        %1787 = vmatpush1.msra.mxu0 0.0
        %1788 = vmatprep.subr.mxu0 0.0
        %1789 = vmatpush1.msra.mxu0 0.0
        %1790 = vmatprep.subr.mxu0 0.0
        %1791 = vmatpush1.msra.mxu0 0.0
        %1792 = vmatprep.subr.mxu0 0.0
        %1793 = vmatpush1.msra.mxu0 0.0
        %1794 = vmatprep.subr.mxu0 0.0
        %1795 = vmatpush1.msra.mxu0 0.0
        %1796 = vmatprep.subr.mxu0 0.0
        %1797 = vmatpush1.msra.mxu0 0.0
        %1798 = vmatprep.subr.mxu0 0.0
        %1799 = vmatpush1.msra.mxu0 0.0
        %1800 = vmatprep.subr.mxu0 0.0
        %1801 = vmatpush1.msra.mxu0 0.0
        %1802 = vmatprep.subr.mxu0 0.0
        %1803 = vmatpush1.msra.mxu0 0.0
        %1804 = vmatprep.subr.mxu0 0.0
        %1805 = vmatpush1.msra.mxu0 0.0
        %1806 = vmatprep.subr.mxu0 0.0
        %1807 = vmatpush1.msra.mxu0 0.0
        %1808 = vmatprep.subr.mxu0 0.0
        %1809 = vmatpush1.msra.mxu0 0.0
        %1810 = vmatprep.subr.mxu0 %v1703
        %1811 = vmatpush1.msra.mxu0 %v1700
        %1812 = vmatprep.subr.mxu0 %v1672
        %1813 = vmatpush1.msra.mxu0 %v1671
        %1814 = vmatprep.subr.mxu0 0.0
        %1815 = vmatpush2.msra.mxu0 0.0
        %1816 = vmatprep.subr.mxu0 0.0
        %1817 = vmatpush2.msra.mxu0 0.0
        %1818 = vmatprep.subr.mxu0 0.0
        %1819 = vmatpush2.msra.mxu0 0.0
        %1820 = vmatprep.subr.mxu0 0.0
        %1821 = vmatpush2.msra.mxu0 0.0
        %1822 = vmatprep.subr.mxu0 0.0
        %1823 = vmatpush2.msra.mxu0 0.0
        %1824 = vmatprep.subr.mxu0 0.0
        %1825 = vmatpush2.msra.mxu0 0.0
        %1826 = vmatprep.subr.mxu0 0.0
        %1827 = vmatpush2.msra.mxu0 0.0
        %1828 = vmatprep.subr.mxu0 0.0
        %1829 = vmatpush2.msra.mxu0 0.0
        %1830 = vmatprep.subr.mxu0 0.0
        %1831 = vmatpush2.msra.mxu0 0.0
        %1832 = vmatprep.subr.mxu0 0.0
        %1833 = vmatpush2.msra.mxu0 0.0
        %1834 = vmatprep.subr.mxu0 0.0
        %1835 = vmatpush2.msra.mxu0 0.0
        %1836 = vmatprep.subr.mxu0 0.0
        %1837 = vmatpush2.msra.mxu0 0.0
        %1838 = vmatprep.subr.mxu0 0.0
        %1839 = vmatpush2.msra.mxu0 0.0
        %1840 = vmatprep.subr.mxu0 0.0
        %1841 = vmatpush2.msra.mxu0 0.0
        %1842 = vmatprep.subr.mxu0 0.0
        %1843 = vmatpush2.msra.mxu0 0.0
        %1844 = vmatprep.subr.mxu0 0.0
        %1845 = vmatpush2.msra.mxu0 0.0
        %1846 = vmatprep.mubr.f32.mxu0 0.0
        %1847 = vmatmul.mubr.f32.gmra.mxu0 %v1688
        %v1848 = vpop.f32.mrf.mxu0
        %v1849 = vadd.f32 %v1681, %v1848
        %v1850 = vpop.f32.mrf.mxu0
        %v1851 = vadd.f32 %v1681, %v1850
        %1852 = vmatprep.mubr.f32.mxu0 0.0
        %1853 = vmatmul.mubr.f32.gmra.mxu0 %v1691
        %v1854 = vpop.f32.mrf.mxu0
        %v1855 = vadd.f32 %v1685, %v1854
        %v1856 = vpop.f32.mrf.mxu0
        %v1857 = vadd.f32 %v1685, %v1856
        %1858 = vdwg.mxu0
        %v1859 = vmax.f32 %v1772, 0.0
        %v1860 = vmax.f32 %v1774, 0.0
        %v1861 = vmax.f32 %v1849, 0.0
        %v1862 = vmax.f32 %v1851, 0.0
        %v1863 = vmax.f32 %v1778, 0.0
        %v1864 = vmax.f32 %v1780, 0.0
        %v1865 = vmax.f32 %v1855, 0.0
        %v1866 = vmax.f32 %v1857, 0.0
        %v1867 = vld [vmem:[%s10] sm:$0xff]
        %v1868 = vld [vmem:[%s10 + $0x8] sm:$0xff]
        %v1869 = vld [vmem:[%s10 + $0x10] sm:$0xff]
        %v1870 = vld [vmem:[%s10 + $0x18] sm:$0xff]
        %v1871 = vld [vmem:[%s10 + $0x20] sm:$0xf]
        %v1872 = vld [vmem:[%s10 + $0x28] sm:$0xf]
        %v1873 = vld [vmem:[%s10 + $0x30] sm:$0xf]
        %v1874 = vld [vmem:[%s10 + $0x38] sm:$0xf]
        %v1875 = vmul.f32 %v1867, %v1859
        %v1876 = vmul.f32 %v1868, %v1860
        %v1877 = vmul.f32 %v1869, %v1861
        %v1878 = vmul.f32 %v1870, %v1862
        %v1879 = vmul.f32 %v1871, %v1863
        %v1880 = vmul.f32 %v1872, %v1864
        %v1881 = vmul.f32 %v1873, %v1865
        %v1882 = vmul.f32 %v1874, %v1866
        %v1883 = vld [vmem:[%s11] sm:$0xff]
        %v1884 = vld [vmem:[%s11 + $0x8] sm:$0xff]
        %v1885 = vld [vmem:[%s11 + $0x10] sm:$0xff]
        %v1886 = vld [vmem:[%s11 + $0x18] sm:$0xff]
        %v1887 = vld [vmem:[%s11 + $0x20] sm:$0xf]
        %v1888 = vld [vmem:[%s11 + $0x28] sm:$0xf]
        %v1889 = vld [vmem:[%s11 + $0x30] sm:$0xf]
        %v1890 = vld [vmem:[%s11 + $0x38] sm:$0xf]
        %v1891 = vadd.f32 %v1875, %v1883
        %v1892 = vadd.f32 %v1876, %v1884
        %v1893 = vadd.f32 %v1877, %v1885
        %v1894 = vadd.f32 %v1878, %v1886
        %v1895 = vadd.f32 %v1879, %v1887
        %v1896 = vadd.f32 %v1880, %v1888
        %v1897 = vadd.f32 %v1881, %v1889
        %v1898 = vadd.f32 %v1882, %v1890
        %v1899 = vmax.f32 %v1891, 0.0
        %v1900 = vmax.f32 %v1892, 0.0
        %v1901 = vmax.f32 %v1893, 0.0
        %v1902 = vmax.f32 %v1894, 0.0
        %v1903 = vmax.f32 %v1895, 0.0
        %v1904 = vmax.f32 %v1896, 0.0
        %v1905 = vmax.f32 %v1897, 0.0
        %v1906 = vmax.f32 %v1898, 0.0
        %v1907 = vadd.f32 %v1479, %v1899
        %v1908 = vadd.f32 %v1480, %v1900
        %v1909 = vadd.f32 %v1481, %v1901
        %v1910 = vadd.f32 %v1482, %v1902
        %v1911 = vadd.f32 %v1483, %v1903
        %v1912 = vadd.f32 %v1484, %v1904
        %v1913 = vadd.f32 %v1485, %v1905
        %v1914 = vadd.f32 %v1486, %v1906
        %1915 = vrot.lane.b32.xlu0 %v1907, 9
        %v1916 = vpop.permute.xlu0 %1915
        %1917 = vrot.lane.b32.xlu0 %v1911, 9
        %v1918 = vpop.permute.xlu0 %1917
        %1919 = vrot.lane.b32.xlu0 %v1908, 9
        %v1920 = vpop.permute.xlu0 %1919
        %1921 = vrot.lane.b32.xlu0 %v1912, 9
        %v1922 = vpop.permute.xlu0 %1921
        %1923 = vrot.lane.b32.xlu0 %v1909, 9
        %v1924 = vpop.permute.xlu0 %1923
        %1925 = vrot.lane.b32.xlu0 %v1913, 9
        %v1926 = vpop.permute.xlu0 %1925
        %1927 = vrot.lane.b32.xlu0 %v1910, 9
        %v1928 = vpop.permute.xlu0 %1927
        %1929 = vrot.lane.b32.xlu0 %v1914, 9
        %v1930 = vpop.permute.xlu0 %1929
        %v1931 = vlaneseq
        %v1932 = vand.u32 %v1931, 127
        %vm1933 = vcmp.lt.s32.totalorder %v1932, 9
        %v1934 = vsel %vm1933, %v1924, %v1928
        %v1935 = vsel %vm1933, %v1926, %v1930
        %v1936 = vsel %vm1933, %v1920, %v1924
        %v1937 = vsel %vm1933, %v1922, %v1926
        %v1938 = vsel %vm1933, %v1916, %v1920
        %v1939 = vsel %vm1933, %v1918, %v1922
        %v1940 = vsel %vm1933, %v1928, %v1916
        %v1941 = vsel %vm1933, %v1930, %v1918
        %v1942 = vld [vmem:[%s12] sm:$0xff]
        %v1943 = vld [vmem:[%s12 + $0x8] sm:$0xff]
        %v1944 = vld [vmem:[%s12 + $0x10] sm:$0xff]
        %v1945 = vld [vmem:[%s12 + $0x18] sm:$0xff]
        %v1946 = vld [vmem:[%s12 + $0x20] sm:$0xf]
        %v1947 = vld [vmem:[%s12 + $0x28] sm:$0xf]
        %v1948 = vld [vmem:[%s12 + $0x30] sm:$0xf]
        %v1949 = vld [vmem:[%s12 + $0x38] sm:$0xf]
        %v1950 = vmul.f32 %v1940, %v1942
        %v1951 = vmul.f32 %v1938, %v1943
        %v1952 = vmul.f32 %v1936, %v1944
        %v1953 = vmul.f32 %v1934, %v1945
        %v1954 = vmul.f32 %v1941, %v1946
        %v1955 = vmul.f32 %v1939, %v1947
        %v1956 = vmul.f32 %v1937, %v1948
        %v1957 = vmul.f32 %v1935, %v1949
        %1958 = vrot.lane.b32.xlu0 %v1907, 8
        %v1959 = vpop.permute.xlu0 %1958
        %1960 = vrot.lane.b32.xlu0 %v1911, 8
        %v1961 = vpop.permute.xlu0 %1960
        %1962 = vrot.lane.b32.xlu0 %v1908, 8
        %v1963 = vpop.permute.xlu0 %1962
        %1964 = vrot.lane.b32.xlu0 %v1912, 8
        %v1965 = vpop.permute.xlu0 %1964
        %1966 = vrot.lane.b32.xlu0 %v1909, 8
        %v1967 = vpop.permute.xlu0 %1966
        %1968 = vrot.lane.b32.xlu0 %v1913, 8
        %v1969 = vpop.permute.xlu0 %1968
        %1970 = vrot.lane.b32.xlu0 %v1910, 8
        %v1971 = vpop.permute.xlu0 %1970
        %1972 = vrot.lane.b32.xlu0 %v1914, 8
        %v1973 = vpop.permute.xlu0 %1972
        %vm1974 = vcmp.lt.s32.totalorder %v1932, 8
        %v1975 = vsel %vm1974, %v1967, %v1971
        %v1976 = vsel %vm1974, %v1969, %v1973
        %v1977 = vsel %vm1974, %v1963, %v1967
        %v1978 = vsel %vm1974, %v1965, %v1969
        %v1979 = vsel %vm1974, %v1959, %v1963
        %v1980 = vsel %vm1974, %v1961, %v1965
        %v1981 = vsel %vm1974, %v1971, %v1959
        %v1982 = vsel %vm1974, %v1973, %v1961
        %s1983 = scalar_lea.vmem %s12, 64
        %v1984 = vld [vmem:[%s1983] sm:$0xff]
        %v1985 = vld [vmem:[%s1983 + $0x8] sm:$0xff]
        %v1986 = vld [vmem:[%s1983 + $0x10] sm:$0xff]
        %v1987 = vld [vmem:[%s1983 + $0x18] sm:$0xff]
        %v1988 = vld [vmem:[%s1983 + $0x20] sm:$0xf]
        %v1989 = vld [vmem:[%s1983 + $0x28] sm:$0xf]
        %v1990 = vld [vmem:[%s1983 + $0x30] sm:$0xf]
        %v1991 = vld [vmem:[%s1983 + $0x38] sm:$0xf]
        %v1992 = vmul.f32 %v1981, %v1984
        %v1993 = vmul.f32 %v1979, %v1985
        %v1994 = vmul.f32 %v1977, %v1986
        %v1995 = vmul.f32 %v1975, %v1987
        %v1996 = vmul.f32 %v1982, %v1988
        %v1997 = vmul.f32 %v1980, %v1989
        %v1998 = vmul.f32 %v1978, %v1990
        %v1999 = vmul.f32 %v1976, %v1991
        %v2000 = vadd.f32 %v1950, %v1992
        %v2001 = vadd.f32 %v1951, %v1993
        %v2002 = vadd.f32 %v1952, %v1994
        %v2003 = vadd.f32 %v1953, %v1995
        %v2004 = vadd.f32 %v1954, %v1996
        %v2005 = vadd.f32 %v1955, %v1997
        %v2006 = vadd.f32 %v1956, %v1998
        %v2007 = vadd.f32 %v1957, %v1999
        %2008 = vrot.lane.b32.xlu0 %v1907, 7
        %v2009 = vpop.permute.xlu0 %2008
        %2010 = vrot.lane.b32.xlu0 %v1911, 7
        %v2011 = vpop.permute.xlu0 %2010
        %2012 = vrot.lane.b32.xlu0 %v1908, 7
        %v2013 = vpop.permute.xlu0 %2012
        %2014 = vrot.lane.b32.xlu0 %v1912, 7
        %v2015 = vpop.permute.xlu0 %2014
        %2016 = vrot.lane.b32.xlu0 %v1909, 7
        %v2017 = vpop.permute.xlu0 %2016
        %2018 = vrot.lane.b32.xlu0 %v1913, 7
        %v2019 = vpop.permute.xlu0 %2018
        %2020 = vrot.lane.b32.xlu0 %v1910, 7
        %v2021 = vpop.permute.xlu0 %2020
        %2022 = vrot.lane.b32.xlu0 %v1914, 7
        %v2023 = vpop.permute.xlu0 %2022
        %vm2024 = vcmp.lt.s32.totalorder %v1932, 7
        %v2025 = vsel %vm2024, %v2017, %v2021
        %v2026 = vsel %vm2024, %v2019, %v2023
        %v2027 = vsel %vm2024, %v2013, %v2017
        %v2028 = vsel %vm2024, %v2015, %v2019
        %v2029 = vsel %vm2024, %v2009, %v2013
        %v2030 = vsel %vm2024, %v2011, %v2015
        %v2031 = vsel %vm2024, %v2021, %v2009
        %v2032 = vsel %vm2024, %v2023, %v2011
        %s2033 = scalar_lea.vmem %s12, 128
        %v2034 = vld [vmem:[%s2033] sm:$0xff]
        %v2035 = vld [vmem:[%s2033 + $0x8] sm:$0xff]
        %v2036 = vld [vmem:[%s2033 + $0x10] sm:$0xff]
        %v2037 = vld [vmem:[%s2033 + $0x18] sm:$0xff]
        %v2038 = vld [vmem:[%s2033 + $0x20] sm:$0xf]
        %v2039 = vld [vmem:[%s2033 + $0x28] sm:$0xf]
        %v2040 = vld [vmem:[%s2033 + $0x30] sm:$0xf]
        %v2041 = vld [vmem:[%s2033 + $0x38] sm:$0xf]
        %v2042 = vmul.f32 %v2031, %v2034
        %v2043 = vmul.f32 %v2029, %v2035
        %v2044 = vmul.f32 %v2027, %v2036
        %v2045 = vmul.f32 %v2025, %v2037
        %v2046 = vmul.f32 %v2032, %v2038
        %v2047 = vmul.f32 %v2030, %v2039
        %v2048 = vmul.f32 %v2028, %v2040
        %v2049 = vmul.f32 %v2026, %v2041
        %v2050 = vadd.f32 %v2000, %v2042
        %v2051 = vadd.f32 %v2001, %v2043
        %v2052 = vadd.f32 %v2002, %v2044
        %v2053 = vadd.f32 %v2003, %v2045
        %v2054 = vadd.f32 %v2004, %v2046
        %v2055 = vadd.f32 %v2005, %v2047
        %v2056 = vadd.f32 %v2006, %v2048
        %v2057 = vadd.f32 %v2007, %v2049
        %2058 = vrot.lane.b32.xlu0 %v1907, 1
        %v2059 = vpop.permute.xlu0 %2058
        %2060 = vrot.lane.b32.xlu0 %v1911, 1
        %v2061 = vpop.permute.xlu0 %2060
        %2062 = vrot.lane.b32.xlu0 %v1908, 1
        %v2063 = vpop.permute.xlu0 %2062
        %2064 = vrot.lane.b32.xlu0 %v1912, 1
        %v2065 = vpop.permute.xlu0 %2064
        %2066 = vrot.lane.b32.xlu0 %v1909, 1
        %v2067 = vpop.permute.xlu0 %2066
        %2068 = vrot.lane.b32.xlu0 %v1913, 1
        %v2069 = vpop.permute.xlu0 %2068
        %2070 = vrot.lane.b32.xlu0 %v1910, 1
        %v2071 = vpop.permute.xlu0 %2070
        %2072 = vrot.lane.b32.xlu0 %v1914, 1
        %v2073 = vpop.permute.xlu0 %2072
        %vm2074 = vcmp.lt.s32.totalorder %v1932, 1
        %v2075 = vsel %vm2074, %v2067, %v2071
        %v2076 = vsel %vm2074, %v2069, %v2073
        %v2077 = vsel %vm2074, %v2063, %v2067
        %v2078 = vsel %vm2074, %v2065, %v2069
        %v2079 = vsel %vm2074, %v2059, %v2063
        %v2080 = vsel %vm2074, %v2061, %v2065
        %v2081 = vsel %vm2074, %v2071, %v2059
        %v2082 = vsel %vm2074, %v2073, %v2061
        %s2083 = scalar_lea.vmem %s12, 192
        %v2084 = vld [vmem:[%s2083] sm:$0xff]
        %v2085 = vld [vmem:[%s2083 + $0x8] sm:$0xff]
        %v2086 = vld [vmem:[%s2083 + $0x10] sm:$0xff]
        %v2087 = vld [vmem:[%s2083 + $0x18] sm:$0xff]
        %v2088 = vld [vmem:[%s2083 + $0x20] sm:$0xf]
        %v2089 = vld [vmem:[%s2083 + $0x28] sm:$0xf]
        %v2090 = vld [vmem:[%s2083 + $0x30] sm:$0xf]
        %v2091 = vld [vmem:[%s2083 + $0x38] sm:$0xf]
        %v2092 = vmul.f32 %v2081, %v2084
        %v2093 = vmul.f32 %v2079, %v2085
        %v2094 = vmul.f32 %v2077, %v2086
        %v2095 = vmul.f32 %v2075, %v2087
        %v2096 = vmul.f32 %v2082, %v2088
        %v2097 = vmul.f32 %v2080, %v2089
        %v2098 = vmul.f32 %v2078, %v2090
        %v2099 = vmul.f32 %v2076, %v2091
        %v2100 = vadd.f32 %v2050, %v2092
        %v2101 = vadd.f32 %v2051, %v2093
        %v2102 = vadd.f32 %v2052, %v2094
        %v2103 = vadd.f32 %v2053, %v2095
        %v2104 = vadd.f32 %v2054, %v2096
        %v2105 = vadd.f32 %v2055, %v2097
        %v2106 = vadd.f32 %v2056, %v2098
        %v2107 = vadd.f32 %v2057, %v2099
        %s2108 = scalar_lea.vmem %s12, 256
        %v2109 = vld [vmem:[%s2108] sm:$0xff]
        %v2110 = vld [vmem:[%s2108 + $0x8] sm:$0xff]
        %v2111 = vld [vmem:[%s2108 + $0x10] sm:$0xff]
        %v2112 = vld [vmem:[%s2108 + $0x18] sm:$0xff]
        %v2113 = vld [vmem:[%s2108 + $0x20] sm:$0xf]
        %v2114 = vld [vmem:[%s2108 + $0x28] sm:$0xf]
        %v2115 = vld [vmem:[%s2108 + $0x30] sm:$0xf]
        %v2116 = vld [vmem:[%s2108 + $0x38] sm:$0xf]
        %v2117 = vmul.f32 %v1907, %v2109
        %v2118 = vmul.f32 %v1908, %v2110
        %v2119 = vmul.f32 %v1909, %v2111
        %v2120 = vmul.f32 %v1910, %v2112
        %v2121 = vmul.f32 %v1911, %v2113
        %v2122 = vmul.f32 %v1912, %v2114
        %v2123 = vmul.f32 %v1913, %v2115
        %v2124 = vmul.f32 %v1914, %v2116
        %v2125 = vadd.f32 %v2100, %v2117
        %v2126 = vadd.f32 %v2101, %v2118
        %v2127 = vadd.f32 %v2102, %v2119
        %v2128 = vadd.f32 %v2103, %v2120
        %v2129 = vadd.f32 %v2104, %v2121
        %v2130 = vadd.f32 %v2105, %v2122
        %v2131 = vadd.f32 %v2106, %v2123
        %v2132 = vadd.f32 %v2107, %v2124
        %2133 = vrot.lane.b32.xlu0 %v1907, 127
        %v2134 = vpop.permute.xlu0 %2133
        %2135 = vrot.lane.b32.xlu0 %v1911, 127
        %v2136 = vpop.permute.xlu0 %2135
        %2137 = vrot.lane.b32.xlu0 %v1908, 127
        %v2138 = vpop.permute.xlu0 %2137
        %2139 = vrot.lane.b32.xlu0 %v1912, 127
        %v2140 = vpop.permute.xlu0 %2139
        %2141 = vrot.lane.b32.xlu0 %v1909, 127
        %v2142 = vpop.permute.xlu0 %2141
        %2143 = vrot.lane.b32.xlu0 %v1913, 127
        %v2144 = vpop.permute.xlu0 %2143
        %2145 = vrot.lane.b32.xlu0 %v1910, 127
        %v2146 = vpop.permute.xlu0 %2145
        %2147 = vrot.lane.b32.xlu0 %v1914, 127
        %v2148 = vpop.permute.xlu0 %2147
        %vm2149 = vcmp.lt.s32.totalorder %v1932, 127
        %v2150 = vsel %vm2149, %v2142, %v2146
        %v2151 = vsel %vm2149, %v2144, %v2148
        %v2152 = vsel %vm2149, %v2138, %v2142
        %v2153 = vsel %vm2149, %v2140, %v2144
        %v2154 = vsel %vm2149, %v2134, %v2138
        %v2155 = vsel %vm2149, %v2136, %v2140
        %v2156 = vsel %vm2149, %v2146, %v2134
        %v2157 = vsel %vm2149, %v2148, %v2136
        %s2158 = scalar_lea.vmem %s12, 320
        %v2159 = vld [vmem:[%s2158] sm:$0xff]
        %v2160 = vld [vmem:[%s2158 + $0x8] sm:$0xff]
        %v2161 = vld [vmem:[%s2158 + $0x10] sm:$0xff]
        %v2162 = vld [vmem:[%s2158 + $0x18] sm:$0xff]
        %v2163 = vld [vmem:[%s2158 + $0x20] sm:$0xf]
        %v2164 = vld [vmem:[%s2158 + $0x28] sm:$0xf]
        %v2165 = vld [vmem:[%s2158 + $0x30] sm:$0xf]
        %v2166 = vld [vmem:[%s2158 + $0x38] sm:$0xf]
        %v2167 = vmul.f32 %v2154, %v2159
        %v2168 = vmul.f32 %v2152, %v2160
        %v2169 = vmul.f32 %v2150, %v2161
        %v2170 = vmul.f32 %v2156, %v2162
        %v2171 = vmul.f32 %v2155, %v2163
        %v2172 = vmul.f32 %v2153, %v2164
        %v2173 = vmul.f32 %v2151, %v2165
        %v2174 = vmul.f32 %v2157, %v2166
        %v2175 = vadd.f32 %v2125, %v2167
        %v2176 = vadd.f32 %v2126, %v2168
        %v2177 = vadd.f32 %v2127, %v2169
        %v2178 = vadd.f32 %v2128, %v2170
        %v2179 = vadd.f32 %v2129, %v2171
        %v2180 = vadd.f32 %v2130, %v2172
        %v2181 = vadd.f32 %v2131, %v2173
        %v2182 = vadd.f32 %v2132, %v2174
        %2183 = vrot.lane.b32.xlu0 %v1907, 121
        %v2184 = vpop.permute.xlu0 %2183
        %2185 = vrot.lane.b32.xlu0 %v1911, 121
        %v2186 = vpop.permute.xlu0 %2185
        %2187 = vrot.lane.b32.xlu0 %v1908, 121
        %v2188 = vpop.permute.xlu0 %2187
        %2189 = vrot.lane.b32.xlu0 %v1912, 121
        %v2190 = vpop.permute.xlu0 %2189
        %2191 = vrot.lane.b32.xlu0 %v1909, 121
        %v2192 = vpop.permute.xlu0 %2191
        %2193 = vrot.lane.b32.xlu0 %v1913, 121
        %v2194 = vpop.permute.xlu0 %2193
        %2195 = vrot.lane.b32.xlu0 %v1910, 121
        %v2196 = vpop.permute.xlu0 %2195
        %2197 = vrot.lane.b32.xlu0 %v1914, 121
        %v2198 = vpop.permute.xlu0 %2197
        %vm2199 = vcmp.lt.s32.totalorder %v1932, 121
        %v2200 = vsel %vm2199, %v2192, %v2196
        %v2201 = vsel %vm2199, %v2194, %v2198
        %v2202 = vsel %vm2199, %v2188, %v2192
        %v2203 = vsel %vm2199, %v2190, %v2194
        %v2204 = vsel %vm2199, %v2184, %v2188
        %v2205 = vsel %vm2199, %v2186, %v2190
        %v2206 = vsel %vm2199, %v2196, %v2184
        %v2207 = vsel %vm2199, %v2198, %v2186
        %s2208 = scalar_lea.vmem %s12, 384
        %v2209 = vld [vmem:[%s2208] sm:$0xff]
        %v2210 = vld [vmem:[%s2208 + $0x8] sm:$0xff]
        %v2211 = vld [vmem:[%s2208 + $0x10] sm:$0xff]
        %v2212 = vld [vmem:[%s2208 + $0x18] sm:$0xff]
        %v2213 = vld [vmem:[%s2208 + $0x20] sm:$0xf]
        %v2214 = vld [vmem:[%s2208 + $0x28] sm:$0xf]
        %v2215 = vld [vmem:[%s2208 + $0x30] sm:$0xf]
        %v2216 = vld [vmem:[%s2208 + $0x38] sm:$0xf]
        %v2217 = vmul.f32 %v2204, %v2209
        %v2218 = vmul.f32 %v2202, %v2210
        %v2219 = vmul.f32 %v2200, %v2211
        %v2220 = vmul.f32 %v2206, %v2212
        %v2221 = vmul.f32 %v2205, %v2213
        %v2222 = vmul.f32 %v2203, %v2214
        %v2223 = vmul.f32 %v2201, %v2215
        %v2224 = vmul.f32 %v2207, %v2216
        %v2225 = vadd.f32 %v2175, %v2217
        %v2226 = vadd.f32 %v2176, %v2218
        %v2227 = vadd.f32 %v2177, %v2219
        %v2228 = vadd.f32 %v2178, %v2220
        %v2229 = vadd.f32 %v2179, %v2221
        %v2230 = vadd.f32 %v2180, %v2222
        %v2231 = vadd.f32 %v2181, %v2223
        %v2232 = vadd.f32 %v2182, %v2224
        %2233 = vrot.lane.b32.xlu0 %v1907, 120
        %v2234 = vpop.permute.xlu0 %2233
        %2235 = vrot.lane.b32.xlu0 %v1911, 120
        %v2236 = vpop.permute.xlu0 %2235
        %2237 = vrot.lane.b32.xlu0 %v1908, 120
        %v2238 = vpop.permute.xlu0 %2237
        %2239 = vrot.lane.b32.xlu0 %v1912, 120
        %v2240 = vpop.permute.xlu0 %2239
        %2241 = vrot.lane.b32.xlu0 %v1909, 120
        %v2242 = vpop.permute.xlu0 %2241
        %2243 = vrot.lane.b32.xlu0 %v1913, 120
        %v2244 = vpop.permute.xlu0 %2243
        %2245 = vrot.lane.b32.xlu0 %v1910, 120
        %v2246 = vpop.permute.xlu0 %2245
        %2247 = vrot.lane.b32.xlu0 %v1914, 120
        %v2248 = vpop.permute.xlu0 %2247
        %vm2249 = vcmp.lt.s32.totalorder %v1932, 120
        %v2250 = vsel %vm2249, %v2242, %v2246
        %v2251 = vsel %vm2249, %v2244, %v2248
        %v2252 = vsel %vm2249, %v2238, %v2242
        %v2253 = vsel %vm2249, %v2240, %v2244
        %v2254 = vsel %vm2249, %v2234, %v2238
        %v2255 = vsel %vm2249, %v2236, %v2240
        %v2256 = vsel %vm2249, %v2246, %v2234
        %v2257 = vsel %vm2249, %v2248, %v2236
        %s2258 = scalar_lea.vmem %s12, 448
        %v2259 = vld [vmem:[%s2258] sm:$0xff]
        %v2260 = vld [vmem:[%s2258 + $0x8] sm:$0xff]
        %v2261 = vld [vmem:[%s2258 + $0x10] sm:$0xff]
        %v2262 = vld [vmem:[%s2258 + $0x18] sm:$0xff]
        %v2263 = vld [vmem:[%s2258 + $0x20] sm:$0xf]
        %v2264 = vld [vmem:[%s2258 + $0x28] sm:$0xf]
        %v2265 = vld [vmem:[%s2258 + $0x30] sm:$0xf]
        %v2266 = vld [vmem:[%s2258 + $0x38] sm:$0xf]
        %v2267 = vmul.f32 %v2254, %v2259
        %v2268 = vmul.f32 %v2252, %v2260
        %v2269 = vmul.f32 %v2250, %v2261
        %v2270 = vmul.f32 %v2256, %v2262
        %v2271 = vmul.f32 %v2255, %v2263
        %v2272 = vmul.f32 %v2253, %v2264
        %v2273 = vmul.f32 %v2251, %v2265
        %v2274 = vmul.f32 %v2257, %v2266
        %v2275 = vadd.f32 %v2225, %v2267
        %v2276 = vadd.f32 %v2226, %v2268
        %v2277 = vadd.f32 %v2227, %v2269
        %v2278 = vadd.f32 %v2228, %v2270
        %v2279 = vadd.f32 %v2229, %v2271
        %v2280 = vadd.f32 %v2230, %v2272
        %v2281 = vadd.f32 %v2231, %v2273
        %v2282 = vadd.f32 %v2232, %v2274
        %2283 = vrot.lane.b32.xlu0 %v1907, 119
        %v2284 = vpop.permute.xlu0 %2283
        %2285 = vrot.lane.b32.xlu0 %v1911, 119
        %v2286 = vpop.permute.xlu0 %2285
        %2287 = vrot.lane.b32.xlu0 %v1908, 119
        %v2288 = vpop.permute.xlu0 %2287
        %2289 = vrot.lane.b32.xlu0 %v1912, 119
        %v2290 = vpop.permute.xlu0 %2289
        %2291 = vrot.lane.b32.xlu0 %v1909, 119
        %v2292 = vpop.permute.xlu0 %2291
        %2293 = vrot.lane.b32.xlu0 %v1913, 119
        %v2294 = vpop.permute.xlu0 %2293
        %2295 = vrot.lane.b32.xlu0 %v1910, 119
        %v2296 = vpop.permute.xlu0 %2295
        %2297 = vrot.lane.b32.xlu0 %v1914, 119
        %v2298 = vpop.permute.xlu0 %2297
        %vm2299 = vcmp.lt.s32.totalorder %v1932, 119
        %v2300 = vsel %vm2299, %v2292, %v2296
        %v2301 = vsel %vm2299, %v2294, %v2298
        %v2302 = vsel %vm2299, %v2288, %v2292
        %v2303 = vsel %vm2299, %v2290, %v2294
        %v2304 = vsel %vm2299, %v2284, %v2288
        %v2305 = vsel %vm2299, %v2286, %v2290
        %v2306 = vsel %vm2299, %v2296, %v2284
        %v2307 = vsel %vm2299, %v2298, %v2286
        %s2308 = scalar_lea.vmem %s12, 512
        %v2309 = vld [vmem:[%s2308] sm:$0xff]
        %v2310 = vld [vmem:[%s2308 + $0x8] sm:$0xff]
        %v2311 = vld [vmem:[%s2308 + $0x10] sm:$0xff]
        %v2312 = vld [vmem:[%s2308 + $0x18] sm:$0xff]
        %v2313 = vld [vmem:[%s2308 + $0x20] sm:$0xf]
        %v2314 = vld [vmem:[%s2308 + $0x28] sm:$0xf]
        %v2315 = vld [vmem:[%s2308 + $0x30] sm:$0xf]
        %v2316 = vld [vmem:[%s2308 + $0x38] sm:$0xf]
        %v2317 = vmul.f32 %v2304, %v2309
        %v2318 = vmul.f32 %v2302, %v2310
        %v2319 = vmul.f32 %v2300, %v2311
        %v2320 = vmul.f32 %v2306, %v2312
        %v2321 = vmul.f32 %v2305, %v2313
        %v2322 = vmul.f32 %v2303, %v2314
        %v2323 = vmul.f32 %v2301, %v2315
        %v2324 = vmul.f32 %v2307, %v2316
        %v2325 = vadd.f32 %v2275, %v2317
        %v2326 = vadd.f32 %v2276, %v2318
        %v2327 = vadd.f32 %v2277, %v2319
        %v2328 = vadd.f32 %v2278, %v2320
        %v2329 = vadd.f32 %v2279, %v2321
        %v2330 = vadd.f32 %v2280, %v2322
        %v2331 = vadd.f32 %v2281, %v2323
        %v2332 = vadd.f32 %v2282, %v2324
        %v2333 = vld [vmem:[%s15] sm:$0xff]
        %v2334 = vld [vmem:[%s15 + $0x8] sm:$0xf]
        %v2335 = vld [vmem:[%s16] sm:$0xff]
        %v2336 = vld [vmem:[%s16 + $0x8] sm:$0xff]
        %v2337 = vld [vmem:[%s16 + $0x10] sm:$0xff]
        %v2338 = vld [vmem:[%s16 + $0x18] sm:$0xff]
        %v2339 = vld [vmem:[%s16 + $0x20] sm:$0xf]
        %v2340 = vld [vmem:[%s16 + $0x28] sm:$0xf]
        %v2341 = vld [vmem:[%s16 + $0x30] sm:$0xf]
        %v2342 = vld [vmem:[%s16 + $0x38] sm:$0xf]
        %v2344 = vsel %vm935, %v2333, 0
        %v2347 = vsel %vm935, %v2334, 0
        %v2350 = vsel %vm939, %v2329, 0
        %v2353 = vsel %vm939, %v2330, 0
        %v2356 = vsel %vm939, %v2331, 0
        %v2359 = vsel %vm939, %v2332, 0
        %2361 = vmatprep.subr.mxu0 0.0
        %2362 = vmatpush1.msra.mxu0 0.0
        %2363 = vmatprep.subr.mxu0 0.0
        %2364 = vmatpush1.msra.mxu0 0.0
        %2365 = vmatprep.subr.mxu0 0.0
        %2366 = vmatpush1.msra.mxu0 0.0
        %2367 = vmatprep.subr.mxu0 0.0
        %2368 = vmatpush1.msra.mxu0 0.0
        %2369 = vmatprep.subr.mxu0 0.0
        %2370 = vmatpush1.msra.mxu0 0.0
        %2371 = vmatprep.subr.mxu0 0.0
        %2372 = vmatpush1.msra.mxu0 0.0
        %2373 = vmatprep.subr.mxu0 0.0
        %2374 = vmatpush1.msra.mxu0 0.0
        %2375 = vmatprep.subr.mxu0 0.0
        %2376 = vmatpush1.msra.mxu0 0.0
        %2377 = vmatprep.subr.mxu0 0.0
        %2378 = vmatpush1.msra.mxu0 0.0
        %2379 = vmatprep.subr.mxu0 0.0
        %2380 = vmatpush1.msra.mxu0 0.0
        %2381 = vmatprep.subr.mxu0 0.0
        %2382 = vmatpush1.msra.mxu0 0.0
        %2383 = vmatprep.subr.mxu0 0.0
        %2384 = vmatpush1.msra.mxu0 0.0
        %2385 = vmatprep.subr.mxu0 0.0
        %2386 = vmatpush1.msra.mxu0 0.0
        %2387 = vmatprep.subr.mxu0 0.0
        %2388 = vmatpush1.msra.mxu0 0.0
        %2389 = vmatprep.subr.mxu0 %v2353
        %2390 = vmatpush1.msra.mxu0 %v2350
        %2391 = vmatprep.subr.mxu0 %v2326
        %2392 = vmatpush1.msra.mxu0 %v2325
        %2393 = vmatprep.subr.mxu0 0.0
        %2394 = vmatpush2.msra.mxu0 0.0
        %2395 = vmatprep.subr.mxu0 0.0
        %2396 = vmatpush2.msra.mxu0 0.0
        %2397 = vmatprep.subr.mxu0 0.0
        %2398 = vmatpush2.msra.mxu0 0.0
        %2399 = vmatprep.subr.mxu0 0.0
        %2400 = vmatpush2.msra.mxu0 0.0
        %2401 = vmatprep.subr.mxu0 0.0
        %2402 = vmatpush2.msra.mxu0 0.0
        %2403 = vmatprep.subr.mxu0 0.0
        %2404 = vmatpush2.msra.mxu0 0.0
        %2405 = vmatprep.subr.mxu0 0.0
        %2406 = vmatpush2.msra.mxu0 0.0
        %2407 = vmatprep.subr.mxu0 0.0
        %2408 = vmatpush2.msra.mxu0 0.0
        %2409 = vmatprep.subr.mxu0 0.0
        %2410 = vmatpush2.msra.mxu0 0.0
        %2411 = vmatprep.subr.mxu0 0.0
        %2412 = vmatpush2.msra.mxu0 0.0
        %2413 = vmatprep.subr.mxu0 0.0
        %2414 = vmatpush2.msra.mxu0 0.0
        %2415 = vmatprep.subr.mxu0 0.0
        %2416 = vmatpush2.msra.mxu0 0.0
        %2417 = vmatprep.subr.mxu0 0.0
        %2418 = vmatpush2.msra.mxu0 0.0
        %2419 = vmatprep.subr.mxu0 0.0
        %2420 = vmatpush2.msra.mxu0 0.0
        %2421 = vmatprep.subr.mxu0 0.0
        %2422 = vmatpush2.msra.mxu0 0.0
        %2423 = vmatprep.subr.mxu0 0.0
        %2424 = vmatpush2.msra.mxu0 0.0
        %2425 = vmatprep.mubr.f32.mxu0 0.0
        %2426 = vmatmul.mubr.f32.gmra.mxu0 %v2344
        %v2427 = vpop.f32.mrf.mxu0
        %v2428 = vadd.f32 %v2335, %v2427
        %v2429 = vpop.f32.mrf.mxu0
        %v2430 = vadd.f32 %v2336, %v2429
        %2431 = vmatprep.mubr.f32.mxu0 0.0
        %2432 = vmatmul.mubr.f32.gmra.mxu0 %v2347
        %v2433 = vpop.f32.mrf.mxu0
        %v2434 = vadd.f32 %v2339, %v2433
        %v2435 = vpop.f32.mrf.mxu0
        %v2436 = vadd.f32 %v2340, %v2435
        %2437 = vdwg.mxu0
        %2438 = vmatprep.subr.mxu0 0.0
        %2439 = vmatpush1.msra.mxu0 0.0
        %2440 = vmatprep.subr.mxu0 0.0
        %2441 = vmatpush1.msra.mxu0 0.0
        %2442 = vmatprep.subr.mxu0 0.0
        %2443 = vmatpush1.msra.mxu0 0.0
        %2444 = vmatprep.subr.mxu0 0.0
        %2445 = vmatpush1.msra.mxu0 0.0
        %2446 = vmatprep.subr.mxu0 0.0
        %2447 = vmatpush1.msra.mxu0 0.0
        %2448 = vmatprep.subr.mxu0 0.0
        %2449 = vmatpush1.msra.mxu0 0.0
        %2450 = vmatprep.subr.mxu0 0.0
        %2451 = vmatpush1.msra.mxu0 0.0
        %2452 = vmatprep.subr.mxu0 0.0
        %2453 = vmatpush1.msra.mxu0 0.0
        %2454 = vmatprep.subr.mxu0 0.0
        %2455 = vmatpush1.msra.mxu0 0.0
        %2456 = vmatprep.subr.mxu0 0.0
        %2457 = vmatpush1.msra.mxu0 0.0
        %2458 = vmatprep.subr.mxu0 0.0
        %2459 = vmatpush1.msra.mxu0 0.0
        %2460 = vmatprep.subr.mxu0 0.0
        %2461 = vmatpush1.msra.mxu0 0.0
        %2462 = vmatprep.subr.mxu0 0.0
        %2463 = vmatpush1.msra.mxu0 0.0
        %2464 = vmatprep.subr.mxu0 0.0
        %2465 = vmatpush1.msra.mxu0 0.0
        %2466 = vmatprep.subr.mxu0 %v2359
        %2467 = vmatpush1.msra.mxu0 %v2356
        %2468 = vmatprep.subr.mxu0 %v2328
        %2469 = vmatpush1.msra.mxu0 %v2327
        %2470 = vmatprep.subr.mxu0 0.0
        %2471 = vmatpush2.msra.mxu0 0.0
        %2472 = vmatprep.subr.mxu0 0.0
        %2473 = vmatpush2.msra.mxu0 0.0
        %2474 = vmatprep.subr.mxu0 0.0
        %2475 = vmatpush2.msra.mxu0 0.0
        %2476 = vmatprep.subr.mxu0 0.0
        %2477 = vmatpush2.msra.mxu0 0.0
        %2478 = vmatprep.subr.mxu0 0.0
        %2479 = vmatpush2.msra.mxu0 0.0
        %2480 = vmatprep.subr.mxu0 0.0
        %2481 = vmatpush2.msra.mxu0 0.0
        %2482 = vmatprep.subr.mxu0 0.0
        %2483 = vmatpush2.msra.mxu0 0.0
        %2484 = vmatprep.subr.mxu0 0.0
        %2485 = vmatpush2.msra.mxu0 0.0
        %2486 = vmatprep.subr.mxu0 0.0
        %2487 = vmatpush2.msra.mxu0 0.0
        %2488 = vmatprep.subr.mxu0 0.0
        %2489 = vmatpush2.msra.mxu0 0.0
        %2490 = vmatprep.subr.mxu0 0.0
        %2491 = vmatpush2.msra.mxu0 0.0
        %2492 = vmatprep.subr.mxu0 0.0
        %2493 = vmatpush2.msra.mxu0 0.0
        %2494 = vmatprep.subr.mxu0 0.0
        %2495 = vmatpush2.msra.mxu0 0.0
        %2496 = vmatprep.subr.mxu0 0.0
        %2497 = vmatpush2.msra.mxu0 0.0
        %2498 = vmatprep.subr.mxu0 0.0
        %2499 = vmatpush2.msra.mxu0 0.0
        %2500 = vmatprep.subr.mxu0 0.0
        %2501 = vmatpush2.msra.mxu0 0.0
        %2502 = vmatprep.mubr.f32.mxu0 0.0
        %2503 = vmatmul.mubr.f32.gmra.mxu0 %v2344
        %v2504 = vpop.f32.mrf.mxu0
        %v2505 = vadd.f32 %v2337, %v2504
        %v2506 = vpop.f32.mrf.mxu0
        %v2507 = vadd.f32 %v2338, %v2506
        %2508 = vmatprep.mubr.f32.mxu0 0.0
        %2509 = vmatmul.mubr.f32.gmra.mxu0 %v2347
        %v2510 = vpop.f32.mrf.mxu0
        %v2511 = vadd.f32 %v2341, %v2510
        %v2512 = vpop.f32.mrf.mxu0
        %v2513 = vadd.f32 %v2342, %v2512
        %2514 = vdwg.mxu0
        %v2515 = vmax.f32 %v2428, 0.0
        %v2516 = vmax.f32 %v2430, 0.0
        %v2517 = vmax.f32 %v2505, 0.0
        %v2518 = vmax.f32 %v2507, 0.0
        %v2519 = vmax.f32 %v2434, 0.0
        %v2520 = vmax.f32 %v2436, 0.0
        %v2521 = vmax.f32 %v2511, 0.0
        %v2522 = vmax.f32 %v2513, 0.0
        %2523 = vrot.lane.b32.xlu0 %v2515, 18
        %v2524 = vpop.permute.xlu0 %2523
        %2525 = vrot.lane.b32.xlu0 %v2519, 18
        %v2526 = vpop.permute.xlu0 %2525
        %2527 = vrot.lane.b32.xlu0 %v2516, 18
        %v2528 = vpop.permute.xlu0 %2527
        %2529 = vrot.lane.b32.xlu0 %v2520, 18
        %v2530 = vpop.permute.xlu0 %2529
        %2531 = vrot.lane.b32.xlu0 %v2517, 18
        %v2532 = vpop.permute.xlu0 %2531
        %2533 = vrot.lane.b32.xlu0 %v2521, 18
        %v2534 = vpop.permute.xlu0 %2533
        %2535 = vrot.lane.b32.xlu0 %v2518, 18
        %v2536 = vpop.permute.xlu0 %2535
        %2537 = vrot.lane.b32.xlu0 %v2522, 18
        %v2538 = vpop.permute.xlu0 %2537
        %vm2539 = vcmp.lt.s32.totalorder %v1932, 18
        %v2540 = vsel %vm2539, %v2532, %v2536
        %v2541 = vsel %vm2539, %v2534, %v2538
        %v2542 = vsel %vm2539, %v2528, %v2532
        %v2543 = vsel %vm2539, %v2530, %v2534
        %v2544 = vsel %vm2539, %v2524, %v2528
        %v2545 = vsel %vm2539, %v2526, %v2530
        %v2546 = vsel %vm2539, %v2536, %v2524
        %v2547 = vsel %vm2539, %v2538, %v2526
        %v2548 = vld [vmem:[%s13] sm:$0xff]
        %v2549 = vld [vmem:[%s13 + $0x8] sm:$0xff]
        %v2550 = vld [vmem:[%s13 + $0x10] sm:$0xff]
        %v2551 = vld [vmem:[%s13 + $0x18] sm:$0xff]
        %v2552 = vld [vmem:[%s13 + $0x20] sm:$0xf]
        %v2553 = vld [vmem:[%s13 + $0x28] sm:$0xf]
        %v2554 = vld [vmem:[%s13 + $0x30] sm:$0xf]
        %v2555 = vld [vmem:[%s13 + $0x38] sm:$0xf]
        %v2556 = vmul.f32 %v2546, %v2548
        %v2557 = vmul.f32 %v2544, %v2549
        %v2558 = vmul.f32 %v2542, %v2550
        %v2559 = vmul.f32 %v2540, %v2551
        %v2560 = vmul.f32 %v2547, %v2552
        %v2561 = vmul.f32 %v2545, %v2553
        %v2562 = vmul.f32 %v2543, %v2554
        %v2563 = vmul.f32 %v2541, %v2555
        %2564 = vrot.lane.b32.xlu0 %v2515, 17
        %v2565 = vpop.permute.xlu0 %2564
        %2566 = vrot.lane.b32.xlu0 %v2519, 17
        %v2567 = vpop.permute.xlu0 %2566
        %2568 = vrot.lane.b32.xlu0 %v2516, 17
        %v2569 = vpop.permute.xlu0 %2568
        %2570 = vrot.lane.b32.xlu0 %v2520, 17
        %v2571 = vpop.permute.xlu0 %2570
        %2572 = vrot.lane.b32.xlu0 %v2517, 17
        %v2573 = vpop.permute.xlu0 %2572
        %2574 = vrot.lane.b32.xlu0 %v2521, 17
        %v2575 = vpop.permute.xlu0 %2574
        %2576 = vrot.lane.b32.xlu0 %v2518, 17
        %v2577 = vpop.permute.xlu0 %2576
        %2578 = vrot.lane.b32.xlu0 %v2522, 17
        %v2579 = vpop.permute.xlu0 %2578
        %vm2580 = vcmp.lt.s32.totalorder %v1932, 17
        %v2581 = vsel %vm2580, %v2573, %v2577
        %v2582 = vsel %vm2580, %v2575, %v2579
        %v2583 = vsel %vm2580, %v2569, %v2573
        %v2584 = vsel %vm2580, %v2571, %v2575
        %v2585 = vsel %vm2580, %v2565, %v2569
        %v2586 = vsel %vm2580, %v2567, %v2571
        %v2587 = vsel %vm2580, %v2577, %v2565
        %v2588 = vsel %vm2580, %v2579, %v2567
        %s2589 = scalar_lea.vmem %s13, 64
        %v2590 = vld [vmem:[%s2589] sm:$0xff]
        %v2591 = vld [vmem:[%s2589 + $0x8] sm:$0xff]
        %v2592 = vld [vmem:[%s2589 + $0x10] sm:$0xff]
        %v2593 = vld [vmem:[%s2589 + $0x18] sm:$0xff]
        %v2594 = vld [vmem:[%s2589 + $0x20] sm:$0xf]
        %v2595 = vld [vmem:[%s2589 + $0x28] sm:$0xf]
        %v2596 = vld [vmem:[%s2589 + $0x30] sm:$0xf]
        %v2597 = vld [vmem:[%s2589 + $0x38] sm:$0xf]
        %v2598 = vmul.f32 %v2587, %v2590
        %v2599 = vmul.f32 %v2585, %v2591
        %v2600 = vmul.f32 %v2583, %v2592
        %v2601 = vmul.f32 %v2581, %v2593
        %v2602 = vmul.f32 %v2588, %v2594
        %v2603 = vmul.f32 %v2586, %v2595
        %v2604 = vmul.f32 %v2584, %v2596
        %v2605 = vmul.f32 %v2582, %v2597
        %v2606 = vadd.f32 %v2556, %v2598
        %v2607 = vadd.f32 %v2557, %v2599
        %v2608 = vadd.f32 %v2558, %v2600
        %v2609 = vadd.f32 %v2559, %v2601
        %v2610 = vadd.f32 %v2560, %v2602
        %v2611 = vadd.f32 %v2561, %v2603
        %v2612 = vadd.f32 %v2562, %v2604
        %v2613 = vadd.f32 %v2563, %v2605
        %2614 = vrot.lane.b32.xlu0 %v2515, 16
        %v2615 = vpop.permute.xlu0 %2614
        %2616 = vrot.lane.b32.xlu0 %v2519, 16
        %v2617 = vpop.permute.xlu0 %2616
        %2618 = vrot.lane.b32.xlu0 %v2516, 16
        %v2619 = vpop.permute.xlu0 %2618
        %2620 = vrot.lane.b32.xlu0 %v2520, 16
        %v2621 = vpop.permute.xlu0 %2620
        %2622 = vrot.lane.b32.xlu0 %v2517, 16
        %v2623 = vpop.permute.xlu0 %2622
        %2624 = vrot.lane.b32.xlu0 %v2521, 16
        %v2625 = vpop.permute.xlu0 %2624
        %2626 = vrot.lane.b32.xlu0 %v2518, 16
        %v2627 = vpop.permute.xlu0 %2626
        %2628 = vrot.lane.b32.xlu0 %v2522, 16
        %v2629 = vpop.permute.xlu0 %2628
        %vm2630 = vcmp.lt.s32.totalorder %v1932, 16
        %v2631 = vsel %vm2630, %v2623, %v2627
        %v2632 = vsel %vm2630, %v2625, %v2629
        %v2633 = vsel %vm2630, %v2619, %v2623
        %v2634 = vsel %vm2630, %v2621, %v2625
        %v2635 = vsel %vm2630, %v2615, %v2619
        %v2636 = vsel %vm2630, %v2617, %v2621
        %v2637 = vsel %vm2630, %v2627, %v2615
        %v2638 = vsel %vm2630, %v2629, %v2617
        %s2639 = scalar_lea.vmem %s13, 128
        %v2640 = vld [vmem:[%s2639] sm:$0xff]
        %v2641 = vld [vmem:[%s2639 + $0x8] sm:$0xff]
        %v2642 = vld [vmem:[%s2639 + $0x10] sm:$0xff]
        %v2643 = vld [vmem:[%s2639 + $0x18] sm:$0xff]
        %v2644 = vld [vmem:[%s2639 + $0x20] sm:$0xf]
        %v2645 = vld [vmem:[%s2639 + $0x28] sm:$0xf]
        %v2646 = vld [vmem:[%s2639 + $0x30] sm:$0xf]
        %v2647 = vld [vmem:[%s2639 + $0x38] sm:$0xf]
        %v2648 = vmul.f32 %v2637, %v2640
        %v2649 = vmul.f32 %v2635, %v2641
        %v2650 = vmul.f32 %v2633, %v2642
        %v2651 = vmul.f32 %v2631, %v2643
        %v2652 = vmul.f32 %v2638, %v2644
        %v2653 = vmul.f32 %v2636, %v2645
        %v2654 = vmul.f32 %v2634, %v2646
        %v2655 = vmul.f32 %v2632, %v2647
        %v2656 = vadd.f32 %v2606, %v2648
        %v2657 = vadd.f32 %v2607, %v2649
        %v2658 = vadd.f32 %v2608, %v2650
        %v2659 = vadd.f32 %v2609, %v2651
        %v2660 = vadd.f32 %v2610, %v2652
        %v2661 = vadd.f32 %v2611, %v2653
        %v2662 = vadd.f32 %v2612, %v2654
        %v2663 = vadd.f32 %v2613, %v2655
        %2664 = vrot.lane.b32.xlu0 %v2515, 15
        %v2665 = vpop.permute.xlu0 %2664
        %2666 = vrot.lane.b32.xlu0 %v2519, 15
        %v2667 = vpop.permute.xlu0 %2666
        %2668 = vrot.lane.b32.xlu0 %v2516, 15
        %v2669 = vpop.permute.xlu0 %2668
        %2670 = vrot.lane.b32.xlu0 %v2520, 15
        %v2671 = vpop.permute.xlu0 %2670
        %2672 = vrot.lane.b32.xlu0 %v2517, 15
        %v2673 = vpop.permute.xlu0 %2672
        %2674 = vrot.lane.b32.xlu0 %v2521, 15
        %v2675 = vpop.permute.xlu0 %2674
        %2676 = vrot.lane.b32.xlu0 %v2518, 15
        %v2677 = vpop.permute.xlu0 %2676
        %2678 = vrot.lane.b32.xlu0 %v2522, 15
        %v2679 = vpop.permute.xlu0 %2678
        %vm2680 = vcmp.lt.s32.totalorder %v1932, 15
        %v2681 = vsel %vm2680, %v2673, %v2677
        %v2682 = vsel %vm2680, %v2675, %v2679
        %v2683 = vsel %vm2680, %v2669, %v2673
        %v2684 = vsel %vm2680, %v2671, %v2675
        %v2685 = vsel %vm2680, %v2665, %v2669
        %v2686 = vsel %vm2680, %v2667, %v2671
        %v2687 = vsel %vm2680, %v2677, %v2665
        %v2688 = vsel %vm2680, %v2679, %v2667
        %s2689 = scalar_lea.vmem %s13, 192
        %v2690 = vld [vmem:[%s2689] sm:$0xff]
        %v2691 = vld [vmem:[%s2689 + $0x8] sm:$0xff]
        %v2692 = vld [vmem:[%s2689 + $0x10] sm:$0xff]
        %v2693 = vld [vmem:[%s2689 + $0x18] sm:$0xff]
        %v2694 = vld [vmem:[%s2689 + $0x20] sm:$0xf]
        %v2695 = vld [vmem:[%s2689 + $0x28] sm:$0xf]
        %v2696 = vld [vmem:[%s2689 + $0x30] sm:$0xf]
        %v2697 = vld [vmem:[%s2689 + $0x38] sm:$0xf]
        %v2698 = vmul.f32 %v2687, %v2690
        %v2699 = vmul.f32 %v2685, %v2691
        %v2700 = vmul.f32 %v2683, %v2692
        %v2701 = vmul.f32 %v2681, %v2693
        %v2702 = vmul.f32 %v2688, %v2694
        %v2703 = vmul.f32 %v2686, %v2695
        %v2704 = vmul.f32 %v2684, %v2696
        %v2705 = vmul.f32 %v2682, %v2697
        %v2706 = vadd.f32 %v2656, %v2698
        %v2707 = vadd.f32 %v2657, %v2699
        %v2708 = vadd.f32 %v2658, %v2700
        %v2709 = vadd.f32 %v2659, %v2701
        %v2710 = vadd.f32 %v2660, %v2702
        %v2711 = vadd.f32 %v2661, %v2703
        %v2712 = vadd.f32 %v2662, %v2704
        %v2713 = vadd.f32 %v2663, %v2705
        %2714 = vrot.lane.b32.xlu0 %v2515, 14
        %v2715 = vpop.permute.xlu0 %2714
        %2716 = vrot.lane.b32.xlu0 %v2519, 14
        %v2717 = vpop.permute.xlu0 %2716
        %2718 = vrot.lane.b32.xlu0 %v2516, 14
        %v2719 = vpop.permute.xlu0 %2718
        %2720 = vrot.lane.b32.xlu0 %v2520, 14
        %v2721 = vpop.permute.xlu0 %2720
        %2722 = vrot.lane.b32.xlu0 %v2517, 14
        %v2723 = vpop.permute.xlu0 %2722
        %2724 = vrot.lane.b32.xlu0 %v2521, 14
        %v2725 = vpop.permute.xlu0 %2724
        %2726 = vrot.lane.b32.xlu0 %v2518, 14
        %v2727 = vpop.permute.xlu0 %2726
        %2728 = vrot.lane.b32.xlu0 %v2522, 14
        %v2729 = vpop.permute.xlu0 %2728
        %vm2730 = vcmp.lt.s32.totalorder %v1932, 14
        %v2731 = vsel %vm2730, %v2723, %v2727
        %v2732 = vsel %vm2730, %v2725, %v2729
        %v2733 = vsel %vm2730, %v2719, %v2723
        %v2734 = vsel %vm2730, %v2721, %v2725
        %v2735 = vsel %vm2730, %v2715, %v2719
        %v2736 = vsel %vm2730, %v2717, %v2721
        %v2737 = vsel %vm2730, %v2727, %v2715
        %v2738 = vsel %vm2730, %v2729, %v2717
        %s2739 = scalar_lea.vmem %s13, 256
        %v2740 = vld [vmem:[%s2739] sm:$0xff]
        %v2741 = vld [vmem:[%s2739 + $0x8] sm:$0xff]
        %v2742 = vld [vmem:[%s2739 + $0x10] sm:$0xff]
        %v2743 = vld [vmem:[%s2739 + $0x18] sm:$0xff]
        %v2744 = vld [vmem:[%s2739 + $0x20] sm:$0xf]
        %v2745 = vld [vmem:[%s2739 + $0x28] sm:$0xf]
        %v2746 = vld [vmem:[%s2739 + $0x30] sm:$0xf]
        %v2747 = vld [vmem:[%s2739 + $0x38] sm:$0xf]
        %v2748 = vmul.f32 %v2737, %v2740
        %v2749 = vmul.f32 %v2735, %v2741
        %v2750 = vmul.f32 %v2733, %v2742
        %v2751 = vmul.f32 %v2731, %v2743
        %v2752 = vmul.f32 %v2738, %v2744
        %v2753 = vmul.f32 %v2736, %v2745
        %v2754 = vmul.f32 %v2734, %v2746
        %v2755 = vmul.f32 %v2732, %v2747
        %v2756 = vadd.f32 %v2706, %v2748
        %v2757 = vadd.f32 %v2707, %v2749
        %v2758 = vadd.f32 %v2708, %v2750
        %v2759 = vadd.f32 %v2709, %v2751
        %v2760 = vadd.f32 %v2710, %v2752
        %v2761 = vadd.f32 %v2711, %v2753
        %v2762 = vadd.f32 %v2712, %v2754
        %v2763 = vadd.f32 %v2713, %v2755
        %2764 = vrot.lane.b32.xlu0 %v2515, 10
        %v2765 = vpop.permute.xlu0 %2764
        %2766 = vrot.lane.b32.xlu0 %v2519, 10
        %v2767 = vpop.permute.xlu0 %2766
        %2768 = vrot.lane.b32.xlu0 %v2516, 10
        %v2769 = vpop.permute.xlu0 %2768
        %2770 = vrot.lane.b32.xlu0 %v2520, 10
        %v2771 = vpop.permute.xlu0 %2770
        %2772 = vrot.lane.b32.xlu0 %v2517, 10
        %v2773 = vpop.permute.xlu0 %2772
        %2774 = vrot.lane.b32.xlu0 %v2521, 10
        %v2775 = vpop.permute.xlu0 %2774
        %2776 = vrot.lane.b32.xlu0 %v2518, 10
        %v2777 = vpop.permute.xlu0 %2776
        %2778 = vrot.lane.b32.xlu0 %v2522, 10
        %v2779 = vpop.permute.xlu0 %2778
        %vm2780 = vcmp.lt.s32.totalorder %v1932, 10
        %v2781 = vsel %vm2780, %v2773, %v2777
        %v2782 = vsel %vm2780, %v2775, %v2779
        %v2783 = vsel %vm2780, %v2769, %v2773
        %v2784 = vsel %vm2780, %v2771, %v2775
        %v2785 = vsel %vm2780, %v2765, %v2769
        %v2786 = vsel %vm2780, %v2767, %v2771
        %v2787 = vsel %vm2780, %v2777, %v2765
        %v2788 = vsel %vm2780, %v2779, %v2767
        %s2789 = scalar_lea.vmem %s13, 320
        %v2790 = vld [vmem:[%s2789] sm:$0xff]
        %v2791 = vld [vmem:[%s2789 + $0x8] sm:$0xff]
        %v2792 = vld [vmem:[%s2789 + $0x10] sm:$0xff]
        %v2793 = vld [vmem:[%s2789 + $0x18] sm:$0xff]
        %v2794 = vld [vmem:[%s2789 + $0x20] sm:$0xf]
        %v2795 = vld [vmem:[%s2789 + $0x28] sm:$0xf]
        %v2796 = vld [vmem:[%s2789 + $0x30] sm:$0xf]
        %v2797 = vld [vmem:[%s2789 + $0x38] sm:$0xf]
        %v2798 = vmul.f32 %v2787, %v2790
        %v2799 = vmul.f32 %v2785, %v2791
        %v2800 = vmul.f32 %v2783, %v2792
        %v2801 = vmul.f32 %v2781, %v2793
        %v2802 = vmul.f32 %v2788, %v2794
        %v2803 = vmul.f32 %v2786, %v2795
        %v2804 = vmul.f32 %v2784, %v2796
        %v2805 = vmul.f32 %v2782, %v2797
        %v2806 = vadd.f32 %v2756, %v2798
        %v2807 = vadd.f32 %v2757, %v2799
        %v2808 = vadd.f32 %v2758, %v2800
        %v2809 = vadd.f32 %v2759, %v2801
        %v2810 = vadd.f32 %v2760, %v2802
        %v2811 = vadd.f32 %v2761, %v2803
        %v2812 = vadd.f32 %v2762, %v2804
        %v2813 = vadd.f32 %v2763, %v2805
        %2814 = vrot.lane.b32.xlu0 %v2515, 9
        %v2815 = vpop.permute.xlu0 %2814
        %2816 = vrot.lane.b32.xlu0 %v2519, 9
        %v2817 = vpop.permute.xlu0 %2816
        %2818 = vrot.lane.b32.xlu0 %v2516, 9
        %v2819 = vpop.permute.xlu0 %2818
        %2820 = vrot.lane.b32.xlu0 %v2520, 9
        %v2821 = vpop.permute.xlu0 %2820
        %2822 = vrot.lane.b32.xlu0 %v2517, 9
        %v2823 = vpop.permute.xlu0 %2822
        %2824 = vrot.lane.b32.xlu0 %v2521, 9
        %v2825 = vpop.permute.xlu0 %2824
        %2826 = vrot.lane.b32.xlu0 %v2518, 9
        %v2827 = vpop.permute.xlu0 %2826
        %2828 = vrot.lane.b32.xlu0 %v2522, 9
        %v2829 = vpop.permute.xlu0 %2828
        %v2830 = vsel %vm1933, %v2823, %v2827
        %v2831 = vsel %vm1933, %v2825, %v2829
        %v2832 = vsel %vm1933, %v2819, %v2823
        %v2833 = vsel %vm1933, %v2821, %v2825
        %v2834 = vsel %vm1933, %v2815, %v2819
        %v2835 = vsel %vm1933, %v2817, %v2821
        %v2836 = vsel %vm1933, %v2827, %v2815
        %v2837 = vsel %vm1933, %v2829, %v2817
        %s2838 = scalar_lea.vmem %s13, 384
        %v2839 = vld [vmem:[%s2838] sm:$0xff]
        %v2840 = vld [vmem:[%s2838 + $0x8] sm:$0xff]
        %v2841 = vld [vmem:[%s2838 + $0x10] sm:$0xff]
        %v2842 = vld [vmem:[%s2838 + $0x18] sm:$0xff]
        %v2843 = vld [vmem:[%s2838 + $0x20] sm:$0xf]
        %v2844 = vld [vmem:[%s2838 + $0x28] sm:$0xf]
        %v2845 = vld [vmem:[%s2838 + $0x30] sm:$0xf]
        %v2846 = vld [vmem:[%s2838 + $0x38] sm:$0xf]
        %v2847 = vmul.f32 %v2836, %v2839
        %v2848 = vmul.f32 %v2834, %v2840
        %v2849 = vmul.f32 %v2832, %v2841
        %v2850 = vmul.f32 %v2830, %v2842
        %v2851 = vmul.f32 %v2837, %v2843
        %v2852 = vmul.f32 %v2835, %v2844
        %v2853 = vmul.f32 %v2833, %v2845
        %v2854 = vmul.f32 %v2831, %v2846
        %v2855 = vadd.f32 %v2806, %v2847
        %v2856 = vadd.f32 %v2807, %v2848
        %v2857 = vadd.f32 %v2808, %v2849
        %v2858 = vadd.f32 %v2809, %v2850
        %v2859 = vadd.f32 %v2810, %v2851
        %v2860 = vadd.f32 %v2811, %v2852
        %v2861 = vadd.f32 %v2812, %v2853
        %v2862 = vadd.f32 %v2813, %v2854
        %2863 = vrot.lane.b32.xlu0 %v2515, 8
        %v2864 = vpop.permute.xlu0 %2863
        %2865 = vrot.lane.b32.xlu0 %v2519, 8
        %v2866 = vpop.permute.xlu0 %2865
        %2867 = vrot.lane.b32.xlu0 %v2516, 8
        %v2868 = vpop.permute.xlu0 %2867
        %2869 = vrot.lane.b32.xlu0 %v2520, 8
        %v2870 = vpop.permute.xlu0 %2869
        %2871 = vrot.lane.b32.xlu0 %v2517, 8
        %v2872 = vpop.permute.xlu0 %2871
        %2873 = vrot.lane.b32.xlu0 %v2521, 8
        %v2874 = vpop.permute.xlu0 %2873
        %2875 = vrot.lane.b32.xlu0 %v2518, 8
        %v2876 = vpop.permute.xlu0 %2875
        %2877 = vrot.lane.b32.xlu0 %v2522, 8
        %v2878 = vpop.permute.xlu0 %2877
        %v2879 = vsel %vm1974, %v2872, %v2876
        %v2880 = vsel %vm1974, %v2874, %v2878
        %v2881 = vsel %vm1974, %v2868, %v2872
        %v2882 = vsel %vm1974, %v2870, %v2874
        %v2883 = vsel %vm1974, %v2864, %v2868
        %v2884 = vsel %vm1974, %v2866, %v2870
        %v2885 = vsel %vm1974, %v2876, %v2864
        %v2886 = vsel %vm1974, %v2878, %v2866
        %s2887 = scalar_lea.vmem %s13, 448
        %v2888 = vld [vmem:[%s2887] sm:$0xff]
        %v2889 = vld [vmem:[%s2887 + $0x8] sm:$0xff]
        %v2890 = vld [vmem:[%s2887 + $0x10] sm:$0xff]
        %v2891 = vld [vmem:[%s2887 + $0x18] sm:$0xff]
        %v2892 = vld [vmem:[%s2887 + $0x20] sm:$0xf]
        %v2893 = vld [vmem:[%s2887 + $0x28] sm:$0xf]
        %v2894 = vld [vmem:[%s2887 + $0x30] sm:$0xf]
        %v2895 = vld [vmem:[%s2887 + $0x38] sm:$0xf]
        %v2896 = vmul.f32 %v2885, %v2888
        %v2897 = vmul.f32 %v2883, %v2889
        %v2898 = vmul.f32 %v2881, %v2890
        %v2899 = vmul.f32 %v2879, %v2891
        %v2900 = vmul.f32 %v2886, %v2892
        %v2901 = vmul.f32 %v2884, %v2893
        %v2902 = vmul.f32 %v2882, %v2894
        %v2903 = vmul.f32 %v2880, %v2895
        %v2904 = vadd.f32 %v2855, %v2896
        %v2905 = vadd.f32 %v2856, %v2897
        %v2906 = vadd.f32 %v2857, %v2898
        %v2907 = vadd.f32 %v2858, %v2899
        %v2908 = vadd.f32 %v2859, %v2900
        %v2909 = vadd.f32 %v2860, %v2901
        %v2910 = vadd.f32 %v2861, %v2902
        %v2911 = vadd.f32 %v2862, %v2903
        %2912 = vrot.lane.b32.xlu0 %v2515, 7
        %v2913 = vpop.permute.xlu0 %2912
        %2914 = vrot.lane.b32.xlu0 %v2519, 7
        %v2915 = vpop.permute.xlu0 %2914
        %2916 = vrot.lane.b32.xlu0 %v2516, 7
        %v2917 = vpop.permute.xlu0 %2916
        %2918 = vrot.lane.b32.xlu0 %v2520, 7
        %v2919 = vpop.permute.xlu0 %2918
        %2920 = vrot.lane.b32.xlu0 %v2517, 7
        %v2921 = vpop.permute.xlu0 %2920
        %2922 = vrot.lane.b32.xlu0 %v2521, 7
        %v2923 = vpop.permute.xlu0 %2922
        %2924 = vrot.lane.b32.xlu0 %v2518, 7
        %v2925 = vpop.permute.xlu0 %2924
        %2926 = vrot.lane.b32.xlu0 %v2522, 7
        %v2927 = vpop.permute.xlu0 %2926
        %v2928 = vsel %vm2024, %v2921, %v2925
        %v2929 = vsel %vm2024, %v2923, %v2927
        %v2930 = vsel %vm2024, %v2917, %v2921
        %v2931 = vsel %vm2024, %v2919, %v2923
        %v2932 = vsel %vm2024, %v2913, %v2917
        %v2933 = vsel %vm2024, %v2915, %v2919
        %v2934 = vsel %vm2024, %v2925, %v2913
        %v2935 = vsel %vm2024, %v2927, %v2915
        %s2936 = scalar_lea.vmem %s13, 512
        %v2937 = vld [vmem:[%s2936] sm:$0xff]
        %v2938 = vld [vmem:[%s2936 + $0x8] sm:$0xff]
        %v2939 = vld [vmem:[%s2936 + $0x10] sm:$0xff]
        %v2940 = vld [vmem:[%s2936 + $0x18] sm:$0xff]
        %v2941 = vld [vmem:[%s2936 + $0x20] sm:$0xf]
        %v2942 = vld [vmem:[%s2936 + $0x28] sm:$0xf]
        %v2943 = vld [vmem:[%s2936 + $0x30] sm:$0xf]
        %v2944 = vld [vmem:[%s2936 + $0x38] sm:$0xf]
        %v2945 = vmul.f32 %v2934, %v2937
        %v2946 = vmul.f32 %v2932, %v2938
        %v2947 = vmul.f32 %v2930, %v2939
        %v2948 = vmul.f32 %v2928, %v2940
        %v2949 = vmul.f32 %v2935, %v2941
        %v2950 = vmul.f32 %v2933, %v2942
        %v2951 = vmul.f32 %v2931, %v2943
        %v2952 = vmul.f32 %v2929, %v2944
        %v2953 = vadd.f32 %v2904, %v2945
        %v2954 = vadd.f32 %v2905, %v2946
        %v2955 = vadd.f32 %v2906, %v2947
        %v2956 = vadd.f32 %v2907, %v2948
        %v2957 = vadd.f32 %v2908, %v2949
        %v2958 = vadd.f32 %v2909, %v2950
        %v2959 = vadd.f32 %v2910, %v2951
        %v2960 = vadd.f32 %v2911, %v2952
        %2961 = vrot.lane.b32.xlu0 %v2515, 6
        %v2962 = vpop.permute.xlu0 %2961
        %2963 = vrot.lane.b32.xlu0 %v2519, 6
        %v2964 = vpop.permute.xlu0 %2963
        %2965 = vrot.lane.b32.xlu0 %v2516, 6
        %v2966 = vpop.permute.xlu0 %2965
        %2967 = vrot.lane.b32.xlu0 %v2520, 6
        %v2968 = vpop.permute.xlu0 %2967
        %2969 = vrot.lane.b32.xlu0 %v2517, 6
        %v2970 = vpop.permute.xlu0 %2969
        %2971 = vrot.lane.b32.xlu0 %v2521, 6
        %v2972 = vpop.permute.xlu0 %2971
        %2973 = vrot.lane.b32.xlu0 %v2518, 6
        %v2974 = vpop.permute.xlu0 %2973
        %2975 = vrot.lane.b32.xlu0 %v2522, 6
        %v2976 = vpop.permute.xlu0 %2975
        %vm2977 = vcmp.lt.s32.totalorder %v1932, 6
        %v2978 = vsel %vm2977, %v2970, %v2974
        %v2979 = vsel %vm2977, %v2972, %v2976
        %v2980 = vsel %vm2977, %v2966, %v2970
        %v2981 = vsel %vm2977, %v2968, %v2972
        %v2982 = vsel %vm2977, %v2962, %v2966
        %v2983 = vsel %vm2977, %v2964, %v2968
        %v2984 = vsel %vm2977, %v2974, %v2962
        %v2985 = vsel %vm2977, %v2976, %v2964
        %s2986 = scalar_lea.vmem %s13, 576
        %v2987 = vld [vmem:[%s2986] sm:$0xff]
        %v2988 = vld [vmem:[%s2986 + $0x8] sm:$0xff]
        %v2989 = vld [vmem:[%s2986 + $0x10] sm:$0xff]
        %v2990 = vld [vmem:[%s2986 + $0x18] sm:$0xff]
        %v2991 = vld [vmem:[%s2986 + $0x20] sm:$0xf]
        %v2992 = vld [vmem:[%s2986 + $0x28] sm:$0xf]
        %v2993 = vld [vmem:[%s2986 + $0x30] sm:$0xf]
        %v2994 = vld [vmem:[%s2986 + $0x38] sm:$0xf]
        %v2995 = vmul.f32 %v2984, %v2987
        %v2996 = vmul.f32 %v2982, %v2988
        %v2997 = vmul.f32 %v2980, %v2989
        %v2998 = vmul.f32 %v2978, %v2990
        %v2999 = vmul.f32 %v2985, %v2991
        %v3000 = vmul.f32 %v2983, %v2992
        %v3001 = vmul.f32 %v2981, %v2993
        %v3002 = vmul.f32 %v2979, %v2994
        %v3003 = vadd.f32 %v2953, %v2995
        %v3004 = vadd.f32 %v2954, %v2996
        %v3005 = vadd.f32 %v2955, %v2997
        %v3006 = vadd.f32 %v2956, %v2998
        %v3007 = vadd.f32 %v2957, %v2999
        %v3008 = vadd.f32 %v2958, %v3000
        %v3009 = vadd.f32 %v2959, %v3001
        %v3010 = vadd.f32 %v2960, %v3002
        %3011 = vrot.lane.b32.xlu0 %v2515, 2
        %v3012 = vpop.permute.xlu0 %3011
        %3013 = vrot.lane.b32.xlu0 %v2519, 2
        %v3014 = vpop.permute.xlu0 %3013
        %3015 = vrot.lane.b32.xlu0 %v2516, 2
        %v3016 = vpop.permute.xlu0 %3015
        %3017 = vrot.lane.b32.xlu0 %v2520, 2
        %v3018 = vpop.permute.xlu0 %3017
        %3019 = vrot.lane.b32.xlu0 %v2517, 2
        %v3020 = vpop.permute.xlu0 %3019
        %3021 = vrot.lane.b32.xlu0 %v2521, 2
        %v3022 = vpop.permute.xlu0 %3021
        %3023 = vrot.lane.b32.xlu0 %v2518, 2
        %v3024 = vpop.permute.xlu0 %3023
        %3025 = vrot.lane.b32.xlu0 %v2522, 2
        %v3026 = vpop.permute.xlu0 %3025
        %vm3027 = vcmp.lt.s32.totalorder %v1932, 2
        %v3028 = vsel %vm3027, %v3020, %v3024
        %v3029 = vsel %vm3027, %v3022, %v3026
        %v3030 = vsel %vm3027, %v3016, %v3020
        %v3031 = vsel %vm3027, %v3018, %v3022
        %v3032 = vsel %vm3027, %v3012, %v3016
        %v3033 = vsel %vm3027, %v3014, %v3018
        %v3034 = vsel %vm3027, %v3024, %v3012
        %v3035 = vsel %vm3027, %v3026, %v3014
        %s3036 = scalar_lea.vmem %s13, 640
        %v3037 = vld [vmem:[%s3036] sm:$0xff]
        %v3038 = vld [vmem:[%s3036 + $0x8] sm:$0xff]
        %v3039 = vld [vmem:[%s3036 + $0x10] sm:$0xff]
        %v3040 = vld [vmem:[%s3036 + $0x18] sm:$0xff]
        %v3041 = vld [vmem:[%s3036 + $0x20] sm:$0xf]
        %v3042 = vld [vmem:[%s3036 + $0x28] sm:$0xf]
        %v3043 = vld [vmem:[%s3036 + $0x30] sm:$0xf]
        %v3044 = vld [vmem:[%s3036 + $0x38] sm:$0xf]
        %v3045 = vmul.f32 %v3034, %v3037
        %v3046 = vmul.f32 %v3032, %v3038
        %v3047 = vmul.f32 %v3030, %v3039
        %v3048 = vmul.f32 %v3028, %v3040
        %v3049 = vmul.f32 %v3035, %v3041
        %v3050 = vmul.f32 %v3033, %v3042
        %v3051 = vmul.f32 %v3031, %v3043
        %v3052 = vmul.f32 %v3029, %v3044
        %v3053 = vadd.f32 %v3003, %v3045
        %v3054 = vadd.f32 %v3004, %v3046
        %v3055 = vadd.f32 %v3005, %v3047
        %v3056 = vadd.f32 %v3006, %v3048
        %v3057 = vadd.f32 %v3007, %v3049
        %v3058 = vadd.f32 %v3008, %v3050
        %v3059 = vadd.f32 %v3009, %v3051
        %v3060 = vadd.f32 %v3010, %v3052
        %3061 = vrot.lane.b32.xlu0 %v2515, 1
        %v3062 = vpop.permute.xlu0 %3061
        %3063 = vrot.lane.b32.xlu0 %v2519, 1
        %v3064 = vpop.permute.xlu0 %3063
        %3065 = vrot.lane.b32.xlu0 %v2516, 1
        %v3066 = vpop.permute.xlu0 %3065
        %3067 = vrot.lane.b32.xlu0 %v2520, 1
        %v3068 = vpop.permute.xlu0 %3067
        %3069 = vrot.lane.b32.xlu0 %v2517, 1
        %v3070 = vpop.permute.xlu0 %3069
        %3071 = vrot.lane.b32.xlu0 %v2521, 1
        %v3072 = vpop.permute.xlu0 %3071
        %3073 = vrot.lane.b32.xlu0 %v2518, 1
        %v3074 = vpop.permute.xlu0 %3073
        %3075 = vrot.lane.b32.xlu0 %v2522, 1
        %v3076 = vpop.permute.xlu0 %3075
        %v3077 = vsel %vm2074, %v3070, %v3074
        %v3078 = vsel %vm2074, %v3072, %v3076
        %v3079 = vsel %vm2074, %v3066, %v3070
        %v3080 = vsel %vm2074, %v3068, %v3072
        %v3081 = vsel %vm2074, %v3062, %v3066
        %v3082 = vsel %vm2074, %v3064, %v3068
        %v3083 = vsel %vm2074, %v3074, %v3062
        %v3084 = vsel %vm2074, %v3076, %v3064
        %s3085 = scalar_lea.vmem %s13, 704
        %v3086 = vld [vmem:[%s3085] sm:$0xff]
        %v3087 = vld [vmem:[%s3085 + $0x8] sm:$0xff]
        %v3088 = vld [vmem:[%s3085 + $0x10] sm:$0xff]
        %v3089 = vld [vmem:[%s3085 + $0x18] sm:$0xff]
        %v3090 = vld [vmem:[%s3085 + $0x20] sm:$0xf]
        %v3091 = vld [vmem:[%s3085 + $0x28] sm:$0xf]
        %v3092 = vld [vmem:[%s3085 + $0x30] sm:$0xf]
        %v3093 = vld [vmem:[%s3085 + $0x38] sm:$0xf]
        %v3094 = vmul.f32 %v3083, %v3086
        %v3095 = vmul.f32 %v3081, %v3087
        %v3096 = vmul.f32 %v3079, %v3088
        %v3097 = vmul.f32 %v3077, %v3089
        %v3098 = vmul.f32 %v3084, %v3090
        %v3099 = vmul.f32 %v3082, %v3091
        %v3100 = vmul.f32 %v3080, %v3092
        %v3101 = vmul.f32 %v3078, %v3093
        %v3102 = vadd.f32 %v3053, %v3094
        %v3103 = vadd.f32 %v3054, %v3095
        %v3104 = vadd.f32 %v3055, %v3096
        %v3105 = vadd.f32 %v3056, %v3097
        %v3106 = vadd.f32 %v3057, %v3098
        %v3107 = vadd.f32 %v3058, %v3099
        %v3108 = vadd.f32 %v3059, %v3100
        %v3109 = vadd.f32 %v3060, %v3101
        %s3110 = scalar_lea.vmem %s13, 768
        %v3111 = vld [vmem:[%s3110] sm:$0xff]
        %v3112 = vld [vmem:[%s3110 + $0x8] sm:$0xff]
        %v3113 = vld [vmem:[%s3110 + $0x10] sm:$0xff]
        %v3114 = vld [vmem:[%s3110 + $0x18] sm:$0xff]
        %v3115 = vld [vmem:[%s3110 + $0x20] sm:$0xf]
        %v3116 = vld [vmem:[%s3110 + $0x28] sm:$0xf]
        %v3117 = vld [vmem:[%s3110 + $0x30] sm:$0xf]
        %v3118 = vld [vmem:[%s3110 + $0x38] sm:$0xf]
        %v3119 = vmul.f32 %v2515, %v3111
        %v3120 = vmul.f32 %v2516, %v3112
        %v3121 = vmul.f32 %v2517, %v3113
        %v3122 = vmul.f32 %v2518, %v3114
        %v3123 = vmul.f32 %v2519, %v3115
        %v3124 = vmul.f32 %v2520, %v3116
        %v3125 = vmul.f32 %v2521, %v3117
        %v3126 = vmul.f32 %v2522, %v3118
        %v3127 = vadd.f32 %v3102, %v3119
        %v3128 = vadd.f32 %v3103, %v3120
        %v3129 = vadd.f32 %v3104, %v3121
        %v3130 = vadd.f32 %v3105, %v3122
        %v3131 = vadd.f32 %v3106, %v3123
        %v3132 = vadd.f32 %v3107, %v3124
        %v3133 = vadd.f32 %v3108, %v3125
        %v3134 = vadd.f32 %v3109, %v3126
        %3135 = vrot.lane.b32.xlu0 %v2515, 127
        %v3136 = vpop.permute.xlu0 %3135
        %3137 = vrot.lane.b32.xlu0 %v2519, 127
        %v3138 = vpop.permute.xlu0 %3137
        %3139 = vrot.lane.b32.xlu0 %v2516, 127
        %v3140 = vpop.permute.xlu0 %3139
        %3141 = vrot.lane.b32.xlu0 %v2520, 127
        %v3142 = vpop.permute.xlu0 %3141
        %3143 = vrot.lane.b32.xlu0 %v2517, 127
        %v3144 = vpop.permute.xlu0 %3143
        %3145 = vrot.lane.b32.xlu0 %v2521, 127
        %v3146 = vpop.permute.xlu0 %3145
        %3147 = vrot.lane.b32.xlu0 %v2518, 127
        %v3148 = vpop.permute.xlu0 %3147
        %3149 = vrot.lane.b32.xlu0 %v2522, 127
        %v3150 = vpop.permute.xlu0 %3149
        %v3151 = vsel %vm2149, %v3144, %v3148
        %v3152 = vsel %vm2149, %v3146, %v3150
        %v3153 = vsel %vm2149, %v3140, %v3144
        %v3154 = vsel %vm2149, %v3142, %v3146
        %v3155 = vsel %vm2149, %v3136, %v3140
        %v3156 = vsel %vm2149, %v3138, %v3142
        %v3157 = vsel %vm2149, %v3148, %v3136
        %v3158 = vsel %vm2149, %v3150, %v3138
        %s3159 = scalar_lea.vmem %s13, 832
        %v3160 = vld [vmem:[%s3159] sm:$0xff]
        %v3161 = vld [vmem:[%s3159 + $0x8] sm:$0xff]
        %v3162 = vld [vmem:[%s3159 + $0x10] sm:$0xff]
        %v3163 = vld [vmem:[%s3159 + $0x18] sm:$0xff]
        %v3164 = vld [vmem:[%s3159 + $0x20] sm:$0xf]
        %v3165 = vld [vmem:[%s3159 + $0x28] sm:$0xf]
        %v3166 = vld [vmem:[%s3159 + $0x30] sm:$0xf]
        %v3167 = vld [vmem:[%s3159 + $0x38] sm:$0xf]
        %v3168 = vmul.f32 %v3155, %v3160
        %v3169 = vmul.f32 %v3153, %v3161
        %v3170 = vmul.f32 %v3151, %v3162
        %v3171 = vmul.f32 %v3157, %v3163
        %v3172 = vmul.f32 %v3156, %v3164
        %v3173 = vmul.f32 %v3154, %v3165
        %v3174 = vmul.f32 %v3152, %v3166
        %v3175 = vmul.f32 %v3158, %v3167
        %v3176 = vadd.f32 %v3127, %v3168
        %v3177 = vadd.f32 %v3128, %v3169
        %v3178 = vadd.f32 %v3129, %v3170
        %v3179 = vadd.f32 %v3130, %v3171
        %v3180 = vadd.f32 %v3131, %v3172
        %v3181 = vadd.f32 %v3132, %v3173
        %v3182 = vadd.f32 %v3133, %v3174
        %v3183 = vadd.f32 %v3134, %v3175
        %3184 = vrot.lane.b32.xlu0 %v2515, 126
        %v3185 = vpop.permute.xlu0 %3184
        %3186 = vrot.lane.b32.xlu0 %v2519, 126
        %v3187 = vpop.permute.xlu0 %3186
        %3188 = vrot.lane.b32.xlu0 %v2516, 126
        %v3189 = vpop.permute.xlu0 %3188
        %3190 = vrot.lane.b32.xlu0 %v2520, 126
        %v3191 = vpop.permute.xlu0 %3190
        %3192 = vrot.lane.b32.xlu0 %v2517, 126
        %v3193 = vpop.permute.xlu0 %3192
        %3194 = vrot.lane.b32.xlu0 %v2521, 126
        %v3195 = vpop.permute.xlu0 %3194
        %3196 = vrot.lane.b32.xlu0 %v2518, 126
        %v3197 = vpop.permute.xlu0 %3196
        %3198 = vrot.lane.b32.xlu0 %v2522, 126
        %v3199 = vpop.permute.xlu0 %3198
        %vm3200 = vcmp.lt.s32.totalorder %v1932, 126
        %v3201 = vsel %vm3200, %v3193, %v3197
        %v3202 = vsel %vm3200, %v3195, %v3199
        %v3203 = vsel %vm3200, %v3189, %v3193
        %v3204 = vsel %vm3200, %v3191, %v3195
        %v3205 = vsel %vm3200, %v3185, %v3189
        %v3206 = vsel %vm3200, %v3187, %v3191
        %v3207 = vsel %vm3200, %v3197, %v3185
        %v3208 = vsel %vm3200, %v3199, %v3187
        %s3209 = scalar_lea.vmem %s13, 896
        %v3210 = vld [vmem:[%s3209] sm:$0xff]
        %v3211 = vld [vmem:[%s3209 + $0x8] sm:$0xff]
        %v3212 = vld [vmem:[%s3209 + $0x10] sm:$0xff]
        %v3213 = vld [vmem:[%s3209 + $0x18] sm:$0xff]
        %v3214 = vld [vmem:[%s3209 + $0x20] sm:$0xf]
        %v3215 = vld [vmem:[%s3209 + $0x28] sm:$0xf]
        %v3216 = vld [vmem:[%s3209 + $0x30] sm:$0xf]
        %v3217 = vld [vmem:[%s3209 + $0x38] sm:$0xf]
        %v3218 = vmul.f32 %v3205, %v3210
        %v3219 = vmul.f32 %v3203, %v3211
        %v3220 = vmul.f32 %v3201, %v3212
        %v3221 = vmul.f32 %v3207, %v3213
        %v3222 = vmul.f32 %v3206, %v3214
        %v3223 = vmul.f32 %v3204, %v3215
        %v3224 = vmul.f32 %v3202, %v3216
        %v3225 = vmul.f32 %v3208, %v3217
        %v3226 = vadd.f32 %v3176, %v3218
        %v3227 = vadd.f32 %v3177, %v3219
        %v3228 = vadd.f32 %v3178, %v3220
        %v3229 = vadd.f32 %v3179, %v3221
        %v3230 = vadd.f32 %v3180, %v3222
        %v3231 = vadd.f32 %v3181, %v3223
        %v3232 = vadd.f32 %v3182, %v3224
        %v3233 = vadd.f32 %v3183, %v3225
        %3234 = vrot.lane.b32.xlu0 %v2515, 122
        %v3235 = vpop.permute.xlu0 %3234
        %3236 = vrot.lane.b32.xlu0 %v2519, 122
        %v3237 = vpop.permute.xlu0 %3236
        %3238 = vrot.lane.b32.xlu0 %v2516, 122
        %v3239 = vpop.permute.xlu0 %3238
        %3240 = vrot.lane.b32.xlu0 %v2520, 122
        %v3241 = vpop.permute.xlu0 %3240
        %3242 = vrot.lane.b32.xlu0 %v2517, 122
        %v3243 = vpop.permute.xlu0 %3242
        %3244 = vrot.lane.b32.xlu0 %v2521, 122
        %v3245 = vpop.permute.xlu0 %3244
        %3246 = vrot.lane.b32.xlu0 %v2518, 122
        %v3247 = vpop.permute.xlu0 %3246
        %3248 = vrot.lane.b32.xlu0 %v2522, 122
        %v3249 = vpop.permute.xlu0 %3248
        %vm3250 = vcmp.lt.s32.totalorder %v1932, 122
        %v3251 = vsel %vm3250, %v3243, %v3247
        %v3252 = vsel %vm3250, %v3245, %v3249
        %v3253 = vsel %vm3250, %v3239, %v3243
        %v3254 = vsel %vm3250, %v3241, %v3245
        %v3255 = vsel %vm3250, %v3235, %v3239
        %v3256 = vsel %vm3250, %v3237, %v3241
        %v3257 = vsel %vm3250, %v3247, %v3235
        %v3258 = vsel %vm3250, %v3249, %v3237
        %s3259 = scalar_lea.vmem %s13, 960
        %v3260 = vld [vmem:[%s3259] sm:$0xff]
        %v3261 = vld [vmem:[%s3259 + $0x8] sm:$0xff]
        %v3262 = vld [vmem:[%s3259 + $0x10] sm:$0xff]
        %v3263 = vld [vmem:[%s3259 + $0x18] sm:$0xff]
        %v3264 = vld [vmem:[%s3259 + $0x20] sm:$0xf]
        %v3265 = vld [vmem:[%s3259 + $0x28] sm:$0xf]
        %v3266 = vld [vmem:[%s3259 + $0x30] sm:$0xf]
        %v3267 = vld [vmem:[%s3259 + $0x38] sm:$0xf]
        %v3268 = vmul.f32 %v3255, %v3260
        %v3269 = vmul.f32 %v3253, %v3261
        %v3270 = vmul.f32 %v3251, %v3262
        %v3271 = vmul.f32 %v3257, %v3263
        %v3272 = vmul.f32 %v3256, %v3264
        %v3273 = vmul.f32 %v3254, %v3265
        %v3274 = vmul.f32 %v3252, %v3266
        %v3275 = vmul.f32 %v3258, %v3267
        %v3276 = vadd.f32 %v3226, %v3268
        %v3277 = vadd.f32 %v3227, %v3269
        %v3278 = vadd.f32 %v3228, %v3270
        %v3279 = vadd.f32 %v3229, %v3271
        %v3280 = vadd.f32 %v3230, %v3272
        %v3281 = vadd.f32 %v3231, %v3273
        %v3282 = vadd.f32 %v3232, %v3274
        %v3283 = vadd.f32 %v3233, %v3275
        %3284 = vrot.lane.b32.xlu0 %v2515, 121
        %v3285 = vpop.permute.xlu0 %3284
        %3286 = vrot.lane.b32.xlu0 %v2519, 121
        %v3287 = vpop.permute.xlu0 %3286
        %3288 = vrot.lane.b32.xlu0 %v2516, 121
        %v3289 = vpop.permute.xlu0 %3288
        %3290 = vrot.lane.b32.xlu0 %v2520, 121
        %v3291 = vpop.permute.xlu0 %3290
        %3292 = vrot.lane.b32.xlu0 %v2517, 121
        %v3293 = vpop.permute.xlu0 %3292
        %3294 = vrot.lane.b32.xlu0 %v2521, 121
        %v3295 = vpop.permute.xlu0 %3294
        %3296 = vrot.lane.b32.xlu0 %v2518, 121
        %v3297 = vpop.permute.xlu0 %3296
        %3298 = vrot.lane.b32.xlu0 %v2522, 121
        %v3299 = vpop.permute.xlu0 %3298
        %v3300 = vsel %vm2199, %v3293, %v3297
        %v3301 = vsel %vm2199, %v3295, %v3299
        %v3302 = vsel %vm2199, %v3289, %v3293
        %v3303 = vsel %vm2199, %v3291, %v3295
        %v3304 = vsel %vm2199, %v3285, %v3289
        %v3305 = vsel %vm2199, %v3287, %v3291
        %v3306 = vsel %vm2199, %v3297, %v3285
        %v3307 = vsel %vm2199, %v3299, %v3287
        %s3308 = scalar_lea.vmem %s13, 1024
        %v3309 = vld [vmem:[%s3308] sm:$0xff]
        %v3310 = vld [vmem:[%s3308 + $0x8] sm:$0xff]
        %v3311 = vld [vmem:[%s3308 + $0x10] sm:$0xff]
        %v3312 = vld [vmem:[%s3308 + $0x18] sm:$0xff]
        %v3313 = vld [vmem:[%s3308 + $0x20] sm:$0xf]
        %v3314 = vld [vmem:[%s3308 + $0x28] sm:$0xf]
        %v3315 = vld [vmem:[%s3308 + $0x30] sm:$0xf]
        %v3316 = vld [vmem:[%s3308 + $0x38] sm:$0xf]
        %v3317 = vmul.f32 %v3304, %v3309
        %v3318 = vmul.f32 %v3302, %v3310
        %v3319 = vmul.f32 %v3300, %v3311
        %v3320 = vmul.f32 %v3306, %v3312
        %v3321 = vmul.f32 %v3305, %v3313
        %v3322 = vmul.f32 %v3303, %v3314
        %v3323 = vmul.f32 %v3301, %v3315
        %v3324 = vmul.f32 %v3307, %v3316
        %v3325 = vadd.f32 %v3276, %v3317
        %v3326 = vadd.f32 %v3277, %v3318
        %v3327 = vadd.f32 %v3278, %v3319
        %v3328 = vadd.f32 %v3279, %v3320
        %v3329 = vadd.f32 %v3280, %v3321
        %v3330 = vadd.f32 %v3281, %v3322
        %v3331 = vadd.f32 %v3282, %v3323
        %v3332 = vadd.f32 %v3283, %v3324
        %3333 = vrot.lane.b32.xlu0 %v2515, 120
        %v3334 = vpop.permute.xlu0 %3333
        %3335 = vrot.lane.b32.xlu0 %v2519, 120
        %v3336 = vpop.permute.xlu0 %3335
        %3337 = vrot.lane.b32.xlu0 %v2516, 120
        %v3338 = vpop.permute.xlu0 %3337
        %3339 = vrot.lane.b32.xlu0 %v2520, 120
        %v3340 = vpop.permute.xlu0 %3339
        %3341 = vrot.lane.b32.xlu0 %v2517, 120
        %v3342 = vpop.permute.xlu0 %3341
        %3343 = vrot.lane.b32.xlu0 %v2521, 120
        %v3344 = vpop.permute.xlu0 %3343
        %3345 = vrot.lane.b32.xlu0 %v2518, 120
        %v3346 = vpop.permute.xlu0 %3345
        %3347 = vrot.lane.b32.xlu0 %v2522, 120
        %v3348 = vpop.permute.xlu0 %3347
        %v3349 = vsel %vm2249, %v3342, %v3346
        %v3350 = vsel %vm2249, %v3344, %v3348
        %v3351 = vsel %vm2249, %v3338, %v3342
        %v3352 = vsel %vm2249, %v3340, %v3344
        %v3353 = vsel %vm2249, %v3334, %v3338
        %v3354 = vsel %vm2249, %v3336, %v3340
        %v3355 = vsel %vm2249, %v3346, %v3334
        %v3356 = vsel %vm2249, %v3348, %v3336
        %s3357 = scalar_lea.vmem %s13, 1088
        %v3358 = vld [vmem:[%s3357] sm:$0xff]
        %v3359 = vld [vmem:[%s3357 + $0x8] sm:$0xff]
        %v3360 = vld [vmem:[%s3357 + $0x10] sm:$0xff]
        %v3361 = vld [vmem:[%s3357 + $0x18] sm:$0xff]
        %v3362 = vld [vmem:[%s3357 + $0x20] sm:$0xf]
        %v3363 = vld [vmem:[%s3357 + $0x28] sm:$0xf]
        %v3364 = vld [vmem:[%s3357 + $0x30] sm:$0xf]
        %v3365 = vld [vmem:[%s3357 + $0x38] sm:$0xf]
        %v3366 = vmul.f32 %v3353, %v3358
        %v3367 = vmul.f32 %v3351, %v3359
        %v3368 = vmul.f32 %v3349, %v3360
        %v3369 = vmul.f32 %v3355, %v3361
        %v3370 = vmul.f32 %v3354, %v3362
        %v3371 = vmul.f32 %v3352, %v3363
        %v3372 = vmul.f32 %v3350, %v3364
        %v3373 = vmul.f32 %v3356, %v3365
        %v3374 = vadd.f32 %v3325, %v3366
        %v3375 = vadd.f32 %v3326, %v3367
        %v3376 = vadd.f32 %v3327, %v3368
        %v3377 = vadd.f32 %v3328, %v3369
        %v3378 = vadd.f32 %v3329, %v3370
        %v3379 = vadd.f32 %v3330, %v3371
        %v3380 = vadd.f32 %v3331, %v3372
        %v3381 = vadd.f32 %v3332, %v3373
        %3382 = vrot.lane.b32.xlu0 %v2515, 119
        %v3383 = vpop.permute.xlu0 %3382
        %3384 = vrot.lane.b32.xlu0 %v2519, 119
        %v3385 = vpop.permute.xlu0 %3384
        %3386 = vrot.lane.b32.xlu0 %v2516, 119
        %v3387 = vpop.permute.xlu0 %3386
        %3388 = vrot.lane.b32.xlu0 %v2520, 119
        %v3389 = vpop.permute.xlu0 %3388
        %3390 = vrot.lane.b32.xlu0 %v2517, 119
        %v3391 = vpop.permute.xlu0 %3390
        %3392 = vrot.lane.b32.xlu0 %v2521, 119
        %v3393 = vpop.permute.xlu0 %3392
        %3394 = vrot.lane.b32.xlu0 %v2518, 119
        %v3395 = vpop.permute.xlu0 %3394
        %3396 = vrot.lane.b32.xlu0 %v2522, 119
        %v3397 = vpop.permute.xlu0 %3396
        %v3398 = vsel %vm2299, %v3391, %v3395
        %v3399 = vsel %vm2299, %v3393, %v3397
        %v3400 = vsel %vm2299, %v3387, %v3391
        %v3401 = vsel %vm2299, %v3389, %v3393
        %v3402 = vsel %vm2299, %v3383, %v3387
        %v3403 = vsel %vm2299, %v3385, %v3389
        %v3404 = vsel %vm2299, %v3395, %v3383
        %v3405 = vsel %vm2299, %v3397, %v3385
        %s3406 = scalar_lea.vmem %s13, 1152
        %v3407 = vld [vmem:[%s3406] sm:$0xff]
        %v3408 = vld [vmem:[%s3406 + $0x8] sm:$0xff]
        %v3409 = vld [vmem:[%s3406 + $0x10] sm:$0xff]
        %v3410 = vld [vmem:[%s3406 + $0x18] sm:$0xff]
        %v3411 = vld [vmem:[%s3406 + $0x20] sm:$0xf]
        %v3412 = vld [vmem:[%s3406 + $0x28] sm:$0xf]
        %v3413 = vld [vmem:[%s3406 + $0x30] sm:$0xf]
        %v3414 = vld [vmem:[%s3406 + $0x38] sm:$0xf]
        %v3415 = vmul.f32 %v3402, %v3407
        %v3416 = vmul.f32 %v3400, %v3408
        %v3417 = vmul.f32 %v3398, %v3409
        %v3418 = vmul.f32 %v3404, %v3410
        %v3419 = vmul.f32 %v3403, %v3411
        %v3420 = vmul.f32 %v3401, %v3412
        %v3421 = vmul.f32 %v3399, %v3413
        %v3422 = vmul.f32 %v3405, %v3414
        %v3423 = vadd.f32 %v3374, %v3415
        %v3424 = vadd.f32 %v3375, %v3416
        %v3425 = vadd.f32 %v3376, %v3417
        %v3426 = vadd.f32 %v3377, %v3418
        %v3427 = vadd.f32 %v3378, %v3419
        %v3428 = vadd.f32 %v3379, %v3420
        %v3429 = vadd.f32 %v3380, %v3421
        %v3430 = vadd.f32 %v3381, %v3422
        %3431 = vrot.lane.b32.xlu0 %v2515, 118
        %v3432 = vpop.permute.xlu0 %3431
        %3433 = vrot.lane.b32.xlu0 %v2519, 118
        %v3434 = vpop.permute.xlu0 %3433
        %3435 = vrot.lane.b32.xlu0 %v2516, 118
        %v3436 = vpop.permute.xlu0 %3435
        %3437 = vrot.lane.b32.xlu0 %v2520, 118
        %v3438 = vpop.permute.xlu0 %3437
        %3439 = vrot.lane.b32.xlu0 %v2517, 118
        %v3440 = vpop.permute.xlu0 %3439
        %3441 = vrot.lane.b32.xlu0 %v2521, 118
        %v3442 = vpop.permute.xlu0 %3441
        %3443 = vrot.lane.b32.xlu0 %v2518, 118
        %v3444 = vpop.permute.xlu0 %3443
        %3445 = vrot.lane.b32.xlu0 %v2522, 118
        %v3446 = vpop.permute.xlu0 %3445
        %vm3447 = vcmp.lt.s32.totalorder %v1932, 118
        %v3448 = vsel %vm3447, %v3440, %v3444
        %v3449 = vsel %vm3447, %v3442, %v3446
        %v3450 = vsel %vm3447, %v3436, %v3440
        %v3451 = vsel %vm3447, %v3438, %v3442
        %v3452 = vsel %vm3447, %v3432, %v3436
        %v3453 = vsel %vm3447, %v3434, %v3438
        %v3454 = vsel %vm3447, %v3444, %v3432
        %v3455 = vsel %vm3447, %v3446, %v3434
        %s3456 = scalar_lea.vmem %s13, 1216
        %v3457 = vld [vmem:[%s3456] sm:$0xff]
        %v3458 = vld [vmem:[%s3456 + $0x8] sm:$0xff]
        %v3459 = vld [vmem:[%s3456 + $0x10] sm:$0xff]
        %v3460 = vld [vmem:[%s3456 + $0x18] sm:$0xff]
        %v3461 = vld [vmem:[%s3456 + $0x20] sm:$0xf]
        %v3462 = vld [vmem:[%s3456 + $0x28] sm:$0xf]
        %v3463 = vld [vmem:[%s3456 + $0x30] sm:$0xf]
        %v3464 = vld [vmem:[%s3456 + $0x38] sm:$0xf]
        %v3465 = vmul.f32 %v3452, %v3457
        %v3466 = vmul.f32 %v3450, %v3458
        %v3467 = vmul.f32 %v3448, %v3459
        %v3468 = vmul.f32 %v3454, %v3460
        %v3469 = vmul.f32 %v3453, %v3461
        %v3470 = vmul.f32 %v3451, %v3462
        %v3471 = vmul.f32 %v3449, %v3463
        %v3472 = vmul.f32 %v3455, %v3464
        %v3473 = vadd.f32 %v3423, %v3465
        %v3474 = vadd.f32 %v3424, %v3466
        %v3475 = vadd.f32 %v3425, %v3467
        %v3476 = vadd.f32 %v3426, %v3468
        %v3477 = vadd.f32 %v3427, %v3469
        %v3478 = vadd.f32 %v3428, %v3470
        %v3479 = vadd.f32 %v3429, %v3471
        %v3480 = vadd.f32 %v3430, %v3472
        %3481 = vrot.lane.b32.xlu0 %v2515, 114
        %v3482 = vpop.permute.xlu0 %3481
        %3483 = vrot.lane.b32.xlu0 %v2519, 114
        %v3484 = vpop.permute.xlu0 %3483
        %3485 = vrot.lane.b32.xlu0 %v2516, 114
        %v3486 = vpop.permute.xlu0 %3485
        %3487 = vrot.lane.b32.xlu0 %v2520, 114
        %v3488 = vpop.permute.xlu0 %3487
        %3489 = vrot.lane.b32.xlu0 %v2517, 114
        %v3490 = vpop.permute.xlu0 %3489
        %3491 = vrot.lane.b32.xlu0 %v2521, 114
        %v3492 = vpop.permute.xlu0 %3491
        %3493 = vrot.lane.b32.xlu0 %v2518, 114
        %v3494 = vpop.permute.xlu0 %3493
        %3495 = vrot.lane.b32.xlu0 %v2522, 114
        %v3496 = vpop.permute.xlu0 %3495
        %vm3497 = vcmp.lt.s32.totalorder %v1932, 114
        %v3498 = vsel %vm3497, %v3490, %v3494
        %v3499 = vsel %vm3497, %v3492, %v3496
        %v3500 = vsel %vm3497, %v3486, %v3490
        %v3501 = vsel %vm3497, %v3488, %v3492
        %v3502 = vsel %vm3497, %v3482, %v3486
        %v3503 = vsel %vm3497, %v3484, %v3488
        %v3504 = vsel %vm3497, %v3494, %v3482
        %v3505 = vsel %vm3497, %v3496, %v3484
        %s3506 = scalar_lea.vmem %s13, 1280
        %v3507 = vld [vmem:[%s3506] sm:$0xff]
        %v3508 = vld [vmem:[%s3506 + $0x8] sm:$0xff]
        %v3509 = vld [vmem:[%s3506 + $0x10] sm:$0xff]
        %v3510 = vld [vmem:[%s3506 + $0x18] sm:$0xff]
        %v3511 = vld [vmem:[%s3506 + $0x20] sm:$0xf]
        %v3512 = vld [vmem:[%s3506 + $0x28] sm:$0xf]
        %v3513 = vld [vmem:[%s3506 + $0x30] sm:$0xf]
        %v3514 = vld [vmem:[%s3506 + $0x38] sm:$0xf]
        %v3515 = vmul.f32 %v3502, %v3507
        %v3516 = vmul.f32 %v3500, %v3508
        %v3517 = vmul.f32 %v3498, %v3509
        %v3518 = vmul.f32 %v3504, %v3510
        %v3519 = vmul.f32 %v3503, %v3511
        %v3520 = vmul.f32 %v3501, %v3512
        %v3521 = vmul.f32 %v3499, %v3513
        %v3522 = vmul.f32 %v3505, %v3514
        %v3523 = vadd.f32 %v3473, %v3515
        %v3524 = vadd.f32 %v3474, %v3516
        %v3525 = vadd.f32 %v3475, %v3517
        %v3526 = vadd.f32 %v3476, %v3518
        %v3527 = vadd.f32 %v3477, %v3519
        %v3528 = vadd.f32 %v3478, %v3520
        %v3529 = vadd.f32 %v3479, %v3521
        %v3530 = vadd.f32 %v3480, %v3522
        %3531 = vrot.lane.b32.xlu0 %v2515, 113
        %v3532 = vpop.permute.xlu0 %3531
        %3533 = vrot.lane.b32.xlu0 %v2519, 113
        %v3534 = vpop.permute.xlu0 %3533
        %3535 = vrot.lane.b32.xlu0 %v2516, 113
        %v3536 = vpop.permute.xlu0 %3535
        %3537 = vrot.lane.b32.xlu0 %v2520, 113
        %v3538 = vpop.permute.xlu0 %3537
        %3539 = vrot.lane.b32.xlu0 %v2517, 113
        %v3540 = vpop.permute.xlu0 %3539
        %3541 = vrot.lane.b32.xlu0 %v2521, 113
        %v3542 = vpop.permute.xlu0 %3541
        %3543 = vrot.lane.b32.xlu0 %v2518, 113
        %v3544 = vpop.permute.xlu0 %3543
        %3545 = vrot.lane.b32.xlu0 %v2522, 113
        %v3546 = vpop.permute.xlu0 %3545
        %vm3547 = vcmp.lt.s32.totalorder %v1932, 113
        %v3548 = vsel %vm3547, %v3540, %v3544
        %v3549 = vsel %vm3547, %v3542, %v3546
        %v3550 = vsel %vm3547, %v3536, %v3540
        %v3551 = vsel %vm3547, %v3538, %v3542
        %v3552 = vsel %vm3547, %v3532, %v3536
        %v3553 = vsel %vm3547, %v3534, %v3538
        %v3554 = vsel %vm3547, %v3544, %v3532
        %v3555 = vsel %vm3547, %v3546, %v3534
        %s3556 = scalar_lea.vmem %s13, 1344
        %v3557 = vld [vmem:[%s3556] sm:$0xff]
        %v3558 = vld [vmem:[%s3556 + $0x8] sm:$0xff]
        %v3559 = vld [vmem:[%s3556 + $0x10] sm:$0xff]
        %v3560 = vld [vmem:[%s3556 + $0x18] sm:$0xff]
        %v3561 = vld [vmem:[%s3556 + $0x20] sm:$0xf]
        %v3562 = vld [vmem:[%s3556 + $0x28] sm:$0xf]
        %v3563 = vld [vmem:[%s3556 + $0x30] sm:$0xf]
        %v3564 = vld [vmem:[%s3556 + $0x38] sm:$0xf]
        %v3565 = vmul.f32 %v3552, %v3557
        %v3566 = vmul.f32 %v3550, %v3558
        %v3567 = vmul.f32 %v3548, %v3559
        %v3568 = vmul.f32 %v3554, %v3560
        %v3569 = vmul.f32 %v3553, %v3561
        %v3570 = vmul.f32 %v3551, %v3562
        %v3571 = vmul.f32 %v3549, %v3563
        %v3572 = vmul.f32 %v3555, %v3564
        %v3573 = vadd.f32 %v3523, %v3565
        %v3574 = vadd.f32 %v3524, %v3566
        %v3575 = vadd.f32 %v3525, %v3567
        %v3576 = vadd.f32 %v3526, %v3568
        %v3577 = vadd.f32 %v3527, %v3569
        %v3578 = vadd.f32 %v3528, %v3570
        %v3579 = vadd.f32 %v3529, %v3571
        %v3580 = vadd.f32 %v3530, %v3572
        %3581 = vrot.lane.b32.xlu0 %v2515, 112
        %v3582 = vpop.permute.xlu0 %3581
        %3583 = vrot.lane.b32.xlu0 %v2519, 112
        %v3584 = vpop.permute.xlu0 %3583
        %3585 = vrot.lane.b32.xlu0 %v2516, 112
        %v3586 = vpop.permute.xlu0 %3585
        %3587 = vrot.lane.b32.xlu0 %v2520, 112
        %v3588 = vpop.permute.xlu0 %3587
        %3589 = vrot.lane.b32.xlu0 %v2517, 112
        %v3590 = vpop.permute.xlu0 %3589
        %3591 = vrot.lane.b32.xlu0 %v2521, 112
        %v3592 = vpop.permute.xlu0 %3591
        %3593 = vrot.lane.b32.xlu0 %v2518, 112
        %v3594 = vpop.permute.xlu0 %3593
        %3595 = vrot.lane.b32.xlu0 %v2522, 112
        %v3596 = vpop.permute.xlu0 %3595
        %vm3597 = vcmp.lt.s32.totalorder %v1932, 112
        %v3598 = vsel %vm3597, %v3590, %v3594
        %v3599 = vsel %vm3597, %v3592, %v3596
        %v3600 = vsel %vm3597, %v3586, %v3590
        %v3601 = vsel %vm3597, %v3588, %v3592
        %v3602 = vsel %vm3597, %v3582, %v3586
        %v3603 = vsel %vm3597, %v3584, %v3588
        %v3604 = vsel %vm3597, %v3594, %v3582
        %v3605 = vsel %vm3597, %v3596, %v3584
        %s3606 = scalar_lea.vmem %s13, 1408
        %v3607 = vld [vmem:[%s3606] sm:$0xff]
        %v3608 = vld [vmem:[%s3606 + $0x8] sm:$0xff]
        %v3609 = vld [vmem:[%s3606 + $0x10] sm:$0xff]
        %v3610 = vld [vmem:[%s3606 + $0x18] sm:$0xff]
        %v3611 = vld [vmem:[%s3606 + $0x20] sm:$0xf]
        %v3612 = vld [vmem:[%s3606 + $0x28] sm:$0xf]
        %v3613 = vld [vmem:[%s3606 + $0x30] sm:$0xf]
        %v3614 = vld [vmem:[%s3606 + $0x38] sm:$0xf]
        %v3615 = vmul.f32 %v3602, %v3607
        %v3616 = vmul.f32 %v3600, %v3608
        %v3617 = vmul.f32 %v3598, %v3609
        %v3618 = vmul.f32 %v3604, %v3610
        %v3619 = vmul.f32 %v3603, %v3611
        %v3620 = vmul.f32 %v3601, %v3612
        %v3621 = vmul.f32 %v3599, %v3613
        %v3622 = vmul.f32 %v3605, %v3614
        %v3623 = vadd.f32 %v3573, %v3615
        %v3624 = vadd.f32 %v3574, %v3616
        %v3625 = vadd.f32 %v3575, %v3617
        %v3626 = vadd.f32 %v3576, %v3618
        %v3627 = vadd.f32 %v3577, %v3619
        %v3628 = vadd.f32 %v3578, %v3620
        %v3629 = vadd.f32 %v3579, %v3621
        %v3630 = vadd.f32 %v3580, %v3622
        %3631 = vrot.lane.b32.xlu0 %v2515, 111
        %v3632 = vpop.permute.xlu0 %3631
        %3633 = vrot.lane.b32.xlu0 %v2519, 111
        %v3634 = vpop.permute.xlu0 %3633
        %3635 = vrot.lane.b32.xlu0 %v2516, 111
        %v3636 = vpop.permute.xlu0 %3635
        %3637 = vrot.lane.b32.xlu0 %v2520, 111
        %v3638 = vpop.permute.xlu0 %3637
        %3639 = vrot.lane.b32.xlu0 %v2517, 111
        %v3640 = vpop.permute.xlu0 %3639
        %3641 = vrot.lane.b32.xlu0 %v2521, 111
        %v3642 = vpop.permute.xlu0 %3641
        %3643 = vrot.lane.b32.xlu0 %v2518, 111
        %v3644 = vpop.permute.xlu0 %3643
        %3645 = vrot.lane.b32.xlu0 %v2522, 111
        %v3646 = vpop.permute.xlu0 %3645
        %vm3647 = vcmp.lt.s32.totalorder %v1932, 111
        %v3648 = vsel %vm3647, %v3640, %v3644
        %v3649 = vsel %vm3647, %v3642, %v3646
        %v3650 = vsel %vm3647, %v3636, %v3640
        %v3651 = vsel %vm3647, %v3638, %v3642
        %v3652 = vsel %vm3647, %v3632, %v3636
        %v3653 = vsel %vm3647, %v3634, %v3638
        %v3654 = vsel %vm3647, %v3644, %v3632
        %v3655 = vsel %vm3647, %v3646, %v3634
        %s3656 = scalar_lea.vmem %s13, 1472
        %v3657 = vld [vmem:[%s3656] sm:$0xff]
        %v3658 = vld [vmem:[%s3656 + $0x8] sm:$0xff]
        %v3659 = vld [vmem:[%s3656 + $0x10] sm:$0xff]
        %v3660 = vld [vmem:[%s3656 + $0x18] sm:$0xff]
        %v3661 = vld [vmem:[%s3656 + $0x20] sm:$0xf]
        %v3662 = vld [vmem:[%s3656 + $0x28] sm:$0xf]
        %v3663 = vld [vmem:[%s3656 + $0x30] sm:$0xf]
        %v3664 = vld [vmem:[%s3656 + $0x38] sm:$0xf]
        %v3665 = vmul.f32 %v3652, %v3657
        %v3666 = vmul.f32 %v3650, %v3658
        %v3667 = vmul.f32 %v3648, %v3659
        %v3668 = vmul.f32 %v3654, %v3660
        %v3669 = vmul.f32 %v3653, %v3661
        %v3670 = vmul.f32 %v3651, %v3662
        %v3671 = vmul.f32 %v3649, %v3663
        %v3672 = vmul.f32 %v3655, %v3664
        %v3673 = vadd.f32 %v3623, %v3665
        %v3674 = vadd.f32 %v3624, %v3666
        %v3675 = vadd.f32 %v3625, %v3667
        %v3676 = vadd.f32 %v3626, %v3668
        %v3677 = vadd.f32 %v3627, %v3669
        %v3678 = vadd.f32 %v3628, %v3670
        %v3679 = vadd.f32 %v3629, %v3671
        %v3680 = vadd.f32 %v3630, %v3672
        %3681 = vrot.lane.b32.xlu0 %v2515, 110
        %v3682 = vpop.permute.xlu0 %3681
        %3683 = vrot.lane.b32.xlu0 %v2519, 110
        %v3684 = vpop.permute.xlu0 %3683
        %3685 = vrot.lane.b32.xlu0 %v2516, 110
        %v3686 = vpop.permute.xlu0 %3685
        %3687 = vrot.lane.b32.xlu0 %v2520, 110
        %v3688 = vpop.permute.xlu0 %3687
        %3689 = vrot.lane.b32.xlu0 %v2517, 110
        %v3690 = vpop.permute.xlu0 %3689
        %3691 = vrot.lane.b32.xlu0 %v2521, 110
        %v3692 = vpop.permute.xlu0 %3691
        %3693 = vrot.lane.b32.xlu0 %v2518, 110
        %v3694 = vpop.permute.xlu0 %3693
        %3695 = vrot.lane.b32.xlu0 %v2522, 110
        %v3696 = vpop.permute.xlu0 %3695
        %vm3697 = vcmp.lt.s32.totalorder %v1932, 110
        %v3698 = vsel %vm3697, %v3690, %v3694
        %v3699 = vsel %vm3697, %v3692, %v3696
        %v3700 = vsel %vm3697, %v3686, %v3690
        %v3701 = vsel %vm3697, %v3688, %v3692
        %v3702 = vsel %vm3697, %v3682, %v3686
        %v3703 = vsel %vm3697, %v3684, %v3688
        %v3704 = vsel %vm3697, %v3694, %v3682
        %v3705 = vsel %vm3697, %v3696, %v3684
        %s3706 = scalar_lea.vmem %s13, 1536
        %v3707 = vld [vmem:[%s3706] sm:$0xff]
        %v3708 = vld [vmem:[%s3706 + $0x8] sm:$0xff]
        %v3709 = vld [vmem:[%s3706 + $0x10] sm:$0xff]
        %v3710 = vld [vmem:[%s3706 + $0x18] sm:$0xff]
        %v3711 = vld [vmem:[%s3706 + $0x20] sm:$0xf]
        %v3712 = vld [vmem:[%s3706 + $0x28] sm:$0xf]
        %v3713 = vld [vmem:[%s3706 + $0x30] sm:$0xf]
        %v3714 = vld [vmem:[%s3706 + $0x38] sm:$0xf]
        %v3715 = vmul.f32 %v3702, %v3707
        %v3716 = vmul.f32 %v3700, %v3708
        %v3717 = vmul.f32 %v3698, %v3709
        %v3718 = vmul.f32 %v3704, %v3710
        %v3719 = vmul.f32 %v3703, %v3711
        %v3720 = vmul.f32 %v3701, %v3712
        %v3721 = vmul.f32 %v3699, %v3713
        %v3722 = vmul.f32 %v3705, %v3714
        %v3723 = vadd.f32 %v3673, %v3715
        %v3724 = vadd.f32 %v3674, %v3716
        %v3725 = vadd.f32 %v3675, %v3717
        %v3726 = vadd.f32 %v3676, %v3718
        %v3727 = vadd.f32 %v3677, %v3719
        %v3728 = vadd.f32 %v3678, %v3720
        %v3729 = vadd.f32 %v3679, %v3721
        %v3730 = vadd.f32 %v3680, %v3722
        %v3731 = vld [vmem:[%s17] sm:$0xff]
        %v3732 = vld [vmem:[%s17 + $0x8] sm:$0xf]
        %3733 = vset.pattern.permute.xlu0 6
        %3734 = vperm.xlu0 %3733, %v1016
        %v3735 = vpop.permute.xlu0 %3734
        %3737 = vset.pattern.permute.xlu0 6
        %3738 = vperm.xlu0 %3737, %v1017
        %v3739 = vpop.permute.xlu0 %3738
        %v3742 = vsel %vm935, %v3731, 0
        %v3745 = vsel %vm935, %v3732, 0
        %v3748 = vsel %vm939, %v3727, 0
        %v3751 = vsel %vm939, %v3728, 0
        %v3754 = vsel %vm939, %v3729, 0
        %v3757 = vsel %vm939, %v3730, 0
        %3759 = vmatprep.subr.mxu0 0.0
        %3760 = vmatpush1.msra.mxu0 0.0
        %3761 = vmatprep.subr.mxu0 0.0
        %3762 = vmatpush1.msra.mxu0 0.0
        %3763 = vmatprep.subr.mxu0 0.0
        %3764 = vmatpush1.msra.mxu0 0.0
        %3765 = vmatprep.subr.mxu0 0.0
        %3766 = vmatpush1.msra.mxu0 0.0
        %3767 = vmatprep.subr.mxu0 0.0
        %3768 = vmatpush1.msra.mxu0 0.0
        %3769 = vmatprep.subr.mxu0 0.0
        %3770 = vmatpush1.msra.mxu0 0.0
        %3771 = vmatprep.subr.mxu0 0.0
        %3772 = vmatpush1.msra.mxu0 0.0
        %3773 = vmatprep.subr.mxu0 0.0
        %3774 = vmatpush1.msra.mxu0 0.0
        %3775 = vmatprep.subr.mxu0 0.0
        %3776 = vmatpush1.msra.mxu0 0.0
        %3777 = vmatprep.subr.mxu0 0.0
        %3778 = vmatpush1.msra.mxu0 0.0
        %3779 = vmatprep.subr.mxu0 0.0
        %3780 = vmatpush1.msra.mxu0 0.0
        %3781 = vmatprep.subr.mxu0 0.0
        %3782 = vmatpush1.msra.mxu0 0.0
        %3783 = vmatprep.subr.mxu0 0.0
        %3784 = vmatpush1.msra.mxu0 0.0
        %3785 = vmatprep.subr.mxu0 0.0
        %3786 = vmatpush1.msra.mxu0 0.0
        %3787 = vmatprep.subr.mxu0 %v3751
        %3788 = vmatpush1.msra.mxu0 %v3748
        %3789 = vmatprep.subr.mxu0 %v3724
        %3790 = vmatpush1.msra.mxu0 %v3723
        %3791 = vmatprep.subr.mxu0 0.0
        %3792 = vmatpush2.msra.mxu0 0.0
        %3793 = vmatprep.subr.mxu0 0.0
        %3794 = vmatpush2.msra.mxu0 0.0
        %3795 = vmatprep.subr.mxu0 0.0
        %3796 = vmatpush2.msra.mxu0 0.0
        %3797 = vmatprep.subr.mxu0 0.0
        %3798 = vmatpush2.msra.mxu0 0.0
        %3799 = vmatprep.subr.mxu0 0.0
        %3800 = vmatpush2.msra.mxu0 0.0
        %3801 = vmatprep.subr.mxu0 0.0
        %3802 = vmatpush2.msra.mxu0 0.0
        %3803 = vmatprep.subr.mxu0 0.0
        %3804 = vmatpush2.msra.mxu0 0.0
        %3805 = vmatprep.subr.mxu0 0.0
        %3806 = vmatpush2.msra.mxu0 0.0
        %3807 = vmatprep.subr.mxu0 0.0
        %3808 = vmatpush2.msra.mxu0 0.0
        %3809 = vmatprep.subr.mxu0 0.0
        %3810 = vmatpush2.msra.mxu0 0.0
        %3811 = vmatprep.subr.mxu0 0.0
        %3812 = vmatpush2.msra.mxu0 0.0
        %3813 = vmatprep.subr.mxu0 0.0
        %3814 = vmatpush2.msra.mxu0 0.0
        %3815 = vmatprep.subr.mxu0 0.0
        %3816 = vmatpush2.msra.mxu0 0.0
        %3817 = vmatprep.subr.mxu0 0.0
        %3818 = vmatpush2.msra.mxu0 0.0
        %3819 = vmatprep.subr.mxu0 0.0
        %3820 = vmatpush2.msra.mxu0 0.0
        %3821 = vmatprep.subr.mxu0 0.0
        %3822 = vmatpush2.msra.mxu0 0.0
        %3823 = vmatprep.mubr.f32.mxu0 0.0
        %3824 = vmatmul.mubr.f32.gmra.mxu0 %v3742
        %v3825 = vpop.f32.mrf.mxu0
        %v3826 = vadd.f32 %v3735, %v3825
        %v3827 = vpop.f32.mrf.mxu0
        %v3828 = vadd.f32 %v3735, %v3827
        %3829 = vmatprep.mubr.f32.mxu0 0.0
        %3830 = vmatmul.mubr.f32.gmra.mxu0 %v3745
        %v3831 = vpop.f32.mrf.mxu0
        %v3832 = vadd.f32 %v3739, %v3831
        %v3833 = vpop.f32.mrf.mxu0
        %v3834 = vadd.f32 %v3739, %v3833
        %3835 = vdwg.mxu0
        %3836 = vmatprep.subr.mxu0 0.0
        %3837 = vmatpush1.msra.mxu0 0.0
        %3838 = vmatprep.subr.mxu0 0.0
        %3839 = vmatpush1.msra.mxu0 0.0
        %3840 = vmatprep.subr.mxu0 0.0
        %3841 = vmatpush1.msra.mxu0 0.0
        %3842 = vmatprep.subr.mxu0 0.0
        %3843 = vmatpush1.msra.mxu0 0.0
        %3844 = vmatprep.subr.mxu0 0.0
        %3845 = vmatpush1.msra.mxu0 0.0
        %3846 = vmatprep.subr.mxu0 0.0
        %3847 = vmatpush1.msra.mxu0 0.0
        %3848 = vmatprep.subr.mxu0 0.0
        %3849 = vmatpush1.msra.mxu0 0.0
        %3850 = vmatprep.subr.mxu0 0.0
        %3851 = vmatpush1.msra.mxu0 0.0
        %3852 = vmatprep.subr.mxu0 0.0
        %3853 = vmatpush1.msra.mxu0 0.0
        %3854 = vmatprep.subr.mxu0 0.0
        %3855 = vmatpush1.msra.mxu0 0.0
        %3856 = vmatprep.subr.mxu0 0.0
        %3857 = vmatpush1.msra.mxu0 0.0
        %3858 = vmatprep.subr.mxu0 0.0
        %3859 = vmatpush1.msra.mxu0 0.0
        %3860 = vmatprep.subr.mxu0 0.0
        %3861 = vmatpush1.msra.mxu0 0.0
        %3862 = vmatprep.subr.mxu0 0.0
        %3863 = vmatpush1.msra.mxu0 0.0
        %3864 = vmatprep.subr.mxu0 %v3757
        %3865 = vmatpush1.msra.mxu0 %v3754
        %3866 = vmatprep.subr.mxu0 %v3726
        %3867 = vmatpush1.msra.mxu0 %v3725
        %3868 = vmatprep.subr.mxu0 0.0
        %3869 = vmatpush2.msra.mxu0 0.0
        %3870 = vmatprep.subr.mxu0 0.0
        %3871 = vmatpush2.msra.mxu0 0.0
        %3872 = vmatprep.subr.mxu0 0.0
        %3873 = vmatpush2.msra.mxu0 0.0
        %3874 = vmatprep.subr.mxu0 0.0
        %3875 = vmatpush2.msra.mxu0 0.0
        %3876 = vmatprep.subr.mxu0 0.0
        %3877 = vmatpush2.msra.mxu0 0.0
        %3878 = vmatprep.subr.mxu0 0.0
        %3879 = vmatpush2.msra.mxu0 0.0
        %3880 = vmatprep.subr.mxu0 0.0
        %3881 = vmatpush2.msra.mxu0 0.0
        %3882 = vmatprep.subr.mxu0 0.0
        %3883 = vmatpush2.msra.mxu0 0.0
        %3884 = vmatprep.subr.mxu0 0.0
        %3885 = vmatpush2.msra.mxu0 0.0
        %3886 = vmatprep.subr.mxu0 0.0
        %3887 = vmatpush2.msra.mxu0 0.0
        %3888 = vmatprep.subr.mxu0 0.0
        %3889 = vmatpush2.msra.mxu0 0.0
        %3890 = vmatprep.subr.mxu0 0.0
        %3891 = vmatpush2.msra.mxu0 0.0
        %3892 = vmatprep.subr.mxu0 0.0
        %3893 = vmatpush2.msra.mxu0 0.0
        %3894 = vmatprep.subr.mxu0 0.0
        %3895 = vmatpush2.msra.mxu0 0.0
        %3896 = vmatprep.subr.mxu0 0.0
        %3897 = vmatpush2.msra.mxu0 0.0
        %3898 = vmatprep.subr.mxu0 0.0
        %3899 = vmatpush2.msra.mxu0 0.0
        %3900 = vmatprep.mubr.f32.mxu0 0.0
        %3901 = vmatmul.mubr.f32.gmra.mxu0 %v3742
        %v3902 = vpop.f32.mrf.mxu0
        %v3903 = vadd.f32 %v3735, %v3902
        %v3904 = vpop.f32.mrf.mxu0
        %v3905 = vadd.f32 %v3735, %v3904
        %3906 = vmatprep.mubr.f32.mxu0 0.0
        %3907 = vmatmul.mubr.f32.gmra.mxu0 %v3745
        %v3908 = vpop.f32.mrf.mxu0
        %v3909 = vadd.f32 %v3739, %v3908
        %v3910 = vpop.f32.mrf.mxu0
        %v3911 = vadd.f32 %v3739, %v3910
        %3912 = vdwg.mxu0
        %v3913 = vmax.f32 %v3826, 0.0
        %v3914 = vmax.f32 %v3828, 0.0
        %v3915 = vmax.f32 %v3903, 0.0
        %v3916 = vmax.f32 %v3905, 0.0
        %v3917 = vmax.f32 %v3832, 0.0
        %v3918 = vmax.f32 %v3834, 0.0
        %v3919 = vmax.f32 %v3909, 0.0
        %v3920 = vmax.f32 %v3911, 0.0
        %3921 = vrot.lane.b32.xlu0 %v3913, 27
        %v3922 = vpop.permute.xlu0 %3921
        %3923 = vrot.lane.b32.xlu0 %v3917, 27
        %v3924 = vpop.permute.xlu0 %3923
        %3925 = vrot.lane.b32.xlu0 %v3914, 27
        %v3926 = vpop.permute.xlu0 %3925
        %3927 = vrot.lane.b32.xlu0 %v3918, 27
        %v3928 = vpop.permute.xlu0 %3927
        %3929 = vrot.lane.b32.xlu0 %v3915, 27
        %v3930 = vpop.permute.xlu0 %3929
        %3931 = vrot.lane.b32.xlu0 %v3919, 27
        %v3932 = vpop.permute.xlu0 %3931
        %3933 = vrot.lane.b32.xlu0 %v3916, 27
        %v3934 = vpop.permute.xlu0 %3933
        %3935 = vrot.lane.b32.xlu0 %v3920, 27
        %v3936 = vpop.permute.xlu0 %3935
        %vm3937 = vcmp.lt.s32.totalorder %v1932, 27
        %v3938 = vsel %vm3937, %v3930, %v3934
        %v3939 = vsel %vm3937, %v3932, %v3936
        %v3940 = vsel %vm3937, %v3926, %v3930
        %v3941 = vsel %vm3937, %v3928, %v3932
        %v3942 = vsel %vm3937, %v3922, %v3926
        %v3943 = vsel %vm3937, %v3924, %v3928
        %v3944 = vsel %vm3937, %v3934, %v3922
        %v3945 = vsel %vm3937, %v3936, %v3924
        %v3946 = vld [vmem:[%s14] sm:$0xff]
        %v3947 = vld [vmem:[%s14 + $0x8] sm:$0xff]
        %v3948 = vld [vmem:[%s14 + $0x10] sm:$0xff]
        %v3949 = vld [vmem:[%s14 + $0x18] sm:$0xff]
        %v3950 = vld [vmem:[%s14 + $0x20] sm:$0xf]
        %v3951 = vld [vmem:[%s14 + $0x28] sm:$0xf]
        %v3952 = vld [vmem:[%s14 + $0x30] sm:$0xf]
        %v3953 = vld [vmem:[%s14 + $0x38] sm:$0xf]
        %v3954 = vmul.f32 %v3944, %v3946
        %v3955 = vmul.f32 %v3942, %v3947
        %v3956 = vmul.f32 %v3940, %v3948
        %v3957 = vmul.f32 %v3938, %v3949
        %v3958 = vmul.f32 %v3945, %v3950
        %v3959 = vmul.f32 %v3943, %v3951
        %v3960 = vmul.f32 %v3941, %v3952
        %v3961 = vmul.f32 %v3939, %v3953
        %3962 = vrot.lane.b32.xlu0 %v3913, 26
        %v3963 = vpop.permute.xlu0 %3962
        %3964 = vrot.lane.b32.xlu0 %v3917, 26
        %v3965 = vpop.permute.xlu0 %3964
        %3966 = vrot.lane.b32.xlu0 %v3914, 26
        %v3967 = vpop.permute.xlu0 %3966
        %3968 = vrot.lane.b32.xlu0 %v3918, 26
        %v3969 = vpop.permute.xlu0 %3968
        %3970 = vrot.lane.b32.xlu0 %v3915, 26
        %v3971 = vpop.permute.xlu0 %3970
        %3972 = vrot.lane.b32.xlu0 %v3919, 26
        %v3973 = vpop.permute.xlu0 %3972
        %3974 = vrot.lane.b32.xlu0 %v3916, 26
        %v3975 = vpop.permute.xlu0 %3974
        %3976 = vrot.lane.b32.xlu0 %v3920, 26
        %v3977 = vpop.permute.xlu0 %3976
        %vm3978 = vcmp.lt.s32.totalorder %v1932, 26
        %v3979 = vsel %vm3978, %v3971, %v3975
        %v3980 = vsel %vm3978, %v3973, %v3977
        %v3981 = vsel %vm3978, %v3967, %v3971
        %v3982 = vsel %vm3978, %v3969, %v3973
        %v3983 = vsel %vm3978, %v3963, %v3967
        %v3984 = vsel %vm3978, %v3965, %v3969
        %v3985 = vsel %vm3978, %v3975, %v3963
        %v3986 = vsel %vm3978, %v3977, %v3965
        %s3987 = scalar_lea.vmem %s14, 64
        %v3988 = vld [vmem:[%s3987] sm:$0xff]
        %v3989 = vld [vmem:[%s3987 + $0x8] sm:$0xff]
        %v3990 = vld [vmem:[%s3987 + $0x10] sm:$0xff]
        %v3991 = vld [vmem:[%s3987 + $0x18] sm:$0xff]
        %v3992 = vld [vmem:[%s3987 + $0x20] sm:$0xf]
        %v3993 = vld [vmem:[%s3987 + $0x28] sm:$0xf]
        %v3994 = vld [vmem:[%s3987 + $0x30] sm:$0xf]
        %v3995 = vld [vmem:[%s3987 + $0x38] sm:$0xf]
        %v3996 = vmul.f32 %v3985, %v3988
        %v3997 = vmul.f32 %v3983, %v3989
        %v3998 = vmul.f32 %v3981, %v3990
        %v3999 = vmul.f32 %v3979, %v3991
        %v4000 = vmul.f32 %v3986, %v3992
        %v4001 = vmul.f32 %v3984, %v3993
        %v4002 = vmul.f32 %v3982, %v3994
        %v4003 = vmul.f32 %v3980, %v3995
        %v4004 = vadd.f32 %v3954, %v3996
        %v4005 = vadd.f32 %v3955, %v3997
        %v4006 = vadd.f32 %v3956, %v3998
        %v4007 = vadd.f32 %v3957, %v3999
        %v4008 = vadd.f32 %v3958, %v4000
        %v4009 = vadd.f32 %v3959, %v4001
        %v4010 = vadd.f32 %v3960, %v4002
        %v4011 = vadd.f32 %v3961, %v4003
        %4012 = vrot.lane.b32.xlu0 %v3913, 25
        %v4013 = vpop.permute.xlu0 %4012
        %4014 = vrot.lane.b32.xlu0 %v3917, 25
        %v4015 = vpop.permute.xlu0 %4014
        %4016 = vrot.lane.b32.xlu0 %v3914, 25
        %v4017 = vpop.permute.xlu0 %4016
        %4018 = vrot.lane.b32.xlu0 %v3918, 25
        %v4019 = vpop.permute.xlu0 %4018
        %4020 = vrot.lane.b32.xlu0 %v3915, 25
        %v4021 = vpop.permute.xlu0 %4020
        %4022 = vrot.lane.b32.xlu0 %v3919, 25
        %v4023 = vpop.permute.xlu0 %4022
        %4024 = vrot.lane.b32.xlu0 %v3916, 25
        %v4025 = vpop.permute.xlu0 %4024
        %4026 = vrot.lane.b32.xlu0 %v3920, 25
        %v4027 = vpop.permute.xlu0 %4026
        %vm4028 = vcmp.lt.s32.totalorder %v1932, 25
        %v4029 = vsel %vm4028, %v4021, %v4025
        %v4030 = vsel %vm4028, %v4023, %v4027
        %v4031 = vsel %vm4028, %v4017, %v4021
        %v4032 = vsel %vm4028, %v4019, %v4023
        %v4033 = vsel %vm4028, %v4013, %v4017
        %v4034 = vsel %vm4028, %v4015, %v4019
        %v4035 = vsel %vm4028, %v4025, %v4013
        %v4036 = vsel %vm4028, %v4027, %v4015
        %s4037 = scalar_lea.vmem %s14, 128
        %v4038 = vld [vmem:[%s4037] sm:$0xff]
        %v4039 = vld [vmem:[%s4037 + $0x8] sm:$0xff]
        %v4040 = vld [vmem:[%s4037 + $0x10] sm:$0xff]
        %v4041 = vld [vmem:[%s4037 + $0x18] sm:$0xff]
        %v4042 = vld [vmem:[%s4037 + $0x20] sm:$0xf]
        %v4043 = vld [vmem:[%s4037 + $0x28] sm:$0xf]
        %v4044 = vld [vmem:[%s4037 + $0x30] sm:$0xf]
        %v4045 = vld [vmem:[%s4037 + $0x38] sm:$0xf]
        %v4046 = vmul.f32 %v4035, %v4038
        %v4047 = vmul.f32 %v4033, %v4039
        %v4048 = vmul.f32 %v4031, %v4040
        %v4049 = vmul.f32 %v4029, %v4041
        %v4050 = vmul.f32 %v4036, %v4042
        %v4051 = vmul.f32 %v4034, %v4043
        %v4052 = vmul.f32 %v4032, %v4044
        %v4053 = vmul.f32 %v4030, %v4045
        %v4054 = vadd.f32 %v4004, %v4046
        %v4055 = vadd.f32 %v4005, %v4047
        %v4056 = vadd.f32 %v4006, %v4048
        %v4057 = vadd.f32 %v4007, %v4049
        %v4058 = vadd.f32 %v4008, %v4050
        %v4059 = vadd.f32 %v4009, %v4051
        %v4060 = vadd.f32 %v4010, %v4052
        %v4061 = vadd.f32 %v4011, %v4053
        %4062 = vrot.lane.b32.xlu0 %v3913, 24
        %v4063 = vpop.permute.xlu0 %4062
        %4064 = vrot.lane.b32.xlu0 %v3917, 24
        %v4065 = vpop.permute.xlu0 %4064
        %4066 = vrot.lane.b32.xlu0 %v3914, 24
        %v4067 = vpop.permute.xlu0 %4066
        %4068 = vrot.lane.b32.xlu0 %v3918, 24
        %v4069 = vpop.permute.xlu0 %4068
        %4070 = vrot.lane.b32.xlu0 %v3915, 24
        %v4071 = vpop.permute.xlu0 %4070
        %4072 = vrot.lane.b32.xlu0 %v3919, 24
        %v4073 = vpop.permute.xlu0 %4072
        %4074 = vrot.lane.b32.xlu0 %v3916, 24
        %v4075 = vpop.permute.xlu0 %4074
        %4076 = vrot.lane.b32.xlu0 %v3920, 24
        %v4077 = vpop.permute.xlu0 %4076
        %vm4078 = vcmp.lt.s32.totalorder %v1932, 24
        %v4079 = vsel %vm4078, %v4071, %v4075
        %v4080 = vsel %vm4078, %v4073, %v4077
        %v4081 = vsel %vm4078, %v4067, %v4071
        %v4082 = vsel %vm4078, %v4069, %v4073
        %v4083 = vsel %vm4078, %v4063, %v4067
        %v4084 = vsel %vm4078, %v4065, %v4069
        %v4085 = vsel %vm4078, %v4075, %v4063
        %v4086 = vsel %vm4078, %v4077, %v4065
        %s4087 = scalar_lea.vmem %s14, 192
        %v4088 = vld [vmem:[%s4087] sm:$0xff]
        %v4089 = vld [vmem:[%s4087 + $0x8] sm:$0xff]
        %v4090 = vld [vmem:[%s4087 + $0x10] sm:$0xff]
        %v4091 = vld [vmem:[%s4087 + $0x18] sm:$0xff]
        %v4092 = vld [vmem:[%s4087 + $0x20] sm:$0xf]
        %v4093 = vld [vmem:[%s4087 + $0x28] sm:$0xf]
        %v4094 = vld [vmem:[%s4087 + $0x30] sm:$0xf]
        %v4095 = vld [vmem:[%s4087 + $0x38] sm:$0xf]
        %v4096 = vmul.f32 %v4085, %v4088
        %v4097 = vmul.f32 %v4083, %v4089
        %v4098 = vmul.f32 %v4081, %v4090
        %v4099 = vmul.f32 %v4079, %v4091
        %v4100 = vmul.f32 %v4086, %v4092
        %v4101 = vmul.f32 %v4084, %v4093
        %v4102 = vmul.f32 %v4082, %v4094
        %v4103 = vmul.f32 %v4080, %v4095
        %v4104 = vadd.f32 %v4054, %v4096
        %v4105 = vadd.f32 %v4055, %v4097
        %v4106 = vadd.f32 %v4056, %v4098
        %v4107 = vadd.f32 %v4057, %v4099
        %v4108 = vadd.f32 %v4058, %v4100
        %v4109 = vadd.f32 %v4059, %v4101
        %v4110 = vadd.f32 %v4060, %v4102
        %v4111 = vadd.f32 %v4061, %v4103
        %4112 = vrot.lane.b32.xlu0 %v3913, 23
        %v4113 = vpop.permute.xlu0 %4112
        %4114 = vrot.lane.b32.xlu0 %v3917, 23
        %v4115 = vpop.permute.xlu0 %4114
        %4116 = vrot.lane.b32.xlu0 %v3914, 23
        %v4117 = vpop.permute.xlu0 %4116
        %4118 = vrot.lane.b32.xlu0 %v3918, 23
        %v4119 = vpop.permute.xlu0 %4118
        %4120 = vrot.lane.b32.xlu0 %v3915, 23
        %v4121 = vpop.permute.xlu0 %4120
        %4122 = vrot.lane.b32.xlu0 %v3919, 23
        %v4123 = vpop.permute.xlu0 %4122
        %4124 = vrot.lane.b32.xlu0 %v3916, 23
        %v4125 = vpop.permute.xlu0 %4124
        %4126 = vrot.lane.b32.xlu0 %v3920, 23
        %v4127 = vpop.permute.xlu0 %4126
        %vm4128 = vcmp.lt.s32.totalorder %v1932, 23
        %v4129 = vsel %vm4128, %v4121, %v4125
        %v4130 = vsel %vm4128, %v4123, %v4127
        %v4131 = vsel %vm4128, %v4117, %v4121
        %v4132 = vsel %vm4128, %v4119, %v4123
        %v4133 = vsel %vm4128, %v4113, %v4117
        %v4134 = vsel %vm4128, %v4115, %v4119
        %v4135 = vsel %vm4128, %v4125, %v4113
        %v4136 = vsel %vm4128, %v4127, %v4115
        %s4137 = scalar_lea.vmem %s14, 256
        %v4138 = vld [vmem:[%s4137] sm:$0xff]
        %v4139 = vld [vmem:[%s4137 + $0x8] sm:$0xff]
        %v4140 = vld [vmem:[%s4137 + $0x10] sm:$0xff]
        %v4141 = vld [vmem:[%s4137 + $0x18] sm:$0xff]
        %v4142 = vld [vmem:[%s4137 + $0x20] sm:$0xf]
        %v4143 = vld [vmem:[%s4137 + $0x28] sm:$0xf]
        %v4144 = vld [vmem:[%s4137 + $0x30] sm:$0xf]
        %v4145 = vld [vmem:[%s4137 + $0x38] sm:$0xf]
        %v4146 = vmul.f32 %v4135, %v4138
        %v4147 = vmul.f32 %v4133, %v4139
        %v4148 = vmul.f32 %v4131, %v4140
        %v4149 = vmul.f32 %v4129, %v4141
        %v4150 = vmul.f32 %v4136, %v4142
        %v4151 = vmul.f32 %v4134, %v4143
        %v4152 = vmul.f32 %v4132, %v4144
        %v4153 = vmul.f32 %v4130, %v4145
        %v4154 = vadd.f32 %v4104, %v4146
        %v4155 = vadd.f32 %v4105, %v4147
        %v4156 = vadd.f32 %v4106, %v4148
        %v4157 = vadd.f32 %v4107, %v4149
        %v4158 = vadd.f32 %v4108, %v4150
        %v4159 = vadd.f32 %v4109, %v4151
        %v4160 = vadd.f32 %v4110, %v4152
        %v4161 = vadd.f32 %v4111, %v4153
        %4162 = vrot.lane.b32.xlu0 %v3913, 22
        %v4163 = vpop.permute.xlu0 %4162
        %4164 = vrot.lane.b32.xlu0 %v3917, 22
        %v4165 = vpop.permute.xlu0 %4164
        %4166 = vrot.lane.b32.xlu0 %v3914, 22
        %v4167 = vpop.permute.xlu0 %4166
        %4168 = vrot.lane.b32.xlu0 %v3918, 22
        %v4169 = vpop.permute.xlu0 %4168
        %4170 = vrot.lane.b32.xlu0 %v3915, 22
        %v4171 = vpop.permute.xlu0 %4170
        %4172 = vrot.lane.b32.xlu0 %v3919, 22
        %v4173 = vpop.permute.xlu0 %4172
        %4174 = vrot.lane.b32.xlu0 %v3916, 22
        %v4175 = vpop.permute.xlu0 %4174
        %4176 = vrot.lane.b32.xlu0 %v3920, 22
        %v4177 = vpop.permute.xlu0 %4176
        %vm4178 = vcmp.lt.s32.totalorder %v1932, 22
        %v4179 = vsel %vm4178, %v4171, %v4175
        %v4180 = vsel %vm4178, %v4173, %v4177
        %v4181 = vsel %vm4178, %v4167, %v4171
        %v4182 = vsel %vm4178, %v4169, %v4173
        %v4183 = vsel %vm4178, %v4163, %v4167
        %v4184 = vsel %vm4178, %v4165, %v4169
        %v4185 = vsel %vm4178, %v4175, %v4163
        %v4186 = vsel %vm4178, %v4177, %v4165
        %s4187 = scalar_lea.vmem %s14, 320
        %v4188 = vld [vmem:[%s4187] sm:$0xff]
        %v4189 = vld [vmem:[%s4187 + $0x8] sm:$0xff]
        %v4190 = vld [vmem:[%s4187 + $0x10] sm:$0xff]
        %v4191 = vld [vmem:[%s4187 + $0x18] sm:$0xff]
        %v4192 = vld [vmem:[%s4187 + $0x20] sm:$0xf]
        %v4193 = vld [vmem:[%s4187 + $0x28] sm:$0xf]
        %v4194 = vld [vmem:[%s4187 + $0x30] sm:$0xf]
        %v4195 = vld [vmem:[%s4187 + $0x38] sm:$0xf]
        %v4196 = vmul.f32 %v4185, %v4188
        %v4197 = vmul.f32 %v4183, %v4189
        %v4198 = vmul.f32 %v4181, %v4190
        %v4199 = vmul.f32 %v4179, %v4191
        %v4200 = vmul.f32 %v4186, %v4192
        %v4201 = vmul.f32 %v4184, %v4193
        %v4202 = vmul.f32 %v4182, %v4194
        %v4203 = vmul.f32 %v4180, %v4195
        %v4204 = vadd.f32 %v4154, %v4196
        %v4205 = vadd.f32 %v4155, %v4197
        %v4206 = vadd.f32 %v4156, %v4198
        %v4207 = vadd.f32 %v4157, %v4199
        %v4208 = vadd.f32 %v4158, %v4200
        %v4209 = vadd.f32 %v4159, %v4201
        %v4210 = vadd.f32 %v4160, %v4202
        %v4211 = vadd.f32 %v4161, %v4203
        %4212 = vrot.lane.b32.xlu0 %v3913, 21
        %v4213 = vpop.permute.xlu0 %4212
        %4214 = vrot.lane.b32.xlu0 %v3917, 21
        %v4215 = vpop.permute.xlu0 %4214
        %4216 = vrot.lane.b32.xlu0 %v3914, 21
        %v4217 = vpop.permute.xlu0 %4216
        %4218 = vrot.lane.b32.xlu0 %v3918, 21
        %v4219 = vpop.permute.xlu0 %4218
        %4220 = vrot.lane.b32.xlu0 %v3915, 21
        %v4221 = vpop.permute.xlu0 %4220
        %4222 = vrot.lane.b32.xlu0 %v3919, 21
        %v4223 = vpop.permute.xlu0 %4222
        %4224 = vrot.lane.b32.xlu0 %v3916, 21
        %v4225 = vpop.permute.xlu0 %4224
        %4226 = vrot.lane.b32.xlu0 %v3920, 21
        %v4227 = vpop.permute.xlu0 %4226
        %vm4228 = vcmp.lt.s32.totalorder %v1932, 21
        %v4229 = vsel %vm4228, %v4221, %v4225
        %v4230 = vsel %vm4228, %v4223, %v4227
        %v4231 = vsel %vm4228, %v4217, %v4221
        %v4232 = vsel %vm4228, %v4219, %v4223
        %v4233 = vsel %vm4228, %v4213, %v4217
        %v4234 = vsel %vm4228, %v4215, %v4219
        %v4235 = vsel %vm4228, %v4225, %v4213
        %v4236 = vsel %vm4228, %v4227, %v4215
        %s4237 = scalar_lea.vmem %s14, 384
        %v4238 = vld [vmem:[%s4237] sm:$0xff]
        %v4239 = vld [vmem:[%s4237 + $0x8] sm:$0xff]
        %v4240 = vld [vmem:[%s4237 + $0x10] sm:$0xff]
        %v4241 = vld [vmem:[%s4237 + $0x18] sm:$0xff]
        %v4242 = vld [vmem:[%s4237 + $0x20] sm:$0xf]
        %v4243 = vld [vmem:[%s4237 + $0x28] sm:$0xf]
        %v4244 = vld [vmem:[%s4237 + $0x30] sm:$0xf]
        %v4245 = vld [vmem:[%s4237 + $0x38] sm:$0xf]
        %v4246 = vmul.f32 %v4235, %v4238
        %v4247 = vmul.f32 %v4233, %v4239
        %v4248 = vmul.f32 %v4231, %v4240
        %v4249 = vmul.f32 %v4229, %v4241
        %v4250 = vmul.f32 %v4236, %v4242
        %v4251 = vmul.f32 %v4234, %v4243
        %v4252 = vmul.f32 %v4232, %v4244
        %v4253 = vmul.f32 %v4230, %v4245
        %v4254 = vadd.f32 %v4204, %v4246
        %v4255 = vadd.f32 %v4205, %v4247
        %v4256 = vadd.f32 %v4206, %v4248
        %v4257 = vadd.f32 %v4207, %v4249
        %v4258 = vadd.f32 %v4208, %v4250
        %v4259 = vadd.f32 %v4209, %v4251
        %v4260 = vadd.f32 %v4210, %v4252
        %v4261 = vadd.f32 %v4211, %v4253
        %4262 = vrot.lane.b32.xlu0 %v3913, 19
        %v4263 = vpop.permute.xlu0 %4262
        %4264 = vrot.lane.b32.xlu0 %v3917, 19
        %v4265 = vpop.permute.xlu0 %4264
        %4266 = vrot.lane.b32.xlu0 %v3914, 19
        %v4267 = vpop.permute.xlu0 %4266
        %4268 = vrot.lane.b32.xlu0 %v3918, 19
        %v4269 = vpop.permute.xlu0 %4268
        %4270 = vrot.lane.b32.xlu0 %v3915, 19
        %v4271 = vpop.permute.xlu0 %4270
        %4272 = vrot.lane.b32.xlu0 %v3919, 19
        %v4273 = vpop.permute.xlu0 %4272
        %4274 = vrot.lane.b32.xlu0 %v3916, 19
        %v4275 = vpop.permute.xlu0 %4274
        %4276 = vrot.lane.b32.xlu0 %v3920, 19
        %v4277 = vpop.permute.xlu0 %4276
        %vm4278 = vcmp.lt.s32.totalorder %v1932, 19
        %v4279 = vsel %vm4278, %v4271, %v4275
        %v4280 = vsel %vm4278, %v4273, %v4277
        %v4281 = vsel %vm4278, %v4267, %v4271
        %v4282 = vsel %vm4278, %v4269, %v4273
        %v4283 = vsel %vm4278, %v4263, %v4267
        %v4284 = vsel %vm4278, %v4265, %v4269
        %v4285 = vsel %vm4278, %v4275, %v4263
        %v4286 = vsel %vm4278, %v4277, %v4265
        %s4287 = scalar_lea.vmem %s14, 448
        %v4288 = vld [vmem:[%s4287] sm:$0xff]
        %v4289 = vld [vmem:[%s4287 + $0x8] sm:$0xff]
        %v4290 = vld [vmem:[%s4287 + $0x10] sm:$0xff]
        %v4291 = vld [vmem:[%s4287 + $0x18] sm:$0xff]
        %v4292 = vld [vmem:[%s4287 + $0x20] sm:$0xf]
        %v4293 = vld [vmem:[%s4287 + $0x28] sm:$0xf]
        %v4294 = vld [vmem:[%s4287 + $0x30] sm:$0xf]
        %v4295 = vld [vmem:[%s4287 + $0x38] sm:$0xf]
        %v4296 = vmul.f32 %v4285, %v4288
        %v4297 = vmul.f32 %v4283, %v4289
        %v4298 = vmul.f32 %v4281, %v4290
        %v4299 = vmul.f32 %v4279, %v4291
        %v4300 = vmul.f32 %v4286, %v4292
        %v4301 = vmul.f32 %v4284, %v4293
        %v4302 = vmul.f32 %v4282, %v4294
        %v4303 = vmul.f32 %v4280, %v4295
        %v4304 = vadd.f32 %v4254, %v4296
        %v4305 = vadd.f32 %v4255, %v4297
        %v4306 = vadd.f32 %v4256, %v4298
        %v4307 = vadd.f32 %v4257, %v4299
        %v4308 = vadd.f32 %v4258, %v4300
        %v4309 = vadd.f32 %v4259, %v4301
        %v4310 = vadd.f32 %v4260, %v4302
        %v4311 = vadd.f32 %v4261, %v4303
        %4312 = vrot.lane.b32.xlu0 %v3913, 18
        %v4313 = vpop.permute.xlu0 %4312
        %4314 = vrot.lane.b32.xlu0 %v3917, 18
        %v4315 = vpop.permute.xlu0 %4314
        %4316 = vrot.lane.b32.xlu0 %v3914, 18
        %v4317 = vpop.permute.xlu0 %4316
        %4318 = vrot.lane.b32.xlu0 %v3918, 18
        %v4319 = vpop.permute.xlu0 %4318
        %4320 = vrot.lane.b32.xlu0 %v3915, 18
        %v4321 = vpop.permute.xlu0 %4320
        %4322 = vrot.lane.b32.xlu0 %v3919, 18
        %v4323 = vpop.permute.xlu0 %4322
        %4324 = vrot.lane.b32.xlu0 %v3916, 18
        %v4325 = vpop.permute.xlu0 %4324
        %4326 = vrot.lane.b32.xlu0 %v3920, 18
        %v4327 = vpop.permute.xlu0 %4326
        %v4328 = vsel %vm2539, %v4321, %v4325
        %v4329 = vsel %vm2539, %v4323, %v4327
        %v4330 = vsel %vm2539, %v4317, %v4321
        %v4331 = vsel %vm2539, %v4319, %v4323
        %v4332 = vsel %vm2539, %v4313, %v4317
        %v4333 = vsel %vm2539, %v4315, %v4319
        %v4334 = vsel %vm2539, %v4325, %v4313
        %v4335 = vsel %vm2539, %v4327, %v4315
        %s4336 = scalar_lea.vmem %s14, 512
        %v4337 = vld [vmem:[%s4336] sm:$0xff]
        %v4338 = vld [vmem:[%s4336 + $0x8] sm:$0xff]
        %v4339 = vld [vmem:[%s4336 + $0x10] sm:$0xff]
        %v4340 = vld [vmem:[%s4336 + $0x18] sm:$0xff]
        %v4341 = vld [vmem:[%s4336 + $0x20] sm:$0xf]
        %v4342 = vld [vmem:[%s4336 + $0x28] sm:$0xf]
        %v4343 = vld [vmem:[%s4336 + $0x30] sm:$0xf]
        %v4344 = vld [vmem:[%s4336 + $0x38] sm:$0xf]
        %v4345 = vmul.f32 %v4334, %v4337
        %v4346 = vmul.f32 %v4332, %v4338
        %v4347 = vmul.f32 %v4330, %v4339
        %v4348 = vmul.f32 %v4328, %v4340
        %v4349 = vmul.f32 %v4335, %v4341
        %v4350 = vmul.f32 %v4333, %v4342
        %v4351 = vmul.f32 %v4331, %v4343
        %v4352 = vmul.f32 %v4329, %v4344
        %v4353 = vadd.f32 %v4304, %v4345
        %v4354 = vadd.f32 %v4305, %v4346
        %v4355 = vadd.f32 %v4306, %v4347
        %v4356 = vadd.f32 %v4307, %v4348
        %v4357 = vadd.f32 %v4308, %v4349
        %v4358 = vadd.f32 %v4309, %v4350
        %v4359 = vadd.f32 %v4310, %v4351
        %v4360 = vadd.f32 %v4311, %v4352
        %4361 = vrot.lane.b32.xlu0 %v3913, 17
        %v4362 = vpop.permute.xlu0 %4361
        %4363 = vrot.lane.b32.xlu0 %v3917, 17
        %v4364 = vpop.permute.xlu0 %4363
        %4365 = vrot.lane.b32.xlu0 %v3914, 17
        %v4366 = vpop.permute.xlu0 %4365
        %4367 = vrot.lane.b32.xlu0 %v3918, 17
        %v4368 = vpop.permute.xlu0 %4367
        %4369 = vrot.lane.b32.xlu0 %v3915, 17
        %v4370 = vpop.permute.xlu0 %4369
        %4371 = vrot.lane.b32.xlu0 %v3919, 17
        %v4372 = vpop.permute.xlu0 %4371
        %4373 = vrot.lane.b32.xlu0 %v3916, 17
        %v4374 = vpop.permute.xlu0 %4373
        %4375 = vrot.lane.b32.xlu0 %v3920, 17
        %v4376 = vpop.permute.xlu0 %4375
        %v4377 = vsel %vm2580, %v4370, %v4374
        %v4378 = vsel %vm2580, %v4372, %v4376
        %v4379 = vsel %vm2580, %v4366, %v4370
        %v4380 = vsel %vm2580, %v4368, %v4372
        %v4381 = vsel %vm2580, %v4362, %v4366
        %v4382 = vsel %vm2580, %v4364, %v4368
        %v4383 = vsel %vm2580, %v4374, %v4362
        %v4384 = vsel %vm2580, %v4376, %v4364
        %s4385 = scalar_lea.vmem %s14, 576
        %v4386 = vld [vmem:[%s4385] sm:$0xff]
        %v4387 = vld [vmem:[%s4385 + $0x8] sm:$0xff]
        %v4388 = vld [vmem:[%s4385 + $0x10] sm:$0xff]
        %v4389 = vld [vmem:[%s4385 + $0x18] sm:$0xff]
        %v4390 = vld [vmem:[%s4385 + $0x20] sm:$0xf]
        %v4391 = vld [vmem:[%s4385 + $0x28] sm:$0xf]
        %v4392 = vld [vmem:[%s4385 + $0x30] sm:$0xf]
        %v4393 = vld [vmem:[%s4385 + $0x38] sm:$0xf]
        %v4394 = vmul.f32 %v4383, %v4386
        %v4395 = vmul.f32 %v4381, %v4387
        %v4396 = vmul.f32 %v4379, %v4388
        %v4397 = vmul.f32 %v4377, %v4389
        %v4398 = vmul.f32 %v4384, %v4390
        %v4399 = vmul.f32 %v4382, %v4391
        %v4400 = vmul.f32 %v4380, %v4392
        %v4401 = vmul.f32 %v4378, %v4393
        %v4402 = vadd.f32 %v4353, %v4394
        %v4403 = vadd.f32 %v4354, %v4395
        %v4404 = vadd.f32 %v4355, %v4396
        %v4405 = vadd.f32 %v4356, %v4397
        %v4406 = vadd.f32 %v4357, %v4398
        %v4407 = vadd.f32 %v4358, %v4399
        %v4408 = vadd.f32 %v4359, %v4400
        %v4409 = vadd.f32 %v4360, %v4401
        %4410 = vrot.lane.b32.xlu0 %v3913, 16
        %v4411 = vpop.permute.xlu0 %4410
        %4412 = vrot.lane.b32.xlu0 %v3917, 16
        %v4413 = vpop.permute.xlu0 %4412
        %4414 = vrot.lane.b32.xlu0 %v3914, 16
        %v4415 = vpop.permute.xlu0 %4414
        %4416 = vrot.lane.b32.xlu0 %v3918, 16
        %v4417 = vpop.permute.xlu0 %4416
        %4418 = vrot.lane.b32.xlu0 %v3915, 16
        %v4419 = vpop.permute.xlu0 %4418
        %4420 = vrot.lane.b32.xlu0 %v3919, 16
        %v4421 = vpop.permute.xlu0 %4420
        %4422 = vrot.lane.b32.xlu0 %v3916, 16
        %v4423 = vpop.permute.xlu0 %4422
        %4424 = vrot.lane.b32.xlu0 %v3920, 16
        %v4425 = vpop.permute.xlu0 %4424
        %v4426 = vsel %vm2630, %v4419, %v4423
        %v4427 = vsel %vm2630, %v4421, %v4425
        %v4428 = vsel %vm2630, %v4415, %v4419
        %v4429 = vsel %vm2630, %v4417, %v4421
        %v4430 = vsel %vm2630, %v4411, %v4415
        %v4431 = vsel %vm2630, %v4413, %v4417
        %v4432 = vsel %vm2630, %v4423, %v4411
        %v4433 = vsel %vm2630, %v4425, %v4413
        %s4434 = scalar_lea.vmem %s14, 640
        %v4435 = vld [vmem:[%s4434] sm:$0xff]
        %v4436 = vld [vmem:[%s4434 + $0x8] sm:$0xff]
        %v4437 = vld [vmem:[%s4434 + $0x10] sm:$0xff]
        %v4438 = vld [vmem:[%s4434 + $0x18] sm:$0xff]
        %v4439 = vld [vmem:[%s4434 + $0x20] sm:$0xf]
        %v4440 = vld [vmem:[%s4434 + $0x28] sm:$0xf]
        %v4441 = vld [vmem:[%s4434 + $0x30] sm:$0xf]
        %v4442 = vld [vmem:[%s4434 + $0x38] sm:$0xf]
        %v4443 = vmul.f32 %v4432, %v4435
        %v4444 = vmul.f32 %v4430, %v4436
        %v4445 = vmul.f32 %v4428, %v4437
        %v4446 = vmul.f32 %v4426, %v4438
        %v4447 = vmul.f32 %v4433, %v4439
        %v4448 = vmul.f32 %v4431, %v4440
        %v4449 = vmul.f32 %v4429, %v4441
        %v4450 = vmul.f32 %v4427, %v4442
        %v4451 = vadd.f32 %v4402, %v4443
        %v4452 = vadd.f32 %v4403, %v4444
        %v4453 = vadd.f32 %v4404, %v4445
        %v4454 = vadd.f32 %v4405, %v4446
        %v4455 = vadd.f32 %v4406, %v4447
        %v4456 = vadd.f32 %v4407, %v4448
        %v4457 = vadd.f32 %v4408, %v4449
        %v4458 = vadd.f32 %v4409, %v4450
        %4459 = vrot.lane.b32.xlu0 %v3913, 15
        %v4460 = vpop.permute.xlu0 %4459
        %4461 = vrot.lane.b32.xlu0 %v3917, 15
        %v4462 = vpop.permute.xlu0 %4461
        %4463 = vrot.lane.b32.xlu0 %v3914, 15
        %v4464 = vpop.permute.xlu0 %4463
        %4465 = vrot.lane.b32.xlu0 %v3918, 15
        %v4466 = vpop.permute.xlu0 %4465
        %4467 = vrot.lane.b32.xlu0 %v3915, 15
        %v4468 = vpop.permute.xlu0 %4467
        %4469 = vrot.lane.b32.xlu0 %v3919, 15
        %v4470 = vpop.permute.xlu0 %4469
        %4471 = vrot.lane.b32.xlu0 %v3916, 15
        %v4472 = vpop.permute.xlu0 %4471
        %4473 = vrot.lane.b32.xlu0 %v3920, 15
        %v4474 = vpop.permute.xlu0 %4473
        %v4475 = vsel %vm2680, %v4468, %v4472
        %v4476 = vsel %vm2680, %v4470, %v4474
        %v4477 = vsel %vm2680, %v4464, %v4468
        %v4478 = vsel %vm2680, %v4466, %v4470
        %v4479 = vsel %vm2680, %v4460, %v4464
        %v4480 = vsel %vm2680, %v4462, %v4466
        %v4481 = vsel %vm2680, %v4472, %v4460
        %v4482 = vsel %vm2680, %v4474, %v4462
        %s4483 = scalar_lea.vmem %s14, 704
        %v4484 = vld [vmem:[%s4483] sm:$0xff]
        %v4485 = vld [vmem:[%s4483 + $0x8] sm:$0xff]
        %v4486 = vld [vmem:[%s4483 + $0x10] sm:$0xff]
        %v4487 = vld [vmem:[%s4483 + $0x18] sm:$0xff]
        %v4488 = vld [vmem:[%s4483 + $0x20] sm:$0xf]
        %v4489 = vld [vmem:[%s4483 + $0x28] sm:$0xf]
        %v4490 = vld [vmem:[%s4483 + $0x30] sm:$0xf]
        %v4491 = vld [vmem:[%s4483 + $0x38] sm:$0xf]
        %v4492 = vmul.f32 %v4481, %v4484
        %v4493 = vmul.f32 %v4479, %v4485
        %v4494 = vmul.f32 %v4477, %v4486
        %v4495 = vmul.f32 %v4475, %v4487
        %v4496 = vmul.f32 %v4482, %v4488
        %v4497 = vmul.f32 %v4480, %v4489
        %v4498 = vmul.f32 %v4478, %v4490
        %v4499 = vmul.f32 %v4476, %v4491
        %v4500 = vadd.f32 %v4451, %v4492
        %v4501 = vadd.f32 %v4452, %v4493
        %v4502 = vadd.f32 %v4453, %v4494
        %v4503 = vadd.f32 %v4454, %v4495
        %v4504 = vadd.f32 %v4455, %v4496
        %v4505 = vadd.f32 %v4456, %v4497
        %v4506 = vadd.f32 %v4457, %v4498
        %v4507 = vadd.f32 %v4458, %v4499
        %4508 = vrot.lane.b32.xlu0 %v3913, 14
        %v4509 = vpop.permute.xlu0 %4508
        %4510 = vrot.lane.b32.xlu0 %v3917, 14
        %v4511 = vpop.permute.xlu0 %4510
        %4512 = vrot.lane.b32.xlu0 %v3914, 14
        %v4513 = vpop.permute.xlu0 %4512
        %4514 = vrot.lane.b32.xlu0 %v3918, 14
        %v4515 = vpop.permute.xlu0 %4514
        %4516 = vrot.lane.b32.xlu0 %v3915, 14
        %v4517 = vpop.permute.xlu0 %4516
        %4518 = vrot.lane.b32.xlu0 %v3919, 14
        %v4519 = vpop.permute.xlu0 %4518
        %4520 = vrot.lane.b32.xlu0 %v3916, 14
        %v4521 = vpop.permute.xlu0 %4520
        %4522 = vrot.lane.b32.xlu0 %v3920, 14
        %v4523 = vpop.permute.xlu0 %4522
        %v4524 = vsel %vm2730, %v4517, %v4521
        %v4525 = vsel %vm2730, %v4519, %v4523
        %v4526 = vsel %vm2730, %v4513, %v4517
        %v4527 = vsel %vm2730, %v4515, %v4519
        %v4528 = vsel %vm2730, %v4509, %v4513
        %v4529 = vsel %vm2730, %v4511, %v4515
        %v4530 = vsel %vm2730, %v4521, %v4509
        %v4531 = vsel %vm2730, %v4523, %v4511
        %s4532 = scalar_lea.vmem %s14, 768
        %v4533 = vld [vmem:[%s4532] sm:$0xff]
        %v4534 = vld [vmem:[%s4532 + $0x8] sm:$0xff]
        %v4535 = vld [vmem:[%s4532 + $0x10] sm:$0xff]
        %v4536 = vld [vmem:[%s4532 + $0x18] sm:$0xff]
        %v4537 = vld [vmem:[%s4532 + $0x20] sm:$0xf]
        %v4538 = vld [vmem:[%s4532 + $0x28] sm:$0xf]
        %v4539 = vld [vmem:[%s4532 + $0x30] sm:$0xf]
        %v4540 = vld [vmem:[%s4532 + $0x38] sm:$0xf]
        %v4541 = vmul.f32 %v4530, %v4533
        %v4542 = vmul.f32 %v4528, %v4534
        %v4543 = vmul.f32 %v4526, %v4535
        %v4544 = vmul.f32 %v4524, %v4536
        %v4545 = vmul.f32 %v4531, %v4537
        %v4546 = vmul.f32 %v4529, %v4538
        %v4547 = vmul.f32 %v4527, %v4539
        %v4548 = vmul.f32 %v4525, %v4540
        %v4549 = vadd.f32 %v4500, %v4541
        %v4550 = vadd.f32 %v4501, %v4542
        %v4551 = vadd.f32 %v4502, %v4543
        %v4552 = vadd.f32 %v4503, %v4544
        %v4553 = vadd.f32 %v4504, %v4545
        %v4554 = vadd.f32 %v4505, %v4546
        %v4555 = vadd.f32 %v4506, %v4547
        %v4556 = vadd.f32 %v4507, %v4548
        %4557 = vrot.lane.b32.xlu0 %v3913, 13
        %v4558 = vpop.permute.xlu0 %4557
        %4559 = vrot.lane.b32.xlu0 %v3917, 13
        %v4560 = vpop.permute.xlu0 %4559
        %4561 = vrot.lane.b32.xlu0 %v3914, 13
        %v4562 = vpop.permute.xlu0 %4561
        %4563 = vrot.lane.b32.xlu0 %v3918, 13
        %v4564 = vpop.permute.xlu0 %4563
        %4565 = vrot.lane.b32.xlu0 %v3915, 13
        %v4566 = vpop.permute.xlu0 %4565
        %4567 = vrot.lane.b32.xlu0 %v3919, 13
        %v4568 = vpop.permute.xlu0 %4567
        %4569 = vrot.lane.b32.xlu0 %v3916, 13
        %v4570 = vpop.permute.xlu0 %4569
        %4571 = vrot.lane.b32.xlu0 %v3920, 13
        %v4572 = vpop.permute.xlu0 %4571
        %vm4573 = vcmp.lt.s32.totalorder %v1932, 13
        %v4574 = vsel %vm4573, %v4566, %v4570
        %v4575 = vsel %vm4573, %v4568, %v4572
        %v4576 = vsel %vm4573, %v4562, %v4566
        %v4577 = vsel %vm4573, %v4564, %v4568
        %v4578 = vsel %vm4573, %v4558, %v4562
        %v4579 = vsel %vm4573, %v4560, %v4564
        %v4580 = vsel %vm4573, %v4570, %v4558
        %v4581 = vsel %vm4573, %v4572, %v4560
        %s4582 = scalar_lea.vmem %s14, 832
        %v4583 = vld [vmem:[%s4582] sm:$0xff]
        %v4584 = vld [vmem:[%s4582 + $0x8] sm:$0xff]
        %v4585 = vld [vmem:[%s4582 + $0x10] sm:$0xff]
        %v4586 = vld [vmem:[%s4582 + $0x18] sm:$0xff]
        %v4587 = vld [vmem:[%s4582 + $0x20] sm:$0xf]
        %v4588 = vld [vmem:[%s4582 + $0x28] sm:$0xf]
        %v4589 = vld [vmem:[%s4582 + $0x30] sm:$0xf]
        %v4590 = vld [vmem:[%s4582 + $0x38] sm:$0xf]
        %v4591 = vmul.f32 %v4580, %v4583
        %v4592 = vmul.f32 %v4578, %v4584
        %v4593 = vmul.f32 %v4576, %v4585
        %v4594 = vmul.f32 %v4574, %v4586
        %v4595 = vmul.f32 %v4581, %v4587
        %v4596 = vmul.f32 %v4579, %v4588
        %v4597 = vmul.f32 %v4577, %v4589
        %v4598 = vmul.f32 %v4575, %v4590
        %v4599 = vadd.f32 %v4549, %v4591
        %v4600 = vadd.f32 %v4550, %v4592
        %v4601 = vadd.f32 %v4551, %v4593
        %v4602 = vadd.f32 %v4552, %v4594
        %v4603 = vadd.f32 %v4553, %v4595
        %v4604 = vadd.f32 %v4554, %v4596
        %v4605 = vadd.f32 %v4555, %v4597
        %v4606 = vadd.f32 %v4556, %v4598
        %4607 = vrot.lane.b32.xlu0 %v3913, 11
        %v4608 = vpop.permute.xlu0 %4607
        %4609 = vrot.lane.b32.xlu0 %v3917, 11
        %v4610 = vpop.permute.xlu0 %4609
        %4611 = vrot.lane.b32.xlu0 %v3914, 11
        %v4612 = vpop.permute.xlu0 %4611
        %4613 = vrot.lane.b32.xlu0 %v3918, 11
        %v4614 = vpop.permute.xlu0 %4613
        %4615 = vrot.lane.b32.xlu0 %v3915, 11
        %v4616 = vpop.permute.xlu0 %4615
        %4617 = vrot.lane.b32.xlu0 %v3919, 11
        %v4618 = vpop.permute.xlu0 %4617
        %4619 = vrot.lane.b32.xlu0 %v3916, 11
        %v4620 = vpop.permute.xlu0 %4619
        %4621 = vrot.lane.b32.xlu0 %v3920, 11
        %v4622 = vpop.permute.xlu0 %4621
        %vm4623 = vcmp.lt.s32.totalorder %v1932, 11
        %v4624 = vsel %vm4623, %v4616, %v4620
        %v4625 = vsel %vm4623, %v4618, %v4622
        %v4626 = vsel %vm4623, %v4612, %v4616
        %v4627 = vsel %vm4623, %v4614, %v4618
        %v4628 = vsel %vm4623, %v4608, %v4612
        %v4629 = vsel %vm4623, %v4610, %v4614
        %v4630 = vsel %vm4623, %v4620, %v4608
        %v4631 = vsel %vm4623, %v4622, %v4610
        %s4632 = scalar_lea.vmem %s14, 896
        %v4633 = vld [vmem:[%s4632] sm:$0xff]
        %v4634 = vld [vmem:[%s4632 + $0x8] sm:$0xff]
        %v4635 = vld [vmem:[%s4632 + $0x10] sm:$0xff]
        %v4636 = vld [vmem:[%s4632 + $0x18] sm:$0xff]
        %v4637 = vld [vmem:[%s4632 + $0x20] sm:$0xf]
        %v4638 = vld [vmem:[%s4632 + $0x28] sm:$0xf]
        %v4639 = vld [vmem:[%s4632 + $0x30] sm:$0xf]
        %v4640 = vld [vmem:[%s4632 + $0x38] sm:$0xf]
        %v4641 = vmul.f32 %v4630, %v4633
        %v4642 = vmul.f32 %v4628, %v4634
        %v4643 = vmul.f32 %v4626, %v4635
        %v4644 = vmul.f32 %v4624, %v4636
        %v4645 = vmul.f32 %v4631, %v4637
        %v4646 = vmul.f32 %v4629, %v4638
        %v4647 = vmul.f32 %v4627, %v4639
        %v4648 = vmul.f32 %v4625, %v4640
        %v4649 = vadd.f32 %v4599, %v4641
        %v4650 = vadd.f32 %v4600, %v4642
        %v4651 = vadd.f32 %v4601, %v4643
        %v4652 = vadd.f32 %v4602, %v4644
        %v4653 = vadd.f32 %v4603, %v4645
        %v4654 = vadd.f32 %v4604, %v4646
        %v4655 = vadd.f32 %v4605, %v4647
        %v4656 = vadd.f32 %v4606, %v4648
        %4657 = vrot.lane.b32.xlu0 %v3913, 10
        %v4658 = vpop.permute.xlu0 %4657
        %4659 = vrot.lane.b32.xlu0 %v3917, 10
        %v4660 = vpop.permute.xlu0 %4659
        %4661 = vrot.lane.b32.xlu0 %v3914, 10
        %v4662 = vpop.permute.xlu0 %4661
        %4663 = vrot.lane.b32.xlu0 %v3918, 10
        %v4664 = vpop.permute.xlu0 %4663
        %4665 = vrot.lane.b32.xlu0 %v3915, 10
        %v4666 = vpop.permute.xlu0 %4665
        %4667 = vrot.lane.b32.xlu0 %v3919, 10
        %v4668 = vpop.permute.xlu0 %4667
        %4669 = vrot.lane.b32.xlu0 %v3916, 10
        %v4670 = vpop.permute.xlu0 %4669
        %4671 = vrot.lane.b32.xlu0 %v3920, 10
        %v4672 = vpop.permute.xlu0 %4671
        %v4673 = vsel %vm2780, %v4666, %v4670
        %v4674 = vsel %vm2780, %v4668, %v4672
        %v4675 = vsel %vm2780, %v4662, %v4666
        %v4676 = vsel %vm2780, %v4664, %v4668
        %v4677 = vsel %vm2780, %v4658, %v4662
        %v4678 = vsel %vm2780, %v4660, %v4664
        %v4679 = vsel %vm2780, %v4670, %v4658
        %v4680 = vsel %vm2780, %v4672, %v4660
        %s4681 = scalar_lea.vmem %s14, 960
        %v4682 = vld [vmem:[%s4681] sm:$0xff]
        %v4683 = vld [vmem:[%s4681 + $0x8] sm:$0xff]
        %v4684 = vld [vmem:[%s4681 + $0x10] sm:$0xff]
        %v4685 = vld [vmem:[%s4681 + $0x18] sm:$0xff]
        %v4686 = vld [vmem:[%s4681 + $0x20] sm:$0xf]
        %v4687 = vld [vmem:[%s4681 + $0x28] sm:$0xf]
        %v4688 = vld [vmem:[%s4681 + $0x30] sm:$0xf]
        %v4689 = vld [vmem:[%s4681 + $0x38] sm:$0xf]
        %v4690 = vmul.f32 %v4679, %v4682
        %v4691 = vmul.f32 %v4677, %v4683
        %v4692 = vmul.f32 %v4675, %v4684
        %v4693 = vmul.f32 %v4673, %v4685
        %v4694 = vmul.f32 %v4680, %v4686
        %v4695 = vmul.f32 %v4678, %v4687
        %v4696 = vmul.f32 %v4676, %v4688
        %v4697 = vmul.f32 %v4674, %v4689
        %v4698 = vadd.f32 %v4649, %v4690
        %v4699 = vadd.f32 %v4650, %v4691
        %v4700 = vadd.f32 %v4651, %v4692
        %v4701 = vadd.f32 %v4652, %v4693
        %v4702 = vadd.f32 %v4653, %v4694
        %v4703 = vadd.f32 %v4654, %v4695
        %v4704 = vadd.f32 %v4655, %v4696
        %v4705 = vadd.f32 %v4656, %v4697
        %4706 = vrot.lane.b32.xlu0 %v3913, 9
        %v4707 = vpop.permute.xlu0 %4706
        %4708 = vrot.lane.b32.xlu0 %v3917, 9
        %v4709 = vpop.permute.xlu0 %4708
        %4710 = vrot.lane.b32.xlu0 %v3914, 9
        %v4711 = vpop.permute.xlu0 %4710
        %4712 = vrot.lane.b32.xlu0 %v3918, 9
        %v4713 = vpop.permute.xlu0 %4712
        %4714 = vrot.lane.b32.xlu0 %v3915, 9
        %v4715 = vpop.permute.xlu0 %4714
        %4716 = vrot.lane.b32.xlu0 %v3919, 9
        %v4717 = vpop.permute.xlu0 %4716
        %4718 = vrot.lane.b32.xlu0 %v3916, 9
        %v4719 = vpop.permute.xlu0 %4718
        %4720 = vrot.lane.b32.xlu0 %v3920, 9
        %v4721 = vpop.permute.xlu0 %4720
        %v4722 = vsel %vm1933, %v4715, %v4719
        %v4723 = vsel %vm1933, %v4717, %v4721
        %v4724 = vsel %vm1933, %v4711, %v4715
        %v4725 = vsel %vm1933, %v4713, %v4717
        %v4726 = vsel %vm1933, %v4707, %v4711
        %v4727 = vsel %vm1933, %v4709, %v4713
        %v4728 = vsel %vm1933, %v4719, %v4707
        %v4729 = vsel %vm1933, %v4721, %v4709
        %s4730 = scalar_lea.vmem %s14, 1024
        %v4731 = vld [vmem:[%s4730] sm:$0xff]
        %v4732 = vld [vmem:[%s4730 + $0x8] sm:$0xff]
        %v4733 = vld [vmem:[%s4730 + $0x10] sm:$0xff]
        %v4734 = vld [vmem:[%s4730 + $0x18] sm:$0xff]
        %v4735 = vld [vmem:[%s4730 + $0x20] sm:$0xf]
        %v4736 = vld [vmem:[%s4730 + $0x28] sm:$0xf]
        %v4737 = vld [vmem:[%s4730 + $0x30] sm:$0xf]
        %v4738 = vld [vmem:[%s4730 + $0x38] sm:$0xf]
        %v4739 = vmul.f32 %v4728, %v4731
        %v4740 = vmul.f32 %v4726, %v4732
        %v4741 = vmul.f32 %v4724, %v4733
        %v4742 = vmul.f32 %v4722, %v4734
        %v4743 = vmul.f32 %v4729, %v4735
        %v4744 = vmul.f32 %v4727, %v4736
        %v4745 = vmul.f32 %v4725, %v4737
        %v4746 = vmul.f32 %v4723, %v4738
        %v4747 = vadd.f32 %v4698, %v4739
        %v4748 = vadd.f32 %v4699, %v4740
        %v4749 = vadd.f32 %v4700, %v4741
        %v4750 = vadd.f32 %v4701, %v4742
        %v4751 = vadd.f32 %v4702, %v4743
        %v4752 = vadd.f32 %v4703, %v4744
        %v4753 = vadd.f32 %v4704, %v4745
        %v4754 = vadd.f32 %v4705, %v4746
        %4755 = vrot.lane.b32.xlu0 %v3913, 8
        %v4756 = vpop.permute.xlu0 %4755
        %4757 = vrot.lane.b32.xlu0 %v3917, 8
        %v4758 = vpop.permute.xlu0 %4757
        %4759 = vrot.lane.b32.xlu0 %v3914, 8
        %v4760 = vpop.permute.xlu0 %4759
        %4761 = vrot.lane.b32.xlu0 %v3918, 8
        %v4762 = vpop.permute.xlu0 %4761
        %4763 = vrot.lane.b32.xlu0 %v3915, 8
        %v4764 = vpop.permute.xlu0 %4763
        %4765 = vrot.lane.b32.xlu0 %v3919, 8
        %v4766 = vpop.permute.xlu0 %4765
        %4767 = vrot.lane.b32.xlu0 %v3916, 8
        %v4768 = vpop.permute.xlu0 %4767
        %4769 = vrot.lane.b32.xlu0 %v3920, 8
        %v4770 = vpop.permute.xlu0 %4769
        %v4771 = vsel %vm1974, %v4764, %v4768
        %v4772 = vsel %vm1974, %v4766, %v4770
        %v4773 = vsel %vm1974, %v4760, %v4764
        %v4774 = vsel %vm1974, %v4762, %v4766
        %v4775 = vsel %vm1974, %v4756, %v4760
        %v4776 = vsel %vm1974, %v4758, %v4762
        %v4777 = vsel %vm1974, %v4768, %v4756
        %v4778 = vsel %vm1974, %v4770, %v4758
        %s4779 = scalar_lea.vmem %s14, 1088
        %v4780 = vld [vmem:[%s4779] sm:$0xff]
        %v4781 = vld [vmem:[%s4779 + $0x8] sm:$0xff]
        %v4782 = vld [vmem:[%s4779 + $0x10] sm:$0xff]
        %v4783 = vld [vmem:[%s4779 + $0x18] sm:$0xff]
        %v4784 = vld [vmem:[%s4779 + $0x20] sm:$0xf]
        %v4785 = vld [vmem:[%s4779 + $0x28] sm:$0xf]
        %v4786 = vld [vmem:[%s4779 + $0x30] sm:$0xf]
        %v4787 = vld [vmem:[%s4779 + $0x38] sm:$0xf]
        %v4788 = vmul.f32 %v4777, %v4780
        %v4789 = vmul.f32 %v4775, %v4781
        %v4790 = vmul.f32 %v4773, %v4782
        %v4791 = vmul.f32 %v4771, %v4783
        %v4792 = vmul.f32 %v4778, %v4784
        %v4793 = vmul.f32 %v4776, %v4785
        %v4794 = vmul.f32 %v4774, %v4786
        %v4795 = vmul.f32 %v4772, %v4787
        %v4796 = vadd.f32 %v4747, %v4788
        %v4797 = vadd.f32 %v4748, %v4789
        %v4798 = vadd.f32 %v4749, %v4790
        %v4799 = vadd.f32 %v4750, %v4791
        %v4800 = vadd.f32 %v4751, %v4792
        %v4801 = vadd.f32 %v4752, %v4793
        %v4802 = vadd.f32 %v4753, %v4794
        %v4803 = vadd.f32 %v4754, %v4795
        %4804 = vrot.lane.b32.xlu0 %v3913, 7
        %v4805 = vpop.permute.xlu0 %4804
        %4806 = vrot.lane.b32.xlu0 %v3917, 7
        %v4807 = vpop.permute.xlu0 %4806
        %4808 = vrot.lane.b32.xlu0 %v3914, 7
        %v4809 = vpop.permute.xlu0 %4808
        %4810 = vrot.lane.b32.xlu0 %v3918, 7
        %v4811 = vpop.permute.xlu0 %4810
        %4812 = vrot.lane.b32.xlu0 %v3915, 7
        %v4813 = vpop.permute.xlu0 %4812
        %4814 = vrot.lane.b32.xlu0 %v3919, 7
        %v4815 = vpop.permute.xlu0 %4814
        %4816 = vrot.lane.b32.xlu0 %v3916, 7
        %v4817 = vpop.permute.xlu0 %4816
        %4818 = vrot.lane.b32.xlu0 %v3920, 7
        %v4819 = vpop.permute.xlu0 %4818
        %v4820 = vsel %vm2024, %v4813, %v4817
        %v4821 = vsel %vm2024, %v4815, %v4819
        %v4822 = vsel %vm2024, %v4809, %v4813
        %v4823 = vsel %vm2024, %v4811, %v4815
        %v4824 = vsel %vm2024, %v4805, %v4809
        %v4825 = vsel %vm2024, %v4807, %v4811
        %v4826 = vsel %vm2024, %v4817, %v4805
        %v4827 = vsel %vm2024, %v4819, %v4807
        %s4828 = scalar_lea.vmem %s14, 1152
        %v4829 = vld [vmem:[%s4828] sm:$0xff]
        %v4830 = vld [vmem:[%s4828 + $0x8] sm:$0xff]
        %v4831 = vld [vmem:[%s4828 + $0x10] sm:$0xff]
        %v4832 = vld [vmem:[%s4828 + $0x18] sm:$0xff]
        %v4833 = vld [vmem:[%s4828 + $0x20] sm:$0xf]
        %v4834 = vld [vmem:[%s4828 + $0x28] sm:$0xf]
        %v4835 = vld [vmem:[%s4828 + $0x30] sm:$0xf]
        %v4836 = vld [vmem:[%s4828 + $0x38] sm:$0xf]
        %v4837 = vmul.f32 %v4826, %v4829
        %v4838 = vmul.f32 %v4824, %v4830
        %v4839 = vmul.f32 %v4822, %v4831
        %v4840 = vmul.f32 %v4820, %v4832
        %v4841 = vmul.f32 %v4827, %v4833
        %v4842 = vmul.f32 %v4825, %v4834
        %v4843 = vmul.f32 %v4823, %v4835
        %v4844 = vmul.f32 %v4821, %v4836
        %v4845 = vadd.f32 %v4796, %v4837
        %v4846 = vadd.f32 %v4797, %v4838
        %v4847 = vadd.f32 %v4798, %v4839
        %v4848 = vadd.f32 %v4799, %v4840
        %v4849 = vadd.f32 %v4800, %v4841
        %v4850 = vadd.f32 %v4801, %v4842
        %v4851 = vadd.f32 %v4802, %v4843
        %v4852 = vadd.f32 %v4803, %v4844
        %4853 = vrot.lane.b32.xlu0 %v3913, 6
        %v4854 = vpop.permute.xlu0 %4853
        %4855 = vrot.lane.b32.xlu0 %v3917, 6
        %v4856 = vpop.permute.xlu0 %4855
        %4857 = vrot.lane.b32.xlu0 %v3914, 6
        %v4858 = vpop.permute.xlu0 %4857
        %4859 = vrot.lane.b32.xlu0 %v3918, 6
        %v4860 = vpop.permute.xlu0 %4859
        %4861 = vrot.lane.b32.xlu0 %v3915, 6
        %v4862 = vpop.permute.xlu0 %4861
        %4863 = vrot.lane.b32.xlu0 %v3919, 6
        %v4864 = vpop.permute.xlu0 %4863
        %4865 = vrot.lane.b32.xlu0 %v3916, 6
        %v4866 = vpop.permute.xlu0 %4865
        %4867 = vrot.lane.b32.xlu0 %v3920, 6
        %v4868 = vpop.permute.xlu0 %4867
        %v4869 = vsel %vm2977, %v4862, %v4866
        %v4870 = vsel %vm2977, %v4864, %v4868
        %v4871 = vsel %vm2977, %v4858, %v4862
        %v4872 = vsel %vm2977, %v4860, %v4864
        %v4873 = vsel %vm2977, %v4854, %v4858
        %v4874 = vsel %vm2977, %v4856, %v4860
        %v4875 = vsel %vm2977, %v4866, %v4854
        %v4876 = vsel %vm2977, %v4868, %v4856
        %s4877 = scalar_lea.vmem %s14, 1216
        %v4878 = vld [vmem:[%s4877] sm:$0xff]
        %v4879 = vld [vmem:[%s4877 + $0x8] sm:$0xff]
        %v4880 = vld [vmem:[%s4877 + $0x10] sm:$0xff]
        %v4881 = vld [vmem:[%s4877 + $0x18] sm:$0xff]
        %v4882 = vld [vmem:[%s4877 + $0x20] sm:$0xf]
        %v4883 = vld [vmem:[%s4877 + $0x28] sm:$0xf]
        %v4884 = vld [vmem:[%s4877 + $0x30] sm:$0xf]
        %v4885 = vld [vmem:[%s4877 + $0x38] sm:$0xf]
        %v4886 = vmul.f32 %v4875, %v4878
        %v4887 = vmul.f32 %v4873, %v4879
        %v4888 = vmul.f32 %v4871, %v4880
        %v4889 = vmul.f32 %v4869, %v4881
        %v4890 = vmul.f32 %v4876, %v4882
        %v4891 = vmul.f32 %v4874, %v4883
        %v4892 = vmul.f32 %v4872, %v4884
        %v4893 = vmul.f32 %v4870, %v4885
        %v4894 = vadd.f32 %v4845, %v4886
        %v4895 = vadd.f32 %v4846, %v4887
        %v4896 = vadd.f32 %v4847, %v4888
        %v4897 = vadd.f32 %v4848, %v4889
        %v4898 = vadd.f32 %v4849, %v4890
        %v4899 = vadd.f32 %v4850, %v4891
        %v4900 = vadd.f32 %v4851, %v4892
        %v4901 = vadd.f32 %v4852, %v4893
        %4902 = vrot.lane.b32.xlu0 %v3913, 5
        %v4903 = vpop.permute.xlu0 %4902
        %4904 = vrot.lane.b32.xlu0 %v3917, 5
        %v4905 = vpop.permute.xlu0 %4904
        %4906 = vrot.lane.b32.xlu0 %v3914, 5
        %v4907 = vpop.permute.xlu0 %4906
        %4908 = vrot.lane.b32.xlu0 %v3918, 5
        %v4909 = vpop.permute.xlu0 %4908
        %4910 = vrot.lane.b32.xlu0 %v3915, 5
        %v4911 = vpop.permute.xlu0 %4910
        %4912 = vrot.lane.b32.xlu0 %v3919, 5
        %v4913 = vpop.permute.xlu0 %4912
        %4914 = vrot.lane.b32.xlu0 %v3916, 5
        %v4915 = vpop.permute.xlu0 %4914
        %4916 = vrot.lane.b32.xlu0 %v3920, 5
        %v4917 = vpop.permute.xlu0 %4916
        %vm4918 = vcmp.lt.s32.totalorder %v1932, 5
        %v4919 = vsel %vm4918, %v4911, %v4915
        %v4920 = vsel %vm4918, %v4913, %v4917
        %v4921 = vsel %vm4918, %v4907, %v4911
        %v4922 = vsel %vm4918, %v4909, %v4913
        %v4923 = vsel %vm4918, %v4903, %v4907
        %v4924 = vsel %vm4918, %v4905, %v4909
        %v4925 = vsel %vm4918, %v4915, %v4903
        %v4926 = vsel %vm4918, %v4917, %v4905
        %s4927 = scalar_lea.vmem %s14, 1280
        %v4928 = vld [vmem:[%s4927] sm:$0xff]
        %v4929 = vld [vmem:[%s4927 + $0x8] sm:$0xff]
        %v4930 = vld [vmem:[%s4927 + $0x10] sm:$0xff]
        %v4931 = vld [vmem:[%s4927 + $0x18] sm:$0xff]
        %v4932 = vld [vmem:[%s4927 + $0x20] sm:$0xf]
        %v4933 = vld [vmem:[%s4927 + $0x28] sm:$0xf]
        %v4934 = vld [vmem:[%s4927 + $0x30] sm:$0xf]
        %v4935 = vld [vmem:[%s4927 + $0x38] sm:$0xf]
        %v4936 = vmul.f32 %v4925, %v4928
        %v4937 = vmul.f32 %v4923, %v4929
        %v4938 = vmul.f32 %v4921, %v4930
        %v4939 = vmul.f32 %v4919, %v4931
        %v4940 = vmul.f32 %v4926, %v4932
        %v4941 = vmul.f32 %v4924, %v4933
        %v4942 = vmul.f32 %v4922, %v4934
        %v4943 = vmul.f32 %v4920, %v4935
        %v4944 = vadd.f32 %v4894, %v4936
        %v4945 = vadd.f32 %v4895, %v4937
        %v4946 = vadd.f32 %v4896, %v4938
        %v4947 = vadd.f32 %v4897, %v4939
        %v4948 = vadd.f32 %v4898, %v4940
        %v4949 = vadd.f32 %v4899, %v4941
        %v4950 = vadd.f32 %v4900, %v4942
        %v4951 = vadd.f32 %v4901, %v4943
        %4952 = vrot.lane.b32.xlu0 %v3913, 3
        %v4953 = vpop.permute.xlu0 %4952
        %4954 = vrot.lane.b32.xlu0 %v3917, 3
        %v4955 = vpop.permute.xlu0 %4954
        %4956 = vrot.lane.b32.xlu0 %v3914, 3
        %v4957 = vpop.permute.xlu0 %4956
        %4958 = vrot.lane.b32.xlu0 %v3918, 3
        %v4959 = vpop.permute.xlu0 %4958
        %4960 = vrot.lane.b32.xlu0 %v3915, 3
        %v4961 = vpop.permute.xlu0 %4960
        %4962 = vrot.lane.b32.xlu0 %v3919, 3
        %v4963 = vpop.permute.xlu0 %4962
        %4964 = vrot.lane.b32.xlu0 %v3916, 3
        %v4965 = vpop.permute.xlu0 %4964
        %4966 = vrot.lane.b32.xlu0 %v3920, 3
        %v4967 = vpop.permute.xlu0 %4966
        %vm4968 = vcmp.lt.s32.totalorder %v1932, 3
        %v4969 = vsel %vm4968, %v4961, %v4965
        %v4970 = vsel %vm4968, %v4963, %v4967
        %v4971 = vsel %vm4968, %v4957, %v4961
        %v4972 = vsel %vm4968, %v4959, %v4963
        %v4973 = vsel %vm4968, %v4953, %v4957
        %v4974 = vsel %vm4968, %v4955, %v4959
        %v4975 = vsel %vm4968, %v4965, %v4953
        %v4976 = vsel %vm4968, %v4967, %v4955
        %s4977 = scalar_lea.vmem %s14, 1344
        %v4978 = vld [vmem:[%s4977] sm:$0xff]
        %v4979 = vld [vmem:[%s4977 + $0x8] sm:$0xff]
        %v4980 = vld [vmem:[%s4977 + $0x10] sm:$0xff]
        %v4981 = vld [vmem:[%s4977 + $0x18] sm:$0xff]
        %v4982 = vld [vmem:[%s4977 + $0x20] sm:$0xf]
        %v4983 = vld [vmem:[%s4977 + $0x28] sm:$0xf]
        %v4984 = vld [vmem:[%s4977 + $0x30] sm:$0xf]
        %v4985 = vld [vmem:[%s4977 + $0x38] sm:$0xf]
        %v4986 = vmul.f32 %v4975, %v4978
        %v4987 = vmul.f32 %v4973, %v4979
        %v4988 = vmul.f32 %v4971, %v4980
        %v4989 = vmul.f32 %v4969, %v4981
        %v4990 = vmul.f32 %v4976, %v4982
        %v4991 = vmul.f32 %v4974, %v4983
        %v4992 = vmul.f32 %v4972, %v4984
        %v4993 = vmul.f32 %v4970, %v4985
        %v4994 = vadd.f32 %v4944, %v4986
        %v4995 = vadd.f32 %v4945, %v4987
        %v4996 = vadd.f32 %v4946, %v4988
        %v4997 = vadd.f32 %v4947, %v4989
        %v4998 = vadd.f32 %v4948, %v4990
        %v4999 = vadd.f32 %v4949, %v4991
        %v5000 = vadd.f32 %v4950, %v4992
        %v5001 = vadd.f32 %v4951, %v4993
        %5002 = vrot.lane.b32.xlu0 %v3913, 2
        %v5003 = vpop.permute.xlu0 %5002
        %5004 = vrot.lane.b32.xlu0 %v3917, 2
        %v5005 = vpop.permute.xlu0 %5004
        %5006 = vrot.lane.b32.xlu0 %v3914, 2
        %v5007 = vpop.permute.xlu0 %5006
        %5008 = vrot.lane.b32.xlu0 %v3918, 2
        %v5009 = vpop.permute.xlu0 %5008
        %5010 = vrot.lane.b32.xlu0 %v3915, 2
        %v5011 = vpop.permute.xlu0 %5010
        %5012 = vrot.lane.b32.xlu0 %v3919, 2
        %v5013 = vpop.permute.xlu0 %5012
        %5014 = vrot.lane.b32.xlu0 %v3916, 2
        %v5015 = vpop.permute.xlu0 %5014
        %5016 = vrot.lane.b32.xlu0 %v3920, 2
        %v5017 = vpop.permute.xlu0 %5016
        %v5018 = vsel %vm3027, %v5011, %v5015
        %v5019 = vsel %vm3027, %v5013, %v5017
        %v5020 = vsel %vm3027, %v5007, %v5011
        %v5021 = vsel %vm3027, %v5009, %v5013
        %v5022 = vsel %vm3027, %v5003, %v5007
        %v5023 = vsel %vm3027, %v5005, %v5009
        %v5024 = vsel %vm3027, %v5015, %v5003
        %v5025 = vsel %vm3027, %v5017, %v5005
        %s5026 = scalar_lea.vmem %s14, 1408
        %v5027 = vld [vmem:[%s5026] sm:$0xff]
        %v5028 = vld [vmem:[%s5026 + $0x8] sm:$0xff]
        %v5029 = vld [vmem:[%s5026 + $0x10] sm:$0xff]
        %v5030 = vld [vmem:[%s5026 + $0x18] sm:$0xff]
        %v5031 = vld [vmem:[%s5026 + $0x20] sm:$0xf]
        %v5032 = vld [vmem:[%s5026 + $0x28] sm:$0xf]
        %v5033 = vld [vmem:[%s5026 + $0x30] sm:$0xf]
        %v5034 = vld [vmem:[%s5026 + $0x38] sm:$0xf]
        %v5035 = vmul.f32 %v5024, %v5027
        %v5036 = vmul.f32 %v5022, %v5028
        %v5037 = vmul.f32 %v5020, %v5029
        %v5038 = vmul.f32 %v5018, %v5030
        %v5039 = vmul.f32 %v5025, %v5031
        %v5040 = vmul.f32 %v5023, %v5032
        %v5041 = vmul.f32 %v5021, %v5033
        %v5042 = vmul.f32 %v5019, %v5034
        %v5043 = vadd.f32 %v4994, %v5035
        %v5044 = vadd.f32 %v4995, %v5036
        %v5045 = vadd.f32 %v4996, %v5037
        %v5046 = vadd.f32 %v4997, %v5038
        %v5047 = vadd.f32 %v4998, %v5039
        %v5048 = vadd.f32 %v4999, %v5040
        %v5049 = vadd.f32 %v5000, %v5041
        %v5050 = vadd.f32 %v5001, %v5042
        %5051 = vrot.lane.b32.xlu0 %v3913, 1
        %v5052 = vpop.permute.xlu0 %5051
        %5053 = vrot.lane.b32.xlu0 %v3917, 1
        %v5054 = vpop.permute.xlu0 %5053
        %5055 = vrot.lane.b32.xlu0 %v3914, 1
        %v5056 = vpop.permute.xlu0 %5055
        %5057 = vrot.lane.b32.xlu0 %v3918, 1
        %v5058 = vpop.permute.xlu0 %5057
        %5059 = vrot.lane.b32.xlu0 %v3915, 1
        %v5060 = vpop.permute.xlu0 %5059
        %5061 = vrot.lane.b32.xlu0 %v3919, 1
        %v5062 = vpop.permute.xlu0 %5061
        %5063 = vrot.lane.b32.xlu0 %v3916, 1
        %v5064 = vpop.permute.xlu0 %5063
        %5065 = vrot.lane.b32.xlu0 %v3920, 1
        %v5066 = vpop.permute.xlu0 %5065
        %v5067 = vsel %vm2074, %v5060, %v5064
        %v5068 = vsel %vm2074, %v5062, %v5066
        %v5069 = vsel %vm2074, %v5056, %v5060
        %v5070 = vsel %vm2074, %v5058, %v5062
        %v5071 = vsel %vm2074, %v5052, %v5056
        %v5072 = vsel %vm2074, %v5054, %v5058
        %v5073 = vsel %vm2074, %v5064, %v5052
        %v5074 = vsel %vm2074, %v5066, %v5054
        %s5075 = scalar_lea.vmem %s14, 1472
        %v5076 = vld [vmem:[%s5075] sm:$0xff]
        %v5077 = vld [vmem:[%s5075 + $0x8] sm:$0xff]
        %v5078 = vld [vmem:[%s5075 + $0x10] sm:$0xff]
        %v5079 = vld [vmem:[%s5075 + $0x18] sm:$0xff]
        %v5080 = vld [vmem:[%s5075 + $0x20] sm:$0xf]
        %v5081 = vld [vmem:[%s5075 + $0x28] sm:$0xf]
        %v5082 = vld [vmem:[%s5075 + $0x30] sm:$0xf]
        %v5083 = vld [vmem:[%s5075 + $0x38] sm:$0xf]
        %v5084 = vmul.f32 %v5073, %v5076
        %v5085 = vmul.f32 %v5071, %v5077
        %v5086 = vmul.f32 %v5069, %v5078
        %v5087 = vmul.f32 %v5067, %v5079
        %v5088 = vmul.f32 %v5074, %v5080
        %v5089 = vmul.f32 %v5072, %v5081
        %v5090 = vmul.f32 %v5070, %v5082
        %v5091 = vmul.f32 %v5068, %v5083
        %v5092 = vadd.f32 %v5043, %v5084
        %v5093 = vadd.f32 %v5044, %v5085
        %v5094 = vadd.f32 %v5045, %v5086
        %v5095 = vadd.f32 %v5046, %v5087
        %v5096 = vadd.f32 %v5047, %v5088
        %v5097 = vadd.f32 %v5048, %v5089
        %v5098 = vadd.f32 %v5049, %v5090
        %v5099 = vadd.f32 %v5050, %v5091
        %s5100 = scalar_lea.vmem %s14, 1536
        %v5101 = vld [vmem:[%s5100] sm:$0xff]
        %v5102 = vld [vmem:[%s5100 + $0x8] sm:$0xff]
        %v5103 = vld [vmem:[%s5100 + $0x10] sm:$0xff]
        %v5104 = vld [vmem:[%s5100 + $0x18] sm:$0xff]
        %v5105 = vld [vmem:[%s5100 + $0x20] sm:$0xf]
        %v5106 = vld [vmem:[%s5100 + $0x28] sm:$0xf]
        %v5107 = vld [vmem:[%s5100 + $0x30] sm:$0xf]
        %v5108 = vld [vmem:[%s5100 + $0x38] sm:$0xf]
        %v5109 = vmul.f32 %v3913, %v5101
        %v5110 = vmul.f32 %v3914, %v5102
        %v5111 = vmul.f32 %v3915, %v5103
        %v5112 = vmul.f32 %v3916, %v5104
        %v5113 = vmul.f32 %v3917, %v5105
        %v5114 = vmul.f32 %v3918, %v5106
        %v5115 = vmul.f32 %v3919, %v5107
        %v5116 = vmul.f32 %v3920, %v5108
        %v5117 = vadd.f32 %v5092, %v5109
        %v5118 = vadd.f32 %v5093, %v5110
        %v5119 = vadd.f32 %v5094, %v5111
        %v5120 = vadd.f32 %v5095, %v5112
        %v5121 = vadd.f32 %v5096, %v5113
        %v5122 = vadd.f32 %v5097, %v5114
        %v5123 = vadd.f32 %v5098, %v5115
        %v5124 = vadd.f32 %v5099, %v5116
        %5125 = vrot.lane.b32.xlu0 %v3913, 127
        %v5126 = vpop.permute.xlu0 %5125
        %5127 = vrot.lane.b32.xlu0 %v3917, 127
        %v5128 = vpop.permute.xlu0 %5127
        %5129 = vrot.lane.b32.xlu0 %v3914, 127
        %v5130 = vpop.permute.xlu0 %5129
        %5131 = vrot.lane.b32.xlu0 %v3918, 127
        %v5132 = vpop.permute.xlu0 %5131
        %5133 = vrot.lane.b32.xlu0 %v3915, 127
        %v5134 = vpop.permute.xlu0 %5133
        %5135 = vrot.lane.b32.xlu0 %v3919, 127
        %v5136 = vpop.permute.xlu0 %5135
        %5137 = vrot.lane.b32.xlu0 %v3916, 127
        %v5138 = vpop.permute.xlu0 %5137
        %5139 = vrot.lane.b32.xlu0 %v3920, 127
        %v5140 = vpop.permute.xlu0 %5139
        %v5141 = vsel %vm2149, %v5134, %v5138
        %v5142 = vsel %vm2149, %v5136, %v5140
        %v5143 = vsel %vm2149, %v5130, %v5134
        %v5144 = vsel %vm2149, %v5132, %v5136
        %v5145 = vsel %vm2149, %v5126, %v5130
        %v5146 = vsel %vm2149, %v5128, %v5132
        %v5147 = vsel %vm2149, %v5138, %v5126
        %v5148 = vsel %vm2149, %v5140, %v5128
        %s5149 = scalar_lea.vmem %s14, 1600
        %v5150 = vld [vmem:[%s5149] sm:$0xff]
        %v5151 = vld [vmem:[%s5149 + $0x8] sm:$0xff]
        %v5152 = vld [vmem:[%s5149 + $0x10] sm:$0xff]
        %v5153 = vld [vmem:[%s5149 + $0x18] sm:$0xff]
        %v5154 = vld [vmem:[%s5149 + $0x20] sm:$0xf]
        %v5155 = vld [vmem:[%s5149 + $0x28] sm:$0xf]
        %v5156 = vld [vmem:[%s5149 + $0x30] sm:$0xf]
        %v5157 = vld [vmem:[%s5149 + $0x38] sm:$0xf]
        %v5158 = vmul.f32 %v5145, %v5150
        %v5159 = vmul.f32 %v5143, %v5151
        %v5160 = vmul.f32 %v5141, %v5152
        %v5161 = vmul.f32 %v5147, %v5153
        %v5162 = vmul.f32 %v5146, %v5154
        %v5163 = vmul.f32 %v5144, %v5155
        %v5164 = vmul.f32 %v5142, %v5156
        %v5165 = vmul.f32 %v5148, %v5157
        %v5166 = vadd.f32 %v5117, %v5158
        %v5167 = vadd.f32 %v5118, %v5159
        %v5168 = vadd.f32 %v5119, %v5160
        %v5169 = vadd.f32 %v5120, %v5161
        %v5170 = vadd.f32 %v5121, %v5162
        %v5171 = vadd.f32 %v5122, %v5163
        %v5172 = vadd.f32 %v5123, %v5164
        %v5173 = vadd.f32 %v5124, %v5165
        %5174 = vrot.lane.b32.xlu0 %v3913, 126
        %v5175 = vpop.permute.xlu0 %5174
        %5176 = vrot.lane.b32.xlu0 %v3917, 126
        %v5177 = vpop.permute.xlu0 %5176
        %5178 = vrot.lane.b32.xlu0 %v3914, 126
        %v5179 = vpop.permute.xlu0 %5178
        %5180 = vrot.lane.b32.xlu0 %v3918, 126
        %v5181 = vpop.permute.xlu0 %5180
        %5182 = vrot.lane.b32.xlu0 %v3915, 126
        %v5183 = vpop.permute.xlu0 %5182
        %5184 = vrot.lane.b32.xlu0 %v3919, 126
        %v5185 = vpop.permute.xlu0 %5184
        %5186 = vrot.lane.b32.xlu0 %v3916, 126
        %v5187 = vpop.permute.xlu0 %5186
        %5188 = vrot.lane.b32.xlu0 %v3920, 126
        %v5189 = vpop.permute.xlu0 %5188
        %v5190 = vsel %vm3200, %v5183, %v5187
        %v5191 = vsel %vm3200, %v5185, %v5189
        %v5192 = vsel %vm3200, %v5179, %v5183
        %v5193 = vsel %vm3200, %v5181, %v5185
        %v5194 = vsel %vm3200, %v5175, %v5179
        %v5195 = vsel %vm3200, %v5177, %v5181
        %v5196 = vsel %vm3200, %v5187, %v5175
        %v5197 = vsel %vm3200, %v5189, %v5177
        %s5198 = scalar_lea.vmem %s14, 1664
        %v5199 = vld [vmem:[%s5198] sm:$0xff]
        %v5200 = vld [vmem:[%s5198 + $0x8] sm:$0xff]
        %v5201 = vld [vmem:[%s5198 + $0x10] sm:$0xff]
        %v5202 = vld [vmem:[%s5198 + $0x18] sm:$0xff]
        %v5203 = vld [vmem:[%s5198 + $0x20] sm:$0xf]
        %v5204 = vld [vmem:[%s5198 + $0x28] sm:$0xf]
        %v5205 = vld [vmem:[%s5198 + $0x30] sm:$0xf]
        %v5206 = vld [vmem:[%s5198 + $0x38] sm:$0xf]
        %v5207 = vmul.f32 %v5194, %v5199
        %v5208 = vmul.f32 %v5192, %v5200
        %v5209 = vmul.f32 %v5190, %v5201
        %v5210 = vmul.f32 %v5196, %v5202
        %v5211 = vmul.f32 %v5195, %v5203
        %v5212 = vmul.f32 %v5193, %v5204
        %v5213 = vmul.f32 %v5191, %v5205
        %v5214 = vmul.f32 %v5197, %v5206
        %v5215 = vadd.f32 %v5166, %v5207
        %v5216 = vadd.f32 %v5167, %v5208
        %v5217 = vadd.f32 %v5168, %v5209
        %v5218 = vadd.f32 %v5169, %v5210
        %v5219 = vadd.f32 %v5170, %v5211
        %v5220 = vadd.f32 %v5171, %v5212
        %v5221 = vadd.f32 %v5172, %v5213
        %v5222 = vadd.f32 %v5173, %v5214
        %5223 = vrot.lane.b32.xlu0 %v3913, 125
        %v5224 = vpop.permute.xlu0 %5223
        %5225 = vrot.lane.b32.xlu0 %v3917, 125
        %v5226 = vpop.permute.xlu0 %5225
        %5227 = vrot.lane.b32.xlu0 %v3914, 125
        %v5228 = vpop.permute.xlu0 %5227
        %5229 = vrot.lane.b32.xlu0 %v3918, 125
        %v5230 = vpop.permute.xlu0 %5229
        %5231 = vrot.lane.b32.xlu0 %v3915, 125
        %v5232 = vpop.permute.xlu0 %5231
        %5233 = vrot.lane.b32.xlu0 %v3919, 125
        %v5234 = vpop.permute.xlu0 %5233
        %5235 = vrot.lane.b32.xlu0 %v3916, 125
        %v5236 = vpop.permute.xlu0 %5235
        %5237 = vrot.lane.b32.xlu0 %v3920, 125
        %v5238 = vpop.permute.xlu0 %5237
        %vm5239 = vcmp.lt.s32.totalorder %v1932, 125
        %v5240 = vsel %vm5239, %v5232, %v5236
        %v5241 = vsel %vm5239, %v5234, %v5238
        %v5242 = vsel %vm5239, %v5228, %v5232
        %v5243 = vsel %vm5239, %v5230, %v5234
        %v5244 = vsel %vm5239, %v5224, %v5228
        %v5245 = vsel %vm5239, %v5226, %v5230
        %v5246 = vsel %vm5239, %v5236, %v5224
        %v5247 = vsel %vm5239, %v5238, %v5226
        %s5248 = scalar_lea.vmem %s14, 1728
        %v5249 = vld [vmem:[%s5248] sm:$0xff]
        %v5250 = vld [vmem:[%s5248 + $0x8] sm:$0xff]
        %v5251 = vld [vmem:[%s5248 + $0x10] sm:$0xff]
        %v5252 = vld [vmem:[%s5248 + $0x18] sm:$0xff]
        %v5253 = vld [vmem:[%s5248 + $0x20] sm:$0xf]
        %v5254 = vld [vmem:[%s5248 + $0x28] sm:$0xf]
        %v5255 = vld [vmem:[%s5248 + $0x30] sm:$0xf]
        %v5256 = vld [vmem:[%s5248 + $0x38] sm:$0xf]
        %v5257 = vmul.f32 %v5244, %v5249
        %v5258 = vmul.f32 %v5242, %v5250
        %v5259 = vmul.f32 %v5240, %v5251
        %v5260 = vmul.f32 %v5246, %v5252
        %v5261 = vmul.f32 %v5245, %v5253
        %v5262 = vmul.f32 %v5243, %v5254
        %v5263 = vmul.f32 %v5241, %v5255
        %v5264 = vmul.f32 %v5247, %v5256
        %v5265 = vadd.f32 %v5215, %v5257
        %v5266 = vadd.f32 %v5216, %v5258
        %v5267 = vadd.f32 %v5217, %v5259
        %v5268 = vadd.f32 %v5218, %v5260
        %v5269 = vadd.f32 %v5219, %v5261
        %v5270 = vadd.f32 %v5220, %v5262
        %v5271 = vadd.f32 %v5221, %v5263
        %v5272 = vadd.f32 %v5222, %v5264
        %5273 = vrot.lane.b32.xlu0 %v3913, 123
        %v5274 = vpop.permute.xlu0 %5273
        %5275 = vrot.lane.b32.xlu0 %v3917, 123
        %v5276 = vpop.permute.xlu0 %5275
        %5277 = vrot.lane.b32.xlu0 %v3914, 123
        %v5278 = vpop.permute.xlu0 %5277
        %5279 = vrot.lane.b32.xlu0 %v3918, 123
        %v5280 = vpop.permute.xlu0 %5279
        %5281 = vrot.lane.b32.xlu0 %v3915, 123
        %v5282 = vpop.permute.xlu0 %5281
        %5283 = vrot.lane.b32.xlu0 %v3919, 123
        %v5284 = vpop.permute.xlu0 %5283
        %5285 = vrot.lane.b32.xlu0 %v3916, 123
        %v5286 = vpop.permute.xlu0 %5285
        %5287 = vrot.lane.b32.xlu0 %v3920, 123
        %v5288 = vpop.permute.xlu0 %5287
        %vm5289 = vcmp.lt.s32.totalorder %v1932, 123
        %v5290 = vsel %vm5289, %v5282, %v5286
        %v5291 = vsel %vm5289, %v5284, %v5288
        %v5292 = vsel %vm5289, %v5278, %v5282
        %v5293 = vsel %vm5289, %v5280, %v5284
        %v5294 = vsel %vm5289, %v5274, %v5278
        %v5295 = vsel %vm5289, %v5276, %v5280
        %v5296 = vsel %vm5289, %v5286, %v5274
        %v5297 = vsel %vm5289, %v5288, %v5276
        %s5298 = scalar_lea.vmem %s14, 1792
        %v5299 = vld [vmem:[%s5298] sm:$0xff]
        %v5300 = vld [vmem:[%s5298 + $0x8] sm:$0xff]
        %v5301 = vld [vmem:[%s5298 + $0x10] sm:$0xff]
        %v5302 = vld [vmem:[%s5298 + $0x18] sm:$0xff]
        %v5303 = vld [vmem:[%s5298 + $0x20] sm:$0xf]
        %v5304 = vld [vmem:[%s5298 + $0x28] sm:$0xf]
        %v5305 = vld [vmem:[%s5298 + $0x30] sm:$0xf]
        %v5306 = vld [vmem:[%s5298 + $0x38] sm:$0xf]
        %v5307 = vmul.f32 %v5294, %v5299
        %v5308 = vmul.f32 %v5292, %v5300
        %v5309 = vmul.f32 %v5290, %v5301
        %v5310 = vmul.f32 %v5296, %v5302
        %v5311 = vmul.f32 %v5295, %v5303
        %v5312 = vmul.f32 %v5293, %v5304
        %v5313 = vmul.f32 %v5291, %v5305
        %v5314 = vmul.f32 %v5297, %v5306
        %v5315 = vadd.f32 %v5265, %v5307
        %v5316 = vadd.f32 %v5266, %v5308
        %v5317 = vadd.f32 %v5267, %v5309
        %v5318 = vadd.f32 %v5268, %v5310
        %v5319 = vadd.f32 %v5269, %v5311
        %v5320 = vadd.f32 %v5270, %v5312
        %v5321 = vadd.f32 %v5271, %v5313
        %v5322 = vadd.f32 %v5272, %v5314
        %5323 = vrot.lane.b32.xlu0 %v3913, 122
        %v5324 = vpop.permute.xlu0 %5323
        %5325 = vrot.lane.b32.xlu0 %v3917, 122
        %v5326 = vpop.permute.xlu0 %5325
        %5327 = vrot.lane.b32.xlu0 %v3914, 122
        %v5328 = vpop.permute.xlu0 %5327
        %5329 = vrot.lane.b32.xlu0 %v3918, 122
        %v5330 = vpop.permute.xlu0 %5329
        %5331 = vrot.lane.b32.xlu0 %v3915, 122
        %v5332 = vpop.permute.xlu0 %5331
        %5333 = vrot.lane.b32.xlu0 %v3919, 122
        %v5334 = vpop.permute.xlu0 %5333
        %5335 = vrot.lane.b32.xlu0 %v3916, 122
        %v5336 = vpop.permute.xlu0 %5335
        %5337 = vrot.lane.b32.xlu0 %v3920, 122
        %v5338 = vpop.permute.xlu0 %5337
        %v5339 = vsel %vm3250, %v5332, %v5336
        %v5340 = vsel %vm3250, %v5334, %v5338
        %v5341 = vsel %vm3250, %v5328, %v5332
        %v5342 = vsel %vm3250, %v5330, %v5334
        %v5343 = vsel %vm3250, %v5324, %v5328
        %v5344 = vsel %vm3250, %v5326, %v5330
        %v5345 = vsel %vm3250, %v5336, %v5324
        %v5346 = vsel %vm3250, %v5338, %v5326
        %s5347 = scalar_lea.vmem %s14, 1856
        %v5348 = vld [vmem:[%s5347] sm:$0xff]
        %v5349 = vld [vmem:[%s5347 + $0x8] sm:$0xff]
        %v5350 = vld [vmem:[%s5347 + $0x10] sm:$0xff]
        %v5351 = vld [vmem:[%s5347 + $0x18] sm:$0xff]
        %v5352 = vld [vmem:[%s5347 + $0x20] sm:$0xf]
        %v5353 = vld [vmem:[%s5347 + $0x28] sm:$0xf]
        %v5354 = vld [vmem:[%s5347 + $0x30] sm:$0xf]
        %v5355 = vld [vmem:[%s5347 + $0x38] sm:$0xf]
        %v5356 = vmul.f32 %v5343, %v5348
        %v5357 = vmul.f32 %v5341, %v5349
        %v5358 = vmul.f32 %v5339, %v5350
        %v5359 = vmul.f32 %v5345, %v5351
        %v5360 = vmul.f32 %v5344, %v5352
        %v5361 = vmul.f32 %v5342, %v5353
        %v5362 = vmul.f32 %v5340, %v5354
        %v5363 = vmul.f32 %v5346, %v5355
        %v5364 = vadd.f32 %v5315, %v5356
        %v5365 = vadd.f32 %v5316, %v5357
        %v5366 = vadd.f32 %v5317, %v5358
        %v5367 = vadd.f32 %v5318, %v5359
        %v5368 = vadd.f32 %v5319, %v5360
        %v5369 = vadd.f32 %v5320, %v5361
        %v5370 = vadd.f32 %v5321, %v5362
        %v5371 = vadd.f32 %v5322, %v5363
        %5372 = vrot.lane.b32.xlu0 %v3913, 121
        %v5373 = vpop.permute.xlu0 %5372
        %5374 = vrot.lane.b32.xlu0 %v3917, 121
        %v5375 = vpop.permute.xlu0 %5374
        %5376 = vrot.lane.b32.xlu0 %v3914, 121
        %v5377 = vpop.permute.xlu0 %5376
        %5378 = vrot.lane.b32.xlu0 %v3918, 121
        %v5379 = vpop.permute.xlu0 %5378
        %5380 = vrot.lane.b32.xlu0 %v3915, 121
        %v5381 = vpop.permute.xlu0 %5380
        %5382 = vrot.lane.b32.xlu0 %v3919, 121
        %v5383 = vpop.permute.xlu0 %5382
        %5384 = vrot.lane.b32.xlu0 %v3916, 121
        %v5385 = vpop.permute.xlu0 %5384
        %5386 = vrot.lane.b32.xlu0 %v3920, 121
        %v5387 = vpop.permute.xlu0 %5386
        %v5388 = vsel %vm2199, %v5381, %v5385
        %v5389 = vsel %vm2199, %v5383, %v5387
        %v5390 = vsel %vm2199, %v5377, %v5381
        %v5391 = vsel %vm2199, %v5379, %v5383
        %v5392 = vsel %vm2199, %v5373, %v5377
        %v5393 = vsel %vm2199, %v5375, %v5379
        %v5394 = vsel %vm2199, %v5385, %v5373
        %v5395 = vsel %vm2199, %v5387, %v5375
        %s5396 = scalar_lea.vmem %s14, 1920
        %v5397 = vld [vmem:[%s5396] sm:$0xff]
        %v5398 = vld [vmem:[%s5396 + $0x8] sm:$0xff]
        %v5399 = vld [vmem:[%s5396 + $0x10] sm:$0xff]
        %v5400 = vld [vmem:[%s5396 + $0x18] sm:$0xff]
        %v5401 = vld [vmem:[%s5396 + $0x20] sm:$0xf]
        %v5402 = vld [vmem:[%s5396 + $0x28] sm:$0xf]
        %v5403 = vld [vmem:[%s5396 + $0x30] sm:$0xf]
        %v5404 = vld [vmem:[%s5396 + $0x38] sm:$0xf]
        %v5405 = vmul.f32 %v5392, %v5397
        %v5406 = vmul.f32 %v5390, %v5398
        %v5407 = vmul.f32 %v5388, %v5399
        %v5408 = vmul.f32 %v5394, %v5400
        %v5409 = vmul.f32 %v5393, %v5401
        %v5410 = vmul.f32 %v5391, %v5402
        %v5411 = vmul.f32 %v5389, %v5403
        %v5412 = vmul.f32 %v5395, %v5404
        %v5413 = vadd.f32 %v5364, %v5405
        %v5414 = vadd.f32 %v5365, %v5406
        %v5415 = vadd.f32 %v5366, %v5407
        %v5416 = vadd.f32 %v5367, %v5408
        %v5417 = vadd.f32 %v5368, %v5409
        %v5418 = vadd.f32 %v5369, %v5410
        %v5419 = vadd.f32 %v5370, %v5411
        %v5420 = vadd.f32 %v5371, %v5412
        %5421 = vrot.lane.b32.xlu0 %v3913, 120
        %v5422 = vpop.permute.xlu0 %5421
        %5423 = vrot.lane.b32.xlu0 %v3917, 120
        %v5424 = vpop.permute.xlu0 %5423
        %5425 = vrot.lane.b32.xlu0 %v3914, 120
        %v5426 = vpop.permute.xlu0 %5425
        %5427 = vrot.lane.b32.xlu0 %v3918, 120
        %v5428 = vpop.permute.xlu0 %5427
        %5429 = vrot.lane.b32.xlu0 %v3915, 120
        %v5430 = vpop.permute.xlu0 %5429
        %5431 = vrot.lane.b32.xlu0 %v3919, 120
        %v5432 = vpop.permute.xlu0 %5431
        %5433 = vrot.lane.b32.xlu0 %v3916, 120
        %v5434 = vpop.permute.xlu0 %5433
        %5435 = vrot.lane.b32.xlu0 %v3920, 120
        %v5436 = vpop.permute.xlu0 %5435
        %v5437 = vsel %vm2249, %v5430, %v5434
        %v5438 = vsel %vm2249, %v5432, %v5436
        %v5439 = vsel %vm2249, %v5426, %v5430
        %v5440 = vsel %vm2249, %v5428, %v5432
        %v5441 = vsel %vm2249, %v5422, %v5426
        %v5442 = vsel %vm2249, %v5424, %v5428
        %v5443 = vsel %vm2249, %v5434, %v5422
        %v5444 = vsel %vm2249, %v5436, %v5424
        %s5445 = scalar_lea.vmem %s14, 1984
        %v5446 = vld [vmem:[%s5445] sm:$0xff]
        %v5447 = vld [vmem:[%s5445 + $0x8] sm:$0xff]
        %v5448 = vld [vmem:[%s5445 + $0x10] sm:$0xff]
        %v5449 = vld [vmem:[%s5445 + $0x18] sm:$0xff]
        %v5450 = vld [vmem:[%s5445 + $0x20] sm:$0xf]
        %v5451 = vld [vmem:[%s5445 + $0x28] sm:$0xf]
        %v5452 = vld [vmem:[%s5445 + $0x30] sm:$0xf]
        %v5453 = vld [vmem:[%s5445 + $0x38] sm:$0xf]
        %v5454 = vmul.f32 %v5441, %v5446
        %v5455 = vmul.f32 %v5439, %v5447
        %v5456 = vmul.f32 %v5437, %v5448
        %v5457 = vmul.f32 %v5443, %v5449
        %v5458 = vmul.f32 %v5442, %v5450
        %v5459 = vmul.f32 %v5440, %v5451
        %v5460 = vmul.f32 %v5438, %v5452
        %v5461 = vmul.f32 %v5444, %v5453
        %v5462 = vadd.f32 %v5413, %v5454
        %v5463 = vadd.f32 %v5414, %v5455
        %v5464 = vadd.f32 %v5415, %v5456
        %v5465 = vadd.f32 %v5416, %v5457
        %v5466 = vadd.f32 %v5417, %v5458
        %v5467 = vadd.f32 %v5418, %v5459
        %v5468 = vadd.f32 %v5419, %v5460
        %v5469 = vadd.f32 %v5420, %v5461
        %5470 = vrot.lane.b32.xlu0 %v3913, 119
        %v5471 = vpop.permute.xlu0 %5470
        %5472 = vrot.lane.b32.xlu0 %v3917, 119
        %v5473 = vpop.permute.xlu0 %5472
        %5474 = vrot.lane.b32.xlu0 %v3914, 119
        %v5475 = vpop.permute.xlu0 %5474
        %5476 = vrot.lane.b32.xlu0 %v3918, 119
        %v5477 = vpop.permute.xlu0 %5476
        %5478 = vrot.lane.b32.xlu0 %v3915, 119
        %v5479 = vpop.permute.xlu0 %5478
        %5480 = vrot.lane.b32.xlu0 %v3919, 119
        %v5481 = vpop.permute.xlu0 %5480
        %5482 = vrot.lane.b32.xlu0 %v3916, 119
        %v5483 = vpop.permute.xlu0 %5482
        %5484 = vrot.lane.b32.xlu0 %v3920, 119
        %v5485 = vpop.permute.xlu0 %5484
        %v5486 = vsel %vm2299, %v5479, %v5483
        %v5487 = vsel %vm2299, %v5481, %v5485
        %v5488 = vsel %vm2299, %v5475, %v5479
        %v5489 = vsel %vm2299, %v5477, %v5481
        %v5490 = vsel %vm2299, %v5471, %v5475
        %v5491 = vsel %vm2299, %v5473, %v5477
        %v5492 = vsel %vm2299, %v5483, %v5471
        %v5493 = vsel %vm2299, %v5485, %v5473
        %s5494 = scalar_lea.vmem %s14, 2048
        %v5495 = vld [vmem:[%s5494] sm:$0xff]
        %v5496 = vld [vmem:[%s5494 + $0x8] sm:$0xff]
        %v5497 = vld [vmem:[%s5494 + $0x10] sm:$0xff]
        %v5498 = vld [vmem:[%s5494 + $0x18] sm:$0xff]
        %v5499 = vld [vmem:[%s5494 + $0x20] sm:$0xf]
        %v5500 = vld [vmem:[%s5494 + $0x28] sm:$0xf]
        %v5501 = vld [vmem:[%s5494 + $0x30] sm:$0xf]
        %v5502 = vld [vmem:[%s5494 + $0x38] sm:$0xf]
        %v5503 = vmul.f32 %v5490, %v5495
        %v5504 = vmul.f32 %v5488, %v5496
        %v5505 = vmul.f32 %v5486, %v5497
        %v5506 = vmul.f32 %v5492, %v5498
        %v5507 = vmul.f32 %v5491, %v5499
        %v5508 = vmul.f32 %v5489, %v5500
        %v5509 = vmul.f32 %v5487, %v5501
        %v5510 = vmul.f32 %v5493, %v5502
        %v5511 = vadd.f32 %v5462, %v5503
        %v5512 = vadd.f32 %v5463, %v5504
        %v5513 = vadd.f32 %v5464, %v5505
        %v5514 = vadd.f32 %v5465, %v5506
        %v5515 = vadd.f32 %v5466, %v5507
        %v5516 = vadd.f32 %v5467, %v5508
        %v5517 = vadd.f32 %v5468, %v5509
        %v5518 = vadd.f32 %v5469, %v5510
        %5519 = vrot.lane.b32.xlu0 %v3913, 118
        %v5520 = vpop.permute.xlu0 %5519
        %5521 = vrot.lane.b32.xlu0 %v3917, 118
        %v5522 = vpop.permute.xlu0 %5521
        %5523 = vrot.lane.b32.xlu0 %v3914, 118
        %v5524 = vpop.permute.xlu0 %5523
        %5525 = vrot.lane.b32.xlu0 %v3918, 118
        %v5526 = vpop.permute.xlu0 %5525
        %5527 = vrot.lane.b32.xlu0 %v3915, 118
        %v5528 = vpop.permute.xlu0 %5527
        %5529 = vrot.lane.b32.xlu0 %v3919, 118
        %v5530 = vpop.permute.xlu0 %5529
        %5531 = vrot.lane.b32.xlu0 %v3916, 118
        %v5532 = vpop.permute.xlu0 %5531
        %5533 = vrot.lane.b32.xlu0 %v3920, 118
        %v5534 = vpop.permute.xlu0 %5533
        %v5535 = vsel %vm3447, %v5528, %v5532
        %v5536 = vsel %vm3447, %v5530, %v5534
        %v5537 = vsel %vm3447, %v5524, %v5528
        %v5538 = vsel %vm3447, %v5526, %v5530
        %v5539 = vsel %vm3447, %v5520, %v5524
        %v5540 = vsel %vm3447, %v5522, %v5526
        %v5541 = vsel %vm3447, %v5532, %v5520
        %v5542 = vsel %vm3447, %v5534, %v5522
        %s5543 = scalar_lea.vmem %s14, 2112
        %v5544 = vld [vmem:[%s5543] sm:$0xff]
        %v5545 = vld [vmem:[%s5543 + $0x8] sm:$0xff]
        %v5546 = vld [vmem:[%s5543 + $0x10] sm:$0xff]
        %v5547 = vld [vmem:[%s5543 + $0x18] sm:$0xff]
        %v5548 = vld [vmem:[%s5543 + $0x20] sm:$0xf]
        %v5549 = vld [vmem:[%s5543 + $0x28] sm:$0xf]
        %v5550 = vld [vmem:[%s5543 + $0x30] sm:$0xf]
        %v5551 = vld [vmem:[%s5543 + $0x38] sm:$0xf]
        %v5552 = vmul.f32 %v5539, %v5544
        %v5553 = vmul.f32 %v5537, %v5545
        %v5554 = vmul.f32 %v5535, %v5546
        %v5555 = vmul.f32 %v5541, %v5547
        %v5556 = vmul.f32 %v5540, %v5548
        %v5557 = vmul.f32 %v5538, %v5549
        %v5558 = vmul.f32 %v5536, %v5550
        %v5559 = vmul.f32 %v5542, %v5551
        %v5560 = vadd.f32 %v5511, %v5552
        %v5561 = vadd.f32 %v5512, %v5553
        %v5562 = vadd.f32 %v5513, %v5554
        %v5563 = vadd.f32 %v5514, %v5555
        %v5564 = vadd.f32 %v5515, %v5556
        %v5565 = vadd.f32 %v5516, %v5557
        %v5566 = vadd.f32 %v5517, %v5558
        %v5567 = vadd.f32 %v5518, %v5559
        %5568 = vrot.lane.b32.xlu0 %v3913, 117
        %v5569 = vpop.permute.xlu0 %5568
        %5570 = vrot.lane.b32.xlu0 %v3917, 117
        %v5571 = vpop.permute.xlu0 %5570
        %5572 = vrot.lane.b32.xlu0 %v3914, 117
        %v5573 = vpop.permute.xlu0 %5572
        %5574 = vrot.lane.b32.xlu0 %v3918, 117
        %v5575 = vpop.permute.xlu0 %5574
        %5576 = vrot.lane.b32.xlu0 %v3915, 117
        %v5577 = vpop.permute.xlu0 %5576
        %5578 = vrot.lane.b32.xlu0 %v3919, 117
        %v5579 = vpop.permute.xlu0 %5578
        %5580 = vrot.lane.b32.xlu0 %v3916, 117
        %v5581 = vpop.permute.xlu0 %5580
        %5582 = vrot.lane.b32.xlu0 %v3920, 117
        %v5583 = vpop.permute.xlu0 %5582
        %vm5584 = vcmp.lt.s32.totalorder %v1932, 117
        %v5585 = vsel %vm5584, %v5577, %v5581
        %v5586 = vsel %vm5584, %v5579, %v5583
        %v5587 = vsel %vm5584, %v5573, %v5577
        %v5588 = vsel %vm5584, %v5575, %v5579
        %v5589 = vsel %vm5584, %v5569, %v5573
        %v5590 = vsel %vm5584, %v5571, %v5575
        %v5591 = vsel %vm5584, %v5581, %v5569
        %v5592 = vsel %vm5584, %v5583, %v5571
        %s5593 = scalar_lea.vmem %s14, 2176
        %v5594 = vld [vmem:[%s5593] sm:$0xff]
        %v5595 = vld [vmem:[%s5593 + $0x8] sm:$0xff]
        %v5596 = vld [vmem:[%s5593 + $0x10] sm:$0xff]
        %v5597 = vld [vmem:[%s5593 + $0x18] sm:$0xff]
        %v5598 = vld [vmem:[%s5593 + $0x20] sm:$0xf]
        %v5599 = vld [vmem:[%s5593 + $0x28] sm:$0xf]
        %v5600 = vld [vmem:[%s5593 + $0x30] sm:$0xf]
        %v5601 = vld [vmem:[%s5593 + $0x38] sm:$0xf]
        %v5602 = vmul.f32 %v5589, %v5594
        %v5603 = vmul.f32 %v5587, %v5595
        %v5604 = vmul.f32 %v5585, %v5596
        %v5605 = vmul.f32 %v5591, %v5597
        %v5606 = vmul.f32 %v5590, %v5598
        %v5607 = vmul.f32 %v5588, %v5599
        %v5608 = vmul.f32 %v5586, %v5600
        %v5609 = vmul.f32 %v5592, %v5601
        %v5610 = vadd.f32 %v5560, %v5602
        %v5611 = vadd.f32 %v5561, %v5603
        %v5612 = vadd.f32 %v5562, %v5604
        %v5613 = vadd.f32 %v5563, %v5605
        %v5614 = vadd.f32 %v5564, %v5606
        %v5615 = vadd.f32 %v5565, %v5607
        %v5616 = vadd.f32 %v5566, %v5608
        %v5617 = vadd.f32 %v5567, %v5609
        %5618 = vrot.lane.b32.xlu0 %v3913, 115
        %v5619 = vpop.permute.xlu0 %5618
        %5620 = vrot.lane.b32.xlu0 %v3917, 115
        %v5621 = vpop.permute.xlu0 %5620
        %5622 = vrot.lane.b32.xlu0 %v3914, 115
        %v5623 = vpop.permute.xlu0 %5622
        %5624 = vrot.lane.b32.xlu0 %v3918, 115
        %v5625 = vpop.permute.xlu0 %5624
        %5626 = vrot.lane.b32.xlu0 %v3915, 115
        %v5627 = vpop.permute.xlu0 %5626
        %5628 = vrot.lane.b32.xlu0 %v3919, 115
        %v5629 = vpop.permute.xlu0 %5628
        %5630 = vrot.lane.b32.xlu0 %v3916, 115
        %v5631 = vpop.permute.xlu0 %5630
        %5632 = vrot.lane.b32.xlu0 %v3920, 115
        %v5633 = vpop.permute.xlu0 %5632
        %vm5634 = vcmp.lt.s32.totalorder %v1932, 115
        %v5635 = vsel %vm5634, %v5627, %v5631
        %v5636 = vsel %vm5634, %v5629, %v5633
        %v5637 = vsel %vm5634, %v5623, %v5627
        %v5638 = vsel %vm5634, %v5625, %v5629
        %v5639 = vsel %vm5634, %v5619, %v5623
        %v5640 = vsel %vm5634, %v5621, %v5625
        %v5641 = vsel %vm5634, %v5631, %v5619
        %v5642 = vsel %vm5634, %v5633, %v5621
        %s5643 = scalar_lea.vmem %s14, 2240
        %v5644 = vld [vmem:[%s5643] sm:$0xff]
        %v5645 = vld [vmem:[%s5643 + $0x8] sm:$0xff]
        %v5646 = vld [vmem:[%s5643 + $0x10] sm:$0xff]
        %v5647 = vld [vmem:[%s5643 + $0x18] sm:$0xff]
        %v5648 = vld [vmem:[%s5643 + $0x20] sm:$0xf]
        %v5649 = vld [vmem:[%s5643 + $0x28] sm:$0xf]
        %v5650 = vld [vmem:[%s5643 + $0x30] sm:$0xf]
        %v5651 = vld [vmem:[%s5643 + $0x38] sm:$0xf]
        %v5652 = vmul.f32 %v5639, %v5644
        %v5653 = vmul.f32 %v5637, %v5645
        %v5654 = vmul.f32 %v5635, %v5646
        %v5655 = vmul.f32 %v5641, %v5647
        %v5656 = vmul.f32 %v5640, %v5648
        %v5657 = vmul.f32 %v5638, %v5649
        %v5658 = vmul.f32 %v5636, %v5650
        %v5659 = vmul.f32 %v5642, %v5651
        %v5660 = vadd.f32 %v5610, %v5652
        %v5661 = vadd.f32 %v5611, %v5653
        %v5662 = vadd.f32 %v5612, %v5654
        %v5663 = vadd.f32 %v5613, %v5655
        %v5664 = vadd.f32 %v5614, %v5656
        %v5665 = vadd.f32 %v5615, %v5657
        %v5666 = vadd.f32 %v5616, %v5658
        %v5667 = vadd.f32 %v5617, %v5659
        %5668 = vrot.lane.b32.xlu0 %v3913, 114
        %v5669 = vpop.permute.xlu0 %5668
        %5670 = vrot.lane.b32.xlu0 %v3917, 114
        %v5671 = vpop.permute.xlu0 %5670
        %5672 = vrot.lane.b32.xlu0 %v3914, 114
        %v5673 = vpop.permute.xlu0 %5672
        %5674 = vrot.lane.b32.xlu0 %v3918, 114
        %v5675 = vpop.permute.xlu0 %5674
        %5676 = vrot.lane.b32.xlu0 %v3915, 114
        %v5677 = vpop.permute.xlu0 %5676
        %5678 = vrot.lane.b32.xlu0 %v3919, 114
        %v5679 = vpop.permute.xlu0 %5678
        %5680 = vrot.lane.b32.xlu0 %v3916, 114
        %v5681 = vpop.permute.xlu0 %5680
        %5682 = vrot.lane.b32.xlu0 %v3920, 114
        %v5683 = vpop.permute.xlu0 %5682
        %v5684 = vsel %vm3497, %v5677, %v5681
        %v5685 = vsel %vm3497, %v5679, %v5683
        %v5686 = vsel %vm3497, %v5673, %v5677
        %v5687 = vsel %vm3497, %v5675, %v5679
        %v5688 = vsel %vm3497, %v5669, %v5673
        %v5689 = vsel %vm3497, %v5671, %v5675
        %v5690 = vsel %vm3497, %v5681, %v5669
        %v5691 = vsel %vm3497, %v5683, %v5671
        %s5692 = scalar_lea.vmem %s14, 2304
        %v5693 = vld [vmem:[%s5692] sm:$0xff]
        %v5694 = vld [vmem:[%s5692 + $0x8] sm:$0xff]
        %v5695 = vld [vmem:[%s5692 + $0x10] sm:$0xff]
        %v5696 = vld [vmem:[%s5692 + $0x18] sm:$0xff]
        %v5697 = vld [vmem:[%s5692 + $0x20] sm:$0xf]
        %v5698 = vld [vmem:[%s5692 + $0x28] sm:$0xf]
        %v5699 = vld [vmem:[%s5692 + $0x30] sm:$0xf]
        %v5700 = vld [vmem:[%s5692 + $0x38] sm:$0xf]
        %v5701 = vmul.f32 %v5688, %v5693
        %v5702 = vmul.f32 %v5686, %v5694
        %v5703 = vmul.f32 %v5684, %v5695
        %v5704 = vmul.f32 %v5690, %v5696
        %v5705 = vmul.f32 %v5689, %v5697
        %v5706 = vmul.f32 %v5687, %v5698
        %v5707 = vmul.f32 %v5685, %v5699
        %v5708 = vmul.f32 %v5691, %v5700
        %v5709 = vadd.f32 %v5660, %v5701
        %v5710 = vadd.f32 %v5661, %v5702
        %v5711 = vadd.f32 %v5662, %v5703
        %v5712 = vadd.f32 %v5663, %v5704
        %v5713 = vadd.f32 %v5664, %v5705
        %v5714 = vadd.f32 %v5665, %v5706
        %v5715 = vadd.f32 %v5666, %v5707
        %v5716 = vadd.f32 %v5667, %v5708
        %5717 = vrot.lane.b32.xlu0 %v3913, 113
        %v5718 = vpop.permute.xlu0 %5717
        %5719 = vrot.lane.b32.xlu0 %v3917, 113
        %v5720 = vpop.permute.xlu0 %5719
        %5721 = vrot.lane.b32.xlu0 %v3914, 113
        %v5722 = vpop.permute.xlu0 %5721
        %5723 = vrot.lane.b32.xlu0 %v3918, 113
        %v5724 = vpop.permute.xlu0 %5723
        %5725 = vrot.lane.b32.xlu0 %v3915, 113
        %v5726 = vpop.permute.xlu0 %5725
        %5727 = vrot.lane.b32.xlu0 %v3919, 113
        %v5728 = vpop.permute.xlu0 %5727
        %5729 = vrot.lane.b32.xlu0 %v3916, 113
        %v5730 = vpop.permute.xlu0 %5729
        %5731 = vrot.lane.b32.xlu0 %v3920, 113
        %v5732 = vpop.permute.xlu0 %5731
        %v5733 = vsel %vm3547, %v5726, %v5730
        %v5734 = vsel %vm3547, %v5728, %v5732
        %v5735 = vsel %vm3547, %v5722, %v5726
        %v5736 = vsel %vm3547, %v5724, %v5728
        %v5737 = vsel %vm3547, %v5718, %v5722
        %v5738 = vsel %vm3547, %v5720, %v5724
        %v5739 = vsel %vm3547, %v5730, %v5718
        %v5740 = vsel %vm3547, %v5732, %v5720
        %s5741 = scalar_lea.vmem %s14, 2368
        %v5742 = vld [vmem:[%s5741] sm:$0xff]
        %v5743 = vld [vmem:[%s5741 + $0x8] sm:$0xff]
        %v5744 = vld [vmem:[%s5741 + $0x10] sm:$0xff]
        %v5745 = vld [vmem:[%s5741 + $0x18] sm:$0xff]
        %v5746 = vld [vmem:[%s5741 + $0x20] sm:$0xf]
        %v5747 = vld [vmem:[%s5741 + $0x28] sm:$0xf]
        %v5748 = vld [vmem:[%s5741 + $0x30] sm:$0xf]
        %v5749 = vld [vmem:[%s5741 + $0x38] sm:$0xf]
        %v5750 = vmul.f32 %v5737, %v5742
        %v5751 = vmul.f32 %v5735, %v5743
        %v5752 = vmul.f32 %v5733, %v5744
        %v5753 = vmul.f32 %v5739, %v5745
        %v5754 = vmul.f32 %v5738, %v5746
        %v5755 = vmul.f32 %v5736, %v5747
        %v5756 = vmul.f32 %v5734, %v5748
        %v5757 = vmul.f32 %v5740, %v5749
        %v5758 = vadd.f32 %v5709, %v5750
        %v5759 = vadd.f32 %v5710, %v5751
        %v5760 = vadd.f32 %v5711, %v5752
        %v5761 = vadd.f32 %v5712, %v5753
        %v5762 = vadd.f32 %v5713, %v5754
        %v5763 = vadd.f32 %v5714, %v5755
        %v5764 = vadd.f32 %v5715, %v5756
        %v5765 = vadd.f32 %v5716, %v5757
        %5766 = vrot.lane.b32.xlu0 %v3913, 112
        %v5767 = vpop.permute.xlu0 %5766
        %5768 = vrot.lane.b32.xlu0 %v3917, 112
        %v5769 = vpop.permute.xlu0 %5768
        %5770 = vrot.lane.b32.xlu0 %v3914, 112
        %v5771 = vpop.permute.xlu0 %5770
        %5772 = vrot.lane.b32.xlu0 %v3918, 112
        %v5773 = vpop.permute.xlu0 %5772
        %5774 = vrot.lane.b32.xlu0 %v3915, 112
        %v5775 = vpop.permute.xlu0 %5774
        %5776 = vrot.lane.b32.xlu0 %v3919, 112
        %v5777 = vpop.permute.xlu0 %5776
        %5778 = vrot.lane.b32.xlu0 %v3916, 112
        %v5779 = vpop.permute.xlu0 %5778
        %5780 = vrot.lane.b32.xlu0 %v3920, 112
        %v5781 = vpop.permute.xlu0 %5780
        %v5782 = vsel %vm3597, %v5775, %v5779
        %v5783 = vsel %vm3597, %v5777, %v5781
        %v5784 = vsel %vm3597, %v5771, %v5775
        %v5785 = vsel %vm3597, %v5773, %v5777
        %v5786 = vsel %vm3597, %v5767, %v5771
        %v5787 = vsel %vm3597, %v5769, %v5773
        %v5788 = vsel %vm3597, %v5779, %v5767
        %v5789 = vsel %vm3597, %v5781, %v5769
        %s5790 = scalar_lea.vmem %s14, 2432
        %v5791 = vld [vmem:[%s5790] sm:$0xff]
        %v5792 = vld [vmem:[%s5790 + $0x8] sm:$0xff]
        %v5793 = vld [vmem:[%s5790 + $0x10] sm:$0xff]
        %v5794 = vld [vmem:[%s5790 + $0x18] sm:$0xff]
        %v5795 = vld [vmem:[%s5790 + $0x20] sm:$0xf]
        %v5796 = vld [vmem:[%s5790 + $0x28] sm:$0xf]
        %v5797 = vld [vmem:[%s5790 + $0x30] sm:$0xf]
        %v5798 = vld [vmem:[%s5790 + $0x38] sm:$0xf]
        %v5799 = vmul.f32 %v5786, %v5791
        %v5800 = vmul.f32 %v5784, %v5792
        %v5801 = vmul.f32 %v5782, %v5793
        %v5802 = vmul.f32 %v5788, %v5794
        %v5803 = vmul.f32 %v5787, %v5795
        %v5804 = vmul.f32 %v5785, %v5796
        %v5805 = vmul.f32 %v5783, %v5797
        %v5806 = vmul.f32 %v5789, %v5798
        %v5807 = vadd.f32 %v5758, %v5799
        %v5808 = vadd.f32 %v5759, %v5800
        %v5809 = vadd.f32 %v5760, %v5801
        %v5810 = vadd.f32 %v5761, %v5802
        %v5811 = vadd.f32 %v5762, %v5803
        %v5812 = vadd.f32 %v5763, %v5804
        %v5813 = vadd.f32 %v5764, %v5805
        %v5814 = vadd.f32 %v5765, %v5806
        %5815 = vrot.lane.b32.xlu0 %v3913, 111
        %v5816 = vpop.permute.xlu0 %5815
        %5817 = vrot.lane.b32.xlu0 %v3917, 111
        %v5818 = vpop.permute.xlu0 %5817
        %5819 = vrot.lane.b32.xlu0 %v3914, 111
        %v5820 = vpop.permute.xlu0 %5819
        %5821 = vrot.lane.b32.xlu0 %v3918, 111
        %v5822 = vpop.permute.xlu0 %5821
        %5823 = vrot.lane.b32.xlu0 %v3915, 111
        %v5824 = vpop.permute.xlu0 %5823
        %5825 = vrot.lane.b32.xlu0 %v3919, 111
        %v5826 = vpop.permute.xlu0 %5825
        %5827 = vrot.lane.b32.xlu0 %v3916, 111
        %v5828 = vpop.permute.xlu0 %5827
        %5829 = vrot.lane.b32.xlu0 %v3920, 111
        %v5830 = vpop.permute.xlu0 %5829
        %v5831 = vsel %vm3647, %v5824, %v5828
        %v5832 = vsel %vm3647, %v5826, %v5830
        %v5833 = vsel %vm3647, %v5820, %v5824
        %v5834 = vsel %vm3647, %v5822, %v5826
        %v5835 = vsel %vm3647, %v5816, %v5820
        %v5836 = vsel %vm3647, %v5818, %v5822
        %v5837 = vsel %vm3647, %v5828, %v5816
        %v5838 = vsel %vm3647, %v5830, %v5818
        %s5839 = scalar_lea.vmem %s14, 2496
        %v5840 = vld [vmem:[%s5839] sm:$0xff]
        %v5841 = vld [vmem:[%s5839 + $0x8] sm:$0xff]
        %v5842 = vld [vmem:[%s5839 + $0x10] sm:$0xff]
        %v5843 = vld [vmem:[%s5839 + $0x18] sm:$0xff]
        %v5844 = vld [vmem:[%s5839 + $0x20] sm:$0xf]
        %v5845 = vld [vmem:[%s5839 + $0x28] sm:$0xf]
        %v5846 = vld [vmem:[%s5839 + $0x30] sm:$0xf]
        %v5847 = vld [vmem:[%s5839 + $0x38] sm:$0xf]
        %v5848 = vmul.f32 %v5835, %v5840
        %v5849 = vmul.f32 %v5833, %v5841
        %v5850 = vmul.f32 %v5831, %v5842
        %v5851 = vmul.f32 %v5837, %v5843
        %v5852 = vmul.f32 %v5836, %v5844
        %v5853 = vmul.f32 %v5834, %v5845
        %v5854 = vmul.f32 %v5832, %v5846
        %v5855 = vmul.f32 %v5838, %v5847
        %v5856 = vadd.f32 %v5807, %v5848
        %v5857 = vadd.f32 %v5808, %v5849
        %v5858 = vadd.f32 %v5809, %v5850
        %v5859 = vadd.f32 %v5810, %v5851
        %v5860 = vadd.f32 %v5811, %v5852
        %v5861 = vadd.f32 %v5812, %v5853
        %v5862 = vadd.f32 %v5813, %v5854
        %v5863 = vadd.f32 %v5814, %v5855
        %5864 = vrot.lane.b32.xlu0 %v3913, 110
        %v5865 = vpop.permute.xlu0 %5864
        %5866 = vrot.lane.b32.xlu0 %v3917, 110
        %v5867 = vpop.permute.xlu0 %5866
        %5868 = vrot.lane.b32.xlu0 %v3914, 110
        %v5869 = vpop.permute.xlu0 %5868
        %5870 = vrot.lane.b32.xlu0 %v3918, 110
        %v5871 = vpop.permute.xlu0 %5870
        %5872 = vrot.lane.b32.xlu0 %v3915, 110
        %v5873 = vpop.permute.xlu0 %5872
        %5874 = vrot.lane.b32.xlu0 %v3919, 110
        %v5875 = vpop.permute.xlu0 %5874
        %5876 = vrot.lane.b32.xlu0 %v3916, 110
        %v5877 = vpop.permute.xlu0 %5876
        %5878 = vrot.lane.b32.xlu0 %v3920, 110
        %v5879 = vpop.permute.xlu0 %5878
        %v5880 = vsel %vm3697, %v5873, %v5877
        %v5881 = vsel %vm3697, %v5875, %v5879
        %v5882 = vsel %vm3697, %v5869, %v5873
        %v5883 = vsel %vm3697, %v5871, %v5875
        %v5884 = vsel %vm3697, %v5865, %v5869
        %v5885 = vsel %vm3697, %v5867, %v5871
        %v5886 = vsel %vm3697, %v5877, %v5865
        %v5887 = vsel %vm3697, %v5879, %v5867
        %s5888 = scalar_lea.vmem %s14, 2560
        %v5889 = vld [vmem:[%s5888] sm:$0xff]
        %v5890 = vld [vmem:[%s5888 + $0x8] sm:$0xff]
        %v5891 = vld [vmem:[%s5888 + $0x10] sm:$0xff]
        %v5892 = vld [vmem:[%s5888 + $0x18] sm:$0xff]
        %v5893 = vld [vmem:[%s5888 + $0x20] sm:$0xf]
        %v5894 = vld [vmem:[%s5888 + $0x28] sm:$0xf]
        %v5895 = vld [vmem:[%s5888 + $0x30] sm:$0xf]
        %v5896 = vld [vmem:[%s5888 + $0x38] sm:$0xf]
        %v5897 = vmul.f32 %v5884, %v5889
        %v5898 = vmul.f32 %v5882, %v5890
        %v5899 = vmul.f32 %v5880, %v5891
        %v5900 = vmul.f32 %v5886, %v5892
        %v5901 = vmul.f32 %v5885, %v5893
        %v5902 = vmul.f32 %v5883, %v5894
        %v5903 = vmul.f32 %v5881, %v5895
        %v5904 = vmul.f32 %v5887, %v5896
        %v5905 = vadd.f32 %v5856, %v5897
        %v5906 = vadd.f32 %v5857, %v5898
        %v5907 = vadd.f32 %v5858, %v5899
        %v5908 = vadd.f32 %v5859, %v5900
        %v5909 = vadd.f32 %v5860, %v5901
        %v5910 = vadd.f32 %v5861, %v5902
        %v5911 = vadd.f32 %v5862, %v5903
        %v5912 = vadd.f32 %v5863, %v5904
        %5913 = vrot.lane.b32.xlu0 %v3913, 109
        %v5914 = vpop.permute.xlu0 %5913
        %5915 = vrot.lane.b32.xlu0 %v3917, 109
        %v5916 = vpop.permute.xlu0 %5915
        %5917 = vrot.lane.b32.xlu0 %v3914, 109
        %v5918 = vpop.permute.xlu0 %5917
        %5919 = vrot.lane.b32.xlu0 %v3918, 109
        %v5920 = vpop.permute.xlu0 %5919
        %5921 = vrot.lane.b32.xlu0 %v3915, 109
        %v5922 = vpop.permute.xlu0 %5921
        %5923 = vrot.lane.b32.xlu0 %v3919, 109
        %v5924 = vpop.permute.xlu0 %5923
        %5925 = vrot.lane.b32.xlu0 %v3916, 109
        %v5926 = vpop.permute.xlu0 %5925
        %5927 = vrot.lane.b32.xlu0 %v3920, 109
        %v5928 = vpop.permute.xlu0 %5927
        %vm5929 = vcmp.lt.s32.totalorder %v1932, 109
        %v5930 = vsel %vm5929, %v5922, %v5926
        %v5931 = vsel %vm5929, %v5924, %v5928
        %v5932 = vsel %vm5929, %v5918, %v5922
        %v5933 = vsel %vm5929, %v5920, %v5924
        %v5934 = vsel %vm5929, %v5914, %v5918
        %v5935 = vsel %vm5929, %v5916, %v5920
        %v5936 = vsel %vm5929, %v5926, %v5914
        %v5937 = vsel %vm5929, %v5928, %v5916
        %s5938 = scalar_lea.vmem %s14, 2624
        %v5939 = vld [vmem:[%s5938] sm:$0xff]
        %v5940 = vld [vmem:[%s5938 + $0x8] sm:$0xff]
        %v5941 = vld [vmem:[%s5938 + $0x10] sm:$0xff]
        %v5942 = vld [vmem:[%s5938 + $0x18] sm:$0xff]
        %v5943 = vld [vmem:[%s5938 + $0x20] sm:$0xf]
        %v5944 = vld [vmem:[%s5938 + $0x28] sm:$0xf]
        %v5945 = vld [vmem:[%s5938 + $0x30] sm:$0xf]
        %v5946 = vld [vmem:[%s5938 + $0x38] sm:$0xf]
        %v5947 = vmul.f32 %v5934, %v5939
        %v5948 = vmul.f32 %v5932, %v5940
        %v5949 = vmul.f32 %v5930, %v5941
        %v5950 = vmul.f32 %v5936, %v5942
        %v5951 = vmul.f32 %v5935, %v5943
        %v5952 = vmul.f32 %v5933, %v5944
        %v5953 = vmul.f32 %v5931, %v5945
        %v5954 = vmul.f32 %v5937, %v5946
        %v5955 = vadd.f32 %v5905, %v5947
        %v5956 = vadd.f32 %v5906, %v5948
        %v5957 = vadd.f32 %v5907, %v5949
        %v5958 = vadd.f32 %v5908, %v5950
        %v5959 = vadd.f32 %v5909, %v5951
        %v5960 = vadd.f32 %v5910, %v5952
        %v5961 = vadd.f32 %v5911, %v5953
        %v5962 = vadd.f32 %v5912, %v5954
        %5963 = vrot.lane.b32.xlu0 %v3913, 107
        %v5964 = vpop.permute.xlu0 %5963
        %5965 = vrot.lane.b32.xlu0 %v3917, 107
        %v5966 = vpop.permute.xlu0 %5965
        %5967 = vrot.lane.b32.xlu0 %v3914, 107
        %v5968 = vpop.permute.xlu0 %5967
        %5969 = vrot.lane.b32.xlu0 %v3918, 107
        %v5970 = vpop.permute.xlu0 %5969
        %5971 = vrot.lane.b32.xlu0 %v3915, 107
        %v5972 = vpop.permute.xlu0 %5971
        %5973 = vrot.lane.b32.xlu0 %v3919, 107
        %v5974 = vpop.permute.xlu0 %5973
        %5975 = vrot.lane.b32.xlu0 %v3916, 107
        %v5976 = vpop.permute.xlu0 %5975
        %5977 = vrot.lane.b32.xlu0 %v3920, 107
        %v5978 = vpop.permute.xlu0 %5977
        %vm5979 = vcmp.lt.s32.totalorder %v1932, 107
        %v5980 = vsel %vm5979, %v5972, %v5976
        %v5981 = vsel %vm5979, %v5974, %v5978
        %v5982 = vsel %vm5979, %v5968, %v5972
        %v5983 = vsel %vm5979, %v5970, %v5974
        %v5984 = vsel %vm5979, %v5964, %v5968
        %v5985 = vsel %vm5979, %v5966, %v5970
        %v5986 = vsel %vm5979, %v5976, %v5964
        %v5987 = vsel %vm5979, %v5978, %v5966
        %s5988 = scalar_lea.vmem %s14, 2688
        %v5989 = vld [vmem:[%s5988] sm:$0xff]
        %v5990 = vld [vmem:[%s5988 + $0x8] sm:$0xff]
        %v5991 = vld [vmem:[%s5988 + $0x10] sm:$0xff]
        %v5992 = vld [vmem:[%s5988 + $0x18] sm:$0xff]
        %v5993 = vld [vmem:[%s5988 + $0x20] sm:$0xf]
        %v5994 = vld [vmem:[%s5988 + $0x28] sm:$0xf]
        %v5995 = vld [vmem:[%s5988 + $0x30] sm:$0xf]
        %v5996 = vld [vmem:[%s5988 + $0x38] sm:$0xf]
        %v5997 = vmul.f32 %v5984, %v5989
        %v5998 = vmul.f32 %v5982, %v5990
        %v5999 = vmul.f32 %v5980, %v5991
        %v6000 = vmul.f32 %v5986, %v5992
        %v6001 = vmul.f32 %v5985, %v5993
        %v6002 = vmul.f32 %v5983, %v5994
        %v6003 = vmul.f32 %v5981, %v5995
        %v6004 = vmul.f32 %v5987, %v5996
        %v6005 = vadd.f32 %v5955, %v5997
        %v6006 = vadd.f32 %v5956, %v5998
        %v6007 = vadd.f32 %v5957, %v5999
        %v6008 = vadd.f32 %v5958, %v6000
        %v6009 = vadd.f32 %v5959, %v6001
        %v6010 = vadd.f32 %v5960, %v6002
        %v6011 = vadd.f32 %v5961, %v6003
        %v6012 = vadd.f32 %v5962, %v6004
        %6013 = vrot.lane.b32.xlu0 %v3913, 106
        %v6014 = vpop.permute.xlu0 %6013
        %6015 = vrot.lane.b32.xlu0 %v3917, 106
        %v6016 = vpop.permute.xlu0 %6015
        %6017 = vrot.lane.b32.xlu0 %v3914, 106
        %v6018 = vpop.permute.xlu0 %6017
        %6019 = vrot.lane.b32.xlu0 %v3918, 106
        %v6020 = vpop.permute.xlu0 %6019
        %6021 = vrot.lane.b32.xlu0 %v3915, 106
        %v6022 = vpop.permute.xlu0 %6021
        %6023 = vrot.lane.b32.xlu0 %v3919, 106
        %v6024 = vpop.permute.xlu0 %6023
        %6025 = vrot.lane.b32.xlu0 %v3916, 106
        %v6026 = vpop.permute.xlu0 %6025
        %6027 = vrot.lane.b32.xlu0 %v3920, 106
        %v6028 = vpop.permute.xlu0 %6027
        %vm6029 = vcmp.lt.s32.totalorder %v1932, 106
        %v6030 = vsel %vm6029, %v6022, %v6026
        %v6031 = vsel %vm6029, %v6024, %v6028
        %v6032 = vsel %vm6029, %v6018, %v6022
        %v6033 = vsel %vm6029, %v6020, %v6024
        %v6034 = vsel %vm6029, %v6014, %v6018
        %v6035 = vsel %vm6029, %v6016, %v6020
        %v6036 = vsel %vm6029, %v6026, %v6014
        %v6037 = vsel %vm6029, %v6028, %v6016
        %s6038 = scalar_lea.vmem %s14, 2752
        %v6039 = vld [vmem:[%s6038] sm:$0xff]
        %v6040 = vld [vmem:[%s6038 + $0x8] sm:$0xff]
        %v6041 = vld [vmem:[%s6038 + $0x10] sm:$0xff]
        %v6042 = vld [vmem:[%s6038 + $0x18] sm:$0xff]
        %v6043 = vld [vmem:[%s6038 + $0x20] sm:$0xf]
        %v6044 = vld [vmem:[%s6038 + $0x28] sm:$0xf]
        %v6045 = vld [vmem:[%s6038 + $0x30] sm:$0xf]
        %v6046 = vld [vmem:[%s6038 + $0x38] sm:$0xf]
        %v6047 = vmul.f32 %v6034, %v6039
        %v6048 = vmul.f32 %v6032, %v6040
        %v6049 = vmul.f32 %v6030, %v6041
        %v6050 = vmul.f32 %v6036, %v6042
        %v6051 = vmul.f32 %v6035, %v6043
        %v6052 = vmul.f32 %v6033, %v6044
        %v6053 = vmul.f32 %v6031, %v6045
        %v6054 = vmul.f32 %v6037, %v6046
        %v6055 = vadd.f32 %v6005, %v6047
        %v6056 = vadd.f32 %v6006, %v6048
        %v6057 = vadd.f32 %v6007, %v6049
        %v6058 = vadd.f32 %v6008, %v6050
        %v6059 = vadd.f32 %v6009, %v6051
        %v6060 = vadd.f32 %v6010, %v6052
        %v6061 = vadd.f32 %v6011, %v6053
        %v6062 = vadd.f32 %v6012, %v6054
        %6063 = vrot.lane.b32.xlu0 %v3913, 105
        %v6064 = vpop.permute.xlu0 %6063
        %6065 = vrot.lane.b32.xlu0 %v3917, 105
        %v6066 = vpop.permute.xlu0 %6065
        %6067 = vrot.lane.b32.xlu0 %v3914, 105
        %v6068 = vpop.permute.xlu0 %6067
        %6069 = vrot.lane.b32.xlu0 %v3918, 105
        %v6070 = vpop.permute.xlu0 %6069
        %6071 = vrot.lane.b32.xlu0 %v3915, 105
        %v6072 = vpop.permute.xlu0 %6071
        %6073 = vrot.lane.b32.xlu0 %v3919, 105
        %v6074 = vpop.permute.xlu0 %6073
        %6075 = vrot.lane.b32.xlu0 %v3916, 105
        %v6076 = vpop.permute.xlu0 %6075
        %6077 = vrot.lane.b32.xlu0 %v3920, 105
        %v6078 = vpop.permute.xlu0 %6077
        %vm6079 = vcmp.lt.s32.totalorder %v1932, 105
        %v6080 = vsel %vm6079, %v6072, %v6076
        %v6081 = vsel %vm6079, %v6074, %v6078
        %v6082 = vsel %vm6079, %v6068, %v6072
        %v6083 = vsel %vm6079, %v6070, %v6074
        %v6084 = vsel %vm6079, %v6064, %v6068
        %v6085 = vsel %vm6079, %v6066, %v6070
        %v6086 = vsel %vm6079, %v6076, %v6064
        %v6087 = vsel %vm6079, %v6078, %v6066
        %s6088 = scalar_lea.vmem %s14, 2816
        %v6089 = vld [vmem:[%s6088] sm:$0xff]
        %v6090 = vld [vmem:[%s6088 + $0x8] sm:$0xff]
        %v6091 = vld [vmem:[%s6088 + $0x10] sm:$0xff]
        %v6092 = vld [vmem:[%s6088 + $0x18] sm:$0xff]
        %v6093 = vld [vmem:[%s6088 + $0x20] sm:$0xf]
        %v6094 = vld [vmem:[%s6088 + $0x28] sm:$0xf]
        %v6095 = vld [vmem:[%s6088 + $0x30] sm:$0xf]
        %v6096 = vld [vmem:[%s6088 + $0x38] sm:$0xf]
        %v6097 = vmul.f32 %v6084, %v6089
        %v6098 = vmul.f32 %v6082, %v6090
        %v6099 = vmul.f32 %v6080, %v6091
        %v6100 = vmul.f32 %v6086, %v6092
        %v6101 = vmul.f32 %v6085, %v6093
        %v6102 = vmul.f32 %v6083, %v6094
        %v6103 = vmul.f32 %v6081, %v6095
        %v6104 = vmul.f32 %v6087, %v6096
        %v6105 = vadd.f32 %v6055, %v6097
        %v6106 = vadd.f32 %v6056, %v6098
        %v6107 = vadd.f32 %v6057, %v6099
        %v6108 = vadd.f32 %v6058, %v6100
        %v6109 = vadd.f32 %v6059, %v6101
        %v6110 = vadd.f32 %v6060, %v6102
        %v6111 = vadd.f32 %v6061, %v6103
        %v6112 = vadd.f32 %v6062, %v6104
        %6113 = vrot.lane.b32.xlu0 %v3913, 104
        %v6114 = vpop.permute.xlu0 %6113
        %6115 = vrot.lane.b32.xlu0 %v3917, 104
        %v6116 = vpop.permute.xlu0 %6115
        %6117 = vrot.lane.b32.xlu0 %v3914, 104
        %v6118 = vpop.permute.xlu0 %6117
        %6119 = vrot.lane.b32.xlu0 %v3918, 104
        %v6120 = vpop.permute.xlu0 %6119
        %6121 = vrot.lane.b32.xlu0 %v3915, 104
        %v6122 = vpop.permute.xlu0 %6121
        %6123 = vrot.lane.b32.xlu0 %v3919, 104
        %v6124 = vpop.permute.xlu0 %6123
        %6125 = vrot.lane.b32.xlu0 %v3916, 104
        %v6126 = vpop.permute.xlu0 %6125
        %6127 = vrot.lane.b32.xlu0 %v3920, 104
        %v6128 = vpop.permute.xlu0 %6127
        %vm6129 = vcmp.lt.s32.totalorder %v1932, 104
        %v6130 = vsel %vm6129, %v6122, %v6126
        %v6131 = vsel %vm6129, %v6124, %v6128
        %v6132 = vsel %vm6129, %v6118, %v6122
        %v6133 = vsel %vm6129, %v6120, %v6124
        %v6134 = vsel %vm6129, %v6114, %v6118
        %v6135 = vsel %vm6129, %v6116, %v6120
        %v6136 = vsel %vm6129, %v6126, %v6114
        %v6137 = vsel %vm6129, %v6128, %v6116
        %s6138 = scalar_lea.vmem %s14, 2880
        %v6139 = vld [vmem:[%s6138] sm:$0xff]
        %v6140 = vld [vmem:[%s6138 + $0x8] sm:$0xff]
        %v6141 = vld [vmem:[%s6138 + $0x10] sm:$0xff]
        %v6142 = vld [vmem:[%s6138 + $0x18] sm:$0xff]
        %v6143 = vld [vmem:[%s6138 + $0x20] sm:$0xf]
        %v6144 = vld [vmem:[%s6138 + $0x28] sm:$0xf]
        %v6145 = vld [vmem:[%s6138 + $0x30] sm:$0xf]
        %v6146 = vld [vmem:[%s6138 + $0x38] sm:$0xf]
        %v6147 = vmul.f32 %v6134, %v6139
        %v6148 = vmul.f32 %v6132, %v6140
        %v6149 = vmul.f32 %v6130, %v6141
        %v6150 = vmul.f32 %v6136, %v6142
        %v6151 = vmul.f32 %v6135, %v6143
        %v6152 = vmul.f32 %v6133, %v6144
        %v6153 = vmul.f32 %v6131, %v6145
        %v6154 = vmul.f32 %v6137, %v6146
        %v6155 = vadd.f32 %v6105, %v6147
        %v6156 = vadd.f32 %v6106, %v6148
        %v6157 = vadd.f32 %v6107, %v6149
        %v6158 = vadd.f32 %v6108, %v6150
        %v6159 = vadd.f32 %v6109, %v6151
        %v6160 = vadd.f32 %v6110, %v6152
        %v6161 = vadd.f32 %v6111, %v6153
        %v6162 = vadd.f32 %v6112, %v6154
        %6163 = vrot.lane.b32.xlu0 %v3913, 103
        %v6164 = vpop.permute.xlu0 %6163
        %6165 = vrot.lane.b32.xlu0 %v3917, 103
        %v6166 = vpop.permute.xlu0 %6165
        %6167 = vrot.lane.b32.xlu0 %v3914, 103
        %v6168 = vpop.permute.xlu0 %6167
        %6169 = vrot.lane.b32.xlu0 %v3918, 103
        %v6170 = vpop.permute.xlu0 %6169
        %6171 = vrot.lane.b32.xlu0 %v3915, 103
        %v6172 = vpop.permute.xlu0 %6171
        %6173 = vrot.lane.b32.xlu0 %v3919, 103
        %v6174 = vpop.permute.xlu0 %6173
        %6175 = vrot.lane.b32.xlu0 %v3916, 103
        %v6176 = vpop.permute.xlu0 %6175
        %6177 = vrot.lane.b32.xlu0 %v3920, 103
        %v6178 = vpop.permute.xlu0 %6177
        %vm6179 = vcmp.lt.s32.totalorder %v1932, 103
        %v6180 = vsel %vm6179, %v6172, %v6176
        %v6181 = vsel %vm6179, %v6174, %v6178
        %v6182 = vsel %vm6179, %v6168, %v6172
        %v6183 = vsel %vm6179, %v6170, %v6174
        %v6184 = vsel %vm6179, %v6164, %v6168
        %v6185 = vsel %vm6179, %v6166, %v6170
        %v6186 = vsel %vm6179, %v6176, %v6164
        %v6187 = vsel %vm6179, %v6178, %v6166
        %s6188 = scalar_lea.vmem %s14, 2944
        %v6189 = vld [vmem:[%s6188] sm:$0xff]
        %v6190 = vld [vmem:[%s6188 + $0x8] sm:$0xff]
        %v6191 = vld [vmem:[%s6188 + $0x10] sm:$0xff]
        %v6192 = vld [vmem:[%s6188 + $0x18] sm:$0xff]
        %v6193 = vld [vmem:[%s6188 + $0x20] sm:$0xf]
        %v6194 = vld [vmem:[%s6188 + $0x28] sm:$0xf]
        %v6195 = vld [vmem:[%s6188 + $0x30] sm:$0xf]
        %v6196 = vld [vmem:[%s6188 + $0x38] sm:$0xf]
        %v6197 = vmul.f32 %v6184, %v6189
        %v6198 = vmul.f32 %v6182, %v6190
        %v6199 = vmul.f32 %v6180, %v6191
        %v6200 = vmul.f32 %v6186, %v6192
        %v6201 = vmul.f32 %v6185, %v6193
        %v6202 = vmul.f32 %v6183, %v6194
        %v6203 = vmul.f32 %v6181, %v6195
        %v6204 = vmul.f32 %v6187, %v6196
        %v6205 = vadd.f32 %v6155, %v6197
        %v6206 = vadd.f32 %v6156, %v6198
        %v6207 = vadd.f32 %v6157, %v6199
        %v6208 = vadd.f32 %v6158, %v6200
        %v6209 = vadd.f32 %v6159, %v6201
        %v6210 = vadd.f32 %v6160, %v6202
        %v6211 = vadd.f32 %v6161, %v6203
        %v6212 = vadd.f32 %v6162, %v6204
        %6213 = vrot.lane.b32.xlu0 %v3913, 102
        %v6214 = vpop.permute.xlu0 %6213
        %6215 = vrot.lane.b32.xlu0 %v3917, 102
        %v6216 = vpop.permute.xlu0 %6215
        %6217 = vrot.lane.b32.xlu0 %v3914, 102
        %v6218 = vpop.permute.xlu0 %6217
        %6219 = vrot.lane.b32.xlu0 %v3918, 102
        %v6220 = vpop.permute.xlu0 %6219
        %6221 = vrot.lane.b32.xlu0 %v3915, 102
        %v6222 = vpop.permute.xlu0 %6221
        %6223 = vrot.lane.b32.xlu0 %v3919, 102
        %v6224 = vpop.permute.xlu0 %6223
        %6225 = vrot.lane.b32.xlu0 %v3916, 102
        %v6226 = vpop.permute.xlu0 %6225
        %6227 = vrot.lane.b32.xlu0 %v3920, 102
        %v6228 = vpop.permute.xlu0 %6227
        %vm6229 = vcmp.lt.s32.totalorder %v1932, 102
        %v6230 = vsel %vm6229, %v6222, %v6226
        %v6231 = vsel %vm6229, %v6224, %v6228
        %v6232 = vsel %vm6229, %v6218, %v6222
        %v6233 = vsel %vm6229, %v6220, %v6224
        %v6234 = vsel %vm6229, %v6214, %v6218
        %v6235 = vsel %vm6229, %v6216, %v6220
        %v6236 = vsel %vm6229, %v6226, %v6214
        %v6237 = vsel %vm6229, %v6228, %v6216
        %s6238 = scalar_lea.vmem %s14, 3008
        %v6239 = vld [vmem:[%s6238] sm:$0xff]
        %v6240 = vld [vmem:[%s6238 + $0x8] sm:$0xff]
        %v6241 = vld [vmem:[%s6238 + $0x10] sm:$0xff]
        %v6242 = vld [vmem:[%s6238 + $0x18] sm:$0xff]
        %v6243 = vld [vmem:[%s6238 + $0x20] sm:$0xf]
        %v6244 = vld [vmem:[%s6238 + $0x28] sm:$0xf]
        %v6245 = vld [vmem:[%s6238 + $0x30] sm:$0xf]
        %v6246 = vld [vmem:[%s6238 + $0x38] sm:$0xf]
        %v6247 = vmul.f32 %v6234, %v6239
        %v6248 = vmul.f32 %v6232, %v6240
        %v6249 = vmul.f32 %v6230, %v6241
        %v6250 = vmul.f32 %v6236, %v6242
        %v6251 = vmul.f32 %v6235, %v6243
        %v6252 = vmul.f32 %v6233, %v6244
        %v6253 = vmul.f32 %v6231, %v6245
        %v6254 = vmul.f32 %v6237, %v6246
        %v6255 = vadd.f32 %v6205, %v6247
        %v6256 = vadd.f32 %v6206, %v6248
        %v6257 = vadd.f32 %v6207, %v6249
        %v6258 = vadd.f32 %v6208, %v6250
        %v6259 = vadd.f32 %v6209, %v6251
        %v6260 = vadd.f32 %v6210, %v6252
        %v6261 = vadd.f32 %v6211, %v6253
        %v6262 = vadd.f32 %v6212, %v6254
        %6263 = vrot.lane.b32.xlu0 %v3913, 101
        %v6264 = vpop.permute.xlu0 %6263
        %6265 = vrot.lane.b32.xlu0 %v3917, 101
        %v6266 = vpop.permute.xlu0 %6265
        %6267 = vrot.lane.b32.xlu0 %v3914, 101
        %v6268 = vpop.permute.xlu0 %6267
        %6269 = vrot.lane.b32.xlu0 %v3918, 101
        %v6270 = vpop.permute.xlu0 %6269
        %6271 = vrot.lane.b32.xlu0 %v3915, 101
        %v6272 = vpop.permute.xlu0 %6271
        %6273 = vrot.lane.b32.xlu0 %v3919, 101
        %v6274 = vpop.permute.xlu0 %6273
        %6275 = vrot.lane.b32.xlu0 %v3916, 101
        %v6276 = vpop.permute.xlu0 %6275
        %6277 = vrot.lane.b32.xlu0 %v3920, 101
        %v6278 = vpop.permute.xlu0 %6277
        %vm6279 = vcmp.lt.s32.totalorder %v1932, 101
        %v6280 = vsel %vm6279, %v6272, %v6276
        %v6281 = vsel %vm6279, %v6274, %v6278
        %v6282 = vsel %vm6279, %v6268, %v6272
        %v6283 = vsel %vm6279, %v6270, %v6274
        %v6284 = vsel %vm6279, %v6264, %v6268
        %v6285 = vsel %vm6279, %v6266, %v6270
        %v6286 = vsel %vm6279, %v6276, %v6264
        %v6287 = vsel %vm6279, %v6278, %v6266
        %s6288 = scalar_lea.vmem %s14, 3072
        %v6289 = vld [vmem:[%s6288] sm:$0xff]
        %v6290 = vld [vmem:[%s6288 + $0x8] sm:$0xff]
        %v6291 = vld [vmem:[%s6288 + $0x10] sm:$0xff]
        %v6292 = vld [vmem:[%s6288 + $0x18] sm:$0xff]
        %v6293 = vld [vmem:[%s6288 + $0x20] sm:$0xf]
        %v6294 = vld [vmem:[%s6288 + $0x28] sm:$0xf]
        %v6295 = vld [vmem:[%s6288 + $0x30] sm:$0xf]
        %v6296 = vld [vmem:[%s6288 + $0x38] sm:$0xf]
        %v6297 = vmul.f32 %v6284, %v6289
        %v6298 = vmul.f32 %v6282, %v6290
        %v6299 = vmul.f32 %v6280, %v6291
        %v6300 = vmul.f32 %v6286, %v6292
        %v6301 = vmul.f32 %v6285, %v6293
        %v6302 = vmul.f32 %v6283, %v6294
        %v6303 = vmul.f32 %v6281, %v6295
        %v6304 = vmul.f32 %v6287, %v6296
        %v6305 = vadd.f32 %v6255, %v6297
        %v6306 = vadd.f32 %v6256, %v6298
        %v6307 = vadd.f32 %v6257, %v6299
        %v6308 = vadd.f32 %v6258, %v6300
        %v6309 = vadd.f32 %v6259, %v6301
        %v6310 = vadd.f32 %v6260, %v6302
        %v6311 = vadd.f32 %v6261, %v6303
        %v6312 = vadd.f32 %v6262, %v6304
        %v6313 = vld [vmem:[%s18] sm:$0xff]
        %v6314 = vld [vmem:[%s18 + $0x8] sm:$0xf]
        %6315 = vset.pattern.permute.xlu0 7
        %6316 = vperm.xlu0 %6315, %v1016
        %v6317 = vpop.permute.xlu0 %6316
        %6319 = vset.pattern.permute.xlu0 7
        %6320 = vperm.xlu0 %6319, %v1017
        %v6321 = vpop.permute.xlu0 %6320
        %v6324 = vsel %vm935, %v6313, 0
        %v6327 = vsel %vm935, %v6314, 0
        %v6330 = vsel %vm939, %v6309, 0
        %v6333 = vsel %vm939, %v6310, 0
        %v6336 = vsel %vm939, %v6311, 0
        %v6339 = vsel %vm939, %v6312, 0
        %6341 = vmatprep.subr.mxu0 0.0
        %6342 = vmatpush1.msra.mxu0 0.0
        %6343 = vmatprep.subr.mxu0 0.0
        %6344 = vmatpush1.msra.mxu0 0.0
        %6345 = vmatprep.subr.mxu0 0.0
        %6346 = vmatpush1.msra.mxu0 0.0
        %6347 = vmatprep.subr.mxu0 0.0
        %6348 = vmatpush1.msra.mxu0 0.0
        %6349 = vmatprep.subr.mxu0 0.0
        %6350 = vmatpush1.msra.mxu0 0.0
        %6351 = vmatprep.subr.mxu0 0.0
        %6352 = vmatpush1.msra.mxu0 0.0
        %6353 = vmatprep.subr.mxu0 0.0
        %6354 = vmatpush1.msra.mxu0 0.0
        %6355 = vmatprep.subr.mxu0 0.0
        %6356 = vmatpush1.msra.mxu0 0.0
        %6357 = vmatprep.subr.mxu0 0.0
        %6358 = vmatpush1.msra.mxu0 0.0
        %6359 = vmatprep.subr.mxu0 0.0
        %6360 = vmatpush1.msra.mxu0 0.0
        %6361 = vmatprep.subr.mxu0 0.0
        %6362 = vmatpush1.msra.mxu0 0.0
        %6363 = vmatprep.subr.mxu0 0.0
        %6364 = vmatpush1.msra.mxu0 0.0
        %6365 = vmatprep.subr.mxu0 0.0
        %6366 = vmatpush1.msra.mxu0 0.0
        %6367 = vmatprep.subr.mxu0 0.0
        %6368 = vmatpush1.msra.mxu0 0.0
        %6369 = vmatprep.subr.mxu0 %v6333
        %6370 = vmatpush1.msra.mxu0 %v6330
        %6371 = vmatprep.subr.mxu0 %v6306
        %6372 = vmatpush1.msra.mxu0 %v6305
        %6373 = vmatprep.subr.mxu0 0.0
        %6374 = vmatpush2.msra.mxu0 0.0
        %6375 = vmatprep.subr.mxu0 0.0
        %6376 = vmatpush2.msra.mxu0 0.0
        %6377 = vmatprep.subr.mxu0 0.0
        %6378 = vmatpush2.msra.mxu0 0.0
        %6379 = vmatprep.subr.mxu0 0.0
        %6380 = vmatpush2.msra.mxu0 0.0
        %6381 = vmatprep.subr.mxu0 0.0
        %6382 = vmatpush2.msra.mxu0 0.0
        %6383 = vmatprep.subr.mxu0 0.0
        %6384 = vmatpush2.msra.mxu0 0.0
        %6385 = vmatprep.subr.mxu0 0.0
        %6386 = vmatpush2.msra.mxu0 0.0
        %6387 = vmatprep.subr.mxu0 0.0
        %6388 = vmatpush2.msra.mxu0 0.0
        %6389 = vmatprep.subr.mxu0 0.0
        %6390 = vmatpush2.msra.mxu0 0.0
        %6391 = vmatprep.subr.mxu0 0.0
        %6392 = vmatpush2.msra.mxu0 0.0
        %6393 = vmatprep.subr.mxu0 0.0
        %6394 = vmatpush2.msra.mxu0 0.0
        %6395 = vmatprep.subr.mxu0 0.0
        %6396 = vmatpush2.msra.mxu0 0.0
        %6397 = vmatprep.subr.mxu0 0.0
        %6398 = vmatpush2.msra.mxu0 0.0
        %6399 = vmatprep.subr.mxu0 0.0
        %6400 = vmatpush2.msra.mxu0 0.0
        %6401 = vmatprep.subr.mxu0 0.0
        %6402 = vmatpush2.msra.mxu0 0.0
        %6403 = vmatprep.subr.mxu0 0.0
        %6404 = vmatpush2.msra.mxu0 0.0
        %6405 = vmatprep.mubr.f32.mxu0 0.0
        %6406 = vmatmul.mubr.f32.gmra.mxu0 %v6324
        %v6407 = vpop.f32.mrf.mxu0
        %v6408 = vadd.f32 %v6317, %v6407
        %v6409 = vpop.f32.mrf.mxu0
        %v6410 = vadd.f32 %v6317, %v6409
        %6411 = vmatprep.mubr.f32.mxu0 0.0
        %6412 = vmatmul.mubr.f32.gmra.mxu0 %v6327
        %v6413 = vpop.f32.mrf.mxu0
        %v6414 = vadd.f32 %v6321, %v6413
        %v6415 = vpop.f32.mrf.mxu0
        %v6416 = vadd.f32 %v6321, %v6415
        %6417 = vdwg.mxu0
        %6418 = vmatprep.subr.mxu0 0.0
        %6419 = vmatpush1.msra.mxu0 0.0
        %6420 = vmatprep.subr.mxu0 0.0
        %6421 = vmatpush1.msra.mxu0 0.0
        %6422 = vmatprep.subr.mxu0 0.0
        %6423 = vmatpush1.msra.mxu0 0.0
        %6424 = vmatprep.subr.mxu0 0.0
        %6425 = vmatpush1.msra.mxu0 0.0
        %6426 = vmatprep.subr.mxu0 0.0
        %6427 = vmatpush1.msra.mxu0 0.0
        %6428 = vmatprep.subr.mxu0 0.0
        %6429 = vmatpush1.msra.mxu0 0.0
        %6430 = vmatprep.subr.mxu0 0.0
        %6431 = vmatpush1.msra.mxu0 0.0
        %6432 = vmatprep.subr.mxu0 0.0
        %6433 = vmatpush1.msra.mxu0 0.0
        %6434 = vmatprep.subr.mxu0 0.0
        %6435 = vmatpush1.msra.mxu0 0.0
        %6436 = vmatprep.subr.mxu0 0.0
        %6437 = vmatpush1.msra.mxu0 0.0
        %6438 = vmatprep.subr.mxu0 0.0
        %6439 = vmatpush1.msra.mxu0 0.0
        %6440 = vmatprep.subr.mxu0 0.0
        %6441 = vmatpush1.msra.mxu0 0.0
        %6442 = vmatprep.subr.mxu0 0.0
        %6443 = vmatpush1.msra.mxu0 0.0
        %6444 = vmatprep.subr.mxu0 0.0
        %6445 = vmatpush1.msra.mxu0 0.0
        %6446 = vmatprep.subr.mxu0 %v6339
        %6447 = vmatpush1.msra.mxu0 %v6336
        %6448 = vmatprep.subr.mxu0 %v6308
        %6449 = vmatpush1.msra.mxu0 %v6307
        %6450 = vmatprep.subr.mxu0 0.0
        %6451 = vmatpush2.msra.mxu0 0.0
        %6452 = vmatprep.subr.mxu0 0.0
        %6453 = vmatpush2.msra.mxu0 0.0
        %6454 = vmatprep.subr.mxu0 0.0
        %6455 = vmatpush2.msra.mxu0 0.0
        %6456 = vmatprep.subr.mxu0 0.0
        %6457 = vmatpush2.msra.mxu0 0.0
        %6458 = vmatprep.subr.mxu0 0.0
        %6459 = vmatpush2.msra.mxu0 0.0
        %6460 = vmatprep.subr.mxu0 0.0
        %6461 = vmatpush2.msra.mxu0 0.0
        %6462 = vmatprep.subr.mxu0 0.0
        %6463 = vmatpush2.msra.mxu0 0.0
        %6464 = vmatprep.subr.mxu0 0.0
        %6465 = vmatpush2.msra.mxu0 0.0
        %6466 = vmatprep.subr.mxu0 0.0
        %6467 = vmatpush2.msra.mxu0 0.0
        %6468 = vmatprep.subr.mxu0 0.0
        %6469 = vmatpush2.msra.mxu0 0.0
        %6470 = vmatprep.subr.mxu0 0.0
        %6471 = vmatpush2.msra.mxu0 0.0
        %6472 = vmatprep.subr.mxu0 0.0
        %6473 = vmatpush2.msra.mxu0 0.0
        %6474 = vmatprep.subr.mxu0 0.0
        %6475 = vmatpush2.msra.mxu0 0.0
        %6476 = vmatprep.subr.mxu0 0.0
        %6477 = vmatpush2.msra.mxu0 0.0
        %6478 = vmatprep.subr.mxu0 0.0
        %6479 = vmatpush2.msra.mxu0 0.0
        %6480 = vmatprep.subr.mxu0 0.0
        %6481 = vmatpush2.msra.mxu0 0.0
        %6482 = vmatprep.mubr.f32.mxu0 0.0
        %6483 = vmatmul.mubr.f32.gmra.mxu0 %v6324
        %v6484 = vpop.f32.mrf.mxu0
        %v6485 = vadd.f32 %v6317, %v6484
        %v6486 = vpop.f32.mrf.mxu0
        %v6487 = vadd.f32 %v6317, %v6486
        %6488 = vmatprep.mubr.f32.mxu0 0.0
        %6489 = vmatmul.mubr.f32.gmra.mxu0 %v6327
        %v6490 = vpop.f32.mrf.mxu0
        %v6491 = vadd.f32 %v6321, %v6490
        %v6492 = vpop.f32.mrf.mxu0
        %v6493 = vadd.f32 %v6321, %v6492
        %6494 = vdwg.mxu0
        %v6495 = vadd.f32 %v6408, %v1907
        %v6496 = vadd.f32 %v6410, %v1908
        %v6497 = vadd.f32 %v6485, %v1909
        %v6498 = vadd.f32 %v6487, %v1910
        %v6499 = vadd.f32 %v6414, %v1911
        %v6500 = vadd.f32 %v6416, %v1912
        %v6501 = vadd.f32 %v6491, %v1913
        %v6502 = vadd.f32 %v6493, %v1914
        %v6503 = vmax.f32 %v6495, 0.0
        %v6504 = vmax.f32 %v6496, 0.0
        %v6505 = vmax.f32 %v6497, 0.0
        %v6506 = vmax.f32 %v6498, 0.0
        %v6507 = vmax.f32 %v6499, 0.0
        %v6508 = vmax.f32 %v6500, 0.0
        %v6509 = vmax.f32 %v6501, 0.0
        %v6510 = vmax.f32 %v6502, 0.0
        %v6511 = vld [vmem:[%s19] sm:$0xff]
        %v6512 = vld [vmem:[%s19 + $0x8] sm:$0xf]
        %6513 = vset.pattern.permute.xlu0 8
        %6514 = vperm.xlu0 %6513, %v1016
        %v6515 = vpop.permute.xlu0 %6514
        %6517 = vset.pattern.permute.xlu0 8
        %6518 = vperm.xlu0 %6517, %v1017
        %v6519 = vpop.permute.xlu0 %6518
        %v6522 = vsel %vm935, %v6511, 0
        %v6525 = vsel %vm935, %v6512, 0
        %v6528 = vsel %vm939, %v6507, 0
        %v6531 = vsel %vm939, %v6508, 0
        %v6534 = vsel %vm939, %v6509, 0
        %v6537 = vsel %vm939, %v6510, 0
        %6539 = vmatprep.subr.mxu0 0.0
        %6540 = vmatpush1.msra.mxu0 0.0
        %6541 = vmatprep.subr.mxu0 0.0
        %6542 = vmatpush1.msra.mxu0 0.0
        %6543 = vmatprep.subr.mxu0 0.0
        %6544 = vmatpush1.msra.mxu0 0.0
        %6545 = vmatprep.subr.mxu0 0.0
        %6546 = vmatpush1.msra.mxu0 0.0
        %6547 = vmatprep.subr.mxu0 0.0
        %6548 = vmatpush1.msra.mxu0 0.0
        %6549 = vmatprep.subr.mxu0 0.0
        %6550 = vmatpush1.msra.mxu0 0.0
        %6551 = vmatprep.subr.mxu0 0.0
        %6552 = vmatpush1.msra.mxu0 0.0
        %6553 = vmatprep.subr.mxu0 0.0
        %6554 = vmatpush1.msra.mxu0 0.0
        %6555 = vmatprep.subr.mxu0 0.0
        %6556 = vmatpush1.msra.mxu0 0.0
        %6557 = vmatprep.subr.mxu0 0.0
        %6558 = vmatpush1.msra.mxu0 0.0
        %6559 = vmatprep.subr.mxu0 0.0
        %6560 = vmatpush1.msra.mxu0 0.0
        %6561 = vmatprep.subr.mxu0 0.0
        %6562 = vmatpush1.msra.mxu0 0.0
        %6563 = vmatprep.subr.mxu0 0.0
        %6564 = vmatpush1.msra.mxu0 0.0
        %6565 = vmatprep.subr.mxu0 0.0
        %6566 = vmatpush1.msra.mxu0 0.0
        %6567 = vmatprep.subr.mxu0 %v6531
        %6568 = vmatpush1.msra.mxu0 %v6528
        %6569 = vmatprep.subr.mxu0 %v6504
        %6570 = vmatpush1.msra.mxu0 %v6503
        %6571 = vmatprep.subr.mxu0 0.0
        %6572 = vmatpush2.msra.mxu0 0.0
        %6573 = vmatprep.subr.mxu0 0.0
        %6574 = vmatpush2.msra.mxu0 0.0
        %6575 = vmatprep.subr.mxu0 0.0
        %6576 = vmatpush2.msra.mxu0 0.0
        %6577 = vmatprep.subr.mxu0 0.0
        %6578 = vmatpush2.msra.mxu0 0.0
        %6579 = vmatprep.subr.mxu0 0.0
        %6580 = vmatpush2.msra.mxu0 0.0
        %6581 = vmatprep.subr.mxu0 0.0
        %6582 = vmatpush2.msra.mxu0 0.0
        %6583 = vmatprep.subr.mxu0 0.0
        %6584 = vmatpush2.msra.mxu0 0.0
        %6585 = vmatprep.subr.mxu0 0.0
        %6586 = vmatpush2.msra.mxu0 0.0
        %6587 = vmatprep.subr.mxu0 0.0
        %6588 = vmatpush2.msra.mxu0 0.0
        %6589 = vmatprep.subr.mxu0 0.0
        %6590 = vmatpush2.msra.mxu0 0.0
        %6591 = vmatprep.subr.mxu0 0.0
        %6592 = vmatpush2.msra.mxu0 0.0
        %6593 = vmatprep.subr.mxu0 0.0
        %6594 = vmatpush2.msra.mxu0 0.0
        %6595 = vmatprep.subr.mxu0 0.0
        %6596 = vmatpush2.msra.mxu0 0.0
        %6597 = vmatprep.subr.mxu0 0.0
        %6598 = vmatpush2.msra.mxu0 0.0
        %6599 = vmatprep.subr.mxu0 0.0
        %6600 = vmatpush2.msra.mxu0 0.0
        %6601 = vmatprep.subr.mxu0 0.0
        %6602 = vmatpush2.msra.mxu0 0.0
        %6603 = vmatprep.mubr.f32.mxu0 0.0
        %6604 = vmatmul.mubr.f32.gmra.mxu0 %v6522
        %v6605 = vpop.f32.mrf.mxu0
        %v6606 = vadd.f32 %v6515, %v6605
        %v6607 = vpop.f32.mrf.mxu0
        %v6608 = vadd.f32 %v6515, %v6607
        %6609 = vmatprep.mubr.f32.mxu0 0.0
        %6610 = vmatmul.mubr.f32.gmra.mxu0 %v6525
        %v6611 = vpop.f32.mrf.mxu0
        %v6612 = vadd.f32 %v6519, %v6611
        %v6613 = vpop.f32.mrf.mxu0
        %v6614 = vadd.f32 %v6519, %v6613
        %6615 = vdwg.mxu0
        %6616 = vmatprep.subr.mxu0 0.0
        %6617 = vmatpush1.msra.mxu0 0.0
        %6618 = vmatprep.subr.mxu0 0.0
        %6619 = vmatpush1.msra.mxu0 0.0
        %6620 = vmatprep.subr.mxu0 0.0
        %6621 = vmatpush1.msra.mxu0 0.0
        %6622 = vmatprep.subr.mxu0 0.0
        %6623 = vmatpush1.msra.mxu0 0.0
        %6624 = vmatprep.subr.mxu0 0.0
        %6625 = vmatpush1.msra.mxu0 0.0
        %6626 = vmatprep.subr.mxu0 0.0
        %6627 = vmatpush1.msra.mxu0 0.0
        %6628 = vmatprep.subr.mxu0 0.0
        %6629 = vmatpush1.msra.mxu0 0.0
        %6630 = vmatprep.subr.mxu0 0.0
        %6631 = vmatpush1.msra.mxu0 0.0
        %6632 = vmatprep.subr.mxu0 0.0
        %6633 = vmatpush1.msra.mxu0 0.0
        %6634 = vmatprep.subr.mxu0 0.0
        %6635 = vmatpush1.msra.mxu0 0.0
        %6636 = vmatprep.subr.mxu0 0.0
        %6637 = vmatpush1.msra.mxu0 0.0
        %6638 = vmatprep.subr.mxu0 0.0
        %6639 = vmatpush1.msra.mxu0 0.0
        %6640 = vmatprep.subr.mxu0 0.0
        %6641 = vmatpush1.msra.mxu0 0.0
        %6642 = vmatprep.subr.mxu0 0.0
        %6643 = vmatpush1.msra.mxu0 0.0
        %6644 = vmatprep.subr.mxu0 %v6537
        %6645 = vmatpush1.msra.mxu0 %v6534
        %6646 = vmatprep.subr.mxu0 %v6506
        %6647 = vmatpush1.msra.mxu0 %v6505
        %6648 = vmatprep.subr.mxu0 0.0
        %6649 = vmatpush2.msra.mxu0 0.0
        %6650 = vmatprep.subr.mxu0 0.0
        %6651 = vmatpush2.msra.mxu0 0.0
        %6652 = vmatprep.subr.mxu0 0.0
        %6653 = vmatpush2.msra.mxu0 0.0
        %6654 = vmatprep.subr.mxu0 0.0
        %6655 = vmatpush2.msra.mxu0 0.0
        %6656 = vmatprep.subr.mxu0 0.0
        %6657 = vmatpush2.msra.mxu0 0.0
        %6658 = vmatprep.subr.mxu0 0.0
        %6659 = vmatpush2.msra.mxu0 0.0
        %6660 = vmatprep.subr.mxu0 0.0
        %6661 = vmatpush2.msra.mxu0 0.0
        %6662 = vmatprep.subr.mxu0 0.0
        %6663 = vmatpush2.msra.mxu0 0.0
        %6664 = vmatprep.subr.mxu0 0.0
        %6665 = vmatpush2.msra.mxu0 0.0
        %6666 = vmatprep.subr.mxu0 0.0
        %6667 = vmatpush2.msra.mxu0 0.0
        %6668 = vmatprep.subr.mxu0 0.0
        %6669 = vmatpush2.msra.mxu0 0.0
        %6670 = vmatprep.subr.mxu0 0.0
        %6671 = vmatpush2.msra.mxu0 0.0
        %6672 = vmatprep.subr.mxu0 0.0
        %6673 = vmatpush2.msra.mxu0 0.0
        %6674 = vmatprep.subr.mxu0 0.0
        %6675 = vmatpush2.msra.mxu0 0.0
        %6676 = vmatprep.subr.mxu0 0.0
        %6677 = vmatpush2.msra.mxu0 0.0
        %6678 = vmatprep.subr.mxu0 0.0
        %6679 = vmatpush2.msra.mxu0 0.0
        %6680 = vmatprep.mubr.f32.mxu0 0.0
        %6681 = vmatmul.mubr.f32.gmra.mxu0 %v6522
        %v6682 = vpop.f32.mrf.mxu0
        %v6683 = vadd.f32 %v6515, %v6682
        %v6684 = vpop.f32.mrf.mxu0
        %v6685 = vadd.f32 %v6515, %v6684
        %6686 = vmatprep.mubr.f32.mxu0 0.0
        %6687 = vmatmul.mubr.f32.gmra.mxu0 %v6525
        %v6688 = vpop.f32.mrf.mxu0
        %v6689 = vadd.f32 %v6519, %v6688
        %v6690 = vpop.f32.mrf.mxu0
        %v6691 = vadd.f32 %v6519, %v6690
        %6692 = vdwg.mxu0
        %v6693 = vmax.f32 %v6606, 0.0
        %v6694 = vmax.f32 %v6608, 0.0
        %v6695 = vmax.f32 %v6683, 0.0
        %v6696 = vmax.f32 %v6685, 0.0
        %v6697 = vmax.f32 %v6612, 0.0
        %v6698 = vmax.f32 %v6614, 0.0
        %v6699 = vmax.f32 %v6689, 0.0
        %v6700 = vmax.f32 %v6691, 0.0
        %v6701 = vadd.f32 %v1899, %v6693
        %v6702 = vadd.f32 %v1900, %v6694
        %v6703 = vadd.f32 %v1901, %v6695
        %v6704 = vadd.f32 %v1902, %v6696
        %v6705 = vadd.f32 %v1903, %v6697
        %v6706 = vadd.f32 %v1904, %v6698
        %v6707 = vadd.f32 %v1905, %v6699
        %v6708 = vadd.f32 %v1906, %v6700
        %6709 = vmatprep.subr.mxu0 0.0
        %6710 = vmatpush1.msra.mxu0 %v713
        %6711 = vmatprep.subr.mxu0 0.0
        %6712 = vmatpush1.msra.mxu0 %v712
        %6713 = vmatprep.subr.mxu0 0.0
        %6714 = vmatpush1.msra.mxu0 %v711
        %6715 = vmatprep.subr.mxu0 0.0
        %6716 = vmatpush1.msra.mxu0 %v710
        %6717 = vmatprep.subr.mxu0 0.0
        %6718 = vmatpush1.msra.mxu0 %v709
        %6719 = vmatprep.subr.mxu0 0.0
        %6720 = vmatpush1.msra.mxu0 %v708
        %6721 = vmatprep.subr.mxu0 0.0
        %6722 = vmatpush1.msra.mxu0 %v707
        %6723 = vmatprep.subr.mxu0 0.0
        %6724 = vmatpush1.msra.mxu0 %v706
        %6725 = vmatprep.subr.mxu0 0.0
        %6726 = vmatpush1.msra.mxu0 %v705
        %6727 = vmatprep.subr.mxu0 0.0
        %6728 = vmatpush1.msra.mxu0 %v704
        %6729 = vmatprep.subr.mxu0 0.0
        %6730 = vmatpush1.msra.mxu0 %v703
        %6731 = vmatprep.subr.mxu0 0.0
        %6732 = vmatpush1.msra.mxu0 %v702
        %6733 = vmatprep.subr.mxu0 0.0
        %6734 = vmatpush1.msra.mxu0 %v701
        %6735 = vmatprep.subr.mxu0 0.0
        %6736 = vmatpush1.msra.mxu0 %v700
        %6737 = vmatprep.subr.mxu0 0.0
        %6738 = vmatpush1.msra.mxu0 %v699
        %6739 = vmatprep.subr.mxu0 0.0
        %6740 = vmatpush1.msra.mxu0 %v698
        %6741 = vmatprep.subr.mxu0 0.0
        %6742 = vmatpush2.msra.mxu0 %v729
        %6743 = vmatprep.subr.mxu0 0.0
        %6744 = vmatpush2.msra.mxu0 %v728
        %6745 = vmatprep.subr.mxu0 0.0
        %6746 = vmatpush2.msra.mxu0 %v727
        %6747 = vmatprep.subr.mxu0 0.0
        %6748 = vmatpush2.msra.mxu0 %v726
        %6749 = vmatprep.subr.mxu0 0.0
        %6750 = vmatpush2.msra.mxu0 %v725
        %6751 = vmatprep.subr.mxu0 0.0
        %6752 = vmatpush2.msra.mxu0 %v724
        %6753 = vmatprep.subr.mxu0 0.0
        %6754 = vmatpush2.msra.mxu0 %v723
        %6755 = vmatprep.subr.mxu0 0.0
        %6756 = vmatpush2.msra.mxu0 %v722
        %6757 = vmatprep.subr.mxu0 0.0
        %6758 = vmatpush2.msra.mxu0 %v721
        %6759 = vmatprep.subr.mxu0 0.0
        %6760 = vmatpush2.msra.mxu0 %v720
        %6761 = vmatprep.subr.mxu0 0.0
        %6762 = vmatpush2.msra.mxu0 %v719
        %6763 = vmatprep.subr.mxu0 0.0
        %6764 = vmatpush2.msra.mxu0 %v718
        %6765 = vmatprep.subr.mxu0 0.0
        %6766 = vmatpush2.msra.mxu0 %v717
        %6767 = vmatprep.subr.mxu0 0.0
        %6768 = vmatpush2.msra.mxu0 %v716
        %6769 = vmatprep.subr.mxu0 0.0
        %6770 = vmatpush2.msra.mxu0 %v715
        %6771 = vmatprep.subr.mxu0 0.0
        %6772 = vmatpush2.msra.mxu0 %v714
        %6773 = vmatprep.mubr.f32.mxu0 %v6702
        %6774 = vmatmul.mubr.f32.gmra.mxu0 %v6701
        %v6775 = vpop.f32.mrf.mxu0
        %v6776 = vadd.f32 0.0, %v6775
        %v6777 = vpop.f32.mrf.mxu0
        %6778 = vmatprep.mubr.f32.mxu0 %v6706
        %6779 = vmatmul.mubr.f32.gmra.mxu0 %v6705
        %v6780 = vpop.f32.mrf.mxu0
        %v6781 = vadd.f32 0.0, %v6780
        %v6782 = vpop.f32.mrf.mxu0
        %6783 = vdwg.mxu0
        %6784 = vmatprep.subr.mxu0 0.0
        %6785 = vmatpush1.msra.mxu0 %v745
        %6786 = vmatprep.subr.mxu0 0.0
        %6787 = vmatpush1.msra.mxu0 %v744
        %6788 = vmatprep.subr.mxu0 0.0
        %6789 = vmatpush1.msra.mxu0 %v743
        %6790 = vmatprep.subr.mxu0 0.0
        %6791 = vmatpush1.msra.mxu0 %v742
        %6792 = vmatprep.subr.mxu0 0.0
        %6793 = vmatpush1.msra.mxu0 %v741
        %6794 = vmatprep.subr.mxu0 0.0
        %6795 = vmatpush1.msra.mxu0 %v740
        %6796 = vmatprep.subr.mxu0 0.0
        %6797 = vmatpush1.msra.mxu0 %v739
        %6798 = vmatprep.subr.mxu0 0.0
        %6799 = vmatpush1.msra.mxu0 %v738
        %6800 = vmatprep.subr.mxu0 0.0
        %6801 = vmatpush1.msra.mxu0 %v737
        %6802 = vmatprep.subr.mxu0 0.0
        %6803 = vmatpush1.msra.mxu0 %v736
        %6804 = vmatprep.subr.mxu0 0.0
        %6805 = vmatpush1.msra.mxu0 %v735
        %6806 = vmatprep.subr.mxu0 0.0
        %6807 = vmatpush1.msra.mxu0 %v734
        %6808 = vmatprep.subr.mxu0 0.0
        %6809 = vmatpush1.msra.mxu0 %v733
        %6810 = vmatprep.subr.mxu0 0.0
        %6811 = vmatpush1.msra.mxu0 %v732
        %6812 = vmatprep.subr.mxu0 0.0
        %6813 = vmatpush1.msra.mxu0 %v731
        %6814 = vmatprep.subr.mxu0 0.0
        %6815 = vmatpush1.msra.mxu0 %v730
        %6816 = vmatprep.subr.mxu0 0.0
        %6817 = vmatpush2.msra.mxu0 %v761
        %6818 = vmatprep.subr.mxu0 0.0
        %6819 = vmatpush2.msra.mxu0 %v760
        %6820 = vmatprep.subr.mxu0 0.0
        %6821 = vmatpush2.msra.mxu0 %v759
        %6822 = vmatprep.subr.mxu0 0.0
        %6823 = vmatpush2.msra.mxu0 %v758
        %6824 = vmatprep.subr.mxu0 0.0
        %6825 = vmatpush2.msra.mxu0 %v757
        %6826 = vmatprep.subr.mxu0 0.0
        %6827 = vmatpush2.msra.mxu0 %v756
        %6828 = vmatprep.subr.mxu0 0.0
        %6829 = vmatpush2.msra.mxu0 %v755
        %6830 = vmatprep.subr.mxu0 0.0
        %6831 = vmatpush2.msra.mxu0 %v754
        %6832 = vmatprep.subr.mxu0 0.0
        %6833 = vmatpush2.msra.mxu0 %v753
        %6834 = vmatprep.subr.mxu0 0.0
        %6835 = vmatpush2.msra.mxu0 %v752
        %6836 = vmatprep.subr.mxu0 0.0
        %6837 = vmatpush2.msra.mxu0 %v751
        %6838 = vmatprep.subr.mxu0 0.0
        %6839 = vmatpush2.msra.mxu0 %v750
        %6840 = vmatprep.subr.mxu0 0.0
        %6841 = vmatpush2.msra.mxu0 %v749
        %6842 = vmatprep.subr.mxu0 0.0
        %6843 = vmatpush2.msra.mxu0 %v748
        %6844 = vmatprep.subr.mxu0 0.0
        %6845 = vmatpush2.msra.mxu0 %v747
        %6846 = vmatprep.subr.mxu0 0.0
        %6847 = vmatpush2.msra.mxu0 %v746
        %6848 = vmatprep.mubr.f32.mxu0 %v6704
        %6849 = vmatmul.mubr.f32.gmra.mxu0 %v6703
        %v6850 = vpop.f32.mrf.mxu0
        %v6851 = vadd.f32 %v6776, %v6850
        %v6852 = vpop.f32.mrf.mxu0
        %6853 = vmatprep.mubr.f32.mxu0 %v6708
        %6854 = vmatmul.mubr.f32.gmra.mxu0 %v6707
        %v6855 = vpop.f32.mrf.mxu0
        %v6856 = vadd.f32 %v6781, %v6855
        %v6857 = vpop.f32.mrf.mxu0
        %6858 = vdwg.mxu0
        %v6859 = vld [vmem:[%s20] sm:$0x3f]
        %v6860 = vld [vmem:[%s3] sm:$0x3f]
        %6862 = vset.pattern.permute.xlu0 9
        %6863 = vperm.xlu0 %6862, %v6860
        %v6864 = vpop.permute.xlu0 %6863
        %v6867 = vsel %vm935, %v6859, 0
        %v6870 = vsel %vm939, %v6856, 0
        %6872 = vmatprep.subr.mxu0 0.0
        %6873 = vmatpush1.msra.mxu0 0.0
        %6874 = vmatprep.subr.mxu0 0.0
        %6875 = vmatpush1.msra.mxu0 0.0
        %6876 = vmatprep.subr.mxu0 0.0
        %6877 = vmatpush1.msra.mxu0 0.0
        %6878 = vmatprep.subr.mxu0 0.0
        %6879 = vmatpush1.msra.mxu0 0.0
        %6880 = vmatprep.subr.mxu0 0.0
        %6881 = vmatpush1.msra.mxu0 0.0
        %6882 = vmatprep.subr.mxu0 0.0
        %6883 = vmatpush1.msra.mxu0 0.0
        %6884 = vmatprep.subr.mxu0 0.0
        %6885 = vmatpush1.msra.mxu0 0.0
        %6886 = vmatprep.subr.mxu0 0.0
        %6887 = vmatpush1.msra.mxu0 0.0
        %6888 = vmatprep.subr.mxu0 0.0
        %6889 = vmatpush1.msra.mxu0 0.0
        %6890 = vmatprep.subr.mxu0 0.0
        %6891 = vmatpush1.msra.mxu0 0.0
        %6892 = vmatprep.subr.mxu0 0.0
        %6893 = vmatpush1.msra.mxu0 0.0
        %6894 = vmatprep.subr.mxu0 0.0
        %6895 = vmatpush1.msra.mxu0 0.0
        %6896 = vmatprep.subr.mxu0 0.0
        %6897 = vmatpush1.msra.mxu0 0.0
        %6898 = vmatprep.subr.mxu0 0.0
        %6899 = vmatpush1.msra.mxu0 0.0
        %6900 = vmatprep.subr.mxu0 0.0
        %6901 = vmatpush1.msra.mxu0 %v6870
        %6902 = vmatprep.subr.mxu0 0.0
        %6903 = vmatpush1.msra.mxu0 %v6851
        %6904 = vmatprep.subr.mxu0 0.0
        %6905 = vmatpush2.msra.mxu0 0.0
        %6906 = vmatprep.subr.mxu0 0.0
        %6907 = vmatpush2.msra.mxu0 0.0
        %6908 = vmatprep.subr.mxu0 0.0
        %6909 = vmatpush2.msra.mxu0 0.0
        %6910 = vmatprep.subr.mxu0 0.0
        %6911 = vmatpush2.msra.mxu0 0.0
        %6912 = vmatprep.subr.mxu0 0.0
        %6913 = vmatpush2.msra.mxu0 0.0
        %6914 = vmatprep.subr.mxu0 0.0
        %6915 = vmatpush2.msra.mxu0 0.0
        %6916 = vmatprep.subr.mxu0 0.0
        %6917 = vmatpush2.msra.mxu0 0.0
        %6918 = vmatprep.subr.mxu0 0.0
        %6919 = vmatpush2.msra.mxu0 0.0
        %6920 = vmatprep.subr.mxu0 0.0
        %6921 = vmatpush2.msra.mxu0 0.0
        %6922 = vmatprep.subr.mxu0 0.0
        %6923 = vmatpush2.msra.mxu0 0.0
        %6924 = vmatprep.subr.mxu0 0.0
        %6925 = vmatpush2.msra.mxu0 0.0
        %6926 = vmatprep.subr.mxu0 0.0
        %6927 = vmatpush2.msra.mxu0 0.0
        %6928 = vmatprep.subr.mxu0 0.0
        %6929 = vmatpush2.msra.mxu0 0.0
        %6930 = vmatprep.subr.mxu0 0.0
        %6931 = vmatpush2.msra.mxu0 0.0
        %6932 = vmatprep.subr.mxu0 0.0
        %6933 = vmatpush2.msra.mxu0 0.0
        %6934 = vmatprep.subr.mxu0 0.0
        %6935 = vmatpush2.msra.mxu0 0.0
        %6936 = vmatprep.mubr.f32.mxu0 0.0
        %6937 = vmatmul.mubr.f32.gmra.mxu0 %v6867
        %v6938 = vpop.f32.mrf.mxu0
        %v6939 = vadd.f32 %v6864, %v6938
        %v6940 = vpop.f32.mrf.mxu0
        %6941 = vdwg.mxu0
        %v6942 = vmul.f32 %v6939, 0.33333334
        %vm6943 = vcmask 62464
        %6944 = vst.msk [vmem:[%s689] sm:$0x3f] %vm6943, %v6942
        %p6945 = scmp.lt.s32.totalorder %s32, 1
        %s6946 = scalar_select %p6945, %s32, 1
        %s6947 = smul.addr %s6946, 8
        %s6948 = scalar_lea.vmem %s21, %s6947
        // Predicated region
        $region128: #{tpu_custom_call.1} parent=122 // pred_check
          %p6949 = pneg %p496
        $region129: #{tpu_custom_call.1} parent=122 // pred_check_branch
          %6951 = sbr.rel (%p6949) target = $region131
        $region130: #{tpu_custom_call.1} parent=122 // pred_region
          _
        $region131: #{tpu_custom_call.1} parent=122 // pred_fallthru
          _
      $region123: #{tpu_custom_call.1} parent=5 // pred_fallthru
        _
      %p6952 = scmp.le.s32.totalorder 2, %s27
      // Predicated region
      $region132: #{tpu_custom_call.1} parent=5 // pred_check
        %p6953 = pneg %p6952
      $region133: #{tpu_custom_call.1} parent=5 // pred_check_branch
        %6955 = sbr.rel (%p6953) target = $region135
      $region134: #{tpu_custom_call.1} parent=5 // pred_region
        %s6956 = ssub.s32 %s27, 2
        // Predicated region
        $region136: #{tpu_custom_call.1} parent=134 // pred_check
          %p6957 = pneg %p502
        $region137: #{tpu_custom_call.1} parent=134 // pred_check_branch
          %6959 = sbr.rel (%p6957) target = $region139
        $region138: #{tpu_custom_call.1} parent=134 // pred_region
          %p6960 = scmp.lt.s32.totalorder %s33, 1
          %s6961 = scalar_select %p6960, %s33, 1
          %s6962 = smul.addr %s6961, 8
          %s6963 = scalar_lea.vmem %s21, %s6962
        $region139: #{tpu_custom_call.1} parent=134 // pred_fallthru
          _
      $region135: #{tpu_custom_call.1} parent=5 // pred_fallthru
        _
    $region6: #{tpu_custom_call.1} parent=1 // loop_footer
      %s31 = sadd.s32 1, %s27
    $region7: #{tpu_custom_call.1} parent=1 // loop_footer_branch
      %26 = sbr.rel target = $region3
    $region8: #{tpu_custom_call.1} parent=1 // loop_exit
      _

</llo_original>
